<compile_context>
chip_gen: v5e
topology: v5e:2x2
jax: 0.10.0
libtpu: 0.0.40
codegen_flags: <defaults>
</compile_context>

<pallas_src>
import functools

import numpy as np
import jax
import jax.numpy as jnp
from jax.experimental import pallas as pl
from jax.experimental.pallas import tpu as pltpu


def mha_kernel(q_ref, k_ref, v_ref,
               wq_ref, bq_ref, wk_ref, bk_ref, wv_ref, bv_ref,
               wo_ref, bo_ref, mt_ref, o_ref,
               *, bt, seq, embed, approx_recip):
    """One grid step = `bt` batch elements, full sequence, full embed dim."""
    wdt = wq_ref.dtype  # MXU input dtype (bf16 on the fast path, f32 for checks)

    q = q_ref[...].astype(wdt)                              # (bt, E)
    # The (bt, S, E) -> (bt*S, E) collapse is a free relabel when S is a
    # multiple of the sublane tile (8 for f32, 16 for bf16); otherwise Mosaic
    # inserts a relayout copy (correct, just slower).
    k2 = k_ref[...].astype(wdt).reshape(bt * seq, embed)    # (bt*S, E)
    v2 = v_ref[...].astype(wdt).reshape(bt * seq, embed)

    # Projections on the MXU with f32 accumulation.  The 1/sqrt(head_dim)
    # scaling is pre-folded into wq / bq by the wrapper.
    qp = jnp.dot(q, wq_ref[...],
                 preferred_element_type=jnp.float32) + bq_ref[...]   # (bt, E)
    kp = jnp.dot(k2, wk_ref[...],
                 preferred_element_type=jnp.float32) + bk_ref[...]   # (bt*S, E)
    vp = jnp.dot(v2, wv_ref[...],
                 preferred_element_type=jnp.float32) + bv_ref[...]   # (bt*S, E)

    # Head-indicator mask mt (H, E): mt[h, e] = 1 iff feature e is in head h.
    mt = mt_ref[...]                                         # (H, E), wdt
    qh = qp.astype(wdt)[:, None, :] * mt[None, :, :]         # (bt, H, E)
    kp3 = kp.astype(wdt).reshape(bt, seq, embed)             # (bt, S, E)
    vp3 = vp.astype(wdt).reshape(bt, seq, embed)

    # scores[b, h, s] = sum_{e in head h} qp[b, e] * kp[b, s, e]   (MXU, f32 acc)
    scores = jnp.einsum('bhe,bse->bhs', qh, kp3,
                        preferred_element_type=jnp.float32)  # (bt, H, S)

    # Softmax over the key axis.
    s_max = jnp.max(scores, axis=-1, keepdims=True)
    p = jnp.exp(scores - s_max)
    denom = jnp.sum(p, axis=-1, keepdims=True)
    if approx_recip:
        w = p * pl.reciprocal(denom, approx=True)            # EUP slot
    else:
        w = p / denom                                        # exact (f32 path)

    # Per-head context on the MXU, then pick each feature's own head.
    ctx_h = jnp.einsum('bhs,bse->bhe', w.astype(wdt), vp3,
                       preferred_element_type=jnp.float32)   # (bt, H, E)
    ctx = jnp.sum(ctx_h * mt.astype(jnp.float32)[None, :, :], axis=1)  # (bt, E)

    out = jnp.dot(ctx.astype(wdt), wo_ref[...],
                  preferred_element_type=jnp.float32) + bo_ref[...]
    o_ref[...] = out.astype(o_ref.dtype)


def _choose_bt(batch, b_tile):
    """Batch tile: MXU-sized, sublane aligned, and >= 2 grid steps if possible."""
    bt = min(b_tile, batch)
    if bt >= batch:
        half = batch // 2
        if half >= 8 and half % 8 == 0:
            return half     # >= 2 grid steps -> both TensorCores on v7x megacore
        return batch
    return max(8, (bt // 8) * 8)  # (bt, E) blocks keep the (8, 128) rule


def _vmem_limit_bytes(default=48 * 1024 * 1024):
    """~80% of physical VMEM (generation aware), never a hard-coded 64 MiB."""
    try:
        cap = int(pltpu.get_tpu_info().vmem_capacity_bytes)
    except Exception:  # hardware-info query unavailable -> safe-on-all-gens default
        return default
    return min(int(cap * 0.8), 112 * 1024 * 1024)


def _mha_pallas(query, key, value, params, *, num_heads, b_tile, weight_dtype):
    B, E = query.shape
    S = key.shape[1]
    H = num_heads
    head_dim = E // H
    scaling = head_dim ** (-0.5)

    wq_t, bq, wk_t, bk, wv_t, bv, wo_t, bo = params

    # Fold the attention scaling into the q projection (free at runtime) and
    # stream the big (E, E) weights in `weight_dtype` (bf16 on the fast path).
    wq_c = (wq_t * scaling).astype(weight_dtype)
    wk_c = wk_t.astype(weight_dtype)
    wv_c = wv_t.astype(weight_dtype)
    wo_c = wo_t.astype(weight_dtype)
    bq_c = (bq * scaling).reshape(1, E).astype(jnp.float32)
    bk_c = bk.reshape(1, E).astype(jnp.float32)
    bv_c = bv.reshape(1, E).astype(jnp.float32)
    bo_c = bo.reshape(1, E).astype(jnp.float32)

    # Head indicator: mt[h, e] = 1 iff feature e belongs to head h (exact in bf16).
    mt = (jnp.arange(H)[:, None] ==
          (jnp.arange(E)[None, :] // head_dim)).astype(weight_dtype)     # (H, E)

    bt = _choose_bt(B, b_tile)
    grid = (pl.cdiv(B, bt),)

    batch2 = lambda b: (b, 0)
    batch3 = lambda b: (b, 0, 0)
    const2 = lambda b: (0, 0)     # constant index_map -> weights fetched once

    approx_recip = np.dtype(weight_dtype) != np.dtype(np.float32)
    kernel = functools.partial(mha_kernel, bt=bt, seq=S, embed=E,
                               approx_recip=approx_recip)

    return pl.pallas_call(
        kernel,
        out_shape=jax.ShapeDtypeStruct((B, E), jnp.float32),
        grid=grid,
        in_specs=[
            pl.BlockSpec((bt, E), batch2),        # query
            pl.BlockSpec((bt, S, E), batch3),     # key   (f32 or bf16)
            pl.BlockSpec((bt, S, E), batch3),     # value (f32 or bf16)
            pl.BlockSpec((E, E), const2),         # Wq^T * scaling
            pl.BlockSpec((1, E), const2),         # bq * scaling
            pl.BlockSpec((E, E), const2),         # Wk^T
            pl.BlockSpec((1, E), const2),         # bk
            pl.BlockSpec((E, E), const2),         # Wv^T
            pl.BlockSpec((1, E), const2),         # bv
            pl.BlockSpec((E, E), const2),         # Wo^T
            pl.BlockSpec((1, E), const2),         # bo
            pl.BlockSpec((H, E), const2),         # head-indicator mask
        ],
        out_specs=pl.BlockSpec((bt, E), batch2),
        compiler_params=pltpu.CompilerParams(
            dimension_semantics=("parallel",),
            vmem_limit_bytes=_vmem_limit_bytes()),
    )(query, key, value, wq_c, bq_c, wk_c, bk_c, wv_c, bv_c, wo_c, bo_c, mt)


def multi_head_attention(query, key, value, params, *, num_heads,
                         b_tile=128, weight_dtype=jnp.bfloat16):
    """query: (B, E), key/value: (B, S, E) (f32 or bf16).  Returns (B, E) f32."""
    return _mha_pallas(query, key, value, params, num_heads=num_heads,
                       b_tile=b_tile, weight_dtype=weight_dtype)


def reference_mha(query, key, value, params, *, num_heads):
    """Pure-JAX replica of the PyTorch forward (eval mode, f32 weights)."""
    wq_t, bq, wk_t, bk, wv_t, bv, wo_t, bo = params
    B, E = query.shape
    S = key.shape[1]
    Dh = E // num_heads
    scaling = Dh ** (-0.5)

    q = query @ wq_t + bq                                       # (B, E)
    k = key @ wk_t + bk                                         # (B, S, E)
    v = value @ wv_t + bv
    qh = q.reshape(B, 1, num_heads, Dh).transpose(0, 2, 1, 3)   # (B, H, 1, Dh)
    kh = k.reshape(B, S, num_heads, Dh).transpose(0, 2, 1, 3)   # (B, H, S, Dh)
    vh = v.reshape(B, S, num_heads, Dh).transpose(0, 2, 1, 3)
    attn = jnp.einsum('bhqd,bhkd->bhqk', qh, kh) * scaling
    w = jax.nn.softmax(attn, axis=-1)
    out = jnp.einsum('bhqk,bhkd->bhqd', w, vh)                  # (B, H, 1, Dh)
    out = out.transpose(0, 2, 1, 3).reshape(B, E)
    return out @ wo_t + bo


def init_params(key, embed_dim):
    """Deterministic nn.Linear-style init; weights returned already transposed."""
    bound = 1.0 / (embed_dim ** 0.5)
    keys = jax.random.split(key, 8)
    params = []
    for i in range(4):
        w = jax.random.uniform(keys[2 * i], (embed_dim, embed_dim),
                               jnp.float32, -bound, bound)      # (out, in)
        b = jax.random.uniform(keys[2 * i + 1], (embed_dim,),
                               jnp.float32, -bound, bound)
        params.extend([w.T, b])                                 # store W^T
    return tuple(params)


if __name__ == "__main__":
    B, S = 64, 16                    # S multiple of 16 -> free reshape in bf16 too
    embed_dim, num_heads = 256, 8    # head_dim = 32; E lane-dense

    root = jax.random.PRNGKey(0)
    k_q, k_k, k_v, k_p = jax.random.split(root, 4)

    query = jax.random.normal(k_q, (B, embed_dim), jnp.float32)
    key = jax.random.normal(k_k, (B, S, embed_dim), jnp.float32)
    value = jax.random.normal(k_v, (B, S, embed_dim), jnp.float32)
    params = init_params(k_p, embed_dim)

    ref = reference_mha(query, key, value, params, num_heads=num_heads)

    # Exact-math path (f32 weights + f32 activations + exact softmax divide):
    # tight check of the kernel math against the reference.
    out_f32 = multi_head_attention(query, key, value, params,
                                   num_heads=num_heads,
                                   weight_dtype=jnp.float32)
    out_f32 = jax.block_until_ready(out_f32)
    assert out_f32.shape == (B, embed_dim)
    assert jnp.allclose(out_f32, ref, rtol=1e-4, atol=1e-4), \
        "f32 kernel mismatch vs reference"

    # Fast path: bf16 weights AND bf16 key/value activations (halved k/v DMA),
    # bf16 attention operands, approx reciprocal; looser tolerance.
    out_bf16 = multi_head_attention(query,
                                    key.astype(jnp.bfloat16),
                                    value.astype(jnp.bfloat16),
                                    params, num_heads=num_heads,
                                    weight_dtype=jnp.bfloat16)
    out_bf16 = jax.block_until_ready(out_bf16)
    assert out_bf16.shape == (B, embed_dim)
    assert jnp.allclose(out_bf16, ref, rtol=3e-2, atol=3e-2), \
        "bf16 kernel mismatch vs reference"

    print("KERNEL_OK")
</pallas_src>

<mosaic_0001>
module attributes {stable_mosaic.version = 11 : i64} {
  func.func @mha_kernel(%arg0: i32, %arg1: memref<32x256xf32, #tpu.memory_space<vmem>>, %arg2: memref<32x16x256xf32, #tpu.memory_space<vmem>>, %arg3: memref<32x16x256xf32, #tpu.memory_space<vmem>>, %arg4: memref<256x256xf32, #tpu.memory_space<vmem>>, %arg5: memref<1x256xf32, #tpu.memory_space<vmem>>, %arg6: memref<256x256xf32, #tpu.memory_space<vmem>>, %arg7: memref<1x256xf32, #tpu.memory_space<vmem>>, %arg8: memref<256x256xf32, #tpu.memory_space<vmem>>, %arg9: memref<1x256xf32, #tpu.memory_space<vmem>>, %arg10: memref<256x256xf32, #tpu.memory_space<vmem>>, %arg11: memref<1x256xf32, #tpu.memory_space<vmem>>, %arg12: memref<8x256xf32, #tpu.memory_space<vmem>>, %arg13: memref<32x256xf32, #tpu.memory_space<vmem>>) attributes {dimension_semantics = [#tpu.dimension_semantics<parallel>], iteration_bounds = array<i64: 2>, scalar_prefetch = 0 : i64, scratch_operands = 0 : i64, tpu.core_type = #tpu.core_type<tc>, window_params = [{transform_indices = @transform_0, window_bounds = array<i64: 32, 256>}, {transform_indices = @transform_1, window_bounds = array<i64: 32, 16, 256>}, {transform_indices = @transform_2, window_bounds = array<i64: 32, 16, 256>}, {pipeline_mode = #tpu.pipeline_mode<synchronous>, transform_indices = @transform_3, window_bounds = array<i64: 256, 256>}, {pipeline_mode = #tpu.pipeline_mode<synchronous>, transform_indices = @transform_4, window_bounds = array<i64: 1, 256>}, {pipeline_mode = #tpu.pipeline_mode<synchronous>, transform_indices = @transform_5, window_bounds = array<i64: 256, 256>}, {pipeline_mode = #tpu.pipeline_mode<synchronous>, transform_indices = @transform_6, window_bounds = array<i64: 1, 256>}, {pipeline_mode = #tpu.pipeline_mode<synchronous>, transform_indices = @transform_7, window_bounds = array<i64: 256, 256>}, {pipeline_mode = #tpu.pipeline_mode<synchronous>, transform_indices = @transform_8, window_bounds = array<i64: 1, 256>}, {pipeline_mode = #tpu.pipeline_mode<synchronous>, transform_indices = @transform_9, window_bounds = array<i64: 256, 256>}, {pipeline_mode = #tpu.pipeline_mode<synchronous>, transform_indices = @transform_10, window_bounds = array<i64: 1, 256>}, {pipeline_mode = #tpu.pipeline_mode<synchronous>, transform_indices = @transform_11, window_bounds = array<i64: 8, 256>}, {transform_indices = @transform_12, window_bounds = array<i64: 32, 256>}]} {
    %c0 = arith.constant 0 : index
    %c0_0 = arith.constant 0 : index
    %0 = vector.load %arg1[%c0, %c0_0] : memref<32x256xf32, #tpu.memory_space<vmem>>, vector<32x256xf32>
    %c0_1 = arith.constant 0 : index
    %c0_2 = arith.constant 0 : index
    %c0_3 = arith.constant 0 : index
    %1 = vector.load %arg2[%c0_1, %c0_2, %c0_3] : memref<32x16x256xf32, #tpu.memory_space<vmem>>, vector<32x16x256xf32>
    %2 = vector.shape_cast %1 : vector<32x16x256xf32> to vector<512x256xf32>
    %c0_4 = arith.constant 0 : index
    %c0_5 = arith.constant 0 : index
    %c0_6 = arith.constant 0 : index
    %3 = vector.load %arg3[%c0_4, %c0_5, %c0_6] : memref<32x16x256xf32, #tpu.memory_space<vmem>>, vector<32x16x256xf32>
    %4 = vector.shape_cast %3 : vector<32x16x256xf32> to vector<512x256xf32>
    %c0_7 = arith.constant 0 : index
    %c0_8 = arith.constant 0 : index
    %5 = vector.load %arg4[%c0_7, %c0_8] : memref<256x256xf32, #tpu.memory_space<vmem>>, vector<256x256xf32>
    %cst = arith.constant dense<0.000000e+00> : vector<32x256xf32>
    %6 = tpu.matmul %0, %5, %cst {dimension_numbers = #tpu.dot_dimension_numbers<[1], [0], [0], [1], [0, 0, 1, 1], [], []>} : vector<32x256xf32>, vector<256x256xf32>, vector<32x256xf32> -> vector<32x256xf32>
    %c0_9 = arith.constant 0 : index
    %c0_10 = arith.constant 0 : index
    %7 = vector.load %arg5[%c0_9, %c0_10] : memref<1x256xf32, #tpu.memory_space<vmem>>, vector<1x256xf32>
    %8 = vector.broadcast %7 : vector<1x256xf32> to vector<32x256xf32>
    %9 = arith.addf %6, %8 : vector<32x256xf32>
    %c0_11 = arith.constant 0 : index
    %c0_12 = arith.constant 0 : index
    %10 = vector.load %arg6[%c0_11, %c0_12] : memref<256x256xf32, #tpu.memory_space<vmem>>, vector<256x256xf32>
    %cst_13 = arith.constant dense<0.000000e+00> : vector<512x256xf32>
    %11 = tpu.matmul %2, %10, %cst_13 {dimension_numbers = #tpu.dot_dimension_numbers<[1], [0], [0], [1], [0, 0, 1, 1], [], []>} : vector<512x256xf32>, vector<256x256xf32>, vector<512x256xf32> -> vector<512x256xf32>
    %c0_14 = arith.constant 0 : index
    %c0_15 = arith.constant 0 : index
    %12 = vector.load %arg7[%c0_14, %c0_15] : memref<1x256xf32, #tpu.memory_space<vmem>>, vector<1x256xf32>
    %13 = vector.broadcast %12 : vector<1x256xf32> to vector<512x256xf32>
    %14 = arith.addf %11, %13 : vector<512x256xf32>
    %c0_16 = arith.constant 0 : index
    %c0_17 = arith.constant 0 : index
    %15 = vector.load %arg8[%c0_16, %c0_17] : memref<256x256xf32, #tpu.memory_space<vmem>>, vector<256x256xf32>
    %cst_18 = arith.constant dense<0.000000e+00> : vector<512x256xf32>
    %16 = tpu.matmul %4, %15, %cst_18 {dimension_numbers = #tpu.dot_dimension_numbers<[1], [0], [0], [1], [0, 0, 1, 1], [], []>} : vector<512x256xf32>, vector<256x256xf32>, vector<512x256xf32> -> vector<512x256xf32>
    %c0_19 = arith.constant 0 : index
    %c0_20 = arith.constant 0 : index
    %17 = vector.load %arg9[%c0_19, %c0_20] : memref<1x256xf32, #tpu.memory_space<vmem>>, vector<1x256xf32>
    %18 = vector.broadcast %17 : vector<1x256xf32> to vector<512x256xf32>
    %19 = arith.addf %16, %18 : vector<512x256xf32>
    %c0_21 = arith.constant 0 : index
    %c0_22 = arith.constant 0 : index
    %20 = vector.load %arg12[%c0_21, %c0_22] : memref<8x256xf32, #tpu.memory_space<vmem>>, vector<8x256xf32>
    %21 = vector.shape_cast %9 : vector<32x256xf32> to vector<32x1x256xf32>
    %22 = vector.shape_cast %20 : vector<8x256xf32> to vector<1x8x256xf32>
    %23 = vector.broadcast %21 : vector<32x1x256xf32> to vector<32x8x256xf32>
    %24 = vector.broadcast %22 : vector<1x8x256xf32> to vector<32x8x256xf32>
    %25 = arith.mulf %23, %24 : vector<32x8x256xf32>
    %26 = vector.shape_cast %14 : vector<512x256xf32> to vector<32x16x256xf32>
    %27 = vector.shape_cast %19 : vector<512x256xf32> to vector<32x16x256xf32>
    "tpu.trace_start"() <{level = 10 : i32, message = "bhe,bse->bhs"}> : () -> ()
    %cst_23 = arith.constant dense<0.000000e+00> : vector<32x8x16xf32>
    %28 = tpu.matmul %25, %26, %cst_23 {dimension_numbers = #tpu.dot_dimension_numbers<[2], [2], [1], [1], [0, 0, 0, 1, 1, 1], [0], [0]>} : vector<32x8x256xf32>, vector<32x16x256xf32>, vector<32x8x16xf32> -> vector<32x8x16xf32>
    "tpu.trace_stop"() : () -> ()
    %cst_24 = arith.constant dense<0xFF800000> : vector<32x8xf32>
    %29 = vector.multi_reduction <maximumf>, %28, %cst_24 [2] : vector<32x8x16xf32> to vector<32x8xf32>
    %30 = vector.shape_cast %29 : vector<32x8xf32> to vector<32x8x1xf32>
    %31 = vector.broadcast %30 : vector<32x8x1xf32> to vector<32x8x16xf32>
    %32 = arith.subf %28, %31 : vector<32x8x16xf32>
    %33 = math.exp %32 : vector<32x8x16xf32>
    %cst_25 = arith.constant dense<0.000000e+00> : vector<32x8xf32>
    %34 = vector.multi_reduction <add>, %33, %cst_25 [2] : vector<32x8x16xf32> to vector<32x8xf32>
    %35 = vector.shape_cast %34 : vector<32x8xf32> to vector<32x8x1xf32>
    %36 = vector.broadcast %35 : vector<32x8x1xf32> to vector<32x8x16xf32>
    %37 = arith.divf %33, %36 : vector<32x8x16xf32>
    "tpu.trace_start"() <{level = 10 : i32, message = "bhs,bse->bhe"}> : () -> ()
    %cst_26 = arith.constant dense<0.000000e+00> : vector<32x8x256xf32>
    %38 = tpu.matmul %37, %27, %cst_26 {dimension_numbers = #tpu.dot_dimension_numbers<[2], [1], [1], [2], [0, 0, 0, 1, 1, 2], [0], [0]>} : vector<32x8x16xf32>, vector<32x16x256xf32>, vector<32x8x256xf32> -> vector<32x8x256xf32>
    "tpu.trace_stop"() : () -> ()
    %39 = vector.shape_cast %20 : vector<8x256xf32> to vector<1x8x256xf32>
    %40 = vector.broadcast %39 : vector<1x8x256xf32> to vector<32x8x256xf32>
    %41 = arith.mulf %38, %40 : vector<32x8x256xf32>
    %cst_27 = arith.constant dense<0.000000e+00> : vector<32x256xf32>
    %42 = vector.multi_reduction <add>, %41, %cst_27 [1] : vector<32x8x256xf32> to vector<32x256xf32>
    %c0_28 = arith.constant 0 : index
    %c0_29 = arith.constant 0 : index
    %43 = vector.load %arg10[%c0_28, %c0_29] : memref<256x256xf32, #tpu.memory_space<vmem>>, vector<256x256xf32>
    %cst_30 = arith.constant dense<0.000000e+00> : vector<32x256xf32>
    %44 = tpu.matmul %42, %43, %cst_30 {dimension_numbers = #tpu.dot_dimension_numbers<[1], [0], [0], [1], [0, 0, 1, 1], [], []>} : vector<32x256xf32>, vector<256x256xf32>, vector<32x256xf32> -> vector<32x256xf32>
    %c0_31 = arith.constant 0 : index
    %c0_32 = arith.constant 0 : index
    %45 = vector.load %arg11[%c0_31, %c0_32] : memref<1x256xf32, #tpu.memory_space<vmem>>, vector<1x256xf32>
    %46 = vector.broadcast %45 : vector<1x256xf32> to vector<32x256xf32>
    %47 = arith.addf %44, %46 : vector<32x256xf32>
    %c0_33 = arith.constant 0 : index
    %c0_34 = arith.constant 0 : index
    %48 = vector.load %arg13[%c0_33, %c0_34] : memref<32x256xf32, #tpu.memory_space<vmem>>, vector<32x256xf32>
    tpu.vector_store %arg13[%c0_33, %c0_34], %47 {strides = array<i32>} : memref<32x256xf32, #tpu.memory_space<vmem>>, vector<32x256xf32>,
    return
  }
  func.func @transform_0(%arg0: i32) -> (i32, i32) {
    %c0_i32 = arith.constant 0 : i32
    %c0_i32_0 = arith.constant 0 : i32
    return %arg0, %c0_i32 : i32, i32
  }
  func.func @transform_1(%arg0: i32) -> (i32, i32, i32) {
    %c0_i32 = arith.constant 0 : i32
    %c0_i32_0 = arith.constant 0 : i32
    %c0_i32_1 = arith.constant 0 : i32
    return %arg0, %c0_i32, %c0_i32_0 : i32, i32, i32
  }
  func.func @transform_2(%arg0: i32) -> (i32, i32, i32) {
    %c0_i32 = arith.constant 0 : i32
    %c0_i32_0 = arith.constant 0 : i32
    %c0_i32_1 = arith.constant 0 : i32
    return %arg0, %c0_i32, %c0_i32_0 : i32, i32, i32
  }
  func.func @transform_3(%arg0: i32) -> (i32, i32) {
    %c0_i32 = arith.constant 0 : i32
    %c0_i32_0 = arith.constant 0 : i32
    %c0_i32_1 = arith.constant 0 : i32
    return %c0_i32, %c0_i32_0 : i32, i32
  }
  func.func @transform_4(%arg0: i32) -> (i32, i32) {
    %c0_i32 = arith.constant 0 : i32
    %c0_i32_0 = arith.constant 0 : i32
    %c0_i32_1 = arith.constant 0 : i32
    return %c0_i32, %c0_i32_0 : i32, i32
  }
  func.func @transform_5(%arg0: i32) -> (i32, i32) {
    %c0_i32 = arith.constant 0 : i32
    %c0_i32_0 = arith.constant 0 : i32
    %c0_i32_1 = arith.constant 0 : i32
    return %c0_i32, %c0_i32_0 : i32, i32
  }
  func.func @transform_6(%arg0: i32) -> (i32, i32) {
    %c0_i32 = arith.constant 0 : i32
    %c0_i32_0 = arith.constant 0 : i32
    %c0_i32_1 = arith.constant 0 : i32
    return %c0_i32, %c0_i32_0 : i32, i32
  }
  func.func @transform_7(%arg0: i32) -> (i32, i32) {
    %c0_i32 = arith.constant 0 : i32
    %c0_i32_0 = arith.constant 0 : i32
    %c0_i32_1 = arith.constant 0 : i32
    return %c0_i32, %c0_i32_0 : i32, i32
  }
  func.func @transform_8(%arg0: i32) -> (i32, i32) {
    %c0_i32 = arith.constant 0 : i32
    %c0_i32_0 = arith.constant 0 : i32
    %c0_i32_1 = arith.constant 0 : i32
    return %c0_i32, %c0_i32_0 : i32, i32
  }
  func.func @transform_9(%arg0: i32) -> (i32, i32) {
    %c0_i32 = arith.constant 0 : i32
    %c0_i32_0 = arith.constant 0 : i32
    %c0_i32_1 = arith.constant 0 : i32
    return %c0_i32, %c0_i32_0 : i32, i32
  }
  func.func @transform_10(%arg0: i32) -> (i32, i32) {
    %c0_i32 = arith.constant 0 : i32
    %c0_i32_0 = arith.constant 0 : i32
    %c0_i32_1 = arith.constant 0 : i32
    return %c0_i32, %c0_i32_0 : i32, i32
  }
  func.func @transform_11(%arg0: i32) -> (i32, i32) {
    %c0_i32 = arith.constant 0 : i32
    %c0_i32_0 = arith.constant 0 : i32
    %c0_i32_1 = arith.constant 0 : i32
    return %c0_i32, %c0_i32_0 : i32, i32
  }
  func.func @transform_12(%arg0: i32) -> (i32, i32) {
    %c0_i32 = arith.constant 0 : i32
    %c0_i32_0 = arith.constant 0 : i32
    return %arg0, %c0_i32 : i32, i32
  }
}

</mosaic_0001>

<llo_original>
// kernel: tpu_custom_call.1
$region0: #{tpu_custom_call.1}
  #allocation0 [shape = 'u32[]', space=smem, size = 0x4, offset = 0x4, fixed_abs, tag = 'smem constant byte address 0x4 - core index']
  #allocation1 [shape = 'u32[72,128]{1,0:T(1,128)}', space=vmem, size = 0x9000, scoped, tag = 'internal scratch']
  %s0 = inlined_call_operand.hbm [shape: f32[64,256], index: 0, kind: input, shape index: {}]
  %s1 = inlined_call_operand.hbm [shape: f32[64,16,256], index: 1, kind: input, shape index: {}]
  %s2 = inlined_call_operand.hbm [shape: f32[64,16,256], index: 2, kind: input, shape index: {}]
  %s3 = inlined_call_operand.hbm [shape: f32[256,256], index: 3, kind: input, shape index: {}]
  %s4 = inlined_call_operand.vmem [shape: f32[1,256], index: 4, kind: input, shape index: {}]
  %s5 = inlined_call_operand.hbm [shape: f32[256,256], index: 5, kind: input, shape index: {}]
  %s6 = inlined_call_operand.vmem [shape: f32[1,256], index: 6, kind: input, shape index: {}]
  %s7 = inlined_call_operand.hbm [shape: f32[256,256], index: 7, kind: input, shape index: {}]
  %s8 = inlined_call_operand.vmem [shape: f32[1,256], index: 8, kind: input, shape index: {}]
  %s9 = inlined_call_operand.hbm [shape: f32[256,256], index: 9, kind: input, shape index: {}]
  %s10 = inlined_call_operand.vmem [shape: f32[1,256], index: 10, kind: input, shape index: {}]
  %s11 = inlined_call_operand.hbm [shape: f32[8,256], index: 11, kind: input, shape index: {}]
  %s12 = inlined_call_operand.hbm [shape: f32[64,256], index: 12, kind: output, shape index: {}]
  %s13 = sld [smem:[#allocation0]]
  $region113: #{tpu_custom_call.1} parent=0
    _
  %s15 = ssub.s32 1, %s13
  %s16 = scalar_select 0, %s15, %s13
  $region1: #{tpu_custom_call.1} parent=0
    #allocation2 [shape = 'u8[65536]{0}', space=vmem, size = 0x10000, scoped, tag = 'input window, operand 0']
    #allocation3 [shape = 's32[2]{0}', space=sflag, size = 0x8, scoped, tag = 'scoped memory for tpu_custom_call.1']
    #allocation4 [shape = 's32[2]{0}', space=sflag, size = 0x8, scoped, tag = 'scoped memory for tpu_custom_call.1']
    #allocation5 [shape = 'u8[1048576]{0}', space=vmem, size = 0x100000, scoped, tag = 'input window, operand 1']
    #allocation6 [shape = 's32[2]{0}', space=sflag, size = 0x8, scoped, tag = 'scoped memory for tpu_custom_call.1']
    #allocation7 [shape = 'u8[1048576]{0}', space=vmem, size = 0x100000, scoped, tag = 'input window, operand 2']
    #allocation8 [shape = 'u8[262144]{0}', space=vmem, size = 0x40000, scoped, tag = 'input window, operand 3, single buffered']
    #allocation9 [shape = 's32[1]{0}', space=sflag, size = 0x4, scoped, tag = 'scoped memory for tpu_custom_call.1']
    #allocation10 [shape = 'u8[262144]{0}', space=vmem, size = 0x40000, scoped, tag = 'input window, operand 5, single buffered']
    #allocation11 [shape = 'u8[262144]{0}', space=vmem, size = 0x40000, scoped, tag = 'input window, operand 7, single buffered']
    #allocation12 [shape = 's32[1]{0}', space=sflag, size = 0x4, scoped, tag = 'scoped memory for tpu_custom_call.1']
    #allocation13 [shape = 'u8[262144]{0}', space=vmem, size = 0x40000, scoped, tag = 'input window, operand 9, single buffered']
    #allocation14 [shape = 'u8[8192]{0}', space=vmem, size = 0x2000, scoped, tag = 'input window, operand 11, single buffered']
    #allocation15 [shape = 's32[1]{0}', space=sflag, size = 0x4, scoped, tag = 'scoped memory for tpu_custom_call.1']
    #allocation16 [shape = 'u8[65536]{0}', space=vmem, size = 0x10000, scoped, tag = 'output window, operand 0']
    %17 = vsyncpa [#allocation3], 0
    %s18 = scalar_lea.sflag [#allocation3], 1
    %19 = vsyncpa %s18, 0
    %20 = vsyncpa [#allocation6], 0
    %s21 = scalar_lea.sflag [#allocation6], 1
    %22 = vsyncpa %s21, 0
    %23 = vsyncpa [#allocation9], 0
    %24 = vsyncpa [#allocation12], 0
    %25 = vsyncpa [#allocation15], 0
    %26 = vsyncpa [#allocation4], 0
    %s27 = scalar_lea.sflag [#allocation4], 1
    %28 = vsyncpa %s27, 0
    loop: start=0, step=1, limit=4
    $region2: #{tpu_custom_call.1} parent=1 // loop_pre_header
      _
    $region3: #{tpu_custom_call.1} parent=1 // loop_header
      %s30 = sphi 0, %s34
      %p31 = scmp.ge.s32.totalorder %s30, 4
      %s40 = sphi 0, %s42
      %s43 = sphi 0, %s40
      %s44 = sphi 0, %s43
      %s60 = sphi 0, %s44
      %s66 = sphi 0, %s68
      %s69 = sphi 0, %s66
      %s70 = sphi 0, %s69
      %s86 = sphi 0, %s70
      %s92 = sphi 0, %s94
      %s95 = sphi 0, %s92
      %s96 = sphi 0, %s95
      %s112 = sphi 0, %s96
      %s116 = sphi 0, %s116
      %s118 = sphi 0, %s116
      %s119 = sphi 0, %s118
      %s133 = sphi 0, %s119
      %s137 = sphi 0, %s137
      %s139 = sphi 0, %s137
      %s140 = sphi 0, %s139
      %s154 = sphi 0, %s140
      %s158 = sphi 0, %s158
      %s160 = sphi 0, %s158
      %s161 = sphi 0, %s160
      %s175 = sphi 0, %s161
      %s179 = sphi 0, %s179
      %s181 = sphi 0, %s179
      %s182 = sphi 0, %s181
      %s196 = sphi 0, %s182
      %s200 = sphi 0, %s200
      %s202 = sphi 0, %s200
      %s203 = sphi 0, %s202
      %s217 = sphi 0, %s203
      %s221 = sphi 0, %s221
      %s223 = sphi 0, %s221
      %s224 = sphi 0, %s223
      %s238 = sphi 0, %s224
      %s242 = sphi 0, %s242
      %s244 = sphi 0, %s242
      %s245 = sphi 0, %s244
      %s259 = sphi 0, %s245
      %s263 = sphi 0, %s263
      %s265 = sphi 0, %s263
      %s266 = sphi 0, %s265
      %s280 = sphi 0, %s266
      %s284 = sphi 0, %s284
      %s286 = sphi 0, %s284
      %s287 = sphi 0, %s286
      %s301 = sphi 0, %s287
      %s307 = sphi 0, %s309
      %s310 = sphi 0, %s307
      %s311 = sphi 0, %s310
      %s327 = sphi 0, %s311
    $region4: #{tpu_custom_call.1} parent=1 // loop_header_branch
      %33 = sbr.rel (%p31) target = $region8
    $region5: #{tpu_custom_call.1} parent=1 // loop_body
      %s35 = ssub.s32 %s30, 1
      %s36 = ssub.s32 %s30, 2
      %s37 = sadd.s32 %s30, 1
      %s38 = ssub.s32 %s30, %s37
      %p39 = scmp.eq.s32.totalorder %s38, 0
      %s41 = sadd.s32 %s40, 1
      %s42 = scalar_select %p39, %s40, %s41
      %p45 = pneg %p39
      %p46 = scmp.eq.s32.totalorder %s30, 1
      %p47 = por %p45, %p46
      %p48 = scmp.ne.s32.totalorder %s40, %s43
      %p49 = scmp.eq.s32.totalorder %s30, 0
      %p50 = por %p48, %p49
      %p51 = scmp.ne.s32.totalorder %s40, %s43
      %p52 = scmp.eq.s32.totalorder %s35, 1
      %p53 = por %p51, %p52
      %p54 = scmp.ne.s32.totalorder %s43, %s44
      %p55 = scmp.eq.s32.totalorder %s35, 0
      %p56 = por %p54, %p55
      %p57 = scmp.ne.s32.totalorder %s43, %s44
      %p58 = scmp.eq.s32.totalorder %s36, 1
      %p59 = por %p57, %p58
      %p61 = scmp.ne.s32.totalorder %s44, %s60
      %p62 = scmp.eq.s32.totalorder %s36, 0
      %p63 = por %p61, %p62
      %s64 = ssub.s32 %s30, %s37
      %p65 = scmp.eq.s32.totalorder %s64, 0
      %s67 = sadd.s32 %s66, 1
      %s68 = scalar_select %p65, %s66, %s67
      %p71 = pneg %p65
      %p72 = scmp.eq.s32.totalorder %s30, 1
      %p73 = por %p71, %p72
      %p74 = scmp.ne.s32.totalorder %s66, %s69
      %p75 = scmp.eq.s32.totalorder %s30, 0
      %p76 = por %p74, %p75
      %p77 = scmp.ne.s32.totalorder %s66, %s69
      %p78 = scmp.eq.s32.totalorder %s35, 1
      %p79 = por %p77, %p78
      %p80 = scmp.ne.s32.totalorder %s69, %s70
      %p81 = scmp.eq.s32.totalorder %s35, 0
      %p82 = por %p80, %p81
      %p83 = scmp.ne.s32.totalorder %s69, %s70
      %p84 = scmp.eq.s32.totalorder %s36, 1
      %p85 = por %p83, %p84
      %p87 = scmp.ne.s32.totalorder %s70, %s86
      %p88 = scmp.eq.s32.totalorder %s36, 0
      %p89 = por %p87, %p88
      %s90 = ssub.s32 %s30, %s37
      %p91 = scmp.eq.s32.totalorder %s90, 0
      %s93 = sadd.s32 %s92, 1
      %s94 = scalar_select %p91, %s92, %s93
      %p97 = pneg %p91
      %p98 = scmp.eq.s32.totalorder %s30, 1
      %p99 = por %p97, %p98
      %p100 = scmp.ne.s32.totalorder %s92, %s95
      %p101 = scmp.eq.s32.totalorder %s30, 0
      %p102 = por %p100, %p101
      %p103 = scmp.ne.s32.totalorder %s92, %s95
      %p104 = scmp.eq.s32.totalorder %s35, 1
      %p105 = por %p103, %p104
      %p106 = scmp.ne.s32.totalorder %s95, %s96
      %p107 = scmp.eq.s32.totalorder %s35, 0
      %p108 = por %p106, %p107
      %p109 = scmp.ne.s32.totalorder %s95, %s96
      %p110 = scmp.eq.s32.totalorder %s36, 1
      %p111 = por %p109, %p110
      %p113 = scmp.ne.s32.totalorder %s96, %s112
      %p114 = scmp.eq.s32.totalorder %s36, 0
      %p115 = por %p113, %p114
      %s117 = sadd.s32 %s116, 1
      %p120 = scmp.eq.s32.totalorder %s30, 1
      %p121 = scmp.ne.s32.totalorder %s116, %s118
      %p122 = scmp.eq.s32.totalorder %s30, 0
      %p123 = por %p121, %p122
      %p124 = scmp.ne.s32.totalorder %s116, %s118
      %p125 = scmp.eq.s32.totalorder %s35, 1
      %p126 = por %p124, %p125
      %p127 = scmp.ne.s32.totalorder %s118, %s119
      %p128 = scmp.eq.s32.totalorder %s35, 0
      %p129 = por %p127, %p128
      %p130 = scmp.ne.s32.totalorder %s118, %s119
      %p131 = scmp.eq.s32.totalorder %s36, 1
      %p132 = por %p130, %p131
      %p134 = scmp.ne.s32.totalorder %s119, %s133
      %p135 = scmp.eq.s32.totalorder %s36, 0
      %p136 = por %p134, %p135
      %s138 = sadd.s32 %s137, 1
      %p141 = scmp.eq.s32.totalorder %s30, 1
      %p142 = scmp.ne.s32.totalorder %s137, %s139
      %p143 = scmp.eq.s32.totalorder %s30, 0
      %p144 = por %p142, %p143
      %p145 = scmp.ne.s32.totalorder %s137, %s139
      %p146 = scmp.eq.s32.totalorder %s35, 1
      %p147 = por %p145, %p146
      %p148 = scmp.ne.s32.totalorder %s139, %s140
      %p149 = scmp.eq.s32.totalorder %s35, 0
      %p150 = por %p148, %p149
      %p151 = scmp.ne.s32.totalorder %s139, %s140
      %p152 = scmp.eq.s32.totalorder %s36, 1
      %p153 = por %p151, %p152
      %p155 = scmp.ne.s32.totalorder %s140, %s154
      %p156 = scmp.eq.s32.totalorder %s36, 0
      %p157 = por %p155, %p156
      %s159 = sadd.s32 %s158, 1
      %p162 = scmp.eq.s32.totalorder %s30, 1
      %p163 = scmp.ne.s32.totalorder %s158, %s160
      %p164 = scmp.eq.s32.totalorder %s30, 0
      %p165 = por %p163, %p164
      %p166 = scmp.ne.s32.totalorder %s158, %s160
      %p167 = scmp.eq.s32.totalorder %s35, 1
      %p168 = por %p166, %p167
      %p169 = scmp.ne.s32.totalorder %s160, %s161
      %p170 = scmp.eq.s32.totalorder %s35, 0
      %p171 = por %p169, %p170
      %p172 = scmp.ne.s32.totalorder %s160, %s161
      %p173 = scmp.eq.s32.totalorder %s36, 1
      %p174 = por %p172, %p173
      %p176 = scmp.ne.s32.totalorder %s161, %s175
      %p177 = scmp.eq.s32.totalorder %s36, 0
      %p178 = por %p176, %p177
      %s180 = sadd.s32 %s179, 1
      %p183 = scmp.eq.s32.totalorder %s30, 1
      %p184 = scmp.ne.s32.totalorder %s179, %s181
      %p185 = scmp.eq.s32.totalorder %s30, 0
      %p186 = por %p184, %p185
      %p187 = scmp.ne.s32.totalorder %s179, %s181
      %p188 = scmp.eq.s32.totalorder %s35, 1
      %p189 = por %p187, %p188
      %p190 = scmp.ne.s32.totalorder %s181, %s182
      %p191 = scmp.eq.s32.totalorder %s35, 0
      %p192 = por %p190, %p191
      %p193 = scmp.ne.s32.totalorder %s181, %s182
      %p194 = scmp.eq.s32.totalorder %s36, 1
      %p195 = por %p193, %p194
      %p197 = scmp.ne.s32.totalorder %s182, %s196
      %p198 = scmp.eq.s32.totalorder %s36, 0
      %p199 = por %p197, %p198
      %s201 = sadd.s32 %s200, 1
      %p204 = scmp.eq.s32.totalorder %s30, 1
      %p205 = scmp.ne.s32.totalorder %s200, %s202
      %p206 = scmp.eq.s32.totalorder %s30, 0
      %p207 = por %p205, %p206
      %p208 = scmp.ne.s32.totalorder %s200, %s202
      %p209 = scmp.eq.s32.totalorder %s35, 1
      %p210 = por %p208, %p209
      %p211 = scmp.ne.s32.totalorder %s202, %s203
      %p212 = scmp.eq.s32.totalorder %s35, 0
      %p213 = por %p211, %p212
      %p214 = scmp.ne.s32.totalorder %s202, %s203
      %p215 = scmp.eq.s32.totalorder %s36, 1
      %p216 = por %p214, %p215
      %p218 = scmp.ne.s32.totalorder %s203, %s217
      %p219 = scmp.eq.s32.totalorder %s36, 0
      %p220 = por %p218, %p219
      %s222 = sadd.s32 %s221, 1
      %p225 = scmp.eq.s32.totalorder %s30, 1
      %p226 = scmp.ne.s32.totalorder %s221, %s223
      %p227 = scmp.eq.s32.totalorder %s30, 0
      %p228 = por %p226, %p227
      %p229 = scmp.ne.s32.totalorder %s221, %s223
      %p230 = scmp.eq.s32.totalorder %s35, 1
      %p231 = por %p229, %p230
      %p232 = scmp.ne.s32.totalorder %s223, %s224
      %p233 = scmp.eq.s32.totalorder %s35, 0
      %p234 = por %p232, %p233
      %p235 = scmp.ne.s32.totalorder %s223, %s224
      %p236 = scmp.eq.s32.totalorder %s36, 1
      %p237 = por %p235, %p236
      %p239 = scmp.ne.s32.totalorder %s224, %s238
      %p240 = scmp.eq.s32.totalorder %s36, 0
      %p241 = por %p239, %p240
      %s243 = sadd.s32 %s242, 1
      %p246 = scmp.eq.s32.totalorder %s30, 1
      %p247 = scmp.ne.s32.totalorder %s242, %s244
      %p248 = scmp.eq.s32.totalorder %s30, 0
      %p249 = por %p247, %p248
      %p250 = scmp.ne.s32.totalorder %s242, %s244
      %p251 = scmp.eq.s32.totalorder %s35, 1
      %p252 = por %p250, %p251
      %p253 = scmp.ne.s32.totalorder %s244, %s245
      %p254 = scmp.eq.s32.totalorder %s35, 0
      %p255 = por %p253, %p254
      %p256 = scmp.ne.s32.totalorder %s244, %s245
      %p257 = scmp.eq.s32.totalorder %s36, 1
      %p258 = por %p256, %p257
      %p260 = scmp.ne.s32.totalorder %s245, %s259
      %p261 = scmp.eq.s32.totalorder %s36, 0
      %p262 = por %p260, %p261
      %s264 = sadd.s32 %s263, 1
      %p267 = scmp.eq.s32.totalorder %s30, 1
      %p268 = scmp.ne.s32.totalorder %s263, %s265
      %p269 = scmp.eq.s32.totalorder %s30, 0
      %p270 = por %p268, %p269
      %p271 = scmp.ne.s32.totalorder %s263, %s265
      %p272 = scmp.eq.s32.totalorder %s35, 1
      %p273 = por %p271, %p272
      %p274 = scmp.ne.s32.totalorder %s265, %s266
      %p275 = scmp.eq.s32.totalorder %s35, 0
      %p276 = por %p274, %p275
      %p277 = scmp.ne.s32.totalorder %s265, %s266
      %p278 = scmp.eq.s32.totalorder %s36, 1
      %p279 = por %p277, %p278
      %p281 = scmp.ne.s32.totalorder %s266, %s280
      %p282 = scmp.eq.s32.totalorder %s36, 0
      %p283 = por %p281, %p282
      %s285 = sadd.s32 %s284, 1
      %p288 = scmp.eq.s32.totalorder %s30, 1
      %p289 = scmp.ne.s32.totalorder %s284, %s286
      %p290 = scmp.eq.s32.totalorder %s30, 0
      %p291 = por %p289, %p290
      %p292 = scmp.ne.s32.totalorder %s284, %s286
      %p293 = scmp.eq.s32.totalorder %s35, 1
      %p294 = por %p292, %p293
      %p295 = scmp.ne.s32.totalorder %s286, %s287
      %p296 = scmp.eq.s32.totalorder %s35, 0
      %p297 = por %p295, %p296
      %p298 = scmp.ne.s32.totalorder %s286, %s287
      %p299 = scmp.eq.s32.totalorder %s36, 1
      %p300 = por %p298, %p299
      %p302 = scmp.ne.s32.totalorder %s287, %s301
      %p303 = scmp.eq.s32.totalorder %s36, 0
      %p304 = por %p302, %p303
      %s305 = ssub.s32 %s30, %s37
      %p306 = scmp.eq.s32.totalorder %s305, 0
      %s308 = sadd.s32 %s307, 1
      %s309 = scalar_select %p306, %s307, %s308
      %p312 = pneg %p306
      %p313 = scmp.eq.s32.totalorder %s30, 1
      %p314 = por %p312, %p313
      %p315 = scmp.ne.s32.totalorder %s307, %s310
      %p316 = scmp.eq.s32.totalorder %s30, 0
      %p317 = por %p315, %p316
      %p318 = scmp.ne.s32.totalorder %s307, %s310
      %p319 = scmp.eq.s32.totalorder %s35, 1
      %p320 = por %p318, %p319
      %p321 = scmp.ne.s32.totalorder %s310, %s311
      %p322 = scmp.eq.s32.totalorder %s35, 0
      %p323 = por %p321, %p322
      %p324 = scmp.ne.s32.totalorder %s310, %s311
      %p325 = scmp.eq.s32.totalorder %s36, 1
      %p326 = por %p324, %p325
      %p328 = scmp.ne.s32.totalorder %s311, %s327
      %p329 = scmp.eq.s32.totalorder %s36, 0
      %p330 = por %p328, %p329
      %p331 = scmp.le.s32.totalorder 1, %s30
      %p332 = scmp.lt.s32.totalorder %s30, 3
      %p333 = pnand %p331, %p332
      %p334 = pneg %p333
      // Predicated region
      $region9: #{tpu_custom_call.1} parent=5 // pred_check
        _
      $region10: #{tpu_custom_call.1} parent=5 // pred_check_branch
        %336 = sbr.rel (%p333) target = $region12
      $region11: #{tpu_custom_call.1} parent=5 // pred_region
        %s337 = ssub.s32 %s30, 1
        // Predicated region
        $region13: #{tpu_custom_call.1} parent=11 // pred_check
          %p338 = pneg %p129
        $region14: #{tpu_custom_call.1} parent=11 // pred_check_branch
          %340 = sbr.rel (%p338) target = $region16
        $region15: #{tpu_custom_call.1} parent=11 // pred_region
          %342 = vsyncadd [#allocation9], 0
          %s343 = sshll.u32 %s3, 4
          %s344 = int_to_ptr.hbm [resolvable:$true] %s343
          %s345 = sshll.u32 [#allocation8], 4
          %s346 = int_to_ptr.vmem [resolvable:$true] %s345
          %351 = dma.hbm_to_vmem [thread:$0]  %s344, 8192, %s346, [#allocation9], 256, 256, 16
        $region16: #{tpu_custom_call.1} parent=11 // pred_fallthru
          _
        // Predicated region
        $region17: #{tpu_custom_call.1} parent=11 // pred_check
          %p352 = pneg %p150
        $region18: #{tpu_custom_call.1} parent=11 // pred_check_branch
          %354 = sbr.rel (%p352) target = $region20
        $region19: #{tpu_custom_call.1} parent=11 // pred_region
          _
        $region20: #{tpu_custom_call.1} parent=11 // pred_fallthru
          _
        // Predicated region
        $region21: #{tpu_custom_call.1} parent=11 // pred_check
          %p355 = pneg %p171
        $region22: #{tpu_custom_call.1} parent=11 // pred_check_branch
          %357 = sbr.rel (%p355) target = $region24
        $region23: #{tpu_custom_call.1} parent=11 // pred_region
          %359 = vsyncadd [#allocation9], 0
          %s360 = sshll.u32 %s5, 4
          %s361 = int_to_ptr.hbm [resolvable:$true] %s360
          %s362 = sshll.u32 [#allocation10], 4
          %s363 = int_to_ptr.vmem [resolvable:$true] %s362
          %368 = dma.hbm_to_vmem [thread:$0]  %s361, 8192, %s363, [#allocation9], 256, 256, 16
        $region24: #{tpu_custom_call.1} parent=11 // pred_fallthru
          _
        // Predicated region
        $region25: #{tpu_custom_call.1} parent=11 // pred_check
          %p369 = pneg %p192
        $region26: #{tpu_custom_call.1} parent=11 // pred_check_branch
          %371 = sbr.rel (%p369) target = $region28
        $region27: #{tpu_custom_call.1} parent=11 // pred_region
          _
        $region28: #{tpu_custom_call.1} parent=11 // pred_fallthru
          _
        // Predicated region
        $region29: #{tpu_custom_call.1} parent=11 // pred_check
          %p372 = pneg %p213
        $region30: #{tpu_custom_call.1} parent=11 // pred_check_branch
          %374 = sbr.rel (%p372) target = $region32
        $region31: #{tpu_custom_call.1} parent=11 // pred_region
          %376 = vsyncadd [#allocation12], 0
          %s377 = sshll.u32 %s7, 4
          %s378 = int_to_ptr.hbm [resolvable:$true] %s377
          %s379 = sshll.u32 [#allocation11], 4
          %s380 = int_to_ptr.vmem [resolvable:$true] %s379
          %385 = dma.hbm_to_vmem [thread:$0]  %s378, 8192, %s380, [#allocation12], 256, 256, 16
        $region32: #{tpu_custom_call.1} parent=11 // pred_fallthru
          _
        // Predicated region
        $region33: #{tpu_custom_call.1} parent=11 // pred_check
          %p386 = pneg %p234
        $region34: #{tpu_custom_call.1} parent=11 // pred_check_branch
          %388 = sbr.rel (%p386) target = $region36
        $region35: #{tpu_custom_call.1} parent=11 // pred_region
          _
        $region36: #{tpu_custom_call.1} parent=11 // pred_fallthru
          _
        // Predicated region
        $region37: #{tpu_custom_call.1} parent=11 // pred_check
          %p389 = pneg %p255
        $region38: #{tpu_custom_call.1} parent=11 // pred_check_branch
          %391 = sbr.rel (%p389) target = $region40
        $region39: #{tpu_custom_call.1} parent=11 // pred_region
          %393 = vsyncadd [#allocation12], 0
          %s394 = sshll.u32 %s9, 4
          %s395 = int_to_ptr.hbm [resolvable:$true] %s394
          %s396 = sshll.u32 [#allocation13], 4
          %s397 = int_to_ptr.vmem [resolvable:$true] %s396
          %402 = dma.hbm_to_vmem [thread:$0]  %s395, 8192, %s397, [#allocation12], 256, 256, 16
        $region40: #{tpu_custom_call.1} parent=11 // pred_fallthru
          _
        // Predicated region
        $region41: #{tpu_custom_call.1} parent=11 // pred_check
          %p403 = pneg %p276
        $region42: #{tpu_custom_call.1} parent=11 // pred_check_branch
          %405 = sbr.rel (%p403) target = $region44
        $region43: #{tpu_custom_call.1} parent=11 // pred_region
          _
        $region44: #{tpu_custom_call.1} parent=11 // pred_fallthru
          _
        // Predicated region
        $region45: #{tpu_custom_call.1} parent=11 // pred_check
          %p406 = pneg %p297
        $region46: #{tpu_custom_call.1} parent=11 // pred_check_branch
          %408 = sbr.rel (%p406) target = $region48
        $region47: #{tpu_custom_call.1} parent=11 // pred_region
          %410 = vsyncadd [#allocation15], 0
          %s412 = sshll.u32 %s11, 4
          %s413 = int_to_ptr.hbm [resolvable:$true] %s412
          %s414 = sshll.u32 [#allocation14], 4
          %s415 = int_to_ptr.vmem [resolvable:$true] %s414
          %417 = dma.hbm_to_vmem [thread:$0]  %s413, 256, %s415, [#allocation15]
        $region48: #{tpu_custom_call.1} parent=11 // pred_fallthru
          _
      $region12: #{tpu_custom_call.1} parent=5 // pred_fallthru
        _
      %p418 = scmp.lt.s32.totalorder %s30, 2
      // Predicated region
      $region49: #{tpu_custom_call.1} parent=5 // pred_check
        %p419 = pneg %p418
      $region50: #{tpu_custom_call.1} parent=5 // pred_check_branch
        %421 = sbr.rel (%p419) target = $region52
      $region51: #{tpu_custom_call.1} parent=5 // pred_region
        // Predicated region
        $region53: #{tpu_custom_call.1} parent=51 // pred_check
          %p422 = pneg %p50
        $region54: #{tpu_custom_call.1} parent=51 // pred_check_branch
          %424 = sbr.rel (%p422) target = $region56
        $region55: #{tpu_custom_call.1} parent=51 // pred_region
          %s425 = sand.u32 %s40, 1
          %s426 = scalar_lea.sflag [#allocation3], %s425
          %s427 = sand.u32 %s40, 1
          %s428 = smul.addr %s427, 64
          %s429 = scalar_lea.vmem [#allocation2], %s428
          %s430 = smul.u32 4, %s30
          %432 = vsyncadd %s426, 0
          %s433 = smul.addr %s430, 2
          %s434 = smul.addr %s433, 8
          %s435 = scalar_lea.hbm %s0, %s434
          %s436 = sshll.u32 %s435, 4
          %s437 = int_to_ptr.hbm [resolvable:$true] %s436
          %s438 = sshll.u32 %s429, 4
          %s439 = int_to_ptr.vmem [resolvable:$true] %s438
          %444 = dma.hbm_to_vmem [thread:$0]  %s437, 1024, %s439, %s426, 256, 256, 16
        $region56: #{tpu_custom_call.1} parent=51 // pred_fallthru
          _
        // Predicated region
        $region57: #{tpu_custom_call.1} parent=51 // pred_check
          %p445 = pneg %p76
        $region58: #{tpu_custom_call.1} parent=51 // pred_check_branch
          %447 = sbr.rel (%p445) target = $region60
        $region59: #{tpu_custom_call.1} parent=51 // pred_region
          %s448 = sand.u32 %s30, 1
          %s449 = scalar_lea.sflag [#allocation6], %s448
          %s450 = sand.u32 %s66, 1
          %s451 = smul.addr %s450, 1024
          %s452 = scalar_lea.vmem [#allocation5], %s451
          %s453 = smul.u32 32, %s30
          %455 = vsyncadd %s449, 0
          %s456 = smul.addr %s453, 4
          %s457 = smul.addr %s456, 8
          %s458 = scalar_lea.hbm %s1, %s457
          %s459 = sshll.u32 %s458, 4
          %s460 = int_to_ptr.hbm [resolvable:$true] %s459
          %s461 = sshll.u32 %s452, 4
          %s462 = int_to_ptr.vmem [resolvable:$true] %s461
          %467 = dma.hbm_to_vmem [thread:$0]  %s460, 16384, %s462, %s449, 256, 256, 16
        $region60: #{tpu_custom_call.1} parent=51 // pred_fallthru
          _
        // Predicated region
        $region61: #{tpu_custom_call.1} parent=51 // pred_check
          %p468 = pneg %p102
        $region62: #{tpu_custom_call.1} parent=51 // pred_check_branch
          %470 = sbr.rel (%p468) target = $region64
        $region63: #{tpu_custom_call.1} parent=51 // pred_region
          %s471 = sand.u32 %s30, 1
          %s472 = scalar_lea.sflag [#allocation6], %s471
          %s473 = sand.u32 %s92, 1
          %s474 = smul.addr %s473, 1024
          %s475 = scalar_lea.vmem [#allocation7], %s474
          %s476 = smul.u32 32, %s30
          %478 = vsyncadd %s472, 0
          %s479 = smul.addr %s476, 4
          %s480 = smul.addr %s479, 8
          %s481 = scalar_lea.hbm %s2, %s480
          %s482 = sshll.u32 %s481, 4
          %s483 = int_to_ptr.hbm [resolvable:$true] %s482
          %s484 = sshll.u32 %s475, 4
          %s485 = int_to_ptr.vmem [resolvable:$true] %s484
          %490 = dma.hbm_to_vmem [thread:$0]  %s483, 16384, %s485, %s472, 256, 256, 16
        $region64: #{tpu_custom_call.1} parent=51 // pred_fallthru
          _
      $region52: #{tpu_custom_call.1} parent=5 // pred_fallthru
        _
      %p491 = scmp.le.s32.totalorder 1, %s30
      %p492 = scmp.lt.s32.totalorder %s30, 3
      %p493 = pnand %p491, %p492
      %p494 = pneg %p493
      // Predicated region
      $region65: #{tpu_custom_call.1} parent=5 // pred_check
        _
      $region66: #{tpu_custom_call.1} parent=5 // pred_check_branch
        %496 = sbr.rel (%p493) target = $region68
      $region67: #{tpu_custom_call.1} parent=5 // pred_region
        %s497 = ssub.s32 %s30, 1
        %s498 = sand.u32 %s43, 1
        %s499 = scalar_lea.sflag [#allocation3], %s498
        %s500 = sand.u32 %s43, 1
        %s501 = smul.addr %s500, 64
        %s502 = scalar_lea.vmem [#allocation2], %s501
        // Predicated region
        $region69: #{tpu_custom_call.1} parent=67 // pred_check
          %p503 = pneg %p56
        $region70: #{tpu_custom_call.1} parent=67 // pred_check_branch
          %505 = sbr.rel (%p503) target = $region72
        $region71: #{tpu_custom_call.1} parent=67 // pred_region
          %507 = dma.done %s499, 1024
        $region72: #{tpu_custom_call.1} parent=67 // pred_fallthru
          _
        %s508 = sand.u32 %s35, 1
        %s509 = scalar_lea.sflag [#allocation6], %s508
        %s510 = sand.u32 %s69, 1
        %s511 = smul.addr %s510, 1024
        %s512 = scalar_lea.vmem [#allocation5], %s511
        // Predicated region
        $region73: #{tpu_custom_call.1} parent=67 // pred_check
          %p513 = pneg %p82
        $region74: #{tpu_custom_call.1} parent=67 // pred_check_branch
          %515 = sbr.rel (%p513) target = $region76
        $region75: #{tpu_custom_call.1} parent=67 // pred_region
          %517 = dma.done %s509, 16384
        $region76: #{tpu_custom_call.1} parent=67 // pred_fallthru
          _
        %s518 = sand.u32 %s35, 1
        %s519 = scalar_lea.sflag [#allocation6], %s518
        %s520 = sand.u32 %s95, 1
        %s521 = smul.addr %s520, 1024
        %s522 = scalar_lea.vmem [#allocation7], %s521
        // Predicated region
        $region77: #{tpu_custom_call.1} parent=67 // pred_check
          %p523 = pneg %p108
        $region78: #{tpu_custom_call.1} parent=67 // pred_check_branch
          %525 = sbr.rel (%p523) target = $region80
        $region79: #{tpu_custom_call.1} parent=67 // pred_region
          %527 = dma.done %s519, 16384
        $region80: #{tpu_custom_call.1} parent=67 // pred_fallthru
          _
        // Predicated region
        $region81: #{tpu_custom_call.1} parent=67 // pred_check
          %p528 = pneg %p129
        $region82: #{tpu_custom_call.1} parent=67 // pred_check_branch
          %530 = sbr.rel (%p528) target = $region84
        $region83: #{tpu_custom_call.1} parent=67 // pred_region
          %532 = dma.done [#allocation9], 8192
        $region84: #{tpu_custom_call.1} parent=67 // pred_fallthru
          _
        // Predicated region
        $region85: #{tpu_custom_call.1} parent=67 // pred_check
          %p533 = pneg %p171
        $region86: #{tpu_custom_call.1} parent=67 // pred_check_branch
          %535 = sbr.rel (%p533) target = $region88
        $region87: #{tpu_custom_call.1} parent=67 // pred_region
          %537 = dma.done [#allocation9], 8192
        $region88: #{tpu_custom_call.1} parent=67 // pred_fallthru
          _
        // Predicated region
        $region89: #{tpu_custom_call.1} parent=67 // pred_check
          %p538 = pneg %p213
        $region90: #{tpu_custom_call.1} parent=67 // pred_check_branch
          %540 = sbr.rel (%p538) target = $region92
        $region91: #{tpu_custom_call.1} parent=67 // pred_region
          %542 = dma.done [#allocation12], 8192
        $region92: #{tpu_custom_call.1} parent=67 // pred_fallthru
          _
        // Predicated region
        $region93: #{tpu_custom_call.1} parent=67 // pred_check
          %p543 = pneg %p255
        $region94: #{tpu_custom_call.1} parent=67 // pred_check_branch
          %545 = sbr.rel (%p543) target = $region96
        $region95: #{tpu_custom_call.1} parent=67 // pred_region
          %547 = dma.done [#allocation12], 8192
        $region96: #{tpu_custom_call.1} parent=67 // pred_fallthru
          _
        // Predicated region
        $region97: #{tpu_custom_call.1} parent=67 // pred_check
          %p548 = pneg %p297
        $region98: #{tpu_custom_call.1} parent=67 // pred_check_branch
          %550 = sbr.rel (%p548) target = $region100
        $region99: #{tpu_custom_call.1} parent=67 // pred_region
          %552 = dma.done [#allocation15], 256
        $region100: #{tpu_custom_call.1} parent=67 // pred_fallthru
          _
        %s553 = sand.u32 %s43, 1
        %s554 = scalar_lea.sflag [#allocation3], %s553
        %s555 = sand.u32 %s43, 1
        %s556 = smul.addr %s555, 64
        %s557 = scalar_lea.vmem [#allocation2], %s556
        %p558 = pneg %p56
        %p559 = pneg %p53
        %s560 = sand.u32 %s35, 1
        %s561 = scalar_lea.sflag [#allocation6], %s560
        %s562 = sand.u32 %s69, 1
        %s563 = smul.addr %s562, 1024
        %s564 = scalar_lea.vmem [#allocation5], %s563
        %p565 = pneg %p82
        %p566 = pneg %p79
        %s567 = sand.u32 %s35, 1
        %s568 = scalar_lea.sflag [#allocation6], %s567
        %s569 = sand.u32 %s95, 1
        %s570 = smul.addr %s569, 1024
        %s571 = scalar_lea.vmem [#allocation7], %s570
        %p572 = pneg %p108
        %p573 = pneg %p105
        %p574 = pneg %p129
        %p575 = pneg %p126
        %p576 = pneg %p150
        %p577 = pneg %p147
        %p578 = pneg %p171
        %p579 = pneg %p168
        %p580 = pneg %p192
        %p581 = pneg %p189
        %p582 = pneg %p213
        %p583 = pneg %p210
        %p584 = pneg %p234
        %p585 = pneg %p231
        %p586 = pneg %p255
        %p587 = pneg %p252
        %p588 = pneg %p276
        %p589 = pneg %p273
        %p590 = pneg %p297
        %p591 = pneg %p294
        %p592 = pneg %p323
        %p593 = pneg %p320
        %s594 = sand.u32 %s310, 1
        %s595 = scalar_lea.sflag [#allocation4], %s594
        %s596 = sand.u32 %s310, 1
        %s597 = smul.addr %s596, 64
        %s598 = scalar_lea.vmem [#allocation16], %s597
        %s599 = smul.u32 4, %s35
        %s600 = smul.u32 32, %s35
        %s601 = smul.u32 32, %s35
        %s602 = smul.u32 4, %s35
        %v603 = vld [vmem:[%s502] sm:$0xff]
        %v604 = vld [vmem:[%s502 + $0x8] sm:$0xff]
        %v605 = vld [vmem:[%s502 + $0x10] sm:$0xff]
        %v606 = vld [vmem:[%s502 + $0x18] sm:$0xff]
        %v607 = vld [vmem:[%s502 + $0x20] sm:$0xff]
        %v608 = vld [vmem:[%s502 + $0x28] sm:$0xff]
        %v609 = vld [vmem:[%s502 + $0x30] sm:$0xff]
        %v610 = vld [vmem:[%s502 + $0x38] sm:$0xff]
        %v611 = vld [vmem:[%s512] sm:$0xff]
        %v612 = vld [vmem:[%s512 + $0x8] sm:$0xff]
        %v613 = vld [vmem:[%s512 + $0x10] sm:$0xff]
        %v614 = vld [vmem:[%s512 + $0x18] sm:$0xff]
        %v615 = vld [vmem:[%s512 + $0x20] sm:$0xff]
        %v616 = vld [vmem:[%s512 + $0x28] sm:$0xff]
        %v617 = vld [vmem:[%s512 + $0x30] sm:$0xff]
        %v618 = vld [vmem:[%s512 + $0x38] sm:$0xff]
        %v619 = vld [vmem:[%s512 + $0x40] sm:$0xff]
        %v620 = vld [vmem:[%s512 + $0x48] sm:$0xff]
        %v621 = vld [vmem:[%s512 + $0x50] sm:$0xff]
        %v622 = vld [vmem:[%s512 + $0x58] sm:$0xff]
        %v623 = vld [vmem:[%s512 + $0x60] sm:$0xff]
        %v624 = vld [vmem:[%s512 + $0x68] sm:$0xff]
        %v625 = vld [vmem:[%s512 + $0x70] sm:$0xff]
        %v626 = vld [vmem:[%s512 + $0x78] sm:$0xff]
        %v627 = vld [vmem:[%s512 + $0x80] sm:$0xff]
        %v628 = vld [vmem:[%s512 + $0x88] sm:$0xff]
        %v629 = vld [vmem:[%s512 + $0x90] sm:$0xff]
        %v630 = vld [vmem:[%s512 + $0x98] sm:$0xff]
        %v631 = vld [vmem:[%s512 + $0xa0] sm:$0xff]
        %v632 = vld [vmem:[%s512 + $0xa8] sm:$0xff]
        %v633 = vld [vmem:[%s512 + $0xb0] sm:$0xff]
        %v634 = vld [vmem:[%s512 + $0xb8] sm:$0xff]
        %v635 = vld [vmem:[%s512 + $0xc0] sm:$0xff]
        %v636 = vld [vmem:[%s512 + $0xc8] sm:$0xff]
        %v637 = vld [vmem:[%s512 + $0xd0] sm:$0xff]
        %v638 = vld [vmem:[%s512 + $0xd8] sm:$0xff]
        %v639 = vld [vmem:[%s512 + $0xe0] sm:$0xff]
        %v640 = vld [vmem:[%s512 + $0xe8] sm:$0xff]
        %v641 = vld [vmem:[%s512 + $0xf0] sm:$0xff]
        %v642 = vld [vmem:[%s512 + $0xf8] sm:$0xff]
        %v643 = vld [vmem:[%s512 + $0x100] sm:$0xff]
        %v644 = vld [vmem:[%s512 + $0x108] sm:$0xff]
        %v645 = vld [vmem:[%s512 + $0x110] sm:$0xff]
        %v646 = vld [vmem:[%s512 + $0x118] sm:$0xff]
        %v647 = vld [vmem:[%s512 + $0x120] sm:$0xff]
        %v648 = vld [vmem:[%s512 + $0x128] sm:$0xff]
        %v649 = vld [vmem:[%s512 + $0x130] sm:$0xff]
        %v650 = vld [vmem:[%s512 + $0x138] sm:$0xff]
        %v651 = vld [vmem:[%s512 + $0x140] sm:$0xff]
        %v652 = vld [vmem:[%s512 + $0x148] sm:$0xff]
        %v653 = vld [vmem:[%s512 + $0x150] sm:$0xff]
        %v654 = vld [vmem:[%s512 + $0x158] sm:$0xff]
        %v655 = vld [vmem:[%s512 + $0x160] sm:$0xff]
        %v656 = vld [vmem:[%s512 + $0x168] sm:$0xff]
        %v657 = vld [vmem:[%s512 + $0x170] sm:$0xff]
        %v658 = vld [vmem:[%s512 + $0x178] sm:$0xff]
        %v659 = vld [vmem:[%s512 + $0x180] sm:$0xff]
        %v660 = vld [vmem:[%s512 + $0x188] sm:$0xff]
        %v661 = vld [vmem:[%s512 + $0x190] sm:$0xff]
        %v662 = vld [vmem:[%s512 + $0x198] sm:$0xff]
        %v663 = vld [vmem:[%s512 + $0x1a0] sm:$0xff]
        %v664 = vld [vmem:[%s512 + $0x1a8] sm:$0xff]
        %v665 = vld [vmem:[%s512 + $0x1b0] sm:$0xff]
        %v666 = vld [vmem:[%s512 + $0x1b8] sm:$0xff]
        %v667 = vld [vmem:[%s512 + $0x1c0] sm:$0xff]
        %v668 = vld [vmem:[%s512 + $0x1c8] sm:$0xff]
        %v669 = vld [vmem:[%s512 + $0x1d0] sm:$0xff]
        %v670 = vld [vmem:[%s512 + $0x1d8] sm:$0xff]
        %v671 = vld [vmem:[%s512 + $0x1e0] sm:$0xff]
        %v672 = vld [vmem:[%s512 + $0x1e8] sm:$0xff]
        %v673 = vld [vmem:[%s512 + $0x1f0] sm:$0xff]
        %v674 = vld [vmem:[%s512 + $0x1f8] sm:$0xff]
        %v675 = vld [vmem:[%s512 + $0x200] sm:$0xff]
        %v676 = vld [vmem:[%s512 + $0x208] sm:$0xff]
        %v677 = vld [vmem:[%s512 + $0x210] sm:$0xff]
        %v678 = vld [vmem:[%s512 + $0x218] sm:$0xff]
        %v679 = vld [vmem:[%s512 + $0x220] sm:$0xff]
        %v680 = vld [vmem:[%s512 + $0x228] sm:$0xff]
        %v681 = vld [vmem:[%s512 + $0x230] sm:$0xff]
        %v682 = vld [vmem:[%s512 + $0x238] sm:$0xff]
        %v683 = vld [vmem:[%s512 + $0x240] sm:$0xff]
        %v684 = vld [vmem:[%s512 + $0x248] sm:$0xff]
        %v685 = vld [vmem:[%s512 + $0x250] sm:$0xff]
        %v686 = vld [vmem:[%s512 + $0x258] sm:$0xff]
        %v687 = vld [vmem:[%s512 + $0x260] sm:$0xff]
        %v688 = vld [vmem:[%s512 + $0x268] sm:$0xff]
        %v689 = vld [vmem:[%s512 + $0x270] sm:$0xff]
        %v690 = vld [vmem:[%s512 + $0x278] sm:$0xff]
        %v691 = vld [vmem:[%s512 + $0x280] sm:$0xff]
        %v692 = vld [vmem:[%s512 + $0x288] sm:$0xff]
        %v693 = vld [vmem:[%s512 + $0x290] sm:$0xff]
        %v694 = vld [vmem:[%s512 + $0x298] sm:$0xff]
        %v695 = vld [vmem:[%s512 + $0x2a0] sm:$0xff]
        %v696 = vld [vmem:[%s512 + $0x2a8] sm:$0xff]
        %v697 = vld [vmem:[%s512 + $0x2b0] sm:$0xff]
        %v698 = vld [vmem:[%s512 + $0x2b8] sm:$0xff]
        %v699 = vld [vmem:[%s512 + $0x2c0] sm:$0xff]
        %v700 = vld [vmem:[%s512 + $0x2c8] sm:$0xff]
        %v701 = vld [vmem:[%s512 + $0x2d0] sm:$0xff]
        %v702 = vld [vmem:[%s512 + $0x2d8] sm:$0xff]
        %v703 = vld [vmem:[%s512 + $0x2e0] sm:$0xff]
        %v704 = vld [vmem:[%s512 + $0x2e8] sm:$0xff]
        %v705 = vld [vmem:[%s512 + $0x2f0] sm:$0xff]
        %v706 = vld [vmem:[%s512 + $0x2f8] sm:$0xff]
        %v707 = vld [vmem:[%s512 + $0x300] sm:$0xff]
        %v708 = vld [vmem:[%s512 + $0x308] sm:$0xff]
        %v709 = vld [vmem:[%s512 + $0x310] sm:$0xff]
        %v710 = vld [vmem:[%s512 + $0x318] sm:$0xff]
        %v711 = vld [vmem:[%s512 + $0x320] sm:$0xff]
        %v712 = vld [vmem:[%s512 + $0x328] sm:$0xff]
        %v713 = vld [vmem:[%s512 + $0x330] sm:$0xff]
        %v714 = vld [vmem:[%s512 + $0x338] sm:$0xff]
        %v715 = vld [vmem:[%s512 + $0x340] sm:$0xff]
        %v716 = vld [vmem:[%s512 + $0x348] sm:$0xff]
        %v717 = vld [vmem:[%s512 + $0x350] sm:$0xff]
        %v718 = vld [vmem:[%s512 + $0x358] sm:$0xff]
        %v719 = vld [vmem:[%s512 + $0x360] sm:$0xff]
        %v720 = vld [vmem:[%s512 + $0x368] sm:$0xff]
        %v721 = vld [vmem:[%s512 + $0x370] sm:$0xff]
        %v722 = vld [vmem:[%s512 + $0x378] sm:$0xff]
        %v723 = vld [vmem:[%s512 + $0x380] sm:$0xff]
        %v724 = vld [vmem:[%s512 + $0x388] sm:$0xff]
        %v725 = vld [vmem:[%s512 + $0x390] sm:$0xff]
        %v726 = vld [vmem:[%s512 + $0x398] sm:$0xff]
        %v727 = vld [vmem:[%s512 + $0x3a0] sm:$0xff]
        %v728 = vld [vmem:[%s512 + $0x3a8] sm:$0xff]
        %v729 = vld [vmem:[%s512 + $0x3b0] sm:$0xff]
        %v730 = vld [vmem:[%s512 + $0x3b8] sm:$0xff]
        %v731 = vld [vmem:[%s512 + $0x3c0] sm:$0xff]
        %v732 = vld [vmem:[%s512 + $0x3c8] sm:$0xff]
        %v733 = vld [vmem:[%s512 + $0x3d0] sm:$0xff]
        %v734 = vld [vmem:[%s512 + $0x3d8] sm:$0xff]
        %v735 = vld [vmem:[%s512 + $0x3e0] sm:$0xff]
        %v736 = vld [vmem:[%s512 + $0x3e8] sm:$0xff]
        %v737 = vld [vmem:[%s512 + $0x3f0] sm:$0xff]
        %v738 = vld [vmem:[%s512 + $0x3f8] sm:$0xff]
        %v739 = vld [vmem:[%s522] sm:$0xff]
        %v740 = vld [vmem:[%s522 + $0x8] sm:$0xff]
        %v741 = vld [vmem:[%s522 + $0x10] sm:$0xff]
        %v742 = vld [vmem:[%s522 + $0x18] sm:$0xff]
        %v743 = vld [vmem:[%s522 + $0x20] sm:$0xff]
        %v744 = vld [vmem:[%s522 + $0x28] sm:$0xff]
        %v745 = vld [vmem:[%s522 + $0x30] sm:$0xff]
        %v746 = vld [vmem:[%s522 + $0x38] sm:$0xff]
        %v747 = vld [vmem:[%s522 + $0x40] sm:$0xff]
        %v748 = vld [vmem:[%s522 + $0x48] sm:$0xff]
        %v749 = vld [vmem:[%s522 + $0x50] sm:$0xff]
        %v750 = vld [vmem:[%s522 + $0x58] sm:$0xff]
        %v751 = vld [vmem:[%s522 + $0x60] sm:$0xff]
        %v752 = vld [vmem:[%s522 + $0x68] sm:$0xff]
        %v753 = vld [vmem:[%s522 + $0x70] sm:$0xff]
        %v754 = vld [vmem:[%s522 + $0x78] sm:$0xff]
        %v755 = vld [vmem:[%s522 + $0x80] sm:$0xff]
        %v756 = vld [vmem:[%s522 + $0x88] sm:$0xff]
        %v757 = vld [vmem:[%s522 + $0x90] sm:$0xff]
        %v758 = vld [vmem:[%s522 + $0x98] sm:$0xff]
        %v759 = vld [vmem:[%s522 + $0xa0] sm:$0xff]
        %v760 = vld [vmem:[%s522 + $0xa8] sm:$0xff]
        %v761 = vld [vmem:[%s522 + $0xb0] sm:$0xff]
        %v762 = vld [vmem:[%s522 + $0xb8] sm:$0xff]
        %v763 = vld [vmem:[%s522 + $0xc0] sm:$0xff]
        %v764 = vld [vmem:[%s522 + $0xc8] sm:$0xff]
        %v765 = vld [vmem:[%s522 + $0xd0] sm:$0xff]
        %v766 = vld [vmem:[%s522 + $0xd8] sm:$0xff]
        %v767 = vld [vmem:[%s522 + $0xe0] sm:$0xff]
        %v768 = vld [vmem:[%s522 + $0xe8] sm:$0xff]
        %v769 = vld [vmem:[%s522 + $0xf0] sm:$0xff]
        %v770 = vld [vmem:[%s522 + $0xf8] sm:$0xff]
        %v771 = vld [vmem:[%s522 + $0x100] sm:$0xff]
        %v772 = vld [vmem:[%s522 + $0x108] sm:$0xff]
        %v773 = vld [vmem:[%s522 + $0x110] sm:$0xff]
        %v774 = vld [vmem:[%s522 + $0x118] sm:$0xff]
        %v775 = vld [vmem:[%s522 + $0x120] sm:$0xff]
        %v776 = vld [vmem:[%s522 + $0x128] sm:$0xff]
        %v777 = vld [vmem:[%s522 + $0x130] sm:$0xff]
        %v778 = vld [vmem:[%s522 + $0x138] sm:$0xff]
        %v779 = vld [vmem:[%s522 + $0x140] sm:$0xff]
        %v780 = vld [vmem:[%s522 + $0x148] sm:$0xff]
        %v781 = vld [vmem:[%s522 + $0x150] sm:$0xff]
        %v782 = vld [vmem:[%s522 + $0x158] sm:$0xff]
        %v783 = vld [vmem:[%s522 + $0x160] sm:$0xff]
        %v784 = vld [vmem:[%s522 + $0x168] sm:$0xff]
        %v785 = vld [vmem:[%s522 + $0x170] sm:$0xff]
        %v786 = vld [vmem:[%s522 + $0x178] sm:$0xff]
        %v787 = vld [vmem:[%s522 + $0x180] sm:$0xff]
        %v788 = vld [vmem:[%s522 + $0x188] sm:$0xff]
        %v789 = vld [vmem:[%s522 + $0x190] sm:$0xff]
        %v790 = vld [vmem:[%s522 + $0x198] sm:$0xff]
        %v791 = vld [vmem:[%s522 + $0x1a0] sm:$0xff]
        %v792 = vld [vmem:[%s522 + $0x1a8] sm:$0xff]
        %v793 = vld [vmem:[%s522 + $0x1b0] sm:$0xff]
        %v794 = vld [vmem:[%s522 + $0x1b8] sm:$0xff]
        %v795 = vld [vmem:[%s522 + $0x1c0] sm:$0xff]
        %v796 = vld [vmem:[%s522 + $0x1c8] sm:$0xff]
        %v797 = vld [vmem:[%s522 + $0x1d0] sm:$0xff]
        %v798 = vld [vmem:[%s522 + $0x1d8] sm:$0xff]
        %v799 = vld [vmem:[%s522 + $0x1e0] sm:$0xff]
        %v800 = vld [vmem:[%s522 + $0x1e8] sm:$0xff]
        %v801 = vld [vmem:[%s522 + $0x1f0] sm:$0xff]
        %v802 = vld [vmem:[%s522 + $0x1f8] sm:$0xff]
        %v803 = vld [vmem:[%s522 + $0x200] sm:$0xff]
        %v804 = vld [vmem:[%s522 + $0x208] sm:$0xff]
        %v805 = vld [vmem:[%s522 + $0x210] sm:$0xff]
        %v806 = vld [vmem:[%s522 + $0x218] sm:$0xff]
        %v807 = vld [vmem:[%s522 + $0x220] sm:$0xff]
        %v808 = vld [vmem:[%s522 + $0x228] sm:$0xff]
        %v809 = vld [vmem:[%s522 + $0x230] sm:$0xff]
        %v810 = vld [vmem:[%s522 + $0x238] sm:$0xff]
        %v811 = vld [vmem:[%s522 + $0x240] sm:$0xff]
        %v812 = vld [vmem:[%s522 + $0x248] sm:$0xff]
        %v813 = vld [vmem:[%s522 + $0x250] sm:$0xff]
        %v814 = vld [vmem:[%s522 + $0x258] sm:$0xff]
        %v815 = vld [vmem:[%s522 + $0x260] sm:$0xff]
        %v816 = vld [vmem:[%s522 + $0x268] sm:$0xff]
        %v817 = vld [vmem:[%s522 + $0x270] sm:$0xff]
        %v818 = vld [vmem:[%s522 + $0x278] sm:$0xff]
        %v819 = vld [vmem:[%s522 + $0x280] sm:$0xff]
        %v820 = vld [vmem:[%s522 + $0x288] sm:$0xff]
        %v821 = vld [vmem:[%s522 + $0x290] sm:$0xff]
        %v822 = vld [vmem:[%s522 + $0x298] sm:$0xff]
        %v823 = vld [vmem:[%s522 + $0x2a0] sm:$0xff]
        %v824 = vld [vmem:[%s522 + $0x2a8] sm:$0xff]
        %v825 = vld [vmem:[%s522 + $0x2b0] sm:$0xff]
        %v826 = vld [vmem:[%s522 + $0x2b8] sm:$0xff]
        %v827 = vld [vmem:[%s522 + $0x2c0] sm:$0xff]
        %v828 = vld [vmem:[%s522 + $0x2c8] sm:$0xff]
        %v829 = vld [vmem:[%s522 + $0x2d0] sm:$0xff]
        %v830 = vld [vmem:[%s522 + $0x2d8] sm:$0xff]
        %v831 = vld [vmem:[%s522 + $0x2e0] sm:$0xff]
        %v832 = vld [vmem:[%s522 + $0x2e8] sm:$0xff]
        %v833 = vld [vmem:[%s522 + $0x2f0] sm:$0xff]
        %v834 = vld [vmem:[%s522 + $0x2f8] sm:$0xff]
        %v835 = vld [vmem:[%s522 + $0x300] sm:$0xff]
        %v836 = vld [vmem:[%s522 + $0x308] sm:$0xff]
        %v837 = vld [vmem:[%s522 + $0x310] sm:$0xff]
        %v838 = vld [vmem:[%s522 + $0x318] sm:$0xff]
        %v839 = vld [vmem:[%s522 + $0x320] sm:$0xff]
        %v840 = vld [vmem:[%s522 + $0x328] sm:$0xff]
        %v841 = vld [vmem:[%s522 + $0x330] sm:$0xff]
        %v842 = vld [vmem:[%s522 + $0x338] sm:$0xff]
        %v843 = vld [vmem:[%s522 + $0x340] sm:$0xff]
        %v844 = vld [vmem:[%s522 + $0x348] sm:$0xff]
        %v845 = vld [vmem:[%s522 + $0x350] sm:$0xff]
        %v846 = vld [vmem:[%s522 + $0x358] sm:$0xff]
        %v847 = vld [vmem:[%s522 + $0x360] sm:$0xff]
        %v848 = vld [vmem:[%s522 + $0x368] sm:$0xff]
        %v849 = vld [vmem:[%s522 + $0x370] sm:$0xff]
        %v850 = vld [vmem:[%s522 + $0x378] sm:$0xff]
        %v851 = vld [vmem:[%s522 + $0x380] sm:$0xff]
        %v852 = vld [vmem:[%s522 + $0x388] sm:$0xff]
        %v853 = vld [vmem:[%s522 + $0x390] sm:$0xff]
        %v854 = vld [vmem:[%s522 + $0x398] sm:$0xff]
        %v855 = vld [vmem:[%s522 + $0x3a0] sm:$0xff]
        %v856 = vld [vmem:[%s522 + $0x3a8] sm:$0xff]
        %v857 = vld [vmem:[%s522 + $0x3b0] sm:$0xff]
        %v858 = vld [vmem:[%s522 + $0x3b8] sm:$0xff]
        %v859 = vld [vmem:[%s522 + $0x3c0] sm:$0xff]
        %v860 = vld [vmem:[%s522 + $0x3c8] sm:$0xff]
        %v861 = vld [vmem:[%s522 + $0x3d0] sm:$0xff]
        %v862 = vld [vmem:[%s522 + $0x3d8] sm:$0xff]
        %v863 = vld [vmem:[%s522 + $0x3e0] sm:$0xff]
        %v864 = vld [vmem:[%s522 + $0x3e8] sm:$0xff]
        %v865 = vld [vmem:[%s522 + $0x3f0] sm:$0xff]
        %v866 = vld [vmem:[%s522 + $0x3f8] sm:$0xff]
        %v867 = vld [vmem:[#allocation8] sm:$0xff]
        %v868 = vld [vmem:[#allocation8 + $0x8] sm:$0xff]
        %v869 = vld [vmem:[#allocation8 + $0x10] sm:$0xff]
        %v870 = vld [vmem:[#allocation8 + $0x18] sm:$0xff]
        %v871 = vld [vmem:[#allocation8 + $0x20] sm:$0xff]
        %v872 = vld [vmem:[#allocation8 + $0x28] sm:$0xff]
        %v873 = vld [vmem:[#allocation8 + $0x30] sm:$0xff]
        %v874 = vld [vmem:[#allocation8 + $0x38] sm:$0xff]
        %v875 = vld [vmem:[#allocation8 + $0x40] sm:$0xff]
        %v876 = vld [vmem:[#allocation8 + $0x48] sm:$0xff]
        %v877 = vld [vmem:[#allocation8 + $0x50] sm:$0xff]
        %v878 = vld [vmem:[#allocation8 + $0x58] sm:$0xff]
        %v879 = vld [vmem:[#allocation8 + $0x60] sm:$0xff]
        %v880 = vld [vmem:[#allocation8 + $0x68] sm:$0xff]
        %v881 = vld [vmem:[#allocation8 + $0x70] sm:$0xff]
        %v882 = vld [vmem:[#allocation8 + $0x78] sm:$0xff]
        %v883 = vld [vmem:[#allocation8 + $0x80] sm:$0xff]
        %v884 = vld [vmem:[#allocation8 + $0x88] sm:$0xff]
        %v885 = vld [vmem:[#allocation8 + $0x90] sm:$0xff]
        %v886 = vld [vmem:[#allocation8 + $0x98] sm:$0xff]
        %v887 = vld [vmem:[#allocation8 + $0xa0] sm:$0xff]
        %v888 = vld [vmem:[#allocation8 + $0xa8] sm:$0xff]
        %v889 = vld [vmem:[#allocation8 + $0xb0] sm:$0xff]
        %v890 = vld [vmem:[#allocation8 + $0xb8] sm:$0xff]
        %v891 = vld [vmem:[#allocation8 + $0xc0] sm:$0xff]
        %v892 = vld [vmem:[#allocation8 + $0xc8] sm:$0xff]
        %v893 = vld [vmem:[#allocation8 + $0xd0] sm:$0xff]
        %v894 = vld [vmem:[#allocation8 + $0xd8] sm:$0xff]
        %v895 = vld [vmem:[#allocation8 + $0xe0] sm:$0xff]
        %v896 = vld [vmem:[#allocation8 + $0xe8] sm:$0xff]
        %v897 = vld [vmem:[#allocation8 + $0xf0] sm:$0xff]
        %v898 = vld [vmem:[#allocation8 + $0xf8] sm:$0xff]
        %v899 = vld [vmem:[#allocation8 + $0x100] sm:$0xff]
        %v900 = vld [vmem:[#allocation8 + $0x108] sm:$0xff]
        %v901 = vld [vmem:[#allocation8 + $0x110] sm:$0xff]
        %v902 = vld [vmem:[#allocation8 + $0x118] sm:$0xff]
        %v903 = vld [vmem:[#allocation8 + $0x120] sm:$0xff]
        %v904 = vld [vmem:[#allocation8 + $0x128] sm:$0xff]
        %v905 = vld [vmem:[#allocation8 + $0x130] sm:$0xff]
        %v906 = vld [vmem:[#allocation8 + $0x138] sm:$0xff]
        %v907 = vld [vmem:[#allocation8 + $0x140] sm:$0xff]
        %v908 = vld [vmem:[#allocation8 + $0x148] sm:$0xff]
        %v909 = vld [vmem:[#allocation8 + $0x150] sm:$0xff]
        %v910 = vld [vmem:[#allocation8 + $0x158] sm:$0xff]
        %v911 = vld [vmem:[#allocation8 + $0x160] sm:$0xff]
        %v912 = vld [vmem:[#allocation8 + $0x168] sm:$0xff]
        %v913 = vld [vmem:[#allocation8 + $0x170] sm:$0xff]
        %v914 = vld [vmem:[#allocation8 + $0x178] sm:$0xff]
        %v915 = vld [vmem:[#allocation8 + $0x180] sm:$0xff]
        %v916 = vld [vmem:[#allocation8 + $0x188] sm:$0xff]
        %v917 = vld [vmem:[#allocation8 + $0x190] sm:$0xff]
        %v918 = vld [vmem:[#allocation8 + $0x198] sm:$0xff]
        %v919 = vld [vmem:[#allocation8 + $0x1a0] sm:$0xff]
        %v920 = vld [vmem:[#allocation8 + $0x1a8] sm:$0xff]
        %v921 = vld [vmem:[#allocation8 + $0x1b0] sm:$0xff]
        %v922 = vld [vmem:[#allocation8 + $0x1b8] sm:$0xff]
        %v923 = vld [vmem:[#allocation8 + $0x1c0] sm:$0xff]
        %v924 = vld [vmem:[#allocation8 + $0x1c8] sm:$0xff]
        %v925 = vld [vmem:[#allocation8 + $0x1d0] sm:$0xff]
        %v926 = vld [vmem:[#allocation8 + $0x1d8] sm:$0xff]
        %v927 = vld [vmem:[#allocation8 + $0x1e0] sm:$0xff]
        %v928 = vld [vmem:[#allocation8 + $0x1e8] sm:$0xff]
        %v929 = vld [vmem:[#allocation8 + $0x1f0] sm:$0xff]
        %v930 = vld [vmem:[#allocation8 + $0x1f8] sm:$0xff]
        %v931 = vld [vmem:[%s4] sm:$0x3]
        %v933 = vperm.slane %v931, 0
        %v934 = vperm.slane %v931, 1
        %937 = vmatpush.msra.mxu0 %v897
        %938 = vmatpush.msra.mxu0 %v895
        %939 = vmatpush.msra.mxu0 %v893
        %940 = vmatpush.msra.mxu0 %v891
        %941 = vmatpush.msra.mxu0 %v889
        %942 = vmatpush.msra.mxu0 %v887
        %943 = vmatpush.msra.mxu0 %v885
        %944 = vmatpush.msra.mxu0 %v883
        %945 = vmatpush.msra.mxu0 %v881
        %946 = vmatpush.msra.mxu0 %v879
        %947 = vmatpush.msra.mxu0 %v877
        %948 = vmatpush.msra.mxu0 %v875
        %949 = vmatpush.msra.mxu0 %v873
        %950 = vmatpush.msra.mxu0 %v871
        %951 = vmatpush.msra.mxu0 %v869
        %952 = vmatpush.msra.mxu0 %v867
        %953 = vmatmul.f32.gmra.mxu0 %v603
        %v954 = vpop.f32.mrf.mxu0
        %v955 = vadd.f32 %v933, %v954
        %956 = vmatmul.f32.gmra.mxu0 %v605
        %v957 = vpop.f32.mrf.mxu0
        %v958 = vadd.f32 %v933, %v957
        %959 = vmatmul.f32.gmra.mxu0 %v607
        %v960 = vpop.f32.mrf.mxu0
        %v961 = vadd.f32 %v933, %v960
        %962 = vmatmul.f32.gmra.mxu0 %v609
        %v963 = vpop.f32.mrf.mxu0
        %v964 = vadd.f32 %v933, %v963
        %965 = vdwg.mxu0
        %966 = vmatpush.msra.mxu0 %v929
        %967 = vmatpush.msra.mxu0 %v927
        %968 = vmatpush.msra.mxu0 %v925
        %969 = vmatpush.msra.mxu0 %v923
        %970 = vmatpush.msra.mxu0 %v921
        %971 = vmatpush.msra.mxu0 %v919
        %972 = vmatpush.msra.mxu0 %v917
        %973 = vmatpush.msra.mxu0 %v915
        %974 = vmatpush.msra.mxu0 %v913
        %975 = vmatpush.msra.mxu0 %v911
        %976 = vmatpush.msra.mxu0 %v909
        %977 = vmatpush.msra.mxu0 %v907
        %978 = vmatpush.msra.mxu0 %v905
        %979 = vmatpush.msra.mxu0 %v903
        %980 = vmatpush.msra.mxu0 %v901
        %981 = vmatpush.msra.mxu0 %v899
        %982 = vmatmul.f32.gmra.mxu0 %v604
        %v983 = vpop.f32.mrf.mxu0
        %v984 = vadd.f32 %v955, %v983
        %985 = vmatmul.f32.gmra.mxu0 %v606
        %v986 = vpop.f32.mrf.mxu0
        %v987 = vadd.f32 %v958, %v986
        %988 = vmatmul.f32.gmra.mxu0 %v608
        %v989 = vpop.f32.mrf.mxu0
        %v990 = vadd.f32 %v961, %v989
        %991 = vmatmul.f32.gmra.mxu0 %v610
        %v992 = vpop.f32.mrf.mxu0
        %v993 = vadd.f32 %v964, %v992
        %994 = vdwg.mxu0
        %995 = vmatpush.msra.mxu0 %v898
        %996 = vmatpush.msra.mxu0 %v896
        %997 = vmatpush.msra.mxu0 %v894
        %998 = vmatpush.msra.mxu0 %v892
        %999 = vmatpush.msra.mxu0 %v890
        %1000 = vmatpush.msra.mxu0 %v888
        %1001 = vmatpush.msra.mxu0 %v886
        %1002 = vmatpush.msra.mxu0 %v884
        %1003 = vmatpush.msra.mxu0 %v882
        %1004 = vmatpush.msra.mxu0 %v880
        %1005 = vmatpush.msra.mxu0 %v878
        %1006 = vmatpush.msra.mxu0 %v876
        %1007 = vmatpush.msra.mxu0 %v874
        %1008 = vmatpush.msra.mxu0 %v872
        %1009 = vmatpush.msra.mxu0 %v870
        %1010 = vmatpush.msra.mxu0 %v868
        %1011 = vmatmul.f32.gmra.mxu0 %v603
        %v1012 = vpop.f32.mrf.mxu0
        %v1013 = vadd.f32 %v934, %v1012
        %1014 = vmatmul.f32.gmra.mxu0 %v605
        %v1015 = vpop.f32.mrf.mxu0
        %v1016 = vadd.f32 %v934, %v1015
        %1017 = vmatmul.f32.gmra.mxu0 %v607
        %v1018 = vpop.f32.mrf.mxu0
        %v1019 = vadd.f32 %v934, %v1018
        %1020 = vmatmul.f32.gmra.mxu0 %v609
        %v1021 = vpop.f32.mrf.mxu0
        %v1022 = vadd.f32 %v934, %v1021
        %1023 = vdwg.mxu0
        %1024 = vmatpush.msra.mxu0 %v930
        %1025 = vmatpush.msra.mxu0 %v928
        %1026 = vmatpush.msra.mxu0 %v926
        %1027 = vmatpush.msra.mxu0 %v924
        %1028 = vmatpush.msra.mxu0 %v922
        %1029 = vmatpush.msra.mxu0 %v920
        %1030 = vmatpush.msra.mxu0 %v918
        %1031 = vmatpush.msra.mxu0 %v916
        %1032 = vmatpush.msra.mxu0 %v914
        %1033 = vmatpush.msra.mxu0 %v912
        %1034 = vmatpush.msra.mxu0 %v910
        %1035 = vmatpush.msra.mxu0 %v908
        %1036 = vmatpush.msra.mxu0 %v906
        %1037 = vmatpush.msra.mxu0 %v904
        %1038 = vmatpush.msra.mxu0 %v902
        %1039 = vmatpush.msra.mxu0 %v900
        %1040 = vmatmul.f32.gmra.mxu0 %v604
        %v1041 = vpop.f32.mrf.mxu0
        %v1042 = vadd.f32 %v1013, %v1041
        %1043 = vmatmul.f32.gmra.mxu0 %v606
        %v1044 = vpop.f32.mrf.mxu0
        %v1045 = vadd.f32 %v1016, %v1044
        %1046 = vmatmul.f32.gmra.mxu0 %v608
        %v1047 = vpop.f32.mrf.mxu0
        %v1048 = vadd.f32 %v1019, %v1047
        %1049 = vmatmul.f32.gmra.mxu0 %v610
        %v1050 = vpop.f32.mrf.mxu0
        %v1051 = vadd.f32 %v1022, %v1050
        %1052 = vdwg.mxu0
        %v1053 = vld [vmem:[#allocation10] sm:$0xff]
        %v1054 = vld [vmem:[#allocation10 + $0x8] sm:$0xff]
        %v1055 = vld [vmem:[#allocation10 + $0x10] sm:$0xff]
        %v1056 = vld [vmem:[#allocation10 + $0x18] sm:$0xff]
        %v1057 = vld [vmem:[#allocation10 + $0x20] sm:$0xff]
        %v1058 = vld [vmem:[#allocation10 + $0x28] sm:$0xff]
        %v1059 = vld [vmem:[#allocation10 + $0x30] sm:$0xff]
        %v1060 = vld [vmem:[#allocation10 + $0x38] sm:$0xff]
        %v1061 = vld [vmem:[#allocation10 + $0x40] sm:$0xff]
        %v1062 = vld [vmem:[#allocation10 + $0x48] sm:$0xff]
        %v1063 = vld [vmem:[#allocation10 + $0x50] sm:$0xff]
        %v1064 = vld [vmem:[#allocation10 + $0x58] sm:$0xff]
        %v1065 = vld [vmem:[#allocation10 + $0x60] sm:$0xff]
        %v1066 = vld [vmem:[#allocation10 + $0x68] sm:$0xff]
        %v1067 = vld [vmem:[#allocation10 + $0x70] sm:$0xff]
        %v1068 = vld [vmem:[#allocation10 + $0x78] sm:$0xff]
        %v1069 = vld [vmem:[#allocation10 + $0x80] sm:$0xff]
        %v1070 = vld [vmem:[#allocation10 + $0x88] sm:$0xff]
        %v1071 = vld [vmem:[#allocation10 + $0x90] sm:$0xff]
        %v1072 = vld [vmem:[#allocation10 + $0x98] sm:$0xff]
        %v1073 = vld [vmem:[#allocation10 + $0xa0] sm:$0xff]
        %v1074 = vld [vmem:[#allocation10 + $0xa8] sm:$0xff]
        %v1075 = vld [vmem:[#allocation10 + $0xb0] sm:$0xff]
        %v1076 = vld [vmem:[#allocation10 + $0xb8] sm:$0xff]
        %v1077 = vld [vmem:[#allocation10 + $0xc0] sm:$0xff]
        %v1078 = vld [vmem:[#allocation10 + $0xc8] sm:$0xff]
        %v1079 = vld [vmem:[#allocation10 + $0xd0] sm:$0xff]
        %v1080 = vld [vmem:[#allocation10 + $0xd8] sm:$0xff]
        %v1081 = vld [vmem:[#allocation10 + $0xe0] sm:$0xff]
        %v1082 = vld [vmem:[#allocation10 + $0xe8] sm:$0xff]
        %v1083 = vld [vmem:[#allocation10 + $0xf0] sm:$0xff]
        %v1084 = vld [vmem:[#allocation10 + $0xf8] sm:$0xff]
        %v1085 = vld [vmem:[#allocation10 + $0x100] sm:$0xff]
        %v1086 = vld [vmem:[#allocation10 + $0x108] sm:$0xff]
        %v1087 = vld [vmem:[#allocation10 + $0x110] sm:$0xff]
        %v1088 = vld [vmem:[#allocation10 + $0x118] sm:$0xff]
        %v1089 = vld [vmem:[#allocation10 + $0x120] sm:$0xff]
        %v1090 = vld [vmem:[#allocation10 + $0x128] sm:$0xff]
        %v1091 = vld [vmem:[#allocation10 + $0x130] sm:$0xff]
        %v1092 = vld [vmem:[#allocation10 + $0x138] sm:$0xff]
        %v1093 = vld [vmem:[#allocation10 + $0x140] sm:$0xff]
        %v1094 = vld [vmem:[#allocation10 + $0x148] sm:$0xff]
        %v1095 = vld [vmem:[#allocation10 + $0x150] sm:$0xff]
        %v1096 = vld [vmem:[#allocation10 + $0x158] sm:$0xff]
        %v1097 = vld [vmem:[#allocation10 + $0x160] sm:$0xff]
        %v1098 = vld [vmem:[#allocation10 + $0x168] sm:$0xff]
        %v1099 = vld [vmem:[#allocation10 + $0x170] sm:$0xff]
        %v1100 = vld [vmem:[#allocation10 + $0x178] sm:$0xff]
        %v1101 = vld [vmem:[#allocation10 + $0x180] sm:$0xff]
        %v1102 = vld [vmem:[#allocation10 + $0x188] sm:$0xff]
        %v1103 = vld [vmem:[#allocation10 + $0x190] sm:$0xff]
        %v1104 = vld [vmem:[#allocation10 + $0x198] sm:$0xff]
        %v1105 = vld [vmem:[#allocation10 + $0x1a0] sm:$0xff]
        %v1106 = vld [vmem:[#allocation10 + $0x1a8] sm:$0xff]
        %v1107 = vld [vmem:[#allocation10 + $0x1b0] sm:$0xff]
        %v1108 = vld [vmem:[#allocation10 + $0x1b8] sm:$0xff]
        %v1109 = vld [vmem:[#allocation10 + $0x1c0] sm:$0xff]
        %v1110 = vld [vmem:[#allocation10 + $0x1c8] sm:$0xff]
        %v1111 = vld [vmem:[#allocation10 + $0x1d0] sm:$0xff]
        %v1112 = vld [vmem:[#allocation10 + $0x1d8] sm:$0xff]
        %v1113 = vld [vmem:[#allocation10 + $0x1e0] sm:$0xff]
        %v1114 = vld [vmem:[#allocation10 + $0x1e8] sm:$0xff]
        %v1115 = vld [vmem:[#allocation10 + $0x1f0] sm:$0xff]
        %v1116 = vld [vmem:[#allocation10 + $0x1f8] sm:$0xff]
        %v1117 = vld [vmem:[%s6] sm:$0x3]
        %v1119 = vperm.slane %v1117, 0
        %v1120 = vperm.slane %v1117, 1
        %1123 = vmatpush.msra.mxu0 %v1083
        %1124 = vmatpush.msra.mxu0 %v1081
        %1125 = vmatpush.msra.mxu0 %v1079
        %1126 = vmatpush.msra.mxu0 %v1077
        %1127 = vmatpush.msra.mxu0 %v1075
        %1128 = vmatpush.msra.mxu0 %v1073
        %1129 = vmatpush.msra.mxu0 %v1071
        %1130 = vmatpush.msra.mxu0 %v1069
        %1131 = vmatpush.msra.mxu0 %v1067
        %1132 = vmatpush.msra.mxu0 %v1065
        %1133 = vmatpush.msra.mxu0 %v1063
        %1134 = vmatpush.msra.mxu0 %v1061
        %1135 = vmatpush.msra.mxu0 %v1059
        %1136 = vmatpush.msra.mxu0 %v1057
        %1137 = vmatpush.msra.mxu0 %v1055
        %1138 = vmatpush.msra.mxu0 %v1053
        %1139 = vmatmul.f32.gmra.mxu0 %v611
        %v1140 = vpop.f32.mrf.mxu0
        %v1141 = vadd.f32 %v1119, %v1140
        %1142 = vmatmul.f32.gmra.mxu0 %v613
        %v1143 = vpop.f32.mrf.mxu0
        %v1144 = vadd.f32 %v1119, %v1143
        %1145 = vmatmul.f32.gmra.mxu0 %v615
        %v1146 = vpop.f32.mrf.mxu0
        %v1147 = vadd.f32 %v1119, %v1146
        %1148 = vmatmul.f32.gmra.mxu0 %v617
        %v1149 = vpop.f32.mrf.mxu0
        %v1150 = vadd.f32 %v1119, %v1149
        %1151 = vmatmul.f32.gmra.mxu0 %v619
        %v1152 = vpop.f32.mrf.mxu0
        %v1153 = vadd.f32 %v1119, %v1152
        %1154 = vmatmul.f32.gmra.mxu0 %v621
        %v1155 = vpop.f32.mrf.mxu0
        %v1156 = vadd.f32 %v1119, %v1155
        %1157 = vmatmul.f32.gmra.mxu0 %v623
        %v1158 = vpop.f32.mrf.mxu0
        %v1159 = vadd.f32 %v1119, %v1158
        %1160 = vmatmul.f32.gmra.mxu0 %v625
        %v1161 = vpop.f32.mrf.mxu0
        %v1162 = vadd.f32 %v1119, %v1161
        %1163 = vmatmul.f32.gmra.mxu0 %v627
        %v1164 = vpop.f32.mrf.mxu0
        %v1165 = vadd.f32 %v1119, %v1164
        %1166 = vmatmul.f32.gmra.mxu0 %v629
        %v1167 = vpop.f32.mrf.mxu0
        %v1168 = vadd.f32 %v1119, %v1167
        %1169 = vmatmul.f32.gmra.mxu0 %v631
        %v1170 = vpop.f32.mrf.mxu0
        %v1171 = vadd.f32 %v1119, %v1170
        %1172 = vmatmul.f32.gmra.mxu0 %v633
        %v1173 = vpop.f32.mrf.mxu0
        %v1174 = vadd.f32 %v1119, %v1173
        %1175 = vmatmul.f32.gmra.mxu0 %v635
        %v1176 = vpop.f32.mrf.mxu0
        %v1177 = vadd.f32 %v1119, %v1176
        %1178 = vmatmul.f32.gmra.mxu0 %v637
        %v1179 = vpop.f32.mrf.mxu0
        %v1180 = vadd.f32 %v1119, %v1179
        %1181 = vmatmul.f32.gmra.mxu0 %v639
        %v1182 = vpop.f32.mrf.mxu0
        %v1183 = vadd.f32 %v1119, %v1182
        %1184 = vmatmul.f32.gmra.mxu0 %v641
        %v1185 = vpop.f32.mrf.mxu0
        %v1186 = vadd.f32 %v1119, %v1185
        %1187 = vmatmul.f32.gmra.mxu0 %v643
        %v1188 = vpop.f32.mrf.mxu0
        %v1189 = vadd.f32 %v1119, %v1188
        %1190 = vmatmul.f32.gmra.mxu0 %v645
        %v1191 = vpop.f32.mrf.mxu0
        %v1192 = vadd.f32 %v1119, %v1191
        %1193 = vmatmul.f32.gmra.mxu0 %v647
        %v1194 = vpop.f32.mrf.mxu0
        %v1195 = vadd.f32 %v1119, %v1194
        %1196 = vmatmul.f32.gmra.mxu0 %v649
        %v1197 = vpop.f32.mrf.mxu0
        %v1198 = vadd.f32 %v1119, %v1197
        %1199 = vmatmul.f32.gmra.mxu0 %v651
        %v1200 = vpop.f32.mrf.mxu0
        %v1201 = vadd.f32 %v1119, %v1200
        %1202 = vmatmul.f32.gmra.mxu0 %v653
        %v1203 = vpop.f32.mrf.mxu0
        %v1204 = vadd.f32 %v1119, %v1203
        %1205 = vmatmul.f32.gmra.mxu0 %v655
        %v1206 = vpop.f32.mrf.mxu0
        %v1207 = vadd.f32 %v1119, %v1206
        %1208 = vmatmul.f32.gmra.mxu0 %v657
        %v1209 = vpop.f32.mrf.mxu0
        %v1210 = vadd.f32 %v1119, %v1209
        %1211 = vmatmul.f32.gmra.mxu0 %v659
        %v1212 = vpop.f32.mrf.mxu0
        %v1213 = vadd.f32 %v1119, %v1212
        %1214 = vmatmul.f32.gmra.mxu0 %v661
        %v1215 = vpop.f32.mrf.mxu0
        %v1216 = vadd.f32 %v1119, %v1215
        %1217 = vmatmul.f32.gmra.mxu0 %v663
        %v1218 = vpop.f32.mrf.mxu0
        %v1219 = vadd.f32 %v1119, %v1218
        %1220 = vmatmul.f32.gmra.mxu0 %v665
        %v1221 = vpop.f32.mrf.mxu0
        %v1222 = vadd.f32 %v1119, %v1221
        %1223 = vmatmul.f32.gmra.mxu0 %v667
        %v1224 = vpop.f32.mrf.mxu0
        %v1225 = vadd.f32 %v1119, %v1224
        %1226 = vmatmul.f32.gmra.mxu0 %v669
        %v1227 = vpop.f32.mrf.mxu0
        %v1228 = vadd.f32 %v1119, %v1227
        %1229 = vmatmul.f32.gmra.mxu0 %v671
        %v1230 = vpop.f32.mrf.mxu0
        %v1231 = vadd.f32 %v1119, %v1230
        %1232 = vmatmul.f32.gmra.mxu0 %v673
        %v1233 = vpop.f32.mrf.mxu0
        %v1234 = vadd.f32 %v1119, %v1233
        %1235 = vmatmul.f32.gmra.mxu0 %v675
        %v1236 = vpop.f32.mrf.mxu0
        %v1237 = vadd.f32 %v1119, %v1236
        %1238 = vmatmul.f32.gmra.mxu0 %v677
        %v1239 = vpop.f32.mrf.mxu0
        %v1240 = vadd.f32 %v1119, %v1239
        %1241 = vmatmul.f32.gmra.mxu0 %v679
        %v1242 = vpop.f32.mrf.mxu0
        %v1243 = vadd.f32 %v1119, %v1242
        %1244 = vmatmul.f32.gmra.mxu0 %v681
        %v1245 = vpop.f32.mrf.mxu0
        %v1246 = vadd.f32 %v1119, %v1245
        %1247 = vmatmul.f32.gmra.mxu0 %v683
        %v1248 = vpop.f32.mrf.mxu0
        %v1249 = vadd.f32 %v1119, %v1248
        %1250 = vmatmul.f32.gmra.mxu0 %v685
        %v1251 = vpop.f32.mrf.mxu0
        %v1252 = vadd.f32 %v1119, %v1251
        %1253 = vmatmul.f32.gmra.mxu0 %v687
        %v1254 = vpop.f32.mrf.mxu0
        %v1255 = vadd.f32 %v1119, %v1254
        %1256 = vmatmul.f32.gmra.mxu0 %v689
        %v1257 = vpop.f32.mrf.mxu0
        %v1258 = vadd.f32 %v1119, %v1257
        %1259 = vmatmul.f32.gmra.mxu0 %v691
        %v1260 = vpop.f32.mrf.mxu0
        %v1261 = vadd.f32 %v1119, %v1260
        %1262 = vmatmul.f32.gmra.mxu0 %v693
        %v1263 = vpop.f32.mrf.mxu0
        %v1264 = vadd.f32 %v1119, %v1263
        %1265 = vmatmul.f32.gmra.mxu0 %v695
        %v1266 = vpop.f32.mrf.mxu0
        %v1267 = vadd.f32 %v1119, %v1266
        %1268 = vmatmul.f32.gmra.mxu0 %v697
        %v1269 = vpop.f32.mrf.mxu0
        %v1270 = vadd.f32 %v1119, %v1269
        %1271 = vmatmul.f32.gmra.mxu0 %v699
        %v1272 = vpop.f32.mrf.mxu0
        %v1273 = vadd.f32 %v1119, %v1272
        %1274 = vmatmul.f32.gmra.mxu0 %v701
        %v1275 = vpop.f32.mrf.mxu0
        %v1276 = vadd.f32 %v1119, %v1275
        %1277 = vmatmul.f32.gmra.mxu0 %v703
        %v1278 = vpop.f32.mrf.mxu0
        %v1279 = vadd.f32 %v1119, %v1278
        %1280 = vmatmul.f32.gmra.mxu0 %v705
        %v1281 = vpop.f32.mrf.mxu0
        %v1282 = vadd.f32 %v1119, %v1281
        %1283 = vmatmul.f32.gmra.mxu0 %v707
        %v1284 = vpop.f32.mrf.mxu0
        %v1285 = vadd.f32 %v1119, %v1284
        %1286 = vmatmul.f32.gmra.mxu0 %v709
        %v1287 = vpop.f32.mrf.mxu0
        %v1288 = vadd.f32 %v1119, %v1287
        %1289 = vmatmul.f32.gmra.mxu0 %v711
        %v1290 = vpop.f32.mrf.mxu0
        %v1291 = vadd.f32 %v1119, %v1290
        %1292 = vmatmul.f32.gmra.mxu0 %v713
        %v1293 = vpop.f32.mrf.mxu0
        %v1294 = vadd.f32 %v1119, %v1293
        %1295 = vmatmul.f32.gmra.mxu0 %v715
        %v1296 = vpop.f32.mrf.mxu0
        %v1297 = vadd.f32 %v1119, %v1296
        %1298 = vmatmul.f32.gmra.mxu0 %v717
        %v1299 = vpop.f32.mrf.mxu0
        %v1300 = vadd.f32 %v1119, %v1299
        %1301 = vmatmul.f32.gmra.mxu0 %v719
        %v1302 = vpop.f32.mrf.mxu0
        %v1303 = vadd.f32 %v1119, %v1302
        %1304 = vmatmul.f32.gmra.mxu0 %v721
        %v1305 = vpop.f32.mrf.mxu0
        %v1306 = vadd.f32 %v1119, %v1305
        %1307 = vmatmul.f32.gmra.mxu0 %v723
        %v1308 = vpop.f32.mrf.mxu0
        %v1309 = vadd.f32 %v1119, %v1308
        %1310 = vmatmul.f32.gmra.mxu0 %v725
        %v1311 = vpop.f32.mrf.mxu0
        %v1312 = vadd.f32 %v1119, %v1311
        %1313 = vmatmul.f32.gmra.mxu0 %v727
        %v1314 = vpop.f32.mrf.mxu0
        %v1315 = vadd.f32 %v1119, %v1314
        %1316 = vmatmul.f32.gmra.mxu0 %v729
        %v1317 = vpop.f32.mrf.mxu0
        %v1318 = vadd.f32 %v1119, %v1317
        %1319 = vmatmul.f32.gmra.mxu0 %v731
        %v1320 = vpop.f32.mrf.mxu0
        %v1321 = vadd.f32 %v1119, %v1320
        %1322 = vmatmul.f32.gmra.mxu0 %v733
        %v1323 = vpop.f32.mrf.mxu0
        %v1324 = vadd.f32 %v1119, %v1323
        %1325 = vmatmul.f32.gmra.mxu0 %v735
        %v1326 = vpop.f32.mrf.mxu0
        %v1327 = vadd.f32 %v1119, %v1326
        %1328 = vmatmul.f32.gmra.mxu0 %v737
        %v1329 = vpop.f32.mrf.mxu0
        %v1330 = vadd.f32 %v1119, %v1329
        %1331 = vdwg.mxu0
        %1332 = vmatpush.msra.mxu0 %v1115
        %1333 = vmatpush.msra.mxu0 %v1113
        %1334 = vmatpush.msra.mxu0 %v1111
        %1335 = vmatpush.msra.mxu0 %v1109
        %1336 = vmatpush.msra.mxu0 %v1107
        %1337 = vmatpush.msra.mxu0 %v1105
        %1338 = vmatpush.msra.mxu0 %v1103
        %1339 = vmatpush.msra.mxu0 %v1101
        %1340 = vmatpush.msra.mxu0 %v1099
        %1341 = vmatpush.msra.mxu0 %v1097
        %1342 = vmatpush.msra.mxu0 %v1095
        %1343 = vmatpush.msra.mxu0 %v1093
        %1344 = vmatpush.msra.mxu0 %v1091
        %1345 = vmatpush.msra.mxu0 %v1089
        %1346 = vmatpush.msra.mxu0 %v1087
        %1347 = vmatpush.msra.mxu0 %v1085
        %1348 = vmatmul.f32.gmra.mxu0 %v612
        %v1349 = vpop.f32.mrf.mxu0
        %v1350 = vadd.f32 %v1141, %v1349
        %1351 = vmatmul.f32.gmra.mxu0 %v614
        %v1352 = vpop.f32.mrf.mxu0
        %v1353 = vadd.f32 %v1144, %v1352
        %1354 = vmatmul.f32.gmra.mxu0 %v616
        %v1355 = vpop.f32.mrf.mxu0
        %v1356 = vadd.f32 %v1147, %v1355
        %1357 = vmatmul.f32.gmra.mxu0 %v618
        %v1358 = vpop.f32.mrf.mxu0
        %v1359 = vadd.f32 %v1150, %v1358
        %1360 = vmatmul.f32.gmra.mxu0 %v620
        %v1361 = vpop.f32.mrf.mxu0
        %v1362 = vadd.f32 %v1153, %v1361
        %1363 = vmatmul.f32.gmra.mxu0 %v622
        %v1364 = vpop.f32.mrf.mxu0
        %v1365 = vadd.f32 %v1156, %v1364
        %1366 = vmatmul.f32.gmra.mxu0 %v624
        %v1367 = vpop.f32.mrf.mxu0
        %v1368 = vadd.f32 %v1159, %v1367
        %1369 = vmatmul.f32.gmra.mxu0 %v626
        %v1370 = vpop.f32.mrf.mxu0
        %v1371 = vadd.f32 %v1162, %v1370
        %1372 = vmatmul.f32.gmra.mxu0 %v628
        %v1373 = vpop.f32.mrf.mxu0
        %v1374 = vadd.f32 %v1165, %v1373
        %1375 = vmatmul.f32.gmra.mxu0 %v630
        %v1376 = vpop.f32.mrf.mxu0
        %v1377 = vadd.f32 %v1168, %v1376
        %1378 = vmatmul.f32.gmra.mxu0 %v632
        %v1379 = vpop.f32.mrf.mxu0
        %v1380 = vadd.f32 %v1171, %v1379
        %1381 = vmatmul.f32.gmra.mxu0 %v634
        %v1382 = vpop.f32.mrf.mxu0
        %v1383 = vadd.f32 %v1174, %v1382
        %1384 = vmatmul.f32.gmra.mxu0 %v636
        %v1385 = vpop.f32.mrf.mxu0
        %v1386 = vadd.f32 %v1177, %v1385
        %1387 = vmatmul.f32.gmra.mxu0 %v638
        %v1388 = vpop.f32.mrf.mxu0
        %v1389 = vadd.f32 %v1180, %v1388
        %1390 = vmatmul.f32.gmra.mxu0 %v640
        %v1391 = vpop.f32.mrf.mxu0
        %v1392 = vadd.f32 %v1183, %v1391
        %1393 = vmatmul.f32.gmra.mxu0 %v642
        %v1394 = vpop.f32.mrf.mxu0
        %v1395 = vadd.f32 %v1186, %v1394
        %1396 = vmatmul.f32.gmra.mxu0 %v644
        %v1397 = vpop.f32.mrf.mxu0
        %v1398 = vadd.f32 %v1189, %v1397
        %1399 = vmatmul.f32.gmra.mxu0 %v646
        %v1400 = vpop.f32.mrf.mxu0
        %v1401 = vadd.f32 %v1192, %v1400
        %1402 = vmatmul.f32.gmra.mxu0 %v648
        %v1403 = vpop.f32.mrf.mxu0
        %v1404 = vadd.f32 %v1195, %v1403
        %1405 = vmatmul.f32.gmra.mxu0 %v650
        %v1406 = vpop.f32.mrf.mxu0
        %v1407 = vadd.f32 %v1198, %v1406
        %1408 = vmatmul.f32.gmra.mxu0 %v652
        %v1409 = vpop.f32.mrf.mxu0
        %v1410 = vadd.f32 %v1201, %v1409
        %1411 = vmatmul.f32.gmra.mxu0 %v654
        %v1412 = vpop.f32.mrf.mxu0
        %v1413 = vadd.f32 %v1204, %v1412
        %1414 = vmatmul.f32.gmra.mxu0 %v656
        %v1415 = vpop.f32.mrf.mxu0
        %v1416 = vadd.f32 %v1207, %v1415
        %1417 = vmatmul.f32.gmra.mxu0 %v658
        %v1418 = vpop.f32.mrf.mxu0
        %v1419 = vadd.f32 %v1210, %v1418
        %1420 = vmatmul.f32.gmra.mxu0 %v660
        %v1421 = vpop.f32.mrf.mxu0
        %v1422 = vadd.f32 %v1213, %v1421
        %1423 = vmatmul.f32.gmra.mxu0 %v662
        %v1424 = vpop.f32.mrf.mxu0
        %v1425 = vadd.f32 %v1216, %v1424
        %1426 = vmatmul.f32.gmra.mxu0 %v664
        %v1427 = vpop.f32.mrf.mxu0
        %v1428 = vadd.f32 %v1219, %v1427
        %1429 = vmatmul.f32.gmra.mxu0 %v666
        %v1430 = vpop.f32.mrf.mxu0
        %v1431 = vadd.f32 %v1222, %v1430
        %1432 = vmatmul.f32.gmra.mxu0 %v668
        %v1433 = vpop.f32.mrf.mxu0
        %v1434 = vadd.f32 %v1225, %v1433
        %1435 = vmatmul.f32.gmra.mxu0 %v670
        %v1436 = vpop.f32.mrf.mxu0
        %v1437 = vadd.f32 %v1228, %v1436
        %1438 = vmatmul.f32.gmra.mxu0 %v672
        %v1439 = vpop.f32.mrf.mxu0
        %v1440 = vadd.f32 %v1231, %v1439
        %1441 = vmatmul.f32.gmra.mxu0 %v674
        %v1442 = vpop.f32.mrf.mxu0
        %v1443 = vadd.f32 %v1234, %v1442
        %1444 = vmatmul.f32.gmra.mxu0 %v676
        %v1445 = vpop.f32.mrf.mxu0
        %v1446 = vadd.f32 %v1237, %v1445
        %1447 = vmatmul.f32.gmra.mxu0 %v678
        %v1448 = vpop.f32.mrf.mxu0
        %v1449 = vadd.f32 %v1240, %v1448
        %1450 = vmatmul.f32.gmra.mxu0 %v680
        %v1451 = vpop.f32.mrf.mxu0
        %v1452 = vadd.f32 %v1243, %v1451
        %1453 = vmatmul.f32.gmra.mxu0 %v682
        %v1454 = vpop.f32.mrf.mxu0
        %v1455 = vadd.f32 %v1246, %v1454
        %1456 = vmatmul.f32.gmra.mxu0 %v684
        %v1457 = vpop.f32.mrf.mxu0
        %v1458 = vadd.f32 %v1249, %v1457
        %1459 = vmatmul.f32.gmra.mxu0 %v686
        %v1460 = vpop.f32.mrf.mxu0
        %v1461 = vadd.f32 %v1252, %v1460
        %1462 = vmatmul.f32.gmra.mxu0 %v688
        %v1463 = vpop.f32.mrf.mxu0
        %v1464 = vadd.f32 %v1255, %v1463
        %1465 = vmatmul.f32.gmra.mxu0 %v690
        %v1466 = vpop.f32.mrf.mxu0
        %v1467 = vadd.f32 %v1258, %v1466
        %1468 = vmatmul.f32.gmra.mxu0 %v692
        %v1469 = vpop.f32.mrf.mxu0
        %v1470 = vadd.f32 %v1261, %v1469
        %1471 = vmatmul.f32.gmra.mxu0 %v694
        %v1472 = vpop.f32.mrf.mxu0
        %v1473 = vadd.f32 %v1264, %v1472
        %1474 = vmatmul.f32.gmra.mxu0 %v696
        %v1475 = vpop.f32.mrf.mxu0
        %v1476 = vadd.f32 %v1267, %v1475
        %1477 = vmatmul.f32.gmra.mxu0 %v698
        %v1478 = vpop.f32.mrf.mxu0
        %v1479 = vadd.f32 %v1270, %v1478
        %1480 = vmatmul.f32.gmra.mxu0 %v700
        %v1481 = vpop.f32.mrf.mxu0
        %v1482 = vadd.f32 %v1273, %v1481
        %1483 = vmatmul.f32.gmra.mxu0 %v702
        %v1484 = vpop.f32.mrf.mxu0
        %v1485 = vadd.f32 %v1276, %v1484
        %1486 = vmatmul.f32.gmra.mxu0 %v704
        %v1487 = vpop.f32.mrf.mxu0
        %v1488 = vadd.f32 %v1279, %v1487
        %1489 = vmatmul.f32.gmra.mxu0 %v706
        %v1490 = vpop.f32.mrf.mxu0
        %v1491 = vadd.f32 %v1282, %v1490
        %1492 = vmatmul.f32.gmra.mxu0 %v708
        %v1493 = vpop.f32.mrf.mxu0
        %v1494 = vadd.f32 %v1285, %v1493
        %1495 = vmatmul.f32.gmra.mxu0 %v710
        %v1496 = vpop.f32.mrf.mxu0
        %v1497 = vadd.f32 %v1288, %v1496
        %1498 = vmatmul.f32.gmra.mxu0 %v712
        %v1499 = vpop.f32.mrf.mxu0
        %v1500 = vadd.f32 %v1291, %v1499
        %1501 = vmatmul.f32.gmra.mxu0 %v714
        %v1502 = vpop.f32.mrf.mxu0
        %v1503 = vadd.f32 %v1294, %v1502
        %1504 = vmatmul.f32.gmra.mxu0 %v716
        %v1505 = vpop.f32.mrf.mxu0
        %v1506 = vadd.f32 %v1297, %v1505
        %1507 = vmatmul.f32.gmra.mxu0 %v718
        %v1508 = vpop.f32.mrf.mxu0
        %v1509 = vadd.f32 %v1300, %v1508
        %1510 = vmatmul.f32.gmra.mxu0 %v720
        %v1511 = vpop.f32.mrf.mxu0
        %v1512 = vadd.f32 %v1303, %v1511
        %1513 = vmatmul.f32.gmra.mxu0 %v722
        %v1514 = vpop.f32.mrf.mxu0
        %v1515 = vadd.f32 %v1306, %v1514
        %1516 = vmatmul.f32.gmra.mxu0 %v724
        %v1517 = vpop.f32.mrf.mxu0
        %v1518 = vadd.f32 %v1309, %v1517
        %1519 = vmatmul.f32.gmra.mxu0 %v726
        %v1520 = vpop.f32.mrf.mxu0
        %v1521 = vadd.f32 %v1312, %v1520
        %1522 = vmatmul.f32.gmra.mxu0 %v728
        %v1523 = vpop.f32.mrf.mxu0
        %v1524 = vadd.f32 %v1315, %v1523
        %1525 = vmatmul.f32.gmra.mxu0 %v730
        %v1526 = vpop.f32.mrf.mxu0
        %v1527 = vadd.f32 %v1318, %v1526
        %1528 = vmatmul.f32.gmra.mxu0 %v732
        %v1529 = vpop.f32.mrf.mxu0
        %v1530 = vadd.f32 %v1321, %v1529
        %1531 = vmatmul.f32.gmra.mxu0 %v734
        %v1532 = vpop.f32.mrf.mxu0
        %v1533 = vadd.f32 %v1324, %v1532
        %1534 = vmatmul.f32.gmra.mxu0 %v736
        %v1535 = vpop.f32.mrf.mxu0
        %v1536 = vadd.f32 %v1327, %v1535
        %1537 = vmatmul.f32.gmra.mxu0 %v738
        %v1538 = vpop.f32.mrf.mxu0
        %v1539 = vadd.f32 %v1330, %v1538
        %1540 = vdwg.mxu0
        %1541 = vmatpush.msra.mxu0 %v1084
        %1542 = vmatpush.msra.mxu0 %v1082
        %1543 = vmatpush.msra.mxu0 %v1080
        %1544 = vmatpush.msra.mxu0 %v1078
        %1545 = vmatpush.msra.mxu0 %v1076
        %1546 = vmatpush.msra.mxu0 %v1074
        %1547 = vmatpush.msra.mxu0 %v1072
        %1548 = vmatpush.msra.mxu0 %v1070
        %1549 = vmatpush.msra.mxu0 %v1068
        %1550 = vmatpush.msra.mxu0 %v1066
        %1551 = vmatpush.msra.mxu0 %v1064
        %1552 = vmatpush.msra.mxu0 %v1062
        %1553 = vmatpush.msra.mxu0 %v1060
        %1554 = vmatpush.msra.mxu0 %v1058
        %1555 = vmatpush.msra.mxu0 %v1056
        %1556 = vmatpush.msra.mxu0 %v1054
        %1557 = vmatmul.f32.gmra.mxu0 %v611
        %v1558 = vpop.f32.mrf.mxu0
        %v1559 = vadd.f32 %v1120, %v1558
        %1560 = vmatmul.f32.gmra.mxu0 %v613
        %v1561 = vpop.f32.mrf.mxu0
        %v1562 = vadd.f32 %v1120, %v1561
        %1563 = vmatmul.f32.gmra.mxu0 %v615
        %v1564 = vpop.f32.mrf.mxu0
        %v1565 = vadd.f32 %v1120, %v1564
        %1566 = vmatmul.f32.gmra.mxu0 %v617
        %v1567 = vpop.f32.mrf.mxu0
        %v1568 = vadd.f32 %v1120, %v1567
        %1569 = vmatmul.f32.gmra.mxu0 %v619
        %v1570 = vpop.f32.mrf.mxu0
        %v1571 = vadd.f32 %v1120, %v1570
        %1572 = vmatmul.f32.gmra.mxu0 %v621
        %v1573 = vpop.f32.mrf.mxu0
        %v1574 = vadd.f32 %v1120, %v1573
        %1575 = vmatmul.f32.gmra.mxu0 %v623
        %v1576 = vpop.f32.mrf.mxu0
        %v1577 = vadd.f32 %v1120, %v1576
        %1578 = vmatmul.f32.gmra.mxu0 %v625
        %v1579 = vpop.f32.mrf.mxu0
        %v1580 = vadd.f32 %v1120, %v1579
        %1581 = vmatmul.f32.gmra.mxu0 %v627
        %v1582 = vpop.f32.mrf.mxu0
        %v1583 = vadd.f32 %v1120, %v1582
        %1584 = vmatmul.f32.gmra.mxu0 %v629
        %v1585 = vpop.f32.mrf.mxu0
        %v1586 = vadd.f32 %v1120, %v1585
        %1587 = vmatmul.f32.gmra.mxu0 %v631
        %v1588 = vpop.f32.mrf.mxu0
        %v1589 = vadd.f32 %v1120, %v1588
        %1590 = vmatmul.f32.gmra.mxu0 %v633
        %v1591 = vpop.f32.mrf.mxu0
        %v1592 = vadd.f32 %v1120, %v1591
        %1593 = vmatmul.f32.gmra.mxu0 %v635
        %v1594 = vpop.f32.mrf.mxu0
        %v1595 = vadd.f32 %v1120, %v1594
        %1596 = vmatmul.f32.gmra.mxu0 %v637
        %v1597 = vpop.f32.mrf.mxu0
        %v1598 = vadd.f32 %v1120, %v1597
        %1599 = vmatmul.f32.gmra.mxu0 %v639
        %v1600 = vpop.f32.mrf.mxu0
        %v1601 = vadd.f32 %v1120, %v1600
        %1602 = vmatmul.f32.gmra.mxu0 %v641
        %v1603 = vpop.f32.mrf.mxu0
        %v1604 = vadd.f32 %v1120, %v1603
        %1605 = vmatmul.f32.gmra.mxu0 %v643
        %v1606 = vpop.f32.mrf.mxu0
        %v1607 = vadd.f32 %v1120, %v1606
        %1608 = vmatmul.f32.gmra.mxu0 %v645
        %v1609 = vpop.f32.mrf.mxu0
        %v1610 = vadd.f32 %v1120, %v1609
        %1611 = vmatmul.f32.gmra.mxu0 %v647
        %v1612 = vpop.f32.mrf.mxu0
        %v1613 = vadd.f32 %v1120, %v1612
        %1614 = vmatmul.f32.gmra.mxu0 %v649
        %v1615 = vpop.f32.mrf.mxu0
        %v1616 = vadd.f32 %v1120, %v1615
        %1617 = vmatmul.f32.gmra.mxu0 %v651
        %v1618 = vpop.f32.mrf.mxu0
        %v1619 = vadd.f32 %v1120, %v1618
        %1620 = vmatmul.f32.gmra.mxu0 %v653
        %v1621 = vpop.f32.mrf.mxu0
        %v1622 = vadd.f32 %v1120, %v1621
        %1623 = vmatmul.f32.gmra.mxu0 %v655
        %v1624 = vpop.f32.mrf.mxu0
        %v1625 = vadd.f32 %v1120, %v1624
        %1626 = vmatmul.f32.gmra.mxu0 %v657
        %v1627 = vpop.f32.mrf.mxu0
        %v1628 = vadd.f32 %v1120, %v1627
        %1629 = vmatmul.f32.gmra.mxu0 %v659
        %v1630 = vpop.f32.mrf.mxu0
        %v1631 = vadd.f32 %v1120, %v1630
        %1632 = vmatmul.f32.gmra.mxu0 %v661
        %v1633 = vpop.f32.mrf.mxu0
        %v1634 = vadd.f32 %v1120, %v1633
        %1635 = vmatmul.f32.gmra.mxu0 %v663
        %v1636 = vpop.f32.mrf.mxu0
        %v1637 = vadd.f32 %v1120, %v1636
        %1638 = vmatmul.f32.gmra.mxu0 %v665
        %v1639 = vpop.f32.mrf.mxu0
        %v1640 = vadd.f32 %v1120, %v1639
        %1641 = vmatmul.f32.gmra.mxu0 %v667
        %v1642 = vpop.f32.mrf.mxu0
        %v1643 = vadd.f32 %v1120, %v1642
        %1644 = vmatmul.f32.gmra.mxu0 %v669
        %v1645 = vpop.f32.mrf.mxu0
        %v1646 = vadd.f32 %v1120, %v1645
        %1647 = vmatmul.f32.gmra.mxu0 %v671
        %v1648 = vpop.f32.mrf.mxu0
        %v1649 = vadd.f32 %v1120, %v1648
        %1650 = vmatmul.f32.gmra.mxu0 %v673
        %v1651 = vpop.f32.mrf.mxu0
        %v1652 = vadd.f32 %v1120, %v1651
        %1653 = vmatmul.f32.gmra.mxu0 %v675
        %v1654 = vpop.f32.mrf.mxu0
        %v1655 = vadd.f32 %v1120, %v1654
        %1656 = vmatmul.f32.gmra.mxu0 %v677
        %v1657 = vpop.f32.mrf.mxu0
        %v1658 = vadd.f32 %v1120, %v1657
        %1659 = vmatmul.f32.gmra.mxu0 %v679
        %v1660 = vpop.f32.mrf.mxu0
        %v1661 = vadd.f32 %v1120, %v1660
        %1662 = vmatmul.f32.gmra.mxu0 %v681
        %v1663 = vpop.f32.mrf.mxu0
        %v1664 = vadd.f32 %v1120, %v1663
        %1665 = vmatmul.f32.gmra.mxu0 %v683
        %v1666 = vpop.f32.mrf.mxu0
        %v1667 = vadd.f32 %v1120, %v1666
        %1668 = vmatmul.f32.gmra.mxu0 %v685
        %v1669 = vpop.f32.mrf.mxu0
        %v1670 = vadd.f32 %v1120, %v1669
        %1671 = vmatmul.f32.gmra.mxu0 %v687
        %v1672 = vpop.f32.mrf.mxu0
        %v1673 = vadd.f32 %v1120, %v1672
        %1674 = vmatmul.f32.gmra.mxu0 %v689
        %v1675 = vpop.f32.mrf.mxu0
        %v1676 = vadd.f32 %v1120, %v1675
        %1677 = vmatmul.f32.gmra.mxu0 %v691
        %v1678 = vpop.f32.mrf.mxu0
        %v1679 = vadd.f32 %v1120, %v1678
        %1680 = vmatmul.f32.gmra.mxu0 %v693
        %v1681 = vpop.f32.mrf.mxu0
        %v1682 = vadd.f32 %v1120, %v1681
        %1683 = vmatmul.f32.gmra.mxu0 %v695
        %v1684 = vpop.f32.mrf.mxu0
        %v1685 = vadd.f32 %v1120, %v1684
        %1686 = vmatmul.f32.gmra.mxu0 %v697
        %v1687 = vpop.f32.mrf.mxu0
        %v1688 = vadd.f32 %v1120, %v1687
        %1689 = vmatmul.f32.gmra.mxu0 %v699
        %v1690 = vpop.f32.mrf.mxu0
        %v1691 = vadd.f32 %v1120, %v1690
        %1692 = vmatmul.f32.gmra.mxu0 %v701
        %v1693 = vpop.f32.mrf.mxu0
        %v1694 = vadd.f32 %v1120, %v1693
        %1695 = vmatmul.f32.gmra.mxu0 %v703
        %v1696 = vpop.f32.mrf.mxu0
        %v1697 = vadd.f32 %v1120, %v1696
        %1698 = vmatmul.f32.gmra.mxu0 %v705
        %v1699 = vpop.f32.mrf.mxu0
        %v1700 = vadd.f32 %v1120, %v1699
        %1701 = vmatmul.f32.gmra.mxu0 %v707
        %v1702 = vpop.f32.mrf.mxu0
        %v1703 = vadd.f32 %v1120, %v1702
        %1704 = vmatmul.f32.gmra.mxu0 %v709
        %v1705 = vpop.f32.mrf.mxu0
        %v1706 = vadd.f32 %v1120, %v1705
        %1707 = vmatmul.f32.gmra.mxu0 %v711
        %v1708 = vpop.f32.mrf.mxu0
        %v1709 = vadd.f32 %v1120, %v1708
        %1710 = vmatmul.f32.gmra.mxu0 %v713
        %v1711 = vpop.f32.mrf.mxu0
        %v1712 = vadd.f32 %v1120, %v1711
        %1713 = vmatmul.f32.gmra.mxu0 %v715
        %v1714 = vpop.f32.mrf.mxu0
        %v1715 = vadd.f32 %v1120, %v1714
        %1716 = vmatmul.f32.gmra.mxu0 %v717
        %v1717 = vpop.f32.mrf.mxu0
        %v1718 = vadd.f32 %v1120, %v1717
        %1719 = vmatmul.f32.gmra.mxu0 %v719
        %v1720 = vpop.f32.mrf.mxu0
        %v1721 = vadd.f32 %v1120, %v1720
        %1722 = vmatmul.f32.gmra.mxu0 %v721
        %v1723 = vpop.f32.mrf.mxu0
        %v1724 = vadd.f32 %v1120, %v1723
        %1725 = vmatmul.f32.gmra.mxu0 %v723
        %v1726 = vpop.f32.mrf.mxu0
        %v1727 = vadd.f32 %v1120, %v1726
        %1728 = vmatmul.f32.gmra.mxu0 %v725
        %v1729 = vpop.f32.mrf.mxu0
        %v1730 = vadd.f32 %v1120, %v1729
        %1731 = vmatmul.f32.gmra.mxu0 %v727
        %v1732 = vpop.f32.mrf.mxu0
        %v1733 = vadd.f32 %v1120, %v1732
        %1734 = vmatmul.f32.gmra.mxu0 %v729
        %v1735 = vpop.f32.mrf.mxu0
        %v1736 = vadd.f32 %v1120, %v1735
        %1737 = vmatmul.f32.gmra.mxu0 %v731
        %v1738 = vpop.f32.mrf.mxu0
        %v1739 = vadd.f32 %v1120, %v1738
        %1740 = vmatmul.f32.gmra.mxu0 %v733
        %v1741 = vpop.f32.mrf.mxu0
        %v1742 = vadd.f32 %v1120, %v1741
        %1743 = vmatmul.f32.gmra.mxu0 %v735
        %v1744 = vpop.f32.mrf.mxu0
        %v1745 = vadd.f32 %v1120, %v1744
        %1746 = vmatmul.f32.gmra.mxu0 %v737
        %v1747 = vpop.f32.mrf.mxu0
        %v1748 = vadd.f32 %v1120, %v1747
        %1749 = vdwg.mxu0
        %1750 = vmatpush.msra.mxu0 %v1116
        %1751 = vmatpush.msra.mxu0 %v1114
        %1752 = vmatpush.msra.mxu0 %v1112
        %1753 = vmatpush.msra.mxu0 %v1110
        %1754 = vmatpush.msra.mxu0 %v1108
        %1755 = vmatpush.msra.mxu0 %v1106
        %1756 = vmatpush.msra.mxu0 %v1104
        %1757 = vmatpush.msra.mxu0 %v1102
        %1758 = vmatpush.msra.mxu0 %v1100
        %1759 = vmatpush.msra.mxu0 %v1098
        %1760 = vmatpush.msra.mxu0 %v1096
        %1761 = vmatpush.msra.mxu0 %v1094
        %1762 = vmatpush.msra.mxu0 %v1092
        %1763 = vmatpush.msra.mxu0 %v1090
        %1764 = vmatpush.msra.mxu0 %v1088
        %1765 = vmatpush.msra.mxu0 %v1086
        %1766 = vmatmul.f32.gmra.mxu0 %v612
        %v1767 = vpop.f32.mrf.mxu0
        %v1768 = vadd.f32 %v1559, %v1767
        %1769 = vmatmul.f32.gmra.mxu0 %v614
        %v1770 = vpop.f32.mrf.mxu0
        %v1771 = vadd.f32 %v1562, %v1770
        %1772 = vmatmul.f32.gmra.mxu0 %v616
        %v1773 = vpop.f32.mrf.mxu0
        %v1774 = vadd.f32 %v1565, %v1773
        %1775 = vmatmul.f32.gmra.mxu0 %v618
        %v1776 = vpop.f32.mrf.mxu0
        %v1777 = vadd.f32 %v1568, %v1776
        %1778 = vmatmul.f32.gmra.mxu0 %v620
        %v1779 = vpop.f32.mrf.mxu0
        %v1780 = vadd.f32 %v1571, %v1779
        %1781 = vmatmul.f32.gmra.mxu0 %v622
        %v1782 = vpop.f32.mrf.mxu0
        %v1783 = vadd.f32 %v1574, %v1782
        %1784 = vmatmul.f32.gmra.mxu0 %v624
        %v1785 = vpop.f32.mrf.mxu0
        %v1786 = vadd.f32 %v1577, %v1785
        %1787 = vmatmul.f32.gmra.mxu0 %v626
        %v1788 = vpop.f32.mrf.mxu0
        %v1789 = vadd.f32 %v1580, %v1788
        %1790 = vmatmul.f32.gmra.mxu0 %v628
        %v1791 = vpop.f32.mrf.mxu0
        %v1792 = vadd.f32 %v1583, %v1791
        %1793 = vmatmul.f32.gmra.mxu0 %v630
        %v1794 = vpop.f32.mrf.mxu0
        %v1795 = vadd.f32 %v1586, %v1794
        %1796 = vmatmul.f32.gmra.mxu0 %v632
        %v1797 = vpop.f32.mrf.mxu0
        %v1798 = vadd.f32 %v1589, %v1797
        %1799 = vmatmul.f32.gmra.mxu0 %v634
        %v1800 = vpop.f32.mrf.mxu0
        %v1801 = vadd.f32 %v1592, %v1800
        %1802 = vmatmul.f32.gmra.mxu0 %v636
        %v1803 = vpop.f32.mrf.mxu0
        %v1804 = vadd.f32 %v1595, %v1803
        %1805 = vmatmul.f32.gmra.mxu0 %v638
        %v1806 = vpop.f32.mrf.mxu0
        %v1807 = vadd.f32 %v1598, %v1806
        %1808 = vmatmul.f32.gmra.mxu0 %v640
        %v1809 = vpop.f32.mrf.mxu0
        %v1810 = vadd.f32 %v1601, %v1809
        %1811 = vmatmul.f32.gmra.mxu0 %v642
        %v1812 = vpop.f32.mrf.mxu0
        %v1813 = vadd.f32 %v1604, %v1812
        %1814 = vmatmul.f32.gmra.mxu0 %v644
        %v1815 = vpop.f32.mrf.mxu0
        %v1816 = vadd.f32 %v1607, %v1815
        %1817 = vmatmul.f32.gmra.mxu0 %v646
        %v1818 = vpop.f32.mrf.mxu0
        %v1819 = vadd.f32 %v1610, %v1818
        %1820 = vmatmul.f32.gmra.mxu0 %v648
        %v1821 = vpop.f32.mrf.mxu0
        %v1822 = vadd.f32 %v1613, %v1821
        %1823 = vmatmul.f32.gmra.mxu0 %v650
        %v1824 = vpop.f32.mrf.mxu0
        %v1825 = vadd.f32 %v1616, %v1824
        %1826 = vmatmul.f32.gmra.mxu0 %v652
        %v1827 = vpop.f32.mrf.mxu0
        %v1828 = vadd.f32 %v1619, %v1827
        %1829 = vmatmul.f32.gmra.mxu0 %v654
        %v1830 = vpop.f32.mrf.mxu0
        %v1831 = vadd.f32 %v1622, %v1830
        %1832 = vmatmul.f32.gmra.mxu0 %v656
        %v1833 = vpop.f32.mrf.mxu0
        %v1834 = vadd.f32 %v1625, %v1833
        %1835 = vmatmul.f32.gmra.mxu0 %v658
        %v1836 = vpop.f32.mrf.mxu0
        %v1837 = vadd.f32 %v1628, %v1836
        %1838 = vmatmul.f32.gmra.mxu0 %v660
        %v1839 = vpop.f32.mrf.mxu0
        %v1840 = vadd.f32 %v1631, %v1839
        %1841 = vmatmul.f32.gmra.mxu0 %v662
        %v1842 = vpop.f32.mrf.mxu0
        %v1843 = vadd.f32 %v1634, %v1842
        %1844 = vmatmul.f32.gmra.mxu0 %v664
        %v1845 = vpop.f32.mrf.mxu0
        %v1846 = vadd.f32 %v1637, %v1845
        %1847 = vmatmul.f32.gmra.mxu0 %v666
        %v1848 = vpop.f32.mrf.mxu0
        %v1849 = vadd.f32 %v1640, %v1848
        %1850 = vmatmul.f32.gmra.mxu0 %v668
        %v1851 = vpop.f32.mrf.mxu0
        %v1852 = vadd.f32 %v1643, %v1851
        %1853 = vmatmul.f32.gmra.mxu0 %v670
        %v1854 = vpop.f32.mrf.mxu0
        %v1855 = vadd.f32 %v1646, %v1854
        %1856 = vmatmul.f32.gmra.mxu0 %v672
        %v1857 = vpop.f32.mrf.mxu0
        %v1858 = vadd.f32 %v1649, %v1857
        %1859 = vmatmul.f32.gmra.mxu0 %v674
        %v1860 = vpop.f32.mrf.mxu0
        %v1861 = vadd.f32 %v1652, %v1860
        %1862 = vmatmul.f32.gmra.mxu0 %v676
        %v1863 = vpop.f32.mrf.mxu0
        %v1864 = vadd.f32 %v1655, %v1863
        %1865 = vmatmul.f32.gmra.mxu0 %v678
        %v1866 = vpop.f32.mrf.mxu0
        %v1867 = vadd.f32 %v1658, %v1866
        %1868 = vmatmul.f32.gmra.mxu0 %v680
        %v1869 = vpop.f32.mrf.mxu0
        %v1870 = vadd.f32 %v1661, %v1869
        %1871 = vmatmul.f32.gmra.mxu0 %v682
        %v1872 = vpop.f32.mrf.mxu0
        %v1873 = vadd.f32 %v1664, %v1872
        %1874 = vmatmul.f32.gmra.mxu0 %v684
        %v1875 = vpop.f32.mrf.mxu0
        %v1876 = vadd.f32 %v1667, %v1875
        %1877 = vmatmul.f32.gmra.mxu0 %v686
        %v1878 = vpop.f32.mrf.mxu0
        %v1879 = vadd.f32 %v1670, %v1878
        %1880 = vmatmul.f32.gmra.mxu0 %v688
        %v1881 = vpop.f32.mrf.mxu0
        %v1882 = vadd.f32 %v1673, %v1881
        %1883 = vmatmul.f32.gmra.mxu0 %v690
        %v1884 = vpop.f32.mrf.mxu0
        %v1885 = vadd.f32 %v1676, %v1884
        %1886 = vmatmul.f32.gmra.mxu0 %v692
        %v1887 = vpop.f32.mrf.mxu0
        %v1888 = vadd.f32 %v1679, %v1887
        %1889 = vmatmul.f32.gmra.mxu0 %v694
        %v1890 = vpop.f32.mrf.mxu0
        %v1891 = vadd.f32 %v1682, %v1890
        %1892 = vmatmul.f32.gmra.mxu0 %v696
        %v1893 = vpop.f32.mrf.mxu0
        %v1894 = vadd.f32 %v1685, %v1893
        %1895 = vmatmul.f32.gmra.mxu0 %v698
        %v1896 = vpop.f32.mrf.mxu0
        %v1897 = vadd.f32 %v1688, %v1896
        %1898 = vmatmul.f32.gmra.mxu0 %v700
        %v1899 = vpop.f32.mrf.mxu0
        %v1900 = vadd.f32 %v1691, %v1899
        %1901 = vmatmul.f32.gmra.mxu0 %v702
        %v1902 = vpop.f32.mrf.mxu0
        %v1903 = vadd.f32 %v1694, %v1902
        %1904 = vmatmul.f32.gmra.mxu0 %v704
        %v1905 = vpop.f32.mrf.mxu0
        %v1906 = vadd.f32 %v1697, %v1905
        %1907 = vmatmul.f32.gmra.mxu0 %v706
        %v1908 = vpop.f32.mrf.mxu0
        %v1909 = vadd.f32 %v1700, %v1908
        %1910 = vmatmul.f32.gmra.mxu0 %v708
        %v1911 = vpop.f32.mrf.mxu0
        %v1912 = vadd.f32 %v1703, %v1911
        %1913 = vmatmul.f32.gmra.mxu0 %v710
        %v1914 = vpop.f32.mrf.mxu0
        %v1915 = vadd.f32 %v1706, %v1914
        %1916 = vmatmul.f32.gmra.mxu0 %v712
        %v1917 = vpop.f32.mrf.mxu0
        %v1918 = vadd.f32 %v1709, %v1917
        %1919 = vmatmul.f32.gmra.mxu0 %v714
        %v1920 = vpop.f32.mrf.mxu0
        %v1921 = vadd.f32 %v1712, %v1920
        %1922 = vmatmul.f32.gmra.mxu0 %v716
        %v1923 = vpop.f32.mrf.mxu0
        %v1924 = vadd.f32 %v1715, %v1923
        %1925 = vmatmul.f32.gmra.mxu0 %v718
        %v1926 = vpop.f32.mrf.mxu0
        %v1927 = vadd.f32 %v1718, %v1926
        %1928 = vmatmul.f32.gmra.mxu0 %v720
        %v1929 = vpop.f32.mrf.mxu0
        %v1930 = vadd.f32 %v1721, %v1929
        %1931 = vmatmul.f32.gmra.mxu0 %v722
        %v1932 = vpop.f32.mrf.mxu0
        %v1933 = vadd.f32 %v1724, %v1932
        %1934 = vmatmul.f32.gmra.mxu0 %v724
        %v1935 = vpop.f32.mrf.mxu0
        %v1936 = vadd.f32 %v1727, %v1935
        %1937 = vmatmul.f32.gmra.mxu0 %v726
        %v1938 = vpop.f32.mrf.mxu0
        %v1939 = vadd.f32 %v1730, %v1938
        %1940 = vmatmul.f32.gmra.mxu0 %v728
        %v1941 = vpop.f32.mrf.mxu0
        %v1942 = vadd.f32 %v1733, %v1941
        %1943 = vmatmul.f32.gmra.mxu0 %v730
        %v1944 = vpop.f32.mrf.mxu0
        %v1945 = vadd.f32 %v1736, %v1944
        %1946 = vmatmul.f32.gmra.mxu0 %v732
        %v1947 = vpop.f32.mrf.mxu0
        %v1948 = vadd.f32 %v1739, %v1947
        %1949 = vmatmul.f32.gmra.mxu0 %v734
        %v1950 = vpop.f32.mrf.mxu0
        %v1951 = vadd.f32 %v1742, %v1950
        %1952 = vmatmul.f32.gmra.mxu0 %v736
        %v1953 = vpop.f32.mrf.mxu0
        %v1954 = vadd.f32 %v1745, %v1953
        %1955 = vmatmul.f32.gmra.mxu0 %v738
        %v1956 = vpop.f32.mrf.mxu0
        %v1957 = vadd.f32 %v1748, %v1956
        %1958 = vdwg.mxu0
        %v1959 = vld [vmem:[#allocation11] sm:$0xff]
        %v1960 = vld [vmem:[#allocation11 + $0x8] sm:$0xff]
        %v1961 = vld [vmem:[#allocation11 + $0x10] sm:$0xff]
        %v1962 = vld [vmem:[#allocation11 + $0x18] sm:$0xff]
        %v1963 = vld [vmem:[#allocation11 + $0x20] sm:$0xff]
        %v1964 = vld [vmem:[#allocation11 + $0x28] sm:$0xff]
        %v1965 = vld [vmem:[#allocation11 + $0x30] sm:$0xff]
        %v1966 = vld [vmem:[#allocation11 + $0x38] sm:$0xff]
        %v1967 = vld [vmem:[#allocation11 + $0x40] sm:$0xff]
        %v1968 = vld [vmem:[#allocation11 + $0x48] sm:$0xff]
        %v1969 = vld [vmem:[#allocation11 + $0x50] sm:$0xff]
        %v1970 = vld [vmem:[#allocation11 + $0x58] sm:$0xff]
        %v1971 = vld [vmem:[#allocation11 + $0x60] sm:$0xff]
        %v1972 = vld [vmem:[#allocation11 + $0x68] sm:$0xff]
        %v1973 = vld [vmem:[#allocation11 + $0x70] sm:$0xff]
        %v1974 = vld [vmem:[#allocation11 + $0x78] sm:$0xff]
        %v1975 = vld [vmem:[#allocation11 + $0x80] sm:$0xff]
        %v1976 = vld [vmem:[#allocation11 + $0x88] sm:$0xff]
        %v1977 = vld [vmem:[#allocation11 + $0x90] sm:$0xff]
        %v1978 = vld [vmem:[#allocation11 + $0x98] sm:$0xff]
        %v1979 = vld [vmem:[#allocation11 + $0xa0] sm:$0xff]
        %v1980 = vld [vmem:[#allocation11 + $0xa8] sm:$0xff]
        %v1981 = vld [vmem:[#allocation11 + $0xb0] sm:$0xff]
        %v1982 = vld [vmem:[#allocation11 + $0xb8] sm:$0xff]
        %v1983 = vld [vmem:[#allocation11 + $0xc0] sm:$0xff]
        %v1984 = vld [vmem:[#allocation11 + $0xc8] sm:$0xff]
        %v1985 = vld [vmem:[#allocation11 + $0xd0] sm:$0xff]
        %v1986 = vld [vmem:[#allocation11 + $0xd8] sm:$0xff]
        %v1987 = vld [vmem:[#allocation11 + $0xe0] sm:$0xff]
        %v1988 = vld [vmem:[#allocation11 + $0xe8] sm:$0xff]
        %v1989 = vld [vmem:[#allocation11 + $0xf0] sm:$0xff]
        %v1990 = vld [vmem:[#allocation11 + $0xf8] sm:$0xff]
        %v1991 = vld [vmem:[#allocation11 + $0x100] sm:$0xff]
        %v1992 = vld [vmem:[#allocation11 + $0x108] sm:$0xff]
        %v1993 = vld [vmem:[#allocation11 + $0x110] sm:$0xff]
        %v1994 = vld [vmem:[#allocation11 + $0x118] sm:$0xff]
        %v1995 = vld [vmem:[#allocation11 + $0x120] sm:$0xff]
        %v1996 = vld [vmem:[#allocation11 + $0x128] sm:$0xff]
        %v1997 = vld [vmem:[#allocation11 + $0x130] sm:$0xff]
        %v1998 = vld [vmem:[#allocation11 + $0x138] sm:$0xff]
        %v1999 = vld [vmem:[#allocation11 + $0x140] sm:$0xff]
        %v2000 = vld [vmem:[#allocation11 + $0x148] sm:$0xff]
        %v2001 = vld [vmem:[#allocation11 + $0x150] sm:$0xff]
        %v2002 = vld [vmem:[#allocation11 + $0x158] sm:$0xff]
        %v2003 = vld [vmem:[#allocation11 + $0x160] sm:$0xff]
        %v2004 = vld [vmem:[#allocation11 + $0x168] sm:$0xff]
        %v2005 = vld [vmem:[#allocation11 + $0x170] sm:$0xff]
        %v2006 = vld [vmem:[#allocation11 + $0x178] sm:$0xff]
        %v2007 = vld [vmem:[#allocation11 + $0x180] sm:$0xff]
        %v2008 = vld [vmem:[#allocation11 + $0x188] sm:$0xff]
        %v2009 = vld [vmem:[#allocation11 + $0x190] sm:$0xff]
        %v2010 = vld [vmem:[#allocation11 + $0x198] sm:$0xff]
        %v2011 = vld [vmem:[#allocation11 + $0x1a0] sm:$0xff]
        %v2012 = vld [vmem:[#allocation11 + $0x1a8] sm:$0xff]
        %v2013 = vld [vmem:[#allocation11 + $0x1b0] sm:$0xff]
        %v2014 = vld [vmem:[#allocation11 + $0x1b8] sm:$0xff]
        %v2015 = vld [vmem:[#allocation11 + $0x1c0] sm:$0xff]
        %v2016 = vld [vmem:[#allocation11 + $0x1c8] sm:$0xff]
        %v2017 = vld [vmem:[#allocation11 + $0x1d0] sm:$0xff]
        %v2018 = vld [vmem:[#allocation11 + $0x1d8] sm:$0xff]
        %v2019 = vld [vmem:[#allocation11 + $0x1e0] sm:$0xff]
        %v2020 = vld [vmem:[#allocation11 + $0x1e8] sm:$0xff]
        %v2021 = vld [vmem:[#allocation11 + $0x1f0] sm:$0xff]
        %v2022 = vld [vmem:[#allocation11 + $0x1f8] sm:$0xff]
        %v2023 = vld [vmem:[%s8] sm:$0x3]
        %v2025 = vperm.slane %v2023, 0
        %v2026 = vperm.slane %v2023, 1
        %2029 = vmatpush.msra.mxu0 %v1989
        %2030 = vmatpush.msra.mxu0 %v1987
        %2031 = vmatpush.msra.mxu0 %v1985
        %2032 = vmatpush.msra.mxu0 %v1983
        %2033 = vmatpush.msra.mxu0 %v1981
        %2034 = vmatpush.msra.mxu0 %v1979
        %2035 = vmatpush.msra.mxu0 %v1977
        %2036 = vmatpush.msra.mxu0 %v1975
        %2037 = vmatpush.msra.mxu0 %v1973
        %2038 = vmatpush.msra.mxu0 %v1971
        %2039 = vmatpush.msra.mxu0 %v1969
        %2040 = vmatpush.msra.mxu0 %v1967
        %2041 = vmatpush.msra.mxu0 %v1965
        %2042 = vmatpush.msra.mxu0 %v1963
        %2043 = vmatpush.msra.mxu0 %v1961
        %2044 = vmatpush.msra.mxu0 %v1959
        %2045 = vmatmul.f32.gmra.mxu0 %v739
        %v2046 = vpop.f32.mrf.mxu0
        %v2047 = vadd.f32 %v2025, %v2046
        %2048 = vmatmul.f32.gmra.mxu0 %v741
        %v2049 = vpop.f32.mrf.mxu0
        %v2050 = vadd.f32 %v2025, %v2049
        %2051 = vmatmul.f32.gmra.mxu0 %v743
        %v2052 = vpop.f32.mrf.mxu0
        %v2053 = vadd.f32 %v2025, %v2052
        %2054 = vmatmul.f32.gmra.mxu0 %v745
        %v2055 = vpop.f32.mrf.mxu0
        %v2056 = vadd.f32 %v2025, %v2055
        %2057 = vmatmul.f32.gmra.mxu0 %v747
        %v2058 = vpop.f32.mrf.mxu0
        %v2059 = vadd.f32 %v2025, %v2058
        %2060 = vmatmul.f32.gmra.mxu0 %v749
        %v2061 = vpop.f32.mrf.mxu0
        %v2062 = vadd.f32 %v2025, %v2061
        %2063 = vmatmul.f32.gmra.mxu0 %v751
        %v2064 = vpop.f32.mrf.mxu0
        %v2065 = vadd.f32 %v2025, %v2064
        %2066 = vmatmul.f32.gmra.mxu0 %v753
        %v2067 = vpop.f32.mrf.mxu0
        %v2068 = vadd.f32 %v2025, %v2067
        %2069 = vmatmul.f32.gmra.mxu0 %v755
        %v2070 = vpop.f32.mrf.mxu0
        %v2071 = vadd.f32 %v2025, %v2070
        %2072 = vmatmul.f32.gmra.mxu0 %v757
        %v2073 = vpop.f32.mrf.mxu0
        %v2074 = vadd.f32 %v2025, %v2073
        %2075 = vmatmul.f32.gmra.mxu0 %v759
        %v2076 = vpop.f32.mrf.mxu0
        %v2077 = vadd.f32 %v2025, %v2076
        %2078 = vmatmul.f32.gmra.mxu0 %v761
        %v2079 = vpop.f32.mrf.mxu0
        %v2080 = vadd.f32 %v2025, %v2079
        %2081 = vmatmul.f32.gmra.mxu0 %v763
        %v2082 = vpop.f32.mrf.mxu0
        %v2083 = vadd.f32 %v2025, %v2082
        %2084 = vmatmul.f32.gmra.mxu0 %v765
        %v2085 = vpop.f32.mrf.mxu0
        %v2086 = vadd.f32 %v2025, %v2085
        %2087 = vmatmul.f32.gmra.mxu0 %v767
        %v2088 = vpop.f32.mrf.mxu0
        %v2089 = vadd.f32 %v2025, %v2088
        %2090 = vmatmul.f32.gmra.mxu0 %v769
        %v2091 = vpop.f32.mrf.mxu0
        %v2092 = vadd.f32 %v2025, %v2091
        %2093 = vmatmul.f32.gmra.mxu0 %v771
        %v2094 = vpop.f32.mrf.mxu0
        %v2095 = vadd.f32 %v2025, %v2094
        %2096 = vmatmul.f32.gmra.mxu0 %v773
        %v2097 = vpop.f32.mrf.mxu0
        %v2098 = vadd.f32 %v2025, %v2097
        %2099 = vmatmul.f32.gmra.mxu0 %v775
        %v2100 = vpop.f32.mrf.mxu0
        %v2101 = vadd.f32 %v2025, %v2100
        %2102 = vmatmul.f32.gmra.mxu0 %v777
        %v2103 = vpop.f32.mrf.mxu0
        %v2104 = vadd.f32 %v2025, %v2103
        %2105 = vmatmul.f32.gmra.mxu0 %v779
        %v2106 = vpop.f32.mrf.mxu0
        %v2107 = vadd.f32 %v2025, %v2106
        %2108 = vmatmul.f32.gmra.mxu0 %v781
        %v2109 = vpop.f32.mrf.mxu0
        %v2110 = vadd.f32 %v2025, %v2109
        %2111 = vmatmul.f32.gmra.mxu0 %v783
        %v2112 = vpop.f32.mrf.mxu0
        %v2113 = vadd.f32 %v2025, %v2112
        %2114 = vmatmul.f32.gmra.mxu0 %v785
        %v2115 = vpop.f32.mrf.mxu0
        %v2116 = vadd.f32 %v2025, %v2115
        %2117 = vmatmul.f32.gmra.mxu0 %v787
        %v2118 = vpop.f32.mrf.mxu0
        %v2119 = vadd.f32 %v2025, %v2118
        %2120 = vmatmul.f32.gmra.mxu0 %v789
        %v2121 = vpop.f32.mrf.mxu0
        %v2122 = vadd.f32 %v2025, %v2121
        %2123 = vmatmul.f32.gmra.mxu0 %v791
        %v2124 = vpop.f32.mrf.mxu0
        %v2125 = vadd.f32 %v2025, %v2124
        %2126 = vmatmul.f32.gmra.mxu0 %v793
        %v2127 = vpop.f32.mrf.mxu0
        %v2128 = vadd.f32 %v2025, %v2127
        %2129 = vmatmul.f32.gmra.mxu0 %v795
        %v2130 = vpop.f32.mrf.mxu0
        %v2131 = vadd.f32 %v2025, %v2130
        %2132 = vmatmul.f32.gmra.mxu0 %v797
        %v2133 = vpop.f32.mrf.mxu0
        %v2134 = vadd.f32 %v2025, %v2133
        %2135 = vmatmul.f32.gmra.mxu0 %v799
        %v2136 = vpop.f32.mrf.mxu0
        %v2137 = vadd.f32 %v2025, %v2136
        %2138 = vmatmul.f32.gmra.mxu0 %v801
        %v2139 = vpop.f32.mrf.mxu0
        %v2140 = vadd.f32 %v2025, %v2139
        %2141 = vmatmul.f32.gmra.mxu0 %v803
        %v2142 = vpop.f32.mrf.mxu0
        %v2143 = vadd.f32 %v2025, %v2142
        %2144 = vmatmul.f32.gmra.mxu0 %v805
        %v2145 = vpop.f32.mrf.mxu0
        %v2146 = vadd.f32 %v2025, %v2145
        %2147 = vmatmul.f32.gmra.mxu0 %v807
        %v2148 = vpop.f32.mrf.mxu0
        %v2149 = vadd.f32 %v2025, %v2148
        %2150 = vmatmul.f32.gmra.mxu0 %v809
        %v2151 = vpop.f32.mrf.mxu0
        %v2152 = vadd.f32 %v2025, %v2151
        %2153 = vmatmul.f32.gmra.mxu0 %v811
        %v2154 = vpop.f32.mrf.mxu0
        %v2155 = vadd.f32 %v2025, %v2154
        %2156 = vmatmul.f32.gmra.mxu0 %v813
        %v2157 = vpop.f32.mrf.mxu0
        %v2158 = vadd.f32 %v2025, %v2157
        %2159 = vmatmul.f32.gmra.mxu0 %v815
        %v2160 = vpop.f32.mrf.mxu0
        %v2161 = vadd.f32 %v2025, %v2160
        %2162 = vmatmul.f32.gmra.mxu0 %v817
        %v2163 = vpop.f32.mrf.mxu0
        %v2164 = vadd.f32 %v2025, %v2163
        %2165 = vmatmul.f32.gmra.mxu0 %v819
        %v2166 = vpop.f32.mrf.mxu0
        %v2167 = vadd.f32 %v2025, %v2166
        %2168 = vmatmul.f32.gmra.mxu0 %v821
        %v2169 = vpop.f32.mrf.mxu0
        %v2170 = vadd.f32 %v2025, %v2169
        %2171 = vmatmul.f32.gmra.mxu0 %v823
        %v2172 = vpop.f32.mrf.mxu0
        %v2173 = vadd.f32 %v2025, %v2172
        %2174 = vmatmul.f32.gmra.mxu0 %v825
        %v2175 = vpop.f32.mrf.mxu0
        %v2176 = vadd.f32 %v2025, %v2175
        %2177 = vmatmul.f32.gmra.mxu0 %v827
        %v2178 = vpop.f32.mrf.mxu0
        %v2179 = vadd.f32 %v2025, %v2178
        %2180 = vmatmul.f32.gmra.mxu0 %v829
        %v2181 = vpop.f32.mrf.mxu0
        %v2182 = vadd.f32 %v2025, %v2181
        %2183 = vmatmul.f32.gmra.mxu0 %v831
        %v2184 = vpop.f32.mrf.mxu0
        %v2185 = vadd.f32 %v2025, %v2184
        %2186 = vmatmul.f32.gmra.mxu0 %v833
        %v2187 = vpop.f32.mrf.mxu0
        %v2188 = vadd.f32 %v2025, %v2187
        %2189 = vmatmul.f32.gmra.mxu0 %v835
        %v2190 = vpop.f32.mrf.mxu0
        %v2191 = vadd.f32 %v2025, %v2190
        %2192 = vmatmul.f32.gmra.mxu0 %v837
        %v2193 = vpop.f32.mrf.mxu0
        %v2194 = vadd.f32 %v2025, %v2193
        %2195 = vmatmul.f32.gmra.mxu0 %v839
        %v2196 = vpop.f32.mrf.mxu0
        %v2197 = vadd.f32 %v2025, %v2196
        %2198 = vmatmul.f32.gmra.mxu0 %v841
        %v2199 = vpop.f32.mrf.mxu0
        %v2200 = vadd.f32 %v2025, %v2199
        %2201 = vmatmul.f32.gmra.mxu0 %v843
        %v2202 = vpop.f32.mrf.mxu0
        %v2203 = vadd.f32 %v2025, %v2202
        %2204 = vmatmul.f32.gmra.mxu0 %v845
        %v2205 = vpop.f32.mrf.mxu0
        %v2206 = vadd.f32 %v2025, %v2205
        %2207 = vmatmul.f32.gmra.mxu0 %v847
        %v2208 = vpop.f32.mrf.mxu0
        %v2209 = vadd.f32 %v2025, %v2208
        %2210 = vmatmul.f32.gmra.mxu0 %v849
        %v2211 = vpop.f32.mrf.mxu0
        %v2212 = vadd.f32 %v2025, %v2211
        %2213 = vmatmul.f32.gmra.mxu0 %v851
        %v2214 = vpop.f32.mrf.mxu0
        %v2215 = vadd.f32 %v2025, %v2214
        %2216 = vmatmul.f32.gmra.mxu0 %v853
        %v2217 = vpop.f32.mrf.mxu0
        %v2218 = vadd.f32 %v2025, %v2217
        %2219 = vmatmul.f32.gmra.mxu0 %v855
        %v2220 = vpop.f32.mrf.mxu0
        %v2221 = vadd.f32 %v2025, %v2220
        %2222 = vmatmul.f32.gmra.mxu0 %v857
        %v2223 = vpop.f32.mrf.mxu0
        %v2224 = vadd.f32 %v2025, %v2223
        %2225 = vmatmul.f32.gmra.mxu0 %v859
        %v2226 = vpop.f32.mrf.mxu0
        %v2227 = vadd.f32 %v2025, %v2226
        %2228 = vmatmul.f32.gmra.mxu0 %v861
        %v2229 = vpop.f32.mrf.mxu0
        %v2230 = vadd.f32 %v2025, %v2229
        %2231 = vmatmul.f32.gmra.mxu0 %v863
        %v2232 = vpop.f32.mrf.mxu0
        %v2233 = vadd.f32 %v2025, %v2232
        %2234 = vmatmul.f32.gmra.mxu0 %v865
        %v2235 = vpop.f32.mrf.mxu0
        %v2236 = vadd.f32 %v2025, %v2235
        %2237 = vdwg.mxu0
        %2238 = vmatpush.msra.mxu0 %v2021
        %2239 = vmatpush.msra.mxu0 %v2019
        %2240 = vmatpush.msra.mxu0 %v2017
        %2241 = vmatpush.msra.mxu0 %v2015
        %2242 = vmatpush.msra.mxu0 %v2013
        %2243 = vmatpush.msra.mxu0 %v2011
        %2244 = vmatpush.msra.mxu0 %v2009
        %2245 = vmatpush.msra.mxu0 %v2007
        %2246 = vmatpush.msra.mxu0 %v2005
        %2247 = vmatpush.msra.mxu0 %v2003
        %2248 = vmatpush.msra.mxu0 %v2001
        %2249 = vmatpush.msra.mxu0 %v1999
        %2250 = vmatpush.msra.mxu0 %v1997
        %2251 = vmatpush.msra.mxu0 %v1995
        %2252 = vmatpush.msra.mxu0 %v1993
        %2253 = vmatpush.msra.mxu0 %v1991
        %2254 = vmatmul.f32.gmra.mxu0 %v740
        %v2255 = vpop.f32.mrf.mxu0
        %v2256 = vadd.f32 %v2047, %v2255
        %2257 = vmatmul.f32.gmra.mxu0 %v742
        %v2258 = vpop.f32.mrf.mxu0
        %v2259 = vadd.f32 %v2050, %v2258
        %2260 = vmatmul.f32.gmra.mxu0 %v744
        %v2261 = vpop.f32.mrf.mxu0
        %v2262 = vadd.f32 %v2053, %v2261
        %2263 = vmatmul.f32.gmra.mxu0 %v746
        %v2264 = vpop.f32.mrf.mxu0
        %v2265 = vadd.f32 %v2056, %v2264
        %2266 = vmatmul.f32.gmra.mxu0 %v748
        %v2267 = vpop.f32.mrf.mxu0
        %v2268 = vadd.f32 %v2059, %v2267
        %2269 = vmatmul.f32.gmra.mxu0 %v750
        %v2270 = vpop.f32.mrf.mxu0
        %v2271 = vadd.f32 %v2062, %v2270
        %2272 = vmatmul.f32.gmra.mxu0 %v752
        %v2273 = vpop.f32.mrf.mxu0
        %v2274 = vadd.f32 %v2065, %v2273
        %2275 = vmatmul.f32.gmra.mxu0 %v754
        %v2276 = vpop.f32.mrf.mxu0
        %v2277 = vadd.f32 %v2068, %v2276
        %2278 = vmatmul.f32.gmra.mxu0 %v756
        %v2279 = vpop.f32.mrf.mxu0
        %v2280 = vadd.f32 %v2071, %v2279
        %2281 = vmatmul.f32.gmra.mxu0 %v758
        %v2282 = vpop.f32.mrf.mxu0
        %v2283 = vadd.f32 %v2074, %v2282
        %2284 = vmatmul.f32.gmra.mxu0 %v760
        %v2285 = vpop.f32.mrf.mxu0
        %v2286 = vadd.f32 %v2077, %v2285
        %2287 = vmatmul.f32.gmra.mxu0 %v762
        %v2288 = vpop.f32.mrf.mxu0
        %v2289 = vadd.f32 %v2080, %v2288
        %2290 = vmatmul.f32.gmra.mxu0 %v764
        %v2291 = vpop.f32.mrf.mxu0
        %v2292 = vadd.f32 %v2083, %v2291
        %2293 = vmatmul.f32.gmra.mxu0 %v766
        %v2294 = vpop.f32.mrf.mxu0
        %v2295 = vadd.f32 %v2086, %v2294
        %2296 = vmatmul.f32.gmra.mxu0 %v768
        %v2297 = vpop.f32.mrf.mxu0
        %v2298 = vadd.f32 %v2089, %v2297
        %2299 = vmatmul.f32.gmra.mxu0 %v770
        %v2300 = vpop.f32.mrf.mxu0
        %v2301 = vadd.f32 %v2092, %v2300
        %2302 = vmatmul.f32.gmra.mxu0 %v772
        %v2303 = vpop.f32.mrf.mxu0
        %v2304 = vadd.f32 %v2095, %v2303
        %2305 = vmatmul.f32.gmra.mxu0 %v774
        %v2306 = vpop.f32.mrf.mxu0
        %v2307 = vadd.f32 %v2098, %v2306
        %2308 = vmatmul.f32.gmra.mxu0 %v776
        %v2309 = vpop.f32.mrf.mxu0
        %v2310 = vadd.f32 %v2101, %v2309
        %2311 = vmatmul.f32.gmra.mxu0 %v778
        %v2312 = vpop.f32.mrf.mxu0
        %v2313 = vadd.f32 %v2104, %v2312
        %2314 = vmatmul.f32.gmra.mxu0 %v780
        %v2315 = vpop.f32.mrf.mxu0
        %v2316 = vadd.f32 %v2107, %v2315
        %2317 = vmatmul.f32.gmra.mxu0 %v782
        %v2318 = vpop.f32.mrf.mxu0
        %v2319 = vadd.f32 %v2110, %v2318
        %2320 = vmatmul.f32.gmra.mxu0 %v784
        %v2321 = vpop.f32.mrf.mxu0
        %v2322 = vadd.f32 %v2113, %v2321
        %2323 = vmatmul.f32.gmra.mxu0 %v786
        %v2324 = vpop.f32.mrf.mxu0
        %v2325 = vadd.f32 %v2116, %v2324
        %2326 = vmatmul.f32.gmra.mxu0 %v788
        %v2327 = vpop.f32.mrf.mxu0
        %v2328 = vadd.f32 %v2119, %v2327
        %2329 = vmatmul.f32.gmra.mxu0 %v790
        %v2330 = vpop.f32.mrf.mxu0
        %v2331 = vadd.f32 %v2122, %v2330
        %2332 = vmatmul.f32.gmra.mxu0 %v792
        %v2333 = vpop.f32.mrf.mxu0
        %v2334 = vadd.f32 %v2125, %v2333
        %2335 = vmatmul.f32.gmra.mxu0 %v794
        %v2336 = vpop.f32.mrf.mxu0
        %v2337 = vadd.f32 %v2128, %v2336
        %2338 = vmatmul.f32.gmra.mxu0 %v796
        %v2339 = vpop.f32.mrf.mxu0
        %v2340 = vadd.f32 %v2131, %v2339
        %2341 = vmatmul.f32.gmra.mxu0 %v798
        %v2342 = vpop.f32.mrf.mxu0
        %v2343 = vadd.f32 %v2134, %v2342
        %2344 = vmatmul.f32.gmra.mxu0 %v800
        %v2345 = vpop.f32.mrf.mxu0
        %v2346 = vadd.f32 %v2137, %v2345
        %2347 = vmatmul.f32.gmra.mxu0 %v802
        %v2348 = vpop.f32.mrf.mxu0
        %v2349 = vadd.f32 %v2140, %v2348
        %2350 = vmatmul.f32.gmra.mxu0 %v804
        %v2351 = vpop.f32.mrf.mxu0
        %v2352 = vadd.f32 %v2143, %v2351
        %2353 = vmatmul.f32.gmra.mxu0 %v806
        %v2354 = vpop.f32.mrf.mxu0
        %v2355 = vadd.f32 %v2146, %v2354
        %2356 = vmatmul.f32.gmra.mxu0 %v808
        %v2357 = vpop.f32.mrf.mxu0
        %v2358 = vadd.f32 %v2149, %v2357
        %2359 = vmatmul.f32.gmra.mxu0 %v810
        %v2360 = vpop.f32.mrf.mxu0
        %v2361 = vadd.f32 %v2152, %v2360
        %2362 = vmatmul.f32.gmra.mxu0 %v812
        %v2363 = vpop.f32.mrf.mxu0
        %v2364 = vadd.f32 %v2155, %v2363
        %2365 = vmatmul.f32.gmra.mxu0 %v814
        %v2366 = vpop.f32.mrf.mxu0
        %v2367 = vadd.f32 %v2158, %v2366
        %2368 = vmatmul.f32.gmra.mxu0 %v816
        %v2369 = vpop.f32.mrf.mxu0
        %v2370 = vadd.f32 %v2161, %v2369
        %2371 = vmatmul.f32.gmra.mxu0 %v818
        %v2372 = vpop.f32.mrf.mxu0
        %v2373 = vadd.f32 %v2164, %v2372
        %2374 = vmatmul.f32.gmra.mxu0 %v820
        %v2375 = vpop.f32.mrf.mxu0
        %v2376 = vadd.f32 %v2167, %v2375
        %2377 = vmatmul.f32.gmra.mxu0 %v822
        %v2378 = vpop.f32.mrf.mxu0
        %v2379 = vadd.f32 %v2170, %v2378
        %2380 = vmatmul.f32.gmra.mxu0 %v824
        %v2381 = vpop.f32.mrf.mxu0
        %v2382 = vadd.f32 %v2173, %v2381
        %2383 = vmatmul.f32.gmra.mxu0 %v826
        %v2384 = vpop.f32.mrf.mxu0
        %v2385 = vadd.f32 %v2176, %v2384
        %2386 = vmatmul.f32.gmra.mxu0 %v828
        %v2387 = vpop.f32.mrf.mxu0
        %v2388 = vadd.f32 %v2179, %v2387
        %2389 = vmatmul.f32.gmra.mxu0 %v830
        %v2390 = vpop.f32.mrf.mxu0
        %v2391 = vadd.f32 %v2182, %v2390
        %2392 = vmatmul.f32.gmra.mxu0 %v832
        %v2393 = vpop.f32.mrf.mxu0
        %v2394 = vadd.f32 %v2185, %v2393
        %2395 = vmatmul.f32.gmra.mxu0 %v834
        %v2396 = vpop.f32.mrf.mxu0
        %v2397 = vadd.f32 %v2188, %v2396
        %2398 = vmatmul.f32.gmra.mxu0 %v836
        %v2399 = vpop.f32.mrf.mxu0
        %v2400 = vadd.f32 %v2191, %v2399
        %2401 = vmatmul.f32.gmra.mxu0 %v838
        %v2402 = vpop.f32.mrf.mxu0
        %v2403 = vadd.f32 %v2194, %v2402
        %2404 = vmatmul.f32.gmra.mxu0 %v840
        %v2405 = vpop.f32.mrf.mxu0
        %v2406 = vadd.f32 %v2197, %v2405
        %2407 = vmatmul.f32.gmra.mxu0 %v842
        %v2408 = vpop.f32.mrf.mxu0
        %v2409 = vadd.f32 %v2200, %v2408
        %2410 = vmatmul.f32.gmra.mxu0 %v844
        %v2411 = vpop.f32.mrf.mxu0
        %v2412 = vadd.f32 %v2203, %v2411
        %2413 = vmatmul.f32.gmra.mxu0 %v846
        %v2414 = vpop.f32.mrf.mxu0
        %v2415 = vadd.f32 %v2206, %v2414
        %2416 = vmatmul.f32.gmra.mxu0 %v848
        %v2417 = vpop.f32.mrf.mxu0
        %v2418 = vadd.f32 %v2209, %v2417
        %2419 = vmatmul.f32.gmra.mxu0 %v850
        %v2420 = vpop.f32.mrf.mxu0
        %v2421 = vadd.f32 %v2212, %v2420
        %2422 = vmatmul.f32.gmra.mxu0 %v852
        %v2423 = vpop.f32.mrf.mxu0
        %v2424 = vadd.f32 %v2215, %v2423
        %2425 = vmatmul.f32.gmra.mxu0 %v854
        %v2426 = vpop.f32.mrf.mxu0
        %v2427 = vadd.f32 %v2218, %v2426
        %2428 = vmatmul.f32.gmra.mxu0 %v856
        %v2429 = vpop.f32.mrf.mxu0
        %v2430 = vadd.f32 %v2221, %v2429
        %2431 = vmatmul.f32.gmra.mxu0 %v858
        %v2432 = vpop.f32.mrf.mxu0
        %v2433 = vadd.f32 %v2224, %v2432
        %2434 = vmatmul.f32.gmra.mxu0 %v860
        %v2435 = vpop.f32.mrf.mxu0
        %v2436 = vadd.f32 %v2227, %v2435
        %2437 = vmatmul.f32.gmra.mxu0 %v862
        %v2438 = vpop.f32.mrf.mxu0
        %v2439 = vadd.f32 %v2230, %v2438
        %2440 = vmatmul.f32.gmra.mxu0 %v864
        %v2441 = vpop.f32.mrf.mxu0
        %v2442 = vadd.f32 %v2233, %v2441
        %2443 = vmatmul.f32.gmra.mxu0 %v866
        %v2444 = vpop.f32.mrf.mxu0
        %v2445 = vadd.f32 %v2236, %v2444
        %2446 = vdwg.mxu0
        %2447 = vmatpush.msra.mxu0 %v1990
        %2448 = vmatpush.msra.mxu0 %v1988
        %2449 = vmatpush.msra.mxu0 %v1986
        %2450 = vmatpush.msra.mxu0 %v1984
        %2451 = vmatpush.msra.mxu0 %v1982
        %2452 = vmatpush.msra.mxu0 %v1980
        %2453 = vmatpush.msra.mxu0 %v1978
        %2454 = vmatpush.msra.mxu0 %v1976
        %2455 = vmatpush.msra.mxu0 %v1974
        %2456 = vmatpush.msra.mxu0 %v1972
        %2457 = vmatpush.msra.mxu0 %v1970
        %2458 = vmatpush.msra.mxu0 %v1968
        %2459 = vmatpush.msra.mxu0 %v1966
        %2460 = vmatpush.msra.mxu0 %v1964
        %2461 = vmatpush.msra.mxu0 %v1962
        %2462 = vmatpush.msra.mxu0 %v1960
        %2463 = vmatmul.f32.gmra.mxu0 %v739
        %v2464 = vpop.f32.mrf.mxu0
        %v2465 = vadd.f32 %v2026, %v2464
        %2466 = vmatmul.f32.gmra.mxu0 %v741
        %v2467 = vpop.f32.mrf.mxu0
        %v2468 = vadd.f32 %v2026, %v2467
        %2469 = vmatmul.f32.gmra.mxu0 %v743
        %v2470 = vpop.f32.mrf.mxu0
        %v2471 = vadd.f32 %v2026, %v2470
        %2472 = vmatmul.f32.gmra.mxu0 %v745
        %v2473 = vpop.f32.mrf.mxu0
        %v2474 = vadd.f32 %v2026, %v2473
        %2475 = vmatmul.f32.gmra.mxu0 %v747
        %v2476 = vpop.f32.mrf.mxu0
        %v2477 = vadd.f32 %v2026, %v2476
        %2478 = vmatmul.f32.gmra.mxu0 %v749
        %v2479 = vpop.f32.mrf.mxu0
        %v2480 = vadd.f32 %v2026, %v2479
        %2481 = vmatmul.f32.gmra.mxu0 %v751
        %v2482 = vpop.f32.mrf.mxu0
        %v2483 = vadd.f32 %v2026, %v2482
        %2484 = vmatmul.f32.gmra.mxu0 %v753
        %v2485 = vpop.f32.mrf.mxu0
        %v2486 = vadd.f32 %v2026, %v2485
        %2487 = vmatmul.f32.gmra.mxu0 %v755
        %v2488 = vpop.f32.mrf.mxu0
        %v2489 = vadd.f32 %v2026, %v2488
        %2490 = vmatmul.f32.gmra.mxu0 %v757
        %v2491 = vpop.f32.mrf.mxu0
        %v2492 = vadd.f32 %v2026, %v2491
        %2493 = vmatmul.f32.gmra.mxu0 %v759
        %v2494 = vpop.f32.mrf.mxu0
        %v2495 = vadd.f32 %v2026, %v2494
        %2496 = vmatmul.f32.gmra.mxu0 %v761
        %v2497 = vpop.f32.mrf.mxu0
        %v2498 = vadd.f32 %v2026, %v2497
        %2499 = vmatmul.f32.gmra.mxu0 %v763
        %v2500 = vpop.f32.mrf.mxu0
        %v2501 = vadd.f32 %v2026, %v2500
        %2502 = vmatmul.f32.gmra.mxu0 %v765
        %v2503 = vpop.f32.mrf.mxu0
        %v2504 = vadd.f32 %v2026, %v2503
        %2505 = vmatmul.f32.gmra.mxu0 %v767
        %v2506 = vpop.f32.mrf.mxu0
        %v2507 = vadd.f32 %v2026, %v2506
        %2508 = vmatmul.f32.gmra.mxu0 %v769
        %v2509 = vpop.f32.mrf.mxu0
        %v2510 = vadd.f32 %v2026, %v2509
        %2511 = vmatmul.f32.gmra.mxu0 %v771
        %v2512 = vpop.f32.mrf.mxu0
        %v2513 = vadd.f32 %v2026, %v2512
        %2514 = vmatmul.f32.gmra.mxu0 %v773
        %v2515 = vpop.f32.mrf.mxu0
        %v2516 = vadd.f32 %v2026, %v2515
        %2517 = vmatmul.f32.gmra.mxu0 %v775
        %v2518 = vpop.f32.mrf.mxu0
        %v2519 = vadd.f32 %v2026, %v2518
        %2520 = vmatmul.f32.gmra.mxu0 %v777
        %v2521 = vpop.f32.mrf.mxu0
        %v2522 = vadd.f32 %v2026, %v2521
        %2523 = vmatmul.f32.gmra.mxu0 %v779
        %v2524 = vpop.f32.mrf.mxu0
        %v2525 = vadd.f32 %v2026, %v2524
        %2526 = vmatmul.f32.gmra.mxu0 %v781
        %v2527 = vpop.f32.mrf.mxu0
        %v2528 = vadd.f32 %v2026, %v2527
        %2529 = vmatmul.f32.gmra.mxu0 %v783
        %v2530 = vpop.f32.mrf.mxu0
        %v2531 = vadd.f32 %v2026, %v2530
        %2532 = vmatmul.f32.gmra.mxu0 %v785
        %v2533 = vpop.f32.mrf.mxu0
        %v2534 = vadd.f32 %v2026, %v2533
        %2535 = vmatmul.f32.gmra.mxu0 %v787
        %v2536 = vpop.f32.mrf.mxu0
        %v2537 = vadd.f32 %v2026, %v2536
        %2538 = vmatmul.f32.gmra.mxu0 %v789
        %v2539 = vpop.f32.mrf.mxu0
        %v2540 = vadd.f32 %v2026, %v2539
        %2541 = vmatmul.f32.gmra.mxu0 %v791
        %v2542 = vpop.f32.mrf.mxu0
        %v2543 = vadd.f32 %v2026, %v2542
        %2544 = vmatmul.f32.gmra.mxu0 %v793
        %v2545 = vpop.f32.mrf.mxu0
        %v2546 = vadd.f32 %v2026, %v2545
        %2547 = vmatmul.f32.gmra.mxu0 %v795
        %v2548 = vpop.f32.mrf.mxu0
        %v2549 = vadd.f32 %v2026, %v2548
        %2550 = vmatmul.f32.gmra.mxu0 %v797
        %v2551 = vpop.f32.mrf.mxu0
        %v2552 = vadd.f32 %v2026, %v2551
        %2553 = vmatmul.f32.gmra.mxu0 %v799
        %v2554 = vpop.f32.mrf.mxu0
        %v2555 = vadd.f32 %v2026, %v2554
        %2556 = vmatmul.f32.gmra.mxu0 %v801
        %v2557 = vpop.f32.mrf.mxu0
        %v2558 = vadd.f32 %v2026, %v2557
        %2559 = vmatmul.f32.gmra.mxu0 %v803
        %v2560 = vpop.f32.mrf.mxu0
        %v2561 = vadd.f32 %v2026, %v2560
        %2562 = vmatmul.f32.gmra.mxu0 %v805
        %v2563 = vpop.f32.mrf.mxu0
        %v2564 = vadd.f32 %v2026, %v2563
        %2565 = vmatmul.f32.gmra.mxu0 %v807
        %v2566 = vpop.f32.mrf.mxu0
        %v2567 = vadd.f32 %v2026, %v2566
        %2568 = vmatmul.f32.gmra.mxu0 %v809
        %v2569 = vpop.f32.mrf.mxu0
        %v2570 = vadd.f32 %v2026, %v2569
        %2571 = vmatmul.f32.gmra.mxu0 %v811
        %v2572 = vpop.f32.mrf.mxu0
        %v2573 = vadd.f32 %v2026, %v2572
        %2574 = vmatmul.f32.gmra.mxu0 %v813
        %v2575 = vpop.f32.mrf.mxu0
        %v2576 = vadd.f32 %v2026, %v2575
        %2577 = vmatmul.f32.gmra.mxu0 %v815
        %v2578 = vpop.f32.mrf.mxu0
        %v2579 = vadd.f32 %v2026, %v2578
        %2580 = vmatmul.f32.gmra.mxu0 %v817
        %v2581 = vpop.f32.mrf.mxu0
        %v2582 = vadd.f32 %v2026, %v2581
        %2583 = vmatmul.f32.gmra.mxu0 %v819
        %v2584 = vpop.f32.mrf.mxu0
        %v2585 = vadd.f32 %v2026, %v2584
        %2586 = vmatmul.f32.gmra.mxu0 %v821
        %v2587 = vpop.f32.mrf.mxu0
        %v2588 = vadd.f32 %v2026, %v2587
        %2589 = vmatmul.f32.gmra.mxu0 %v823
        %v2590 = vpop.f32.mrf.mxu0
        %v2591 = vadd.f32 %v2026, %v2590
        %2592 = vmatmul.f32.gmra.mxu0 %v825
        %v2593 = vpop.f32.mrf.mxu0
        %v2594 = vadd.f32 %v2026, %v2593
        %2595 = vmatmul.f32.gmra.mxu0 %v827
        %v2596 = vpop.f32.mrf.mxu0
        %v2597 = vadd.f32 %v2026, %v2596
        %2598 = vmatmul.f32.gmra.mxu0 %v829
        %v2599 = vpop.f32.mrf.mxu0
        %v2600 = vadd.f32 %v2026, %v2599
        %2601 = vmatmul.f32.gmra.mxu0 %v831
        %v2602 = vpop.f32.mrf.mxu0
        %v2603 = vadd.f32 %v2026, %v2602
        %2604 = vmatmul.f32.gmra.mxu0 %v833
        %v2605 = vpop.f32.mrf.mxu0
        %v2606 = vadd.f32 %v2026, %v2605
        %2607 = vmatmul.f32.gmra.mxu0 %v835
        %v2608 = vpop.f32.mrf.mxu0
        %v2609 = vadd.f32 %v2026, %v2608
        %2610 = vmatmul.f32.gmra.mxu0 %v837
        %v2611 = vpop.f32.mrf.mxu0
        %v2612 = vadd.f32 %v2026, %v2611
        %2613 = vmatmul.f32.gmra.mxu0 %v839
        %v2614 = vpop.f32.mrf.mxu0
        %v2615 = vadd.f32 %v2026, %v2614
        %2616 = vmatmul.f32.gmra.mxu0 %v841
        %v2617 = vpop.f32.mrf.mxu0
        %v2618 = vadd.f32 %v2026, %v2617
        %2619 = vmatmul.f32.gmra.mxu0 %v843
        %v2620 = vpop.f32.mrf.mxu0
        %v2621 = vadd.f32 %v2026, %v2620
        %2622 = vmatmul.f32.gmra.mxu0 %v845
        %v2623 = vpop.f32.mrf.mxu0
        %v2624 = vadd.f32 %v2026, %v2623
        %2625 = vmatmul.f32.gmra.mxu0 %v847
        %v2626 = vpop.f32.mrf.mxu0
        %v2627 = vadd.f32 %v2026, %v2626
        %2628 = vmatmul.f32.gmra.mxu0 %v849
        %v2629 = vpop.f32.mrf.mxu0
        %v2630 = vadd.f32 %v2026, %v2629
        %2631 = vmatmul.f32.gmra.mxu0 %v851
        %v2632 = vpop.f32.mrf.mxu0
        %v2633 = vadd.f32 %v2026, %v2632
        %2634 = vmatmul.f32.gmra.mxu0 %v853
        %v2635 = vpop.f32.mrf.mxu0
        %v2636 = vadd.f32 %v2026, %v2635
        %2637 = vmatmul.f32.gmra.mxu0 %v855
        %v2638 = vpop.f32.mrf.mxu0
        %v2639 = vadd.f32 %v2026, %v2638
        %2640 = vmatmul.f32.gmra.mxu0 %v857
        %v2641 = vpop.f32.mrf.mxu0
        %v2642 = vadd.f32 %v2026, %v2641
        %2643 = vmatmul.f32.gmra.mxu0 %v859
        %v2644 = vpop.f32.mrf.mxu0
        %v2645 = vadd.f32 %v2026, %v2644
        %2646 = vmatmul.f32.gmra.mxu0 %v861
        %v2647 = vpop.f32.mrf.mxu0
        %v2648 = vadd.f32 %v2026, %v2647
        %2649 = vmatmul.f32.gmra.mxu0 %v863
        %v2650 = vpop.f32.mrf.mxu0
        %v2651 = vadd.f32 %v2026, %v2650
        %2652 = vmatmul.f32.gmra.mxu0 %v865
        %v2653 = vpop.f32.mrf.mxu0
        %v2654 = vadd.f32 %v2026, %v2653
        %2655 = vdwg.mxu0
        %2656 = vmatpush.msra.mxu0 %v2022
        %2657 = vmatpush.msra.mxu0 %v2020
        %2658 = vmatpush.msra.mxu0 %v2018
        %2659 = vmatpush.msra.mxu0 %v2016
        %2660 = vmatpush.msra.mxu0 %v2014
        %2661 = vmatpush.msra.mxu0 %v2012
        %2662 = vmatpush.msra.mxu0 %v2010
        %2663 = vmatpush.msra.mxu0 %v2008
        %2664 = vmatpush.msra.mxu0 %v2006
        %2665 = vmatpush.msra.mxu0 %v2004
        %2666 = vmatpush.msra.mxu0 %v2002
        %2667 = vmatpush.msra.mxu0 %v2000
        %2668 = vmatpush.msra.mxu0 %v1998
        %2669 = vmatpush.msra.mxu0 %v1996
        %2670 = vmatpush.msra.mxu0 %v1994
        %2671 = vmatpush.msra.mxu0 %v1992
        %2672 = vmatmul.f32.gmra.mxu0 %v740
        %v2673 = vpop.f32.mrf.mxu0
        %v2674 = vadd.f32 %v2465, %v2673
        %2675 = vmatmul.f32.gmra.mxu0 %v742
        %v2676 = vpop.f32.mrf.mxu0
        %v2677 = vadd.f32 %v2468, %v2676
        %2678 = vmatmul.f32.gmra.mxu0 %v744
        %v2679 = vpop.f32.mrf.mxu0
        %v2680 = vadd.f32 %v2471, %v2679
        %2681 = vmatmul.f32.gmra.mxu0 %v746
        %v2682 = vpop.f32.mrf.mxu0
        %v2683 = vadd.f32 %v2474, %v2682
        %2684 = vmatmul.f32.gmra.mxu0 %v748
        %v2685 = vpop.f32.mrf.mxu0
        %v2686 = vadd.f32 %v2477, %v2685
        %2687 = vmatmul.f32.gmra.mxu0 %v750
        %v2688 = vpop.f32.mrf.mxu0
        %v2689 = vadd.f32 %v2480, %v2688
        %2690 = vmatmul.f32.gmra.mxu0 %v752
        %v2691 = vpop.f32.mrf.mxu0
        %v2692 = vadd.f32 %v2483, %v2691
        %2693 = vmatmul.f32.gmra.mxu0 %v754
        %v2694 = vpop.f32.mrf.mxu0
        %v2695 = vadd.f32 %v2486, %v2694
        %2696 = vmatmul.f32.gmra.mxu0 %v756
        %v2697 = vpop.f32.mrf.mxu0
        %v2698 = vadd.f32 %v2489, %v2697
        %2699 = vmatmul.f32.gmra.mxu0 %v758
        %v2700 = vpop.f32.mrf.mxu0
        %v2701 = vadd.f32 %v2492, %v2700
        %2702 = vmatmul.f32.gmra.mxu0 %v760
        %v2703 = vpop.f32.mrf.mxu0
        %v2704 = vadd.f32 %v2495, %v2703
        %2705 = vmatmul.f32.gmra.mxu0 %v762
        %v2706 = vpop.f32.mrf.mxu0
        %v2707 = vadd.f32 %v2498, %v2706
        %2708 = vmatmul.f32.gmra.mxu0 %v764
        %v2709 = vpop.f32.mrf.mxu0
        %v2710 = vadd.f32 %v2501, %v2709
        %2711 = vmatmul.f32.gmra.mxu0 %v766
        %v2712 = vpop.f32.mrf.mxu0
        %v2713 = vadd.f32 %v2504, %v2712
        %2714 = vmatmul.f32.gmra.mxu0 %v768
        %v2715 = vpop.f32.mrf.mxu0
        %v2716 = vadd.f32 %v2507, %v2715
        %2717 = vmatmul.f32.gmra.mxu0 %v770
        %v2718 = vpop.f32.mrf.mxu0
        %v2719 = vadd.f32 %v2510, %v2718
        %2720 = vmatmul.f32.gmra.mxu0 %v772
        %v2721 = vpop.f32.mrf.mxu0
        %v2722 = vadd.f32 %v2513, %v2721
        %2723 = vmatmul.f32.gmra.mxu0 %v774
        %v2724 = vpop.f32.mrf.mxu0
        %v2725 = vadd.f32 %v2516, %v2724
        %2726 = vmatmul.f32.gmra.mxu0 %v776
        %v2727 = vpop.f32.mrf.mxu0
        %v2728 = vadd.f32 %v2519, %v2727
        %2729 = vmatmul.f32.gmra.mxu0 %v778
        %v2730 = vpop.f32.mrf.mxu0
        %v2731 = vadd.f32 %v2522, %v2730
        %2732 = vmatmul.f32.gmra.mxu0 %v780
        %v2733 = vpop.f32.mrf.mxu0
        %v2734 = vadd.f32 %v2525, %v2733
        %2735 = vmatmul.f32.gmra.mxu0 %v782
        %v2736 = vpop.f32.mrf.mxu0
        %v2737 = vadd.f32 %v2528, %v2736
        %2738 = vmatmul.f32.gmra.mxu0 %v784
        %v2739 = vpop.f32.mrf.mxu0
        %v2740 = vadd.f32 %v2531, %v2739
        %2741 = vmatmul.f32.gmra.mxu0 %v786
        %v2742 = vpop.f32.mrf.mxu0
        %v2743 = vadd.f32 %v2534, %v2742
        %2744 = vmatmul.f32.gmra.mxu0 %v788
        %v2745 = vpop.f32.mrf.mxu0
        %v2746 = vadd.f32 %v2537, %v2745
        %2747 = vmatmul.f32.gmra.mxu0 %v790
        %v2748 = vpop.f32.mrf.mxu0
        %v2749 = vadd.f32 %v2540, %v2748
        %2750 = vmatmul.f32.gmra.mxu0 %v792
        %v2751 = vpop.f32.mrf.mxu0
        %v2752 = vadd.f32 %v2543, %v2751
        %2753 = vmatmul.f32.gmra.mxu0 %v794
        %v2754 = vpop.f32.mrf.mxu0
        %v2755 = vadd.f32 %v2546, %v2754
        %2756 = vmatmul.f32.gmra.mxu0 %v796
        %v2757 = vpop.f32.mrf.mxu0
        %v2758 = vadd.f32 %v2549, %v2757
        %2759 = vmatmul.f32.gmra.mxu0 %v798
        %v2760 = vpop.f32.mrf.mxu0
        %v2761 = vadd.f32 %v2552, %v2760
        %2762 = vmatmul.f32.gmra.mxu0 %v800
        %v2763 = vpop.f32.mrf.mxu0
        %v2764 = vadd.f32 %v2555, %v2763
        %2765 = vmatmul.f32.gmra.mxu0 %v802
        %v2766 = vpop.f32.mrf.mxu0
        %v2767 = vadd.f32 %v2558, %v2766
        %2768 = vmatmul.f32.gmra.mxu0 %v804
        %v2769 = vpop.f32.mrf.mxu0
        %v2770 = vadd.f32 %v2561, %v2769
        %2771 = vmatmul.f32.gmra.mxu0 %v806
        %v2772 = vpop.f32.mrf.mxu0
        %v2773 = vadd.f32 %v2564, %v2772
        %2774 = vmatmul.f32.gmra.mxu0 %v808
        %v2775 = vpop.f32.mrf.mxu0
        %v2776 = vadd.f32 %v2567, %v2775
        %2777 = vmatmul.f32.gmra.mxu0 %v810
        %v2778 = vpop.f32.mrf.mxu0
        %v2779 = vadd.f32 %v2570, %v2778
        %2780 = vmatmul.f32.gmra.mxu0 %v812
        %v2781 = vpop.f32.mrf.mxu0
        %v2782 = vadd.f32 %v2573, %v2781
        %2783 = vmatmul.f32.gmra.mxu0 %v814
        %v2784 = vpop.f32.mrf.mxu0
        %v2785 = vadd.f32 %v2576, %v2784
        %2786 = vmatmul.f32.gmra.mxu0 %v816
        %v2787 = vpop.f32.mrf.mxu0
        %v2788 = vadd.f32 %v2579, %v2787
        %2789 = vmatmul.f32.gmra.mxu0 %v818
        %v2790 = vpop.f32.mrf.mxu0
        %v2791 = vadd.f32 %v2582, %v2790
        %2792 = vmatmul.f32.gmra.mxu0 %v820
        %v2793 = vpop.f32.mrf.mxu0
        %v2794 = vadd.f32 %v2585, %v2793
        %2795 = vmatmul.f32.gmra.mxu0 %v822
        %v2796 = vpop.f32.mrf.mxu0
        %v2797 = vadd.f32 %v2588, %v2796
        %2798 = vmatmul.f32.gmra.mxu0 %v824
        %v2799 = vpop.f32.mrf.mxu0
        %v2800 = vadd.f32 %v2591, %v2799
        %2801 = vmatmul.f32.gmra.mxu0 %v826
        %v2802 = vpop.f32.mrf.mxu0
        %v2803 = vadd.f32 %v2594, %v2802
        %2804 = vmatmul.f32.gmra.mxu0 %v828
        %v2805 = vpop.f32.mrf.mxu0
        %v2806 = vadd.f32 %v2597, %v2805
        %2807 = vmatmul.f32.gmra.mxu0 %v830
        %v2808 = vpop.f32.mrf.mxu0
        %v2809 = vadd.f32 %v2600, %v2808
        %2810 = vmatmul.f32.gmra.mxu0 %v832
        %v2811 = vpop.f32.mrf.mxu0
        %v2812 = vadd.f32 %v2603, %v2811
        %2813 = vmatmul.f32.gmra.mxu0 %v834
        %v2814 = vpop.f32.mrf.mxu0
        %v2815 = vadd.f32 %v2606, %v2814
        %2816 = vmatmul.f32.gmra.mxu0 %v836
        %v2817 = vpop.f32.mrf.mxu0
        %v2818 = vadd.f32 %v2609, %v2817
        %2819 = vmatmul.f32.gmra.mxu0 %v838
        %v2820 = vpop.f32.mrf.mxu0
        %v2821 = vadd.f32 %v2612, %v2820
        %2822 = vmatmul.f32.gmra.mxu0 %v840
        %v2823 = vpop.f32.mrf.mxu0
        %v2824 = vadd.f32 %v2615, %v2823
        %2825 = vmatmul.f32.gmra.mxu0 %v842
        %v2826 = vpop.f32.mrf.mxu0
        %v2827 = vadd.f32 %v2618, %v2826
        %2828 = vmatmul.f32.gmra.mxu0 %v844
        %v2829 = vpop.f32.mrf.mxu0
        %v2830 = vadd.f32 %v2621, %v2829
        %2831 = vmatmul.f32.gmra.mxu0 %v846
        %v2832 = vpop.f32.mrf.mxu0
        %v2833 = vadd.f32 %v2624, %v2832
        %2834 = vmatmul.f32.gmra.mxu0 %v848
        %v2835 = vpop.f32.mrf.mxu0
        %v2836 = vadd.f32 %v2627, %v2835
        %2837 = vmatmul.f32.gmra.mxu0 %v850
        %v2838 = vpop.f32.mrf.mxu0
        %v2839 = vadd.f32 %v2630, %v2838
        %2840 = vmatmul.f32.gmra.mxu0 %v852
        %v2841 = vpop.f32.mrf.mxu0
        %v2842 = vadd.f32 %v2633, %v2841
        %2843 = vmatmul.f32.gmra.mxu0 %v854
        %v2844 = vpop.f32.mrf.mxu0
        %v2845 = vadd.f32 %v2636, %v2844
        %2846 = vmatmul.f32.gmra.mxu0 %v856
        %v2847 = vpop.f32.mrf.mxu0
        %v2848 = vadd.f32 %v2639, %v2847
        %2849 = vmatmul.f32.gmra.mxu0 %v858
        %v2850 = vpop.f32.mrf.mxu0
        %v2851 = vadd.f32 %v2642, %v2850
        %2852 = vmatmul.f32.gmra.mxu0 %v860
        %v2853 = vpop.f32.mrf.mxu0
        %v2854 = vadd.f32 %v2645, %v2853
        %2855 = vmatmul.f32.gmra.mxu0 %v862
        %v2856 = vpop.f32.mrf.mxu0
        %v2857 = vadd.f32 %v2648, %v2856
        %2858 = vmatmul.f32.gmra.mxu0 %v864
        %v2859 = vpop.f32.mrf.mxu0
        %v2860 = vadd.f32 %v2651, %v2859
        %2861 = vmatmul.f32.gmra.mxu0 %v866
        %v2862 = vpop.f32.mrf.mxu0
        %v2863 = vadd.f32 %v2654, %v2862
        %2864 = vdwg.mxu0
        %v2865 = vld [vmem:[#allocation14] sm:$0xff]
        %v2866 = vld [vmem:[#allocation14 + $0x8] sm:$0xff]
        %v2875 = vrot.slane %v1042, 7
        %v2876 = vrot.slane %v1045, 7
        %v2877 = vrot.slane %v1048, 7
        %v2878 = vrot.slane %v1051, 7
        %vm2879 = vcmask 1040384
        %v2880 = vsel %vm2879, %v984, %v2875
        %vm2881 = vcmask 1041409
        %v2882 = vsel %vm2881, %v984, %v2875
        %v2883 = vrot.slane %v2882, 1
        %vm2884 = vcmask 1042434
        %v2885 = vsel %vm2884, %v984, %v2875
        %v2886 = vrot.slane %v2885, 2
        %vm2887 = vcmask 1043459
        %v2888 = vsel %vm2887, %v984, %v2875
        %v2889 = vrot.slane %v2888, 3
        %vm2890 = vcmask 1044484
        %v2891 = vsel %vm2890, %v984, %v2875
        %v2892 = vrot.slane %v2891, 4
        %vm2893 = vcmask 1045509
        %v2894 = vsel %vm2893, %v984, %v2875
        %v2895 = vrot.slane %v2894, 5
        %vm2896 = vcmask 1046534
        %v2897 = vsel %vm2896, %v984, %v2875
        %v2898 = vrot.slane %v2897, 6
        %vm2899 = vcmask 1046528
        %v2900 = vsel %vm2899, %v2875, %v984
        %v2901 = vrot.slane %v2900, 7
        %v2902 = vsel %vm2879, %v987, %v2876
        %v2903 = vsel %vm2881, %v987, %v2876
        %v2904 = vrot.slane %v2903, 1
        %v2905 = vsel %vm2884, %v987, %v2876
        %v2906 = vrot.slane %v2905, 2
        %v2907 = vsel %vm2887, %v987, %v2876
        %v2908 = vrot.slane %v2907, 3
        %v2909 = vsel %vm2890, %v987, %v2876
        %v2910 = vrot.slane %v2909, 4
        %v2911 = vsel %vm2893, %v987, %v2876
        %v2912 = vrot.slane %v2911, 5
        %v2913 = vsel %vm2896, %v987, %v2876
        %v2914 = vrot.slane %v2913, 6
        %v2915 = vsel %vm2899, %v2876, %v987
        %v2916 = vrot.slane %v2915, 7
        %v2917 = vsel %vm2879, %v990, %v2877
        %v2918 = vsel %vm2881, %v990, %v2877
        %v2919 = vrot.slane %v2918, 1
        %v2920 = vsel %vm2884, %v990, %v2877
        %v2921 = vrot.slane %v2920, 2
        %v2922 = vsel %vm2887, %v990, %v2877
        %v2923 = vrot.slane %v2922, 3
        %v2924 = vsel %vm2890, %v990, %v2877
        %v2925 = vrot.slane %v2924, 4
        %v2926 = vsel %vm2893, %v990, %v2877
        %v2927 = vrot.slane %v2926, 5
        %v2928 = vsel %vm2896, %v990, %v2877
        %v2929 = vrot.slane %v2928, 6
        %v2930 = vsel %vm2899, %v2877, %v990
        %v2931 = vrot.slane %v2930, 7
        %v2932 = vsel %vm2879, %v993, %v2878
        %v2933 = vsel %vm2881, %v993, %v2878
        %v2934 = vrot.slane %v2933, 1
        %v2935 = vsel %vm2884, %v993, %v2878
        %v2936 = vrot.slane %v2935, 2
        %v2937 = vsel %vm2887, %v993, %v2878
        %v2938 = vrot.slane %v2937, 3
        %v2939 = vsel %vm2890, %v993, %v2878
        %v2940 = vrot.slane %v2939, 4
        %v2941 = vsel %vm2893, %v993, %v2878
        %v2942 = vrot.slane %v2941, 5
        %v2943 = vsel %vm2896, %v993, %v2878
        %v2944 = vrot.slane %v2943, 6
        %v2945 = vsel %vm2899, %v2878, %v993
        %v2946 = vrot.slane %v2945, 7
        %v2947 = vperm.slane %v2880, 0
        %v2948 = vperm.slane %v2880, 1
        %v2949 = vperm.slane %v2883, 0
        %v2950 = vperm.slane %v2883, 1
        %v2951 = vperm.slane %v2886, 0
        %v2952 = vperm.slane %v2886, 1
        %v2953 = vperm.slane %v2889, 0
        %v2954 = vperm.slane %v2889, 1
        %v2955 = vperm.slane %v2892, 0
        %v2956 = vperm.slane %v2892, 1
        %v2957 = vperm.slane %v2895, 0
        %v2958 = vperm.slane %v2895, 1
        %v2959 = vperm.slane %v2898, 0
        %v2960 = vperm.slane %v2898, 1
        %v2961 = vperm.slane %v2901, 0
        %v2962 = vperm.slane %v2901, 1
        %v2963 = vperm.slane %v2902, 0
        %v2964 = vperm.slane %v2902, 1
        %v2965 = vperm.slane %v2904, 0
        %v2966 = vperm.slane %v2904, 1
        %v2967 = vperm.slane %v2906, 0
        %v2968 = vperm.slane %v2906, 1
        %v2969 = vperm.slane %v2908, 0
        %v2970 = vperm.slane %v2908, 1
        %v2971 = vperm.slane %v2910, 0
        %v2972 = vperm.slane %v2910, 1
        %v2973 = vperm.slane %v2912, 0
        %v2974 = vperm.slane %v2912, 1
        %v2975 = vperm.slane %v2914, 0
        %v2976 = vperm.slane %v2914, 1
        %v2977 = vperm.slane %v2916, 0
        %v2978 = vperm.slane %v2916, 1
        %v2979 = vperm.slane %v2917, 0
        %v2980 = vperm.slane %v2917, 1
        %v2981 = vperm.slane %v2919, 0
        %v2982 = vperm.slane %v2919, 1
        %v2983 = vperm.slane %v2921, 0
        %v2984 = vperm.slane %v2921, 1
        %v2985 = vperm.slane %v2923, 0
        %v2986 = vperm.slane %v2923, 1
        %v2987 = vperm.slane %v2925, 0
        %v2988 = vperm.slane %v2925, 1
        %v2989 = vperm.slane %v2927, 0
        %v2990 = vperm.slane %v2927, 1
        %v2991 = vperm.slane %v2929, 0
        %v2992 = vperm.slane %v2929, 1
        %v2993 = vperm.slane %v2931, 0
        %v2994 = vperm.slane %v2931, 1
        %v2995 = vperm.slane %v2932, 0
        %v2996 = vperm.slane %v2932, 1
        %v2997 = vperm.slane %v2934, 0
        %v2998 = vperm.slane %v2934, 1
        %v2999 = vperm.slane %v2936, 0
        %v3000 = vperm.slane %v2936, 1
        %v3001 = vperm.slane %v2938, 0
        %v3002 = vperm.slane %v2938, 1
        %v3003 = vperm.slane %v2940, 0
        %v3004 = vperm.slane %v2940, 1
        %v3005 = vperm.slane %v2942, 0
        %v3006 = vperm.slane %v2942, 1
        %v3007 = vperm.slane %v2944, 0
        %v3008 = vperm.slane %v2944, 1
        %v3009 = vperm.slane %v2946, 0
        %v3010 = vperm.slane %v2946, 1
        %v3075 = vmul.f32 %v2947, %v2865
        %v3076 = vmul.f32 %v2948, %v2866
        %v3077 = vmul.f32 %v2949, %v2865
        %v3078 = vmul.f32 %v2950, %v2866
        %v3079 = vmul.f32 %v2951, %v2865
        %v3080 = vmul.f32 %v2952, %v2866
        %v3081 = vmul.f32 %v2953, %v2865
        %v3082 = vmul.f32 %v2954, %v2866
        %v3083 = vmul.f32 %v2955, %v2865
        %v3084 = vmul.f32 %v2956, %v2866
        %v3085 = vmul.f32 %v2957, %v2865
        %v3086 = vmul.f32 %v2958, %v2866
        %v3087 = vmul.f32 %v2959, %v2865
        %v3088 = vmul.f32 %v2960, %v2866
        %v3089 = vmul.f32 %v2961, %v2865
        %v3090 = vmul.f32 %v2962, %v2866
        %v3091 = vmul.f32 %v2963, %v2865
        %v3092 = vmul.f32 %v2964, %v2866
        %v3093 = vmul.f32 %v2965, %v2865
        %v3094 = vmul.f32 %v2966, %v2866
        %v3095 = vmul.f32 %v2967, %v2865
        %v3096 = vmul.f32 %v2968, %v2866
        %v3097 = vmul.f32 %v2969, %v2865
        %v3098 = vmul.f32 %v2970, %v2866
        %v3099 = vmul.f32 %v2971, %v2865
        %v3100 = vmul.f32 %v2972, %v2866
        %v3101 = vmul.f32 %v2973, %v2865
        %v3102 = vmul.f32 %v2974, %v2866
        %v3103 = vmul.f32 %v2975, %v2865
        %v3104 = vmul.f32 %v2976, %v2866
        %v3105 = vmul.f32 %v2977, %v2865
        %v3106 = vmul.f32 %v2978, %v2866
        %v3107 = vmul.f32 %v2979, %v2865
        %v3108 = vmul.f32 %v2980, %v2866
        %v3109 = vmul.f32 %v2981, %v2865
        %v3110 = vmul.f32 %v2982, %v2866
        %v3111 = vmul.f32 %v2983, %v2865
        %v3112 = vmul.f32 %v2984, %v2866
        %v3113 = vmul.f32 %v2985, %v2865
        %v3114 = vmul.f32 %v2986, %v2866
        %v3115 = vmul.f32 %v2987, %v2865
        %v3116 = vmul.f32 %v2988, %v2866
        %v3117 = vmul.f32 %v2989, %v2865
        %v3118 = vmul.f32 %v2990, %v2866
        %v3119 = vmul.f32 %v2991, %v2865
        %v3120 = vmul.f32 %v2992, %v2866
        %v3121 = vmul.f32 %v2993, %v2865
        %v3122 = vmul.f32 %v2994, %v2866
        %v3123 = vmul.f32 %v2995, %v2865
        %v3124 = vmul.f32 %v2996, %v2866
        %v3125 = vmul.f32 %v2997, %v2865
        %v3126 = vmul.f32 %v2998, %v2866
        %v3127 = vmul.f32 %v2999, %v2865
        %v3128 = vmul.f32 %v3000, %v2866
        %v3129 = vmul.f32 %v3001, %v2865
        %v3130 = vmul.f32 %v3002, %v2866
        %v3131 = vmul.f32 %v3003, %v2865
        %v3132 = vmul.f32 %v3004, %v2866
        %v3133 = vmul.f32 %v3005, %v2865
        %v3134 = vmul.f32 %v3006, %v2866
        %v3135 = vmul.f32 %v3007, %v2865
        %v3136 = vmul.f32 %v3008, %v2866
        %v3137 = vmul.f32 %v3009, %v2865
        %v3138 = vmul.f32 %v3010, %v2866
        %3139 = vmatpush.xpose.msra.mxu0 0.0
        %3140 = vmatpush.xpose.msra.mxu0 0.0
        %3141 = vmatpush.xpose.msra.mxu0 0.0
        %3142 = vmatpush.xpose.msra.mxu0 0.0
        %3143 = vmatpush.xpose.msra.mxu0 0.0
        %3144 = vmatpush.xpose.msra.mxu0 0.0
        %3145 = vmatpush.xpose.msra.mxu0 0.0
        %3146 = vmatpush.xpose.msra.mxu0 0.0
        %3147 = vmatpush.xpose.msra.mxu0 0.0
        %3148 = vmatpush.xpose.msra.mxu0 0.0
        %3149 = vmatpush.xpose.msra.mxu0 0.0
        %3150 = vmatpush.xpose.msra.mxu0 0.0
        %3151 = vmatpush.xpose.msra.mxu0 0.0
        %3152 = vmatpush.xpose.msra.mxu0 0.0
        %3153 = vmatpush.xpose.msra.mxu0 %v1353
        %3154 = vmatpush.xpose.msra.mxu0 %v1350
        %3155 = vmatmul.f32.gmra.mxu0 %v3075
        %v3156 = vpop.f32.mrf.mxu0
        %v3157 = vadd.f32 0.0, %v3156
        %3158 = vdwg.mxu0
        %3159 = vmatpush.xpose.msra.mxu0 0.0
        %3160 = vmatpush.xpose.msra.mxu0 0.0
        %3161 = vmatpush.xpose.msra.mxu0 0.0
        %3162 = vmatpush.xpose.msra.mxu0 0.0
        %3163 = vmatpush.xpose.msra.mxu0 0.0
        %3164 = vmatpush.xpose.msra.mxu0 0.0
        %3165 = vmatpush.xpose.msra.mxu0 0.0
        %3166 = vmatpush.xpose.msra.mxu0 0.0
        %3167 = vmatpush.xpose.msra.mxu0 0.0
        %3168 = vmatpush.xpose.msra.mxu0 0.0
        %3169 = vmatpush.xpose.msra.mxu0 0.0
        %3170 = vmatpush.xpose.msra.mxu0 0.0
        %3171 = vmatpush.xpose.msra.mxu0 0.0
        %3172 = vmatpush.xpose.msra.mxu0 0.0
        %3173 = vmatpush.xpose.msra.mxu0 %v1771
        %3174 = vmatpush.xpose.msra.mxu0 %v1768
        %3175 = vmatmul.f32.gmra.mxu0 %v3076
        %v3176 = vpop.f32.mrf.mxu0
        %v3177 = vadd.f32 %v3157, %v3176
        %3178 = vdwg.mxu0
        %3179 = vmatpush.xpose.msra.mxu0 0.0
        %3180 = vmatpush.xpose.msra.mxu0 0.0
        %3181 = vmatpush.xpose.msra.mxu0 0.0
        %3182 = vmatpush.xpose.msra.mxu0 0.0
        %3183 = vmatpush.xpose.msra.mxu0 0.0
        %3184 = vmatpush.xpose.msra.mxu0 0.0
        %3185 = vmatpush.xpose.msra.mxu0 0.0
        %3186 = vmatpush.xpose.msra.mxu0 0.0
        %3187 = vmatpush.xpose.msra.mxu0 0.0
        %3188 = vmatpush.xpose.msra.mxu0 0.0
        %3189 = vmatpush.xpose.msra.mxu0 0.0
        %3190 = vmatpush.xpose.msra.mxu0 0.0
        %3191 = vmatpush.xpose.msra.mxu0 0.0
        %3192 = vmatpush.xpose.msra.mxu0 0.0
        %3193 = vmatpush.xpose.msra.mxu0 %v1359
        %3194 = vmatpush.xpose.msra.mxu0 %v1356
        %3195 = vmatmul.f32.gmra.mxu0 %v3077
        %v3196 = vpop.f32.mrf.mxu0
        %v3197 = vadd.f32 0.0, %v3196
        %3198 = vdwg.mxu0
        %3199 = vmatpush.xpose.msra.mxu0 0.0
        %3200 = vmatpush.xpose.msra.mxu0 0.0
        %3201 = vmatpush.xpose.msra.mxu0 0.0
        %3202 = vmatpush.xpose.msra.mxu0 0.0
        %3203 = vmatpush.xpose.msra.mxu0 0.0
        %3204 = vmatpush.xpose.msra.mxu0 0.0
        %3205 = vmatpush.xpose.msra.mxu0 0.0
        %3206 = vmatpush.xpose.msra.mxu0 0.0
        %3207 = vmatpush.xpose.msra.mxu0 0.0
        %3208 = vmatpush.xpose.msra.mxu0 0.0
        %3209 = vmatpush.xpose.msra.mxu0 0.0
        %3210 = vmatpush.xpose.msra.mxu0 0.0
        %3211 = vmatpush.xpose.msra.mxu0 0.0
        %3212 = vmatpush.xpose.msra.mxu0 0.0
        %3213 = vmatpush.xpose.msra.mxu0 %v1777
        %3214 = vmatpush.xpose.msra.mxu0 %v1774
        %3215 = vmatmul.f32.gmra.mxu0 %v3078
        %v3216 = vpop.f32.mrf.mxu0
        %v3217 = vadd.f32 %v3197, %v3216
        %3218 = vdwg.mxu0
        %3219 = vmatpush.xpose.msra.mxu0 0.0
        %3220 = vmatpush.xpose.msra.mxu0 0.0
        %3221 = vmatpush.xpose.msra.mxu0 0.0
        %3222 = vmatpush.xpose.msra.mxu0 0.0
        %3223 = vmatpush.xpose.msra.mxu0 0.0
        %3224 = vmatpush.xpose.msra.mxu0 0.0
        %3225 = vmatpush.xpose.msra.mxu0 0.0
        %3226 = vmatpush.xpose.msra.mxu0 0.0
        %3227 = vmatpush.xpose.msra.mxu0 0.0
        %3228 = vmatpush.xpose.msra.mxu0 0.0
        %3229 = vmatpush.xpose.msra.mxu0 0.0
        %3230 = vmatpush.xpose.msra.mxu0 0.0
        %3231 = vmatpush.xpose.msra.mxu0 0.0
        %3232 = vmatpush.xpose.msra.mxu0 0.0
        %3233 = vmatpush.xpose.msra.mxu0 %v1365
        %3234 = vmatpush.xpose.msra.mxu0 %v1362
        %3235 = vmatmul.f32.gmra.mxu0 %v3079
        %v3236 = vpop.f32.mrf.mxu0
        %v3237 = vadd.f32 0.0, %v3236
        %3238 = vdwg.mxu0
        %3239 = vmatpush.xpose.msra.mxu0 0.0
        %3240 = vmatpush.xpose.msra.mxu0 0.0
        %3241 = vmatpush.xpose.msra.mxu0 0.0
        %3242 = vmatpush.xpose.msra.mxu0 0.0
        %3243 = vmatpush.xpose.msra.mxu0 0.0
        %3244 = vmatpush.xpose.msra.mxu0 0.0
        %3245 = vmatpush.xpose.msra.mxu0 0.0
        %3246 = vmatpush.xpose.msra.mxu0 0.0
        %3247 = vmatpush.xpose.msra.mxu0 0.0
        %3248 = vmatpush.xpose.msra.mxu0 0.0
        %3249 = vmatpush.xpose.msra.mxu0 0.0
        %3250 = vmatpush.xpose.msra.mxu0 0.0
        %3251 = vmatpush.xpose.msra.mxu0 0.0
        %3252 = vmatpush.xpose.msra.mxu0 0.0
        %3253 = vmatpush.xpose.msra.mxu0 %v1783
        %3254 = vmatpush.xpose.msra.mxu0 %v1780
        %3255 = vmatmul.f32.gmra.mxu0 %v3080
        %v3256 = vpop.f32.mrf.mxu0
        %v3257 = vadd.f32 %v3237, %v3256
        %3258 = vdwg.mxu0
        %3259 = vmatpush.xpose.msra.mxu0 0.0
        %3260 = vmatpush.xpose.msra.mxu0 0.0
        %3261 = vmatpush.xpose.msra.mxu0 0.0
        %3262 = vmatpush.xpose.msra.mxu0 0.0
        %3263 = vmatpush.xpose.msra.mxu0 0.0
        %3264 = vmatpush.xpose.msra.mxu0 0.0
        %3265 = vmatpush.xpose.msra.mxu0 0.0
        %3266 = vmatpush.xpose.msra.mxu0 0.0
        %3267 = vmatpush.xpose.msra.mxu0 0.0
        %3268 = vmatpush.xpose.msra.mxu0 0.0
        %3269 = vmatpush.xpose.msra.mxu0 0.0
        %3270 = vmatpush.xpose.msra.mxu0 0.0
        %3271 = vmatpush.xpose.msra.mxu0 0.0
        %3272 = vmatpush.xpose.msra.mxu0 0.0
        %3273 = vmatpush.xpose.msra.mxu0 %v1371
        %3274 = vmatpush.xpose.msra.mxu0 %v1368
        %3275 = vmatmul.f32.gmra.mxu0 %v3081
        %v3276 = vpop.f32.mrf.mxu0
        %v3277 = vadd.f32 0.0, %v3276
        %3278 = vdwg.mxu0
        %3279 = vmatpush.xpose.msra.mxu0 0.0
        %3280 = vmatpush.xpose.msra.mxu0 0.0
        %3281 = vmatpush.xpose.msra.mxu0 0.0
        %3282 = vmatpush.xpose.msra.mxu0 0.0
        %3283 = vmatpush.xpose.msra.mxu0 0.0
        %3284 = vmatpush.xpose.msra.mxu0 0.0
        %3285 = vmatpush.xpose.msra.mxu0 0.0
        %3286 = vmatpush.xpose.msra.mxu0 0.0
        %3287 = vmatpush.xpose.msra.mxu0 0.0
        %3288 = vmatpush.xpose.msra.mxu0 0.0
        %3289 = vmatpush.xpose.msra.mxu0 0.0
        %3290 = vmatpush.xpose.msra.mxu0 0.0
        %3291 = vmatpush.xpose.msra.mxu0 0.0
        %3292 = vmatpush.xpose.msra.mxu0 0.0
        %3293 = vmatpush.xpose.msra.mxu0 %v1789
        %3294 = vmatpush.xpose.msra.mxu0 %v1786
        %3295 = vmatmul.f32.gmra.mxu0 %v3082
        %v3296 = vpop.f32.mrf.mxu0
        %v3297 = vadd.f32 %v3277, %v3296
        %3298 = vdwg.mxu0
        %3299 = vmatpush.xpose.msra.mxu0 0.0
        %3300 = vmatpush.xpose.msra.mxu0 0.0
        %3301 = vmatpush.xpose.msra.mxu0 0.0
        %3302 = vmatpush.xpose.msra.mxu0 0.0
        %3303 = vmatpush.xpose.msra.mxu0 0.0
        %3304 = vmatpush.xpose.msra.mxu0 0.0
        %3305 = vmatpush.xpose.msra.mxu0 0.0
        %3306 = vmatpush.xpose.msra.mxu0 0.0
        %3307 = vmatpush.xpose.msra.mxu0 0.0
        %3308 = vmatpush.xpose.msra.mxu0 0.0
        %3309 = vmatpush.xpose.msra.mxu0 0.0
        %3310 = vmatpush.xpose.msra.mxu0 0.0
        %3311 = vmatpush.xpose.msra.mxu0 0.0
        %3312 = vmatpush.xpose.msra.mxu0 0.0
        %3313 = vmatpush.xpose.msra.mxu0 %v1377
        %3314 = vmatpush.xpose.msra.mxu0 %v1374
        %3315 = vmatmul.f32.gmra.mxu0 %v3083
        %v3316 = vpop.f32.mrf.mxu0
        %v3317 = vadd.f32 0.0, %v3316
        %3318 = vdwg.mxu0
        %3319 = vmatpush.xpose.msra.mxu0 0.0
        %3320 = vmatpush.xpose.msra.mxu0 0.0
        %3321 = vmatpush.xpose.msra.mxu0 0.0
        %3322 = vmatpush.xpose.msra.mxu0 0.0
        %3323 = vmatpush.xpose.msra.mxu0 0.0
        %3324 = vmatpush.xpose.msra.mxu0 0.0
        %3325 = vmatpush.xpose.msra.mxu0 0.0
        %3326 = vmatpush.xpose.msra.mxu0 0.0
        %3327 = vmatpush.xpose.msra.mxu0 0.0
        %3328 = vmatpush.xpose.msra.mxu0 0.0
        %3329 = vmatpush.xpose.msra.mxu0 0.0
        %3330 = vmatpush.xpose.msra.mxu0 0.0
        %3331 = vmatpush.xpose.msra.mxu0 0.0
        %3332 = vmatpush.xpose.msra.mxu0 0.0
        %3333 = vmatpush.xpose.msra.mxu0 %v1795
        %3334 = vmatpush.xpose.msra.mxu0 %v1792
        %3335 = vmatmul.f32.gmra.mxu0 %v3084
        %v3336 = vpop.f32.mrf.mxu0
        %v3337 = vadd.f32 %v3317, %v3336
        %3338 = vdwg.mxu0
        %3339 = vmatpush.xpose.msra.mxu0 0.0
        %3340 = vmatpush.xpose.msra.mxu0 0.0
        %3341 = vmatpush.xpose.msra.mxu0 0.0
        %3342 = vmatpush.xpose.msra.mxu0 0.0
        %3343 = vmatpush.xpose.msra.mxu0 0.0
        %3344 = vmatpush.xpose.msra.mxu0 0.0
        %3345 = vmatpush.xpose.msra.mxu0 0.0
        %3346 = vmatpush.xpose.msra.mxu0 0.0
        %3347 = vmatpush.xpose.msra.mxu0 0.0
        %3348 = vmatpush.xpose.msra.mxu0 0.0
        %3349 = vmatpush.xpose.msra.mxu0 0.0
        %3350 = vmatpush.xpose.msra.mxu0 0.0
        %3351 = vmatpush.xpose.msra.mxu0 0.0
        %3352 = vmatpush.xpose.msra.mxu0 0.0
        %3353 = vmatpush.xpose.msra.mxu0 %v1383
        %3354 = vmatpush.xpose.msra.mxu0 %v1380
        %3355 = vmatmul.f32.gmra.mxu0 %v3085
        %v3356 = vpop.f32.mrf.mxu0
        %v3357 = vadd.f32 0.0, %v3356
        %3358 = vdwg.mxu0
        %3359 = vmatpush.xpose.msra.mxu0 0.0
        %3360 = vmatpush.xpose.msra.mxu0 0.0
        %3361 = vmatpush.xpose.msra.mxu0 0.0
        %3362 = vmatpush.xpose.msra.mxu0 0.0
        %3363 = vmatpush.xpose.msra.mxu0 0.0
        %3364 = vmatpush.xpose.msra.mxu0 0.0
        %3365 = vmatpush.xpose.msra.mxu0 0.0
        %3366 = vmatpush.xpose.msra.mxu0 0.0
        %3367 = vmatpush.xpose.msra.mxu0 0.0
        %3368 = vmatpush.xpose.msra.mxu0 0.0
        %3369 = vmatpush.xpose.msra.mxu0 0.0
        %3370 = vmatpush.xpose.msra.mxu0 0.0
        %3371 = vmatpush.xpose.msra.mxu0 0.0
        %3372 = vmatpush.xpose.msra.mxu0 0.0
        %3373 = vmatpush.xpose.msra.mxu0 %v1801
        %3374 = vmatpush.xpose.msra.mxu0 %v1798
        %3375 = vmatmul.f32.gmra.mxu0 %v3086
        %v3376 = vpop.f32.mrf.mxu0
        %v3377 = vadd.f32 %v3357, %v3376
        %3378 = vdwg.mxu0
        %3379 = vmatpush.xpose.msra.mxu0 0.0
        %3380 = vmatpush.xpose.msra.mxu0 0.0
        %3381 = vmatpush.xpose.msra.mxu0 0.0
        %3382 = vmatpush.xpose.msra.mxu0 0.0
        %3383 = vmatpush.xpose.msra.mxu0 0.0
        %3384 = vmatpush.xpose.msra.mxu0 0.0
        %3385 = vmatpush.xpose.msra.mxu0 0.0
        %3386 = vmatpush.xpose.msra.mxu0 0.0
        %3387 = vmatpush.xpose.msra.mxu0 0.0
        %3388 = vmatpush.xpose.msra.mxu0 0.0
        %3389 = vmatpush.xpose.msra.mxu0 0.0
        %3390 = vmatpush.xpose.msra.mxu0 0.0
        %3391 = vmatpush.xpose.msra.mxu0 0.0
        %3392 = vmatpush.xpose.msra.mxu0 0.0
        %3393 = vmatpush.xpose.msra.mxu0 %v1389
        %3394 = vmatpush.xpose.msra.mxu0 %v1386
        %3395 = vmatmul.f32.gmra.mxu0 %v3087
        %v3396 = vpop.f32.mrf.mxu0
        %v3397 = vadd.f32 0.0, %v3396
        %3398 = vdwg.mxu0
        %3399 = vmatpush.xpose.msra.mxu0 0.0
        %3400 = vmatpush.xpose.msra.mxu0 0.0
        %3401 = vmatpush.xpose.msra.mxu0 0.0
        %3402 = vmatpush.xpose.msra.mxu0 0.0
        %3403 = vmatpush.xpose.msra.mxu0 0.0
        %3404 = vmatpush.xpose.msra.mxu0 0.0
        %3405 = vmatpush.xpose.msra.mxu0 0.0
        %3406 = vmatpush.xpose.msra.mxu0 0.0
        %3407 = vmatpush.xpose.msra.mxu0 0.0
        %3408 = vmatpush.xpose.msra.mxu0 0.0
        %3409 = vmatpush.xpose.msra.mxu0 0.0
        %3410 = vmatpush.xpose.msra.mxu0 0.0
        %3411 = vmatpush.xpose.msra.mxu0 0.0
        %3412 = vmatpush.xpose.msra.mxu0 0.0
        %3413 = vmatpush.xpose.msra.mxu0 %v1807
        %3414 = vmatpush.xpose.msra.mxu0 %v1804
        %3415 = vmatmul.f32.gmra.mxu0 %v3088
        %v3416 = vpop.f32.mrf.mxu0
        %v3417 = vadd.f32 %v3397, %v3416
        %3418 = vdwg.mxu0
        %3419 = vmatpush.xpose.msra.mxu0 0.0
        %3420 = vmatpush.xpose.msra.mxu0 0.0
        %3421 = vmatpush.xpose.msra.mxu0 0.0
        %3422 = vmatpush.xpose.msra.mxu0 0.0
        %3423 = vmatpush.xpose.msra.mxu0 0.0
        %3424 = vmatpush.xpose.msra.mxu0 0.0
        %3425 = vmatpush.xpose.msra.mxu0 0.0
        %3426 = vmatpush.xpose.msra.mxu0 0.0
        %3427 = vmatpush.xpose.msra.mxu0 0.0
        %3428 = vmatpush.xpose.msra.mxu0 0.0
        %3429 = vmatpush.xpose.msra.mxu0 0.0
        %3430 = vmatpush.xpose.msra.mxu0 0.0
        %3431 = vmatpush.xpose.msra.mxu0 0.0
        %3432 = vmatpush.xpose.msra.mxu0 0.0
        %3433 = vmatpush.xpose.msra.mxu0 %v1395
        %3434 = vmatpush.xpose.msra.mxu0 %v1392
        %3435 = vmatmul.f32.gmra.mxu0 %v3089
        %v3436 = vpop.f32.mrf.mxu0
        %v3437 = vadd.f32 0.0, %v3436
        %3438 = vdwg.mxu0
        %3439 = vmatpush.xpose.msra.mxu0 0.0
        %3440 = vmatpush.xpose.msra.mxu0 0.0
        %3441 = vmatpush.xpose.msra.mxu0 0.0
        %3442 = vmatpush.xpose.msra.mxu0 0.0
        %3443 = vmatpush.xpose.msra.mxu0 0.0
        %3444 = vmatpush.xpose.msra.mxu0 0.0
        %3445 = vmatpush.xpose.msra.mxu0 0.0
        %3446 = vmatpush.xpose.msra.mxu0 0.0
        %3447 = vmatpush.xpose.msra.mxu0 0.0
        %3448 = vmatpush.xpose.msra.mxu0 0.0
        %3449 = vmatpush.xpose.msra.mxu0 0.0
        %3450 = vmatpush.xpose.msra.mxu0 0.0
        %3451 = vmatpush.xpose.msra.mxu0 0.0
        %3452 = vmatpush.xpose.msra.mxu0 0.0
        %3453 = vmatpush.xpose.msra.mxu0 %v1813
        %3454 = vmatpush.xpose.msra.mxu0 %v1810
        %3455 = vmatmul.f32.gmra.mxu0 %v3090
        %v3456 = vpop.f32.mrf.mxu0
        %v3457 = vadd.f32 %v3437, %v3456
        %3458 = vdwg.mxu0
        %3459 = vmatpush.xpose.msra.mxu0 0.0
        %3460 = vmatpush.xpose.msra.mxu0 0.0
        %3461 = vmatpush.xpose.msra.mxu0 0.0
        %3462 = vmatpush.xpose.msra.mxu0 0.0
        %3463 = vmatpush.xpose.msra.mxu0 0.0
        %3464 = vmatpush.xpose.msra.mxu0 0.0
        %3465 = vmatpush.xpose.msra.mxu0 0.0
        %3466 = vmatpush.xpose.msra.mxu0 0.0
        %3467 = vmatpush.xpose.msra.mxu0 0.0
        %3468 = vmatpush.xpose.msra.mxu0 0.0
        %3469 = vmatpush.xpose.msra.mxu0 0.0
        %3470 = vmatpush.xpose.msra.mxu0 0.0
        %3471 = vmatpush.xpose.msra.mxu0 0.0
        %3472 = vmatpush.xpose.msra.mxu0 0.0
        %3473 = vmatpush.xpose.msra.mxu0 %v1401
        %3474 = vmatpush.xpose.msra.mxu0 %v1398
        %3475 = vmatmul.f32.gmra.mxu0 %v3091
        %v3476 = vpop.f32.mrf.mxu0
        %v3477 = vadd.f32 0.0, %v3476
        %3478 = vdwg.mxu0
        %3479 = vmatpush.xpose.msra.mxu0 0.0
        %3480 = vmatpush.xpose.msra.mxu0 0.0
        %3481 = vmatpush.xpose.msra.mxu0 0.0
        %3482 = vmatpush.xpose.msra.mxu0 0.0
        %3483 = vmatpush.xpose.msra.mxu0 0.0
        %3484 = vmatpush.xpose.msra.mxu0 0.0
        %3485 = vmatpush.xpose.msra.mxu0 0.0
        %3486 = vmatpush.xpose.msra.mxu0 0.0
        %3487 = vmatpush.xpose.msra.mxu0 0.0
        %3488 = vmatpush.xpose.msra.mxu0 0.0
        %3489 = vmatpush.xpose.msra.mxu0 0.0
        %3490 = vmatpush.xpose.msra.mxu0 0.0
        %3491 = vmatpush.xpose.msra.mxu0 0.0
        %3492 = vmatpush.xpose.msra.mxu0 0.0
        %3493 = vmatpush.xpose.msra.mxu0 %v1819
        %3494 = vmatpush.xpose.msra.mxu0 %v1816
        %3495 = vmatmul.f32.gmra.mxu0 %v3092
        %v3496 = vpop.f32.mrf.mxu0
        %v3497 = vadd.f32 %v3477, %v3496
        %3498 = vdwg.mxu0
        %3499 = vmatpush.xpose.msra.mxu0 0.0
        %3500 = vmatpush.xpose.msra.mxu0 0.0
        %3501 = vmatpush.xpose.msra.mxu0 0.0
        %3502 = vmatpush.xpose.msra.mxu0 0.0
        %3503 = vmatpush.xpose.msra.mxu0 0.0
        %3504 = vmatpush.xpose.msra.mxu0 0.0
        %3505 = vmatpush.xpose.msra.mxu0 0.0
        %3506 = vmatpush.xpose.msra.mxu0 0.0
        %3507 = vmatpush.xpose.msra.mxu0 0.0
        %3508 = vmatpush.xpose.msra.mxu0 0.0
        %3509 = vmatpush.xpose.msra.mxu0 0.0
        %3510 = vmatpush.xpose.msra.mxu0 0.0
        %3511 = vmatpush.xpose.msra.mxu0 0.0
        %3512 = vmatpush.xpose.msra.mxu0 0.0
        %3513 = vmatpush.xpose.msra.mxu0 %v1407
        %3514 = vmatpush.xpose.msra.mxu0 %v1404
        %3515 = vmatmul.f32.gmra.mxu0 %v3093
        %v3516 = vpop.f32.mrf.mxu0
        %v3517 = vadd.f32 0.0, %v3516
        %3518 = vdwg.mxu0
        %3519 = vmatpush.xpose.msra.mxu0 0.0
        %3520 = vmatpush.xpose.msra.mxu0 0.0
        %3521 = vmatpush.xpose.msra.mxu0 0.0
        %3522 = vmatpush.xpose.msra.mxu0 0.0
        %3523 = vmatpush.xpose.msra.mxu0 0.0
        %3524 = vmatpush.xpose.msra.mxu0 0.0
        %3525 = vmatpush.xpose.msra.mxu0 0.0
        %3526 = vmatpush.xpose.msra.mxu0 0.0
        %3527 = vmatpush.xpose.msra.mxu0 0.0
        %3528 = vmatpush.xpose.msra.mxu0 0.0
        %3529 = vmatpush.xpose.msra.mxu0 0.0
        %3530 = vmatpush.xpose.msra.mxu0 0.0
        %3531 = vmatpush.xpose.msra.mxu0 0.0
        %3532 = vmatpush.xpose.msra.mxu0 0.0
        %3533 = vmatpush.xpose.msra.mxu0 %v1825
        %3534 = vmatpush.xpose.msra.mxu0 %v1822
        %3535 = vmatmul.f32.gmra.mxu0 %v3094
        %v3536 = vpop.f32.mrf.mxu0
        %v3537 = vadd.f32 %v3517, %v3536
        %3538 = vdwg.mxu0
        %3539 = vmatpush.xpose.msra.mxu0 0.0
        %3540 = vmatpush.xpose.msra.mxu0 0.0
        %3541 = vmatpush.xpose.msra.mxu0 0.0
        %3542 = vmatpush.xpose.msra.mxu0 0.0
        %3543 = vmatpush.xpose.msra.mxu0 0.0
        %3544 = vmatpush.xpose.msra.mxu0 0.0
        %3545 = vmatpush.xpose.msra.mxu0 0.0
        %3546 = vmatpush.xpose.msra.mxu0 0.0
        %3547 = vmatpush.xpose.msra.mxu0 0.0
        %3548 = vmatpush.xpose.msra.mxu0 0.0
        %3549 = vmatpush.xpose.msra.mxu0 0.0
        %3550 = vmatpush.xpose.msra.mxu0 0.0
        %3551 = vmatpush.xpose.msra.mxu0 0.0
        %3552 = vmatpush.xpose.msra.mxu0 0.0
        %3553 = vmatpush.xpose.msra.mxu0 %v1413
        %3554 = vmatpush.xpose.msra.mxu0 %v1410
        %3555 = vmatmul.f32.gmra.mxu0 %v3095
        %v3556 = vpop.f32.mrf.mxu0
        %v3557 = vadd.f32 0.0, %v3556
        %3558 = vdwg.mxu0
        %3559 = vmatpush.xpose.msra.mxu0 0.0
        %3560 = vmatpush.xpose.msra.mxu0 0.0
        %3561 = vmatpush.xpose.msra.mxu0 0.0
        %3562 = vmatpush.xpose.msra.mxu0 0.0
        %3563 = vmatpush.xpose.msra.mxu0 0.0
        %3564 = vmatpush.xpose.msra.mxu0 0.0
        %3565 = vmatpush.xpose.msra.mxu0 0.0
        %3566 = vmatpush.xpose.msra.mxu0 0.0
        %3567 = vmatpush.xpose.msra.mxu0 0.0
        %3568 = vmatpush.xpose.msra.mxu0 0.0
        %3569 = vmatpush.xpose.msra.mxu0 0.0
        %3570 = vmatpush.xpose.msra.mxu0 0.0
        %3571 = vmatpush.xpose.msra.mxu0 0.0
        %3572 = vmatpush.xpose.msra.mxu0 0.0
        %3573 = vmatpush.xpose.msra.mxu0 %v1831
        %3574 = vmatpush.xpose.msra.mxu0 %v1828
        %3575 = vmatmul.f32.gmra.mxu0 %v3096
        %v3576 = vpop.f32.mrf.mxu0
        %v3577 = vadd.f32 %v3557, %v3576
        %3578 = vdwg.mxu0
        %3579 = vmatpush.xpose.msra.mxu0 0.0
        %3580 = vmatpush.xpose.msra.mxu0 0.0
        %3581 = vmatpush.xpose.msra.mxu0 0.0
        %3582 = vmatpush.xpose.msra.mxu0 0.0
        %3583 = vmatpush.xpose.msra.mxu0 0.0
        %3584 = vmatpush.xpose.msra.mxu0 0.0
        %3585 = vmatpush.xpose.msra.mxu0 0.0
        %3586 = vmatpush.xpose.msra.mxu0 0.0
        %3587 = vmatpush.xpose.msra.mxu0 0.0
        %3588 = vmatpush.xpose.msra.mxu0 0.0
        %3589 = vmatpush.xpose.msra.mxu0 0.0
        %3590 = vmatpush.xpose.msra.mxu0 0.0
        %3591 = vmatpush.xpose.msra.mxu0 0.0
        %3592 = vmatpush.xpose.msra.mxu0 0.0
        %3593 = vmatpush.xpose.msra.mxu0 %v1419
        %3594 = vmatpush.xpose.msra.mxu0 %v1416
        %3595 = vmatmul.f32.gmra.mxu0 %v3097
        %v3596 = vpop.f32.mrf.mxu0
        %v3597 = vadd.f32 0.0, %v3596
        %3598 = vdwg.mxu0
        %3599 = vmatpush.xpose.msra.mxu0 0.0
        %3600 = vmatpush.xpose.msra.mxu0 0.0
        %3601 = vmatpush.xpose.msra.mxu0 0.0
        %3602 = vmatpush.xpose.msra.mxu0 0.0
        %3603 = vmatpush.xpose.msra.mxu0 0.0
        %3604 = vmatpush.xpose.msra.mxu0 0.0
        %3605 = vmatpush.xpose.msra.mxu0 0.0
        %3606 = vmatpush.xpose.msra.mxu0 0.0
        %3607 = vmatpush.xpose.msra.mxu0 0.0
        %3608 = vmatpush.xpose.msra.mxu0 0.0
        %3609 = vmatpush.xpose.msra.mxu0 0.0
        %3610 = vmatpush.xpose.msra.mxu0 0.0
        %3611 = vmatpush.xpose.msra.mxu0 0.0
        %3612 = vmatpush.xpose.msra.mxu0 0.0
        %3613 = vmatpush.xpose.msra.mxu0 %v1837
        %3614 = vmatpush.xpose.msra.mxu0 %v1834
        %3615 = vmatmul.f32.gmra.mxu0 %v3098
        %v3616 = vpop.f32.mrf.mxu0
        %v3617 = vadd.f32 %v3597, %v3616
        %3618 = vdwg.mxu0
        %3619 = vmatpush.xpose.msra.mxu0 0.0
        %3620 = vmatpush.xpose.msra.mxu0 0.0
        %3621 = vmatpush.xpose.msra.mxu0 0.0
        %3622 = vmatpush.xpose.msra.mxu0 0.0
        %3623 = vmatpush.xpose.msra.mxu0 0.0
        %3624 = vmatpush.xpose.msra.mxu0 0.0
        %3625 = vmatpush.xpose.msra.mxu0 0.0
        %3626 = vmatpush.xpose.msra.mxu0 0.0
        %3627 = vmatpush.xpose.msra.mxu0 0.0
        %3628 = vmatpush.xpose.msra.mxu0 0.0
        %3629 = vmatpush.xpose.msra.mxu0 0.0
        %3630 = vmatpush.xpose.msra.mxu0 0.0
        %3631 = vmatpush.xpose.msra.mxu0 0.0
        %3632 = vmatpush.xpose.msra.mxu0 0.0
        %3633 = vmatpush.xpose.msra.mxu0 %v1425
        %3634 = vmatpush.xpose.msra.mxu0 %v1422
        %3635 = vmatmul.f32.gmra.mxu0 %v3099
        %v3636 = vpop.f32.mrf.mxu0
        %v3637 = vadd.f32 0.0, %v3636
        %3638 = vdwg.mxu0
        %3639 = vmatpush.xpose.msra.mxu0 0.0
        %3640 = vmatpush.xpose.msra.mxu0 0.0
        %3641 = vmatpush.xpose.msra.mxu0 0.0
        %3642 = vmatpush.xpose.msra.mxu0 0.0
        %3643 = vmatpush.xpose.msra.mxu0 0.0
        %3644 = vmatpush.xpose.msra.mxu0 0.0
        %3645 = vmatpush.xpose.msra.mxu0 0.0
        %3646 = vmatpush.xpose.msra.mxu0 0.0
        %3647 = vmatpush.xpose.msra.mxu0 0.0
        %3648 = vmatpush.xpose.msra.mxu0 0.0
        %3649 = vmatpush.xpose.msra.mxu0 0.0
        %3650 = vmatpush.xpose.msra.mxu0 0.0
        %3651 = vmatpush.xpose.msra.mxu0 0.0
        %3652 = vmatpush.xpose.msra.mxu0 0.0
        %3653 = vmatpush.xpose.msra.mxu0 %v1843
        %3654 = vmatpush.xpose.msra.mxu0 %v1840
        %3655 = vmatmul.f32.gmra.mxu0 %v3100
        %v3656 = vpop.f32.mrf.mxu0
        %v3657 = vadd.f32 %v3637, %v3656
        %3658 = vdwg.mxu0
        %3659 = vmatpush.xpose.msra.mxu0 0.0
        %3660 = vmatpush.xpose.msra.mxu0 0.0
        %3661 = vmatpush.xpose.msra.mxu0 0.0
        %3662 = vmatpush.xpose.msra.mxu0 0.0
        %3663 = vmatpush.xpose.msra.mxu0 0.0
        %3664 = vmatpush.xpose.msra.mxu0 0.0
        %3665 = vmatpush.xpose.msra.mxu0 0.0
        %3666 = vmatpush.xpose.msra.mxu0 0.0
        %3667 = vmatpush.xpose.msra.mxu0 0.0
        %3668 = vmatpush.xpose.msra.mxu0 0.0
        %3669 = vmatpush.xpose.msra.mxu0 0.0
        %3670 = vmatpush.xpose.msra.mxu0 0.0
        %3671 = vmatpush.xpose.msra.mxu0 0.0
        %3672 = vmatpush.xpose.msra.mxu0 0.0
        %3673 = vmatpush.xpose.msra.mxu0 %v1431
        %3674 = vmatpush.xpose.msra.mxu0 %v1428
        %3675 = vmatmul.f32.gmra.mxu0 %v3101
        %v3676 = vpop.f32.mrf.mxu0
        %v3677 = vadd.f32 0.0, %v3676
        %3678 = vdwg.mxu0
        %3679 = vmatpush.xpose.msra.mxu0 0.0
        %3680 = vmatpush.xpose.msra.mxu0 0.0
        %3681 = vmatpush.xpose.msra.mxu0 0.0
        %3682 = vmatpush.xpose.msra.mxu0 0.0
        %3683 = vmatpush.xpose.msra.mxu0 0.0
        %3684 = vmatpush.xpose.msra.mxu0 0.0
        %3685 = vmatpush.xpose.msra.mxu0 0.0
        %3686 = vmatpush.xpose.msra.mxu0 0.0
        %3687 = vmatpush.xpose.msra.mxu0 0.0
        %3688 = vmatpush.xpose.msra.mxu0 0.0
        %3689 = vmatpush.xpose.msra.mxu0 0.0
        %3690 = vmatpush.xpose.msra.mxu0 0.0
        %3691 = vmatpush.xpose.msra.mxu0 0.0
        %3692 = vmatpush.xpose.msra.mxu0 0.0
        %3693 = vmatpush.xpose.msra.mxu0 %v1849
        %3694 = vmatpush.xpose.msra.mxu0 %v1846
        %3695 = vmatmul.f32.gmra.mxu0 %v3102
        %v3696 = vpop.f32.mrf.mxu0
        %v3697 = vadd.f32 %v3677, %v3696
        %3698 = vdwg.mxu0
        %3699 = vmatpush.xpose.msra.mxu0 0.0
        %3700 = vmatpush.xpose.msra.mxu0 0.0
        %3701 = vmatpush.xpose.msra.mxu0 0.0
        %3702 = vmatpush.xpose.msra.mxu0 0.0
        %3703 = vmatpush.xpose.msra.mxu0 0.0
        %3704 = vmatpush.xpose.msra.mxu0 0.0
        %3705 = vmatpush.xpose.msra.mxu0 0.0
        %3706 = vmatpush.xpose.msra.mxu0 0.0
        %3707 = vmatpush.xpose.msra.mxu0 0.0
        %3708 = vmatpush.xpose.msra.mxu0 0.0
        %3709 = vmatpush.xpose.msra.mxu0 0.0
        %3710 = vmatpush.xpose.msra.mxu0 0.0
        %3711 = vmatpush.xpose.msra.mxu0 0.0
        %3712 = vmatpush.xpose.msra.mxu0 0.0
        %3713 = vmatpush.xpose.msra.mxu0 %v1437
        %3714 = vmatpush.xpose.msra.mxu0 %v1434
        %3715 = vmatmul.f32.gmra.mxu0 %v3103
        %v3716 = vpop.f32.mrf.mxu0
        %v3717 = vadd.f32 0.0, %v3716
        %3718 = vdwg.mxu0
        %3719 = vmatpush.xpose.msra.mxu0 0.0
        %3720 = vmatpush.xpose.msra.mxu0 0.0
        %3721 = vmatpush.xpose.msra.mxu0 0.0
        %3722 = vmatpush.xpose.msra.mxu0 0.0
        %3723 = vmatpush.xpose.msra.mxu0 0.0
        %3724 = vmatpush.xpose.msra.mxu0 0.0
        %3725 = vmatpush.xpose.msra.mxu0 0.0
        %3726 = vmatpush.xpose.msra.mxu0 0.0
        %3727 = vmatpush.xpose.msra.mxu0 0.0
        %3728 = vmatpush.xpose.msra.mxu0 0.0
        %3729 = vmatpush.xpose.msra.mxu0 0.0
        %3730 = vmatpush.xpose.msra.mxu0 0.0
        %3731 = vmatpush.xpose.msra.mxu0 0.0
        %3732 = vmatpush.xpose.msra.mxu0 0.0
        %3733 = vmatpush.xpose.msra.mxu0 %v1855
        %3734 = vmatpush.xpose.msra.mxu0 %v1852
        %3735 = vmatmul.f32.gmra.mxu0 %v3104
        %v3736 = vpop.f32.mrf.mxu0
        %v3737 = vadd.f32 %v3717, %v3736
        %3738 = vdwg.mxu0
        %3739 = vmatpush.xpose.msra.mxu0 0.0
        %3740 = vmatpush.xpose.msra.mxu0 0.0
        %3741 = vmatpush.xpose.msra.mxu0 0.0
        %3742 = vmatpush.xpose.msra.mxu0 0.0
        %3743 = vmatpush.xpose.msra.mxu0 0.0
        %3744 = vmatpush.xpose.msra.mxu0 0.0
        %3745 = vmatpush.xpose.msra.mxu0 0.0
        %3746 = vmatpush.xpose.msra.mxu0 0.0
        %3747 = vmatpush.xpose.msra.mxu0 0.0
        %3748 = vmatpush.xpose.msra.mxu0 0.0
        %3749 = vmatpush.xpose.msra.mxu0 0.0
        %3750 = vmatpush.xpose.msra.mxu0 0.0
        %3751 = vmatpush.xpose.msra.mxu0 0.0
        %3752 = vmatpush.xpose.msra.mxu0 0.0
        %3753 = vmatpush.xpose.msra.mxu0 %v1443
        %3754 = vmatpush.xpose.msra.mxu0 %v1440
        %3755 = vmatmul.f32.gmra.mxu0 %v3105
        %v3756 = vpop.f32.mrf.mxu0
        %v3757 = vadd.f32 0.0, %v3756
        %3758 = vdwg.mxu0
        %3759 = vmatpush.xpose.msra.mxu0 0.0
        %3760 = vmatpush.xpose.msra.mxu0 0.0
        %3761 = vmatpush.xpose.msra.mxu0 0.0
        %3762 = vmatpush.xpose.msra.mxu0 0.0
        %3763 = vmatpush.xpose.msra.mxu0 0.0
        %3764 = vmatpush.xpose.msra.mxu0 0.0
        %3765 = vmatpush.xpose.msra.mxu0 0.0
        %3766 = vmatpush.xpose.msra.mxu0 0.0
        %3767 = vmatpush.xpose.msra.mxu0 0.0
        %3768 = vmatpush.xpose.msra.mxu0 0.0
        %3769 = vmatpush.xpose.msra.mxu0 0.0
        %3770 = vmatpush.xpose.msra.mxu0 0.0
        %3771 = vmatpush.xpose.msra.mxu0 0.0
        %3772 = vmatpush.xpose.msra.mxu0 0.0
        %3773 = vmatpush.xpose.msra.mxu0 %v1861
        %3774 = vmatpush.xpose.msra.mxu0 %v1858
        %3775 = vmatmul.f32.gmra.mxu0 %v3106
        %v3776 = vpop.f32.mrf.mxu0
        %v3777 = vadd.f32 %v3757, %v3776
        %3778 = vdwg.mxu0
        %3779 = vmatpush.xpose.msra.mxu0 0.0
        %3780 = vmatpush.xpose.msra.mxu0 0.0
        %3781 = vmatpush.xpose.msra.mxu0 0.0
        %3782 = vmatpush.xpose.msra.mxu0 0.0
        %3783 = vmatpush.xpose.msra.mxu0 0.0
        %3784 = vmatpush.xpose.msra.mxu0 0.0
        %3785 = vmatpush.xpose.msra.mxu0 0.0
        %3786 = vmatpush.xpose.msra.mxu0 0.0
        %3787 = vmatpush.xpose.msra.mxu0 0.0
        %3788 = vmatpush.xpose.msra.mxu0 0.0
        %3789 = vmatpush.xpose.msra.mxu0 0.0
        %3790 = vmatpush.xpose.msra.mxu0 0.0
        %3791 = vmatpush.xpose.msra.mxu0 0.0
        %3792 = vmatpush.xpose.msra.mxu0 0.0
        %3793 = vmatpush.xpose.msra.mxu0 %v1449
        %3794 = vmatpush.xpose.msra.mxu0 %v1446
        %3795 = vmatmul.f32.gmra.mxu0 %v3107
        %v3796 = vpop.f32.mrf.mxu0
        %v3797 = vadd.f32 0.0, %v3796
        %3798 = vdwg.mxu0
        %3799 = vmatpush.xpose.msra.mxu0 0.0
        %3800 = vmatpush.xpose.msra.mxu0 0.0
        %3801 = vmatpush.xpose.msra.mxu0 0.0
        %3802 = vmatpush.xpose.msra.mxu0 0.0
        %3803 = vmatpush.xpose.msra.mxu0 0.0
        %3804 = vmatpush.xpose.msra.mxu0 0.0
        %3805 = vmatpush.xpose.msra.mxu0 0.0
        %3806 = vmatpush.xpose.msra.mxu0 0.0
        %3807 = vmatpush.xpose.msra.mxu0 0.0
        %3808 = vmatpush.xpose.msra.mxu0 0.0
        %3809 = vmatpush.xpose.msra.mxu0 0.0
        %3810 = vmatpush.xpose.msra.mxu0 0.0
        %3811 = vmatpush.xpose.msra.mxu0 0.0
        %3812 = vmatpush.xpose.msra.mxu0 0.0
        %3813 = vmatpush.xpose.msra.mxu0 %v1867
        %3814 = vmatpush.xpose.msra.mxu0 %v1864
        %3815 = vmatmul.f32.gmra.mxu0 %v3108
        %v3816 = vpop.f32.mrf.mxu0
        %v3817 = vadd.f32 %v3797, %v3816
        %3818 = vdwg.mxu0
        %3819 = vmatpush.xpose.msra.mxu0 0.0
        %3820 = vmatpush.xpose.msra.mxu0 0.0
        %3821 = vmatpush.xpose.msra.mxu0 0.0
        %3822 = vmatpush.xpose.msra.mxu0 0.0
        %3823 = vmatpush.xpose.msra.mxu0 0.0
        %3824 = vmatpush.xpose.msra.mxu0 0.0
        %3825 = vmatpush.xpose.msra.mxu0 0.0
        %3826 = vmatpush.xpose.msra.mxu0 0.0
        %3827 = vmatpush.xpose.msra.mxu0 0.0
        %3828 = vmatpush.xpose.msra.mxu0 0.0
        %3829 = vmatpush.xpose.msra.mxu0 0.0
        %3830 = vmatpush.xpose.msra.mxu0 0.0
        %3831 = vmatpush.xpose.msra.mxu0 0.0
        %3832 = vmatpush.xpose.msra.mxu0 0.0
        %3833 = vmatpush.xpose.msra.mxu0 %v1455
        %3834 = vmatpush.xpose.msra.mxu0 %v1452
        %3835 = vmatmul.f32.gmra.mxu0 %v3109
        %v3836 = vpop.f32.mrf.mxu0
        %v3837 = vadd.f32 0.0, %v3836
        %3838 = vdwg.mxu0
        %3839 = vmatpush.xpose.msra.mxu0 0.0
        %3840 = vmatpush.xpose.msra.mxu0 0.0
        %3841 = vmatpush.xpose.msra.mxu0 0.0
        %3842 = vmatpush.xpose.msra.mxu0 0.0
        %3843 = vmatpush.xpose.msra.mxu0 0.0
        %3844 = vmatpush.xpose.msra.mxu0 0.0
        %3845 = vmatpush.xpose.msra.mxu0 0.0
        %3846 = vmatpush.xpose.msra.mxu0 0.0
        %3847 = vmatpush.xpose.msra.mxu0 0.0
        %3848 = vmatpush.xpose.msra.mxu0 0.0
        %3849 = vmatpush.xpose.msra.mxu0 0.0
        %3850 = vmatpush.xpose.msra.mxu0 0.0
        %3851 = vmatpush.xpose.msra.mxu0 0.0
        %3852 = vmatpush.xpose.msra.mxu0 0.0
        %3853 = vmatpush.xpose.msra.mxu0 %v1873
        %3854 = vmatpush.xpose.msra.mxu0 %v1870
        %3855 = vmatmul.f32.gmra.mxu0 %v3110
        %v3856 = vpop.f32.mrf.mxu0
        %v3857 = vadd.f32 %v3837, %v3856
        %3858 = vdwg.mxu0
        %3859 = vmatpush.xpose.msra.mxu0 0.0
        %3860 = vmatpush.xpose.msra.mxu0 0.0
        %3861 = vmatpush.xpose.msra.mxu0 0.0
        %3862 = vmatpush.xpose.msra.mxu0 0.0
        %3863 = vmatpush.xpose.msra.mxu0 0.0
        %3864 = vmatpush.xpose.msra.mxu0 0.0
        %3865 = vmatpush.xpose.msra.mxu0 0.0
        %3866 = vmatpush.xpose.msra.mxu0 0.0
        %3867 = vmatpush.xpose.msra.mxu0 0.0
        %3868 = vmatpush.xpose.msra.mxu0 0.0
        %3869 = vmatpush.xpose.msra.mxu0 0.0
        %3870 = vmatpush.xpose.msra.mxu0 0.0
        %3871 = vmatpush.xpose.msra.mxu0 0.0
        %3872 = vmatpush.xpose.msra.mxu0 0.0
        %3873 = vmatpush.xpose.msra.mxu0 %v1461
        %3874 = vmatpush.xpose.msra.mxu0 %v1458
        %3875 = vmatmul.f32.gmra.mxu0 %v3111
        %v3876 = vpop.f32.mrf.mxu0
        %v3877 = vadd.f32 0.0, %v3876
        %3878 = vdwg.mxu0
        %3879 = vmatpush.xpose.msra.mxu0 0.0
        %3880 = vmatpush.xpose.msra.mxu0 0.0
        %3881 = vmatpush.xpose.msra.mxu0 0.0
        %3882 = vmatpush.xpose.msra.mxu0 0.0
        %3883 = vmatpush.xpose.msra.mxu0 0.0
        %3884 = vmatpush.xpose.msra.mxu0 0.0
        %3885 = vmatpush.xpose.msra.mxu0 0.0
        %3886 = vmatpush.xpose.msra.mxu0 0.0
        %3887 = vmatpush.xpose.msra.mxu0 0.0
        %3888 = vmatpush.xpose.msra.mxu0 0.0
        %3889 = vmatpush.xpose.msra.mxu0 0.0
        %3890 = vmatpush.xpose.msra.mxu0 0.0
        %3891 = vmatpush.xpose.msra.mxu0 0.0
        %3892 = vmatpush.xpose.msra.mxu0 0.0
        %3893 = vmatpush.xpose.msra.mxu0 %v1879
        %3894 = vmatpush.xpose.msra.mxu0 %v1876
        %3895 = vmatmul.f32.gmra.mxu0 %v3112
        %v3896 = vpop.f32.mrf.mxu0
        %v3897 = vadd.f32 %v3877, %v3896
        %3898 = vdwg.mxu0
        %3899 = vmatpush.xpose.msra.mxu0 0.0
        %3900 = vmatpush.xpose.msra.mxu0 0.0
        %3901 = vmatpush.xpose.msra.mxu0 0.0
        %3902 = vmatpush.xpose.msra.mxu0 0.0
        %3903 = vmatpush.xpose.msra.mxu0 0.0
        %3904 = vmatpush.xpose.msra.mxu0 0.0
        %3905 = vmatpush.xpose.msra.mxu0 0.0
        %3906 = vmatpush.xpose.msra.mxu0 0.0
        %3907 = vmatpush.xpose.msra.mxu0 0.0
        %3908 = vmatpush.xpose.msra.mxu0 0.0
        %3909 = vmatpush.xpose.msra.mxu0 0.0
        %3910 = vmatpush.xpose.msra.mxu0 0.0
        %3911 = vmatpush.xpose.msra.mxu0 0.0
        %3912 = vmatpush.xpose.msra.mxu0 0.0
        %3913 = vmatpush.xpose.msra.mxu0 %v1467
        %3914 = vmatpush.xpose.msra.mxu0 %v1464
        %3915 = vmatmul.f32.gmra.mxu0 %v3113
        %v3916 = vpop.f32.mrf.mxu0
        %v3917 = vadd.f32 0.0, %v3916
        %3918 = vdwg.mxu0
        %3919 = vmatpush.xpose.msra.mxu0 0.0
        %3920 = vmatpush.xpose.msra.mxu0 0.0
        %3921 = vmatpush.xpose.msra.mxu0 0.0
        %3922 = vmatpush.xpose.msra.mxu0 0.0
        %3923 = vmatpush.xpose.msra.mxu0 0.0
        %3924 = vmatpush.xpose.msra.mxu0 0.0
        %3925 = vmatpush.xpose.msra.mxu0 0.0
        %3926 = vmatpush.xpose.msra.mxu0 0.0
        %3927 = vmatpush.xpose.msra.mxu0 0.0
        %3928 = vmatpush.xpose.msra.mxu0 0.0
        %3929 = vmatpush.xpose.msra.mxu0 0.0
        %3930 = vmatpush.xpose.msra.mxu0 0.0
        %3931 = vmatpush.xpose.msra.mxu0 0.0
        %3932 = vmatpush.xpose.msra.mxu0 0.0
        %3933 = vmatpush.xpose.msra.mxu0 %v1885
        %3934 = vmatpush.xpose.msra.mxu0 %v1882
        %3935 = vmatmul.f32.gmra.mxu0 %v3114
        %v3936 = vpop.f32.mrf.mxu0
        %v3937 = vadd.f32 %v3917, %v3936
        %3938 = vdwg.mxu0
        %3939 = vmatpush.xpose.msra.mxu0 0.0
        %3940 = vmatpush.xpose.msra.mxu0 0.0
        %3941 = vmatpush.xpose.msra.mxu0 0.0
        %3942 = vmatpush.xpose.msra.mxu0 0.0
        %3943 = vmatpush.xpose.msra.mxu0 0.0
        %3944 = vmatpush.xpose.msra.mxu0 0.0
        %3945 = vmatpush.xpose.msra.mxu0 0.0
        %3946 = vmatpush.xpose.msra.mxu0 0.0
        %3947 = vmatpush.xpose.msra.mxu0 0.0
        %3948 = vmatpush.xpose.msra.mxu0 0.0
        %3949 = vmatpush.xpose.msra.mxu0 0.0
        %3950 = vmatpush.xpose.msra.mxu0 0.0
        %3951 = vmatpush.xpose.msra.mxu0 0.0
        %3952 = vmatpush.xpose.msra.mxu0 0.0
        %3953 = vmatpush.xpose.msra.mxu0 %v1473
        %3954 = vmatpush.xpose.msra.mxu0 %v1470
        %3955 = vmatmul.f32.gmra.mxu0 %v3115
        %v3956 = vpop.f32.mrf.mxu0
        %v3957 = vadd.f32 0.0, %v3956
        %3958 = vdwg.mxu0
        %3959 = vmatpush.xpose.msra.mxu0 0.0
        %3960 = vmatpush.xpose.msra.mxu0 0.0
        %3961 = vmatpush.xpose.msra.mxu0 0.0
        %3962 = vmatpush.xpose.msra.mxu0 0.0
        %3963 = vmatpush.xpose.msra.mxu0 0.0
        %3964 = vmatpush.xpose.msra.mxu0 0.0
        %3965 = vmatpush.xpose.msra.mxu0 0.0
        %3966 = vmatpush.xpose.msra.mxu0 0.0
        %3967 = vmatpush.xpose.msra.mxu0 0.0
        %3968 = vmatpush.xpose.msra.mxu0 0.0
        %3969 = vmatpush.xpose.msra.mxu0 0.0
        %3970 = vmatpush.xpose.msra.mxu0 0.0
        %3971 = vmatpush.xpose.msra.mxu0 0.0
        %3972 = vmatpush.xpose.msra.mxu0 0.0
        %3973 = vmatpush.xpose.msra.mxu0 %v1891
        %3974 = vmatpush.xpose.msra.mxu0 %v1888
        %3975 = vmatmul.f32.gmra.mxu0 %v3116
        %v3976 = vpop.f32.mrf.mxu0
        %v3977 = vadd.f32 %v3957, %v3976
        %3978 = vdwg.mxu0
        %3979 = vmatpush.xpose.msra.mxu0 0.0
        %3980 = vmatpush.xpose.msra.mxu0 0.0
        %3981 = vmatpush.xpose.msra.mxu0 0.0
        %3982 = vmatpush.xpose.msra.mxu0 0.0
        %3983 = vmatpush.xpose.msra.mxu0 0.0
        %3984 = vmatpush.xpose.msra.mxu0 0.0
        %3985 = vmatpush.xpose.msra.mxu0 0.0
        %3986 = vmatpush.xpose.msra.mxu0 0.0
        %3987 = vmatpush.xpose.msra.mxu0 0.0
        %3988 = vmatpush.xpose.msra.mxu0 0.0
        %3989 = vmatpush.xpose.msra.mxu0 0.0
        %3990 = vmatpush.xpose.msra.mxu0 0.0
        %3991 = vmatpush.xpose.msra.mxu0 0.0
        %3992 = vmatpush.xpose.msra.mxu0 0.0
        %3993 = vmatpush.xpose.msra.mxu0 %v1479
        %3994 = vmatpush.xpose.msra.mxu0 %v1476
        %3995 = vmatmul.f32.gmra.mxu0 %v3117
        %v3996 = vpop.f32.mrf.mxu0
        %v3997 = vadd.f32 0.0, %v3996
        %3998 = vdwg.mxu0
        %3999 = vmatpush.xpose.msra.mxu0 0.0
        %4000 = vmatpush.xpose.msra.mxu0 0.0
        %4001 = vmatpush.xpose.msra.mxu0 0.0
        %4002 = vmatpush.xpose.msra.mxu0 0.0
        %4003 = vmatpush.xpose.msra.mxu0 0.0
        %4004 = vmatpush.xpose.msra.mxu0 0.0
        %4005 = vmatpush.xpose.msra.mxu0 0.0
        %4006 = vmatpush.xpose.msra.mxu0 0.0
        %4007 = vmatpush.xpose.msra.mxu0 0.0
        %4008 = vmatpush.xpose.msra.mxu0 0.0
        %4009 = vmatpush.xpose.msra.mxu0 0.0
        %4010 = vmatpush.xpose.msra.mxu0 0.0
        %4011 = vmatpush.xpose.msra.mxu0 0.0
        %4012 = vmatpush.xpose.msra.mxu0 0.0
        %4013 = vmatpush.xpose.msra.mxu0 %v1897
        %4014 = vmatpush.xpose.msra.mxu0 %v1894
        %4015 = vmatmul.f32.gmra.mxu0 %v3118
        %v4016 = vpop.f32.mrf.mxu0
        %v4017 = vadd.f32 %v3997, %v4016
        %4018 = vdwg.mxu0
        %4019 = vmatpush.xpose.msra.mxu0 0.0
        %4020 = vmatpush.xpose.msra.mxu0 0.0
        %4021 = vmatpush.xpose.msra.mxu0 0.0
        %4022 = vmatpush.xpose.msra.mxu0 0.0
        %4023 = vmatpush.xpose.msra.mxu0 0.0
        %4024 = vmatpush.xpose.msra.mxu0 0.0
        %4025 = vmatpush.xpose.msra.mxu0 0.0
        %4026 = vmatpush.xpose.msra.mxu0 0.0
        %4027 = vmatpush.xpose.msra.mxu0 0.0
        %4028 = vmatpush.xpose.msra.mxu0 0.0
        %4029 = vmatpush.xpose.msra.mxu0 0.0
        %4030 = vmatpush.xpose.msra.mxu0 0.0
        %4031 = vmatpush.xpose.msra.mxu0 0.0
        %4032 = vmatpush.xpose.msra.mxu0 0.0
        %4033 = vmatpush.xpose.msra.mxu0 %v1485
        %4034 = vmatpush.xpose.msra.mxu0 %v1482
        %4035 = vmatmul.f32.gmra.mxu0 %v3119
        %v4036 = vpop.f32.mrf.mxu0
        %v4037 = vadd.f32 0.0, %v4036
        %4038 = vdwg.mxu0
        %4039 = vmatpush.xpose.msra.mxu0 0.0
        %4040 = vmatpush.xpose.msra.mxu0 0.0
        %4041 = vmatpush.xpose.msra.mxu0 0.0
        %4042 = vmatpush.xpose.msra.mxu0 0.0
        %4043 = vmatpush.xpose.msra.mxu0 0.0
        %4044 = vmatpush.xpose.msra.mxu0 0.0
        %4045 = vmatpush.xpose.msra.mxu0 0.0
        %4046 = vmatpush.xpose.msra.mxu0 0.0
        %4047 = vmatpush.xpose.msra.mxu0 0.0
        %4048 = vmatpush.xpose.msra.mxu0 0.0
        %4049 = vmatpush.xpose.msra.mxu0 0.0
        %4050 = vmatpush.xpose.msra.mxu0 0.0
        %4051 = vmatpush.xpose.msra.mxu0 0.0
        %4052 = vmatpush.xpose.msra.mxu0 0.0
        %4053 = vmatpush.xpose.msra.mxu0 %v1903
        %4054 = vmatpush.xpose.msra.mxu0 %v1900
        %4055 = vmatmul.f32.gmra.mxu0 %v3120
        %v4056 = vpop.f32.mrf.mxu0
        %v4057 = vadd.f32 %v4037, %v4056
        %4058 = vdwg.mxu0
        %4059 = vmatpush.xpose.msra.mxu0 0.0
        %4060 = vmatpush.xpose.msra.mxu0 0.0
        %4061 = vmatpush.xpose.msra.mxu0 0.0
        %4062 = vmatpush.xpose.msra.mxu0 0.0
        %4063 = vmatpush.xpose.msra.mxu0 0.0
        %4064 = vmatpush.xpose.msra.mxu0 0.0
        %4065 = vmatpush.xpose.msra.mxu0 0.0
        %4066 = vmatpush.xpose.msra.mxu0 0.0
        %4067 = vmatpush.xpose.msra.mxu0 0.0
        %4068 = vmatpush.xpose.msra.mxu0 0.0
        %4069 = vmatpush.xpose.msra.mxu0 0.0
        %4070 = vmatpush.xpose.msra.mxu0 0.0
        %4071 = vmatpush.xpose.msra.mxu0 0.0
        %4072 = vmatpush.xpose.msra.mxu0 0.0
        %4073 = vmatpush.xpose.msra.mxu0 %v1491
        %4074 = vmatpush.xpose.msra.mxu0 %v1488
        %4075 = vmatmul.f32.gmra.mxu0 %v3121
        %v4076 = vpop.f32.mrf.mxu0
        %v4077 = vadd.f32 0.0, %v4076
        %4078 = vdwg.mxu0
        %4079 = vmatpush.xpose.msra.mxu0 0.0
        %4080 = vmatpush.xpose.msra.mxu0 0.0
        %4081 = vmatpush.xpose.msra.mxu0 0.0
        %4082 = vmatpush.xpose.msra.mxu0 0.0
        %4083 = vmatpush.xpose.msra.mxu0 0.0
        %4084 = vmatpush.xpose.msra.mxu0 0.0
        %4085 = vmatpush.xpose.msra.mxu0 0.0
        %4086 = vmatpush.xpose.msra.mxu0 0.0
        %4087 = vmatpush.xpose.msra.mxu0 0.0
        %4088 = vmatpush.xpose.msra.mxu0 0.0
        %4089 = vmatpush.xpose.msra.mxu0 0.0
        %4090 = vmatpush.xpose.msra.mxu0 0.0
        %4091 = vmatpush.xpose.msra.mxu0 0.0
        %4092 = vmatpush.xpose.msra.mxu0 0.0
        %4093 = vmatpush.xpose.msra.mxu0 %v1909
        %4094 = vmatpush.xpose.msra.mxu0 %v1906
        %4095 = vmatmul.f32.gmra.mxu0 %v3122
        %v4096 = vpop.f32.mrf.mxu0
        %v4097 = vadd.f32 %v4077, %v4096
        %4098 = vdwg.mxu0
        %4099 = vmatpush.xpose.msra.mxu0 0.0
        %4100 = vmatpush.xpose.msra.mxu0 0.0
        %4101 = vmatpush.xpose.msra.mxu0 0.0
        %4102 = vmatpush.xpose.msra.mxu0 0.0
        %4103 = vmatpush.xpose.msra.mxu0 0.0
        %4104 = vmatpush.xpose.msra.mxu0 0.0
        %4105 = vmatpush.xpose.msra.mxu0 0.0
        %4106 = vmatpush.xpose.msra.mxu0 0.0
        %4107 = vmatpush.xpose.msra.mxu0 0.0
        %4108 = vmatpush.xpose.msra.mxu0 0.0
        %4109 = vmatpush.xpose.msra.mxu0 0.0
        %4110 = vmatpush.xpose.msra.mxu0 0.0
        %4111 = vmatpush.xpose.msra.mxu0 0.0
        %4112 = vmatpush.xpose.msra.mxu0 0.0
        %4113 = vmatpush.xpose.msra.mxu0 %v1497
        %4114 = vmatpush.xpose.msra.mxu0 %v1494
        %4115 = vmatmul.f32.gmra.mxu0 %v3123
        %v4116 = vpop.f32.mrf.mxu0
        %v4117 = vadd.f32 0.0, %v4116
        %4118 = vdwg.mxu0
        %4119 = vmatpush.xpose.msra.mxu0 0.0
        %4120 = vmatpush.xpose.msra.mxu0 0.0
        %4121 = vmatpush.xpose.msra.mxu0 0.0
        %4122 = vmatpush.xpose.msra.mxu0 0.0
        %4123 = vmatpush.xpose.msra.mxu0 0.0
        %4124 = vmatpush.xpose.msra.mxu0 0.0
        %4125 = vmatpush.xpose.msra.mxu0 0.0
        %4126 = vmatpush.xpose.msra.mxu0 0.0
        %4127 = vmatpush.xpose.msra.mxu0 0.0
        %4128 = vmatpush.xpose.msra.mxu0 0.0
        %4129 = vmatpush.xpose.msra.mxu0 0.0
        %4130 = vmatpush.xpose.msra.mxu0 0.0
        %4131 = vmatpush.xpose.msra.mxu0 0.0
        %4132 = vmatpush.xpose.msra.mxu0 0.0
        %4133 = vmatpush.xpose.msra.mxu0 %v1915
        %4134 = vmatpush.xpose.msra.mxu0 %v1912
        %4135 = vmatmul.f32.gmra.mxu0 %v3124
        %v4136 = vpop.f32.mrf.mxu0
        %v4137 = vadd.f32 %v4117, %v4136
        %4138 = vdwg.mxu0
        %4139 = vmatpush.xpose.msra.mxu0 0.0
        %4140 = vmatpush.xpose.msra.mxu0 0.0
        %4141 = vmatpush.xpose.msra.mxu0 0.0
        %4142 = vmatpush.xpose.msra.mxu0 0.0
        %4143 = vmatpush.xpose.msra.mxu0 0.0
        %4144 = vmatpush.xpose.msra.mxu0 0.0
        %4145 = vmatpush.xpose.msra.mxu0 0.0
        %4146 = vmatpush.xpose.msra.mxu0 0.0
        %4147 = vmatpush.xpose.msra.mxu0 0.0
        %4148 = vmatpush.xpose.msra.mxu0 0.0
        %4149 = vmatpush.xpose.msra.mxu0 0.0
        %4150 = vmatpush.xpose.msra.mxu0 0.0
        %4151 = vmatpush.xpose.msra.mxu0 0.0
        %4152 = vmatpush.xpose.msra.mxu0 0.0
        %4153 = vmatpush.xpose.msra.mxu0 %v1503
        %4154 = vmatpush.xpose.msra.mxu0 %v1500
        %4155 = vmatmul.f32.gmra.mxu0 %v3125
        %v4156 = vpop.f32.mrf.mxu0
        %v4157 = vadd.f32 0.0, %v4156
        %4158 = vdwg.mxu0
        %4159 = vmatpush.xpose.msra.mxu0 0.0
        %4160 = vmatpush.xpose.msra.mxu0 0.0
        %4161 = vmatpush.xpose.msra.mxu0 0.0
        %4162 = vmatpush.xpose.msra.mxu0 0.0
        %4163 = vmatpush.xpose.msra.mxu0 0.0
        %4164 = vmatpush.xpose.msra.mxu0 0.0
        %4165 = vmatpush.xpose.msra.mxu0 0.0
        %4166 = vmatpush.xpose.msra.mxu0 0.0
        %4167 = vmatpush.xpose.msra.mxu0 0.0
        %4168 = vmatpush.xpose.msra.mxu0 0.0
        %4169 = vmatpush.xpose.msra.mxu0 0.0
        %4170 = vmatpush.xpose.msra.mxu0 0.0
        %4171 = vmatpush.xpose.msra.mxu0 0.0
        %4172 = vmatpush.xpose.msra.mxu0 0.0
        %4173 = vmatpush.xpose.msra.mxu0 %v1921
        %4174 = vmatpush.xpose.msra.mxu0 %v1918
        %4175 = vmatmul.f32.gmra.mxu0 %v3126
        %v4176 = vpop.f32.mrf.mxu0
        %v4177 = vadd.f32 %v4157, %v4176
        %4178 = vdwg.mxu0
        %4179 = vmatpush.xpose.msra.mxu0 0.0
        %4180 = vmatpush.xpose.msra.mxu0 0.0
        %4181 = vmatpush.xpose.msra.mxu0 0.0
        %4182 = vmatpush.xpose.msra.mxu0 0.0
        %4183 = vmatpush.xpose.msra.mxu0 0.0
        %4184 = vmatpush.xpose.msra.mxu0 0.0
        %4185 = vmatpush.xpose.msra.mxu0 0.0
        %4186 = vmatpush.xpose.msra.mxu0 0.0
        %4187 = vmatpush.xpose.msra.mxu0 0.0
        %4188 = vmatpush.xpose.msra.mxu0 0.0
        %4189 = vmatpush.xpose.msra.mxu0 0.0
        %4190 = vmatpush.xpose.msra.mxu0 0.0
        %4191 = vmatpush.xpose.msra.mxu0 0.0
        %4192 = vmatpush.xpose.msra.mxu0 0.0
        %4193 = vmatpush.xpose.msra.mxu0 %v1509
        %4194 = vmatpush.xpose.msra.mxu0 %v1506
        %4195 = vmatmul.f32.gmra.mxu0 %v3127
        %v4196 = vpop.f32.mrf.mxu0
        %v4197 = vadd.f32 0.0, %v4196
        %4198 = vdwg.mxu0
        %4199 = vmatpush.xpose.msra.mxu0 0.0
        %4200 = vmatpush.xpose.msra.mxu0 0.0
        %4201 = vmatpush.xpose.msra.mxu0 0.0
        %4202 = vmatpush.xpose.msra.mxu0 0.0
        %4203 = vmatpush.xpose.msra.mxu0 0.0
        %4204 = vmatpush.xpose.msra.mxu0 0.0
        %4205 = vmatpush.xpose.msra.mxu0 0.0
        %4206 = vmatpush.xpose.msra.mxu0 0.0
        %4207 = vmatpush.xpose.msra.mxu0 0.0
        %4208 = vmatpush.xpose.msra.mxu0 0.0
        %4209 = vmatpush.xpose.msra.mxu0 0.0
        %4210 = vmatpush.xpose.msra.mxu0 0.0
        %4211 = vmatpush.xpose.msra.mxu0 0.0
        %4212 = vmatpush.xpose.msra.mxu0 0.0
        %4213 = vmatpush.xpose.msra.mxu0 %v1927
        %4214 = vmatpush.xpose.msra.mxu0 %v1924
        %4215 = vmatmul.f32.gmra.mxu0 %v3128
        %v4216 = vpop.f32.mrf.mxu0
        %v4217 = vadd.f32 %v4197, %v4216
        %4218 = vdwg.mxu0
        %4219 = vmatpush.xpose.msra.mxu0 0.0
        %4220 = vmatpush.xpose.msra.mxu0 0.0
        %4221 = vmatpush.xpose.msra.mxu0 0.0
        %4222 = vmatpush.xpose.msra.mxu0 0.0
        %4223 = vmatpush.xpose.msra.mxu0 0.0
        %4224 = vmatpush.xpose.msra.mxu0 0.0
        %4225 = vmatpush.xpose.msra.mxu0 0.0
        %4226 = vmatpush.xpose.msra.mxu0 0.0
        %4227 = vmatpush.xpose.msra.mxu0 0.0
        %4228 = vmatpush.xpose.msra.mxu0 0.0
        %4229 = vmatpush.xpose.msra.mxu0 0.0
        %4230 = vmatpush.xpose.msra.mxu0 0.0
        %4231 = vmatpush.xpose.msra.mxu0 0.0
        %4232 = vmatpush.xpose.msra.mxu0 0.0
        %4233 = vmatpush.xpose.msra.mxu0 %v1515
        %4234 = vmatpush.xpose.msra.mxu0 %v1512
        %4235 = vmatmul.f32.gmra.mxu0 %v3129
        %v4236 = vpop.f32.mrf.mxu0
        %v4237 = vadd.f32 0.0, %v4236
        %4238 = vdwg.mxu0
        %4239 = vmatpush.xpose.msra.mxu0 0.0
        %4240 = vmatpush.xpose.msra.mxu0 0.0
        %4241 = vmatpush.xpose.msra.mxu0 0.0
        %4242 = vmatpush.xpose.msra.mxu0 0.0
        %4243 = vmatpush.xpose.msra.mxu0 0.0
        %4244 = vmatpush.xpose.msra.mxu0 0.0
        %4245 = vmatpush.xpose.msra.mxu0 0.0
        %4246 = vmatpush.xpose.msra.mxu0 0.0
        %4247 = vmatpush.xpose.msra.mxu0 0.0
        %4248 = vmatpush.xpose.msra.mxu0 0.0
        %4249 = vmatpush.xpose.msra.mxu0 0.0
        %4250 = vmatpush.xpose.msra.mxu0 0.0
        %4251 = vmatpush.xpose.msra.mxu0 0.0
        %4252 = vmatpush.xpose.msra.mxu0 0.0
        %4253 = vmatpush.xpose.msra.mxu0 %v1933
        %4254 = vmatpush.xpose.msra.mxu0 %v1930
        %4255 = vmatmul.f32.gmra.mxu0 %v3130
        %v4256 = vpop.f32.mrf.mxu0
        %v4257 = vadd.f32 %v4237, %v4256
        %4258 = vdwg.mxu0
        %4259 = vmatpush.xpose.msra.mxu0 0.0
        %4260 = vmatpush.xpose.msra.mxu0 0.0
        %4261 = vmatpush.xpose.msra.mxu0 0.0
        %4262 = vmatpush.xpose.msra.mxu0 0.0
        %4263 = vmatpush.xpose.msra.mxu0 0.0
        %4264 = vmatpush.xpose.msra.mxu0 0.0
        %4265 = vmatpush.xpose.msra.mxu0 0.0
        %4266 = vmatpush.xpose.msra.mxu0 0.0
        %4267 = vmatpush.xpose.msra.mxu0 0.0
        %4268 = vmatpush.xpose.msra.mxu0 0.0
        %4269 = vmatpush.xpose.msra.mxu0 0.0
        %4270 = vmatpush.xpose.msra.mxu0 0.0
        %4271 = vmatpush.xpose.msra.mxu0 0.0
        %4272 = vmatpush.xpose.msra.mxu0 0.0
        %4273 = vmatpush.xpose.msra.mxu0 %v1521
        %4274 = vmatpush.xpose.msra.mxu0 %v1518
        %4275 = vmatmul.f32.gmra.mxu0 %v3131
        %v4276 = vpop.f32.mrf.mxu0
        %v4277 = vadd.f32 0.0, %v4276
        %4278 = vdwg.mxu0
        %4279 = vmatpush.xpose.msra.mxu0 0.0
        %4280 = vmatpush.xpose.msra.mxu0 0.0
        %4281 = vmatpush.xpose.msra.mxu0 0.0
        %4282 = vmatpush.xpose.msra.mxu0 0.0
        %4283 = vmatpush.xpose.msra.mxu0 0.0
        %4284 = vmatpush.xpose.msra.mxu0 0.0
        %4285 = vmatpush.xpose.msra.mxu0 0.0
        %4286 = vmatpush.xpose.msra.mxu0 0.0
        %4287 = vmatpush.xpose.msra.mxu0 0.0
        %4288 = vmatpush.xpose.msra.mxu0 0.0
        %4289 = vmatpush.xpose.msra.mxu0 0.0
        %4290 = vmatpush.xpose.msra.mxu0 0.0
        %4291 = vmatpush.xpose.msra.mxu0 0.0
        %4292 = vmatpush.xpose.msra.mxu0 0.0
        %4293 = vmatpush.xpose.msra.mxu0 %v1939
        %4294 = vmatpush.xpose.msra.mxu0 %v1936
        %4295 = vmatmul.f32.gmra.mxu0 %v3132
        %v4296 = vpop.f32.mrf.mxu0
        %v4297 = vadd.f32 %v4277, %v4296
        %4298 = vdwg.mxu0
        %4299 = vmatpush.xpose.msra.mxu0 0.0
        %4300 = vmatpush.xpose.msra.mxu0 0.0
        %4301 = vmatpush.xpose.msra.mxu0 0.0
        %4302 = vmatpush.xpose.msra.mxu0 0.0
        %4303 = vmatpush.xpose.msra.mxu0 0.0
        %4304 = vmatpush.xpose.msra.mxu0 0.0
        %4305 = vmatpush.xpose.msra.mxu0 0.0
        %4306 = vmatpush.xpose.msra.mxu0 0.0
        %4307 = vmatpush.xpose.msra.mxu0 0.0
        %4308 = vmatpush.xpose.msra.mxu0 0.0
        %4309 = vmatpush.xpose.msra.mxu0 0.0
        %4310 = vmatpush.xpose.msra.mxu0 0.0
        %4311 = vmatpush.xpose.msra.mxu0 0.0
        %4312 = vmatpush.xpose.msra.mxu0 0.0
        %4313 = vmatpush.xpose.msra.mxu0 %v1527
        %4314 = vmatpush.xpose.msra.mxu0 %v1524
        %4315 = vmatmul.f32.gmra.mxu0 %v3133
        %v4316 = vpop.f32.mrf.mxu0
        %v4317 = vadd.f32 0.0, %v4316
        %4318 = vdwg.mxu0
        %4319 = vmatpush.xpose.msra.mxu0 0.0
        %4320 = vmatpush.xpose.msra.mxu0 0.0
        %4321 = vmatpush.xpose.msra.mxu0 0.0
        %4322 = vmatpush.xpose.msra.mxu0 0.0
        %4323 = vmatpush.xpose.msra.mxu0 0.0
        %4324 = vmatpush.xpose.msra.mxu0 0.0
        %4325 = vmatpush.xpose.msra.mxu0 0.0
        %4326 = vmatpush.xpose.msra.mxu0 0.0
        %4327 = vmatpush.xpose.msra.mxu0 0.0
        %4328 = vmatpush.xpose.msra.mxu0 0.0
        %4329 = vmatpush.xpose.msra.mxu0 0.0
        %4330 = vmatpush.xpose.msra.mxu0 0.0
        %4331 = vmatpush.xpose.msra.mxu0 0.0
        %4332 = vmatpush.xpose.msra.mxu0 0.0
        %4333 = vmatpush.xpose.msra.mxu0 %v1945
        %4334 = vmatpush.xpose.msra.mxu0 %v1942
        %4335 = vmatmul.f32.gmra.mxu0 %v3134
        %v4336 = vpop.f32.mrf.mxu0
        %v4337 = vadd.f32 %v4317, %v4336
        %4338 = vdwg.mxu0
        %4339 = vmatpush.xpose.msra.mxu0 0.0
        %4340 = vmatpush.xpose.msra.mxu0 0.0
        %4341 = vmatpush.xpose.msra.mxu0 0.0
        %4342 = vmatpush.xpose.msra.mxu0 0.0
        %4343 = vmatpush.xpose.msra.mxu0 0.0
        %4344 = vmatpush.xpose.msra.mxu0 0.0
        %4345 = vmatpush.xpose.msra.mxu0 0.0
        %4346 = vmatpush.xpose.msra.mxu0 0.0
        %4347 = vmatpush.xpose.msra.mxu0 0.0
        %4348 = vmatpush.xpose.msra.mxu0 0.0
        %4349 = vmatpush.xpose.msra.mxu0 0.0
        %4350 = vmatpush.xpose.msra.mxu0 0.0
        %4351 = vmatpush.xpose.msra.mxu0 0.0
        %4352 = vmatpush.xpose.msra.mxu0 0.0
        %4353 = vmatpush.xpose.msra.mxu0 %v1533
        %4354 = vmatpush.xpose.msra.mxu0 %v1530
        %4355 = vmatmul.f32.gmra.mxu0 %v3135
        %v4356 = vpop.f32.mrf.mxu0
        %v4357 = vadd.f32 0.0, %v4356
        %4358 = vdwg.mxu0
        %4359 = vmatpush.xpose.msra.mxu0 0.0
        %4360 = vmatpush.xpose.msra.mxu0 0.0
        %4361 = vmatpush.xpose.msra.mxu0 0.0
        %4362 = vmatpush.xpose.msra.mxu0 0.0
        %4363 = vmatpush.xpose.msra.mxu0 0.0
        %4364 = vmatpush.xpose.msra.mxu0 0.0
        %4365 = vmatpush.xpose.msra.mxu0 0.0
        %4366 = vmatpush.xpose.msra.mxu0 0.0
        %4367 = vmatpush.xpose.msra.mxu0 0.0
        %4368 = vmatpush.xpose.msra.mxu0 0.0
        %4369 = vmatpush.xpose.msra.mxu0 0.0
        %4370 = vmatpush.xpose.msra.mxu0 0.0
        %4371 = vmatpush.xpose.msra.mxu0 0.0
        %4372 = vmatpush.xpose.msra.mxu0 0.0
        %4373 = vmatpush.xpose.msra.mxu0 %v1951
        %4374 = vmatpush.xpose.msra.mxu0 %v1948
        %4375 = vmatmul.f32.gmra.mxu0 %v3136
        %v4376 = vpop.f32.mrf.mxu0
        %v4377 = vadd.f32 %v4357, %v4376
        %4378 = vdwg.mxu0
        %4379 = vmatpush.xpose.msra.mxu0 0.0
        %4380 = vmatpush.xpose.msra.mxu0 0.0
        %4381 = vmatpush.xpose.msra.mxu0 0.0
        %4382 = vmatpush.xpose.msra.mxu0 0.0
        %4383 = vmatpush.xpose.msra.mxu0 0.0
        %4384 = vmatpush.xpose.msra.mxu0 0.0
        %4385 = vmatpush.xpose.msra.mxu0 0.0
        %4386 = vmatpush.xpose.msra.mxu0 0.0
        %4387 = vmatpush.xpose.msra.mxu0 0.0
        %4388 = vmatpush.xpose.msra.mxu0 0.0
        %4389 = vmatpush.xpose.msra.mxu0 0.0
        %4390 = vmatpush.xpose.msra.mxu0 0.0
        %4391 = vmatpush.xpose.msra.mxu0 0.0
        %4392 = vmatpush.xpose.msra.mxu0 0.0
        %4393 = vmatpush.xpose.msra.mxu0 %v1539
        %4394 = vmatpush.xpose.msra.mxu0 %v1536
        %4395 = vmatmul.f32.gmra.mxu0 %v3137
        %v4396 = vpop.f32.mrf.mxu0
        %v4397 = vadd.f32 0.0, %v4396
        %4398 = vdwg.mxu0
        %4399 = vmatpush.xpose.msra.mxu0 0.0
        %4400 = vmatpush.xpose.msra.mxu0 0.0
        %4401 = vmatpush.xpose.msra.mxu0 0.0
        %4402 = vmatpush.xpose.msra.mxu0 0.0
        %4403 = vmatpush.xpose.msra.mxu0 0.0
        %4404 = vmatpush.xpose.msra.mxu0 0.0
        %4405 = vmatpush.xpose.msra.mxu0 0.0
        %4406 = vmatpush.xpose.msra.mxu0 0.0
        %4407 = vmatpush.xpose.msra.mxu0 0.0
        %4408 = vmatpush.xpose.msra.mxu0 0.0
        %4409 = vmatpush.xpose.msra.mxu0 0.0
        %4410 = vmatpush.xpose.msra.mxu0 0.0
        %4411 = vmatpush.xpose.msra.mxu0 0.0
        %4412 = vmatpush.xpose.msra.mxu0 0.0
        %4413 = vmatpush.xpose.msra.mxu0 %v1957
        %4414 = vmatpush.xpose.msra.mxu0 %v1954
        %4415 = vmatmul.f32.gmra.mxu0 %v3138
        %v4416 = vpop.f32.mrf.mxu0
        %v4417 = vadd.f32 %v4397, %v4416
        %4418 = vdwg.mxu0
        %vm4419 = vcmask 130048
        %v4420 = vsel %vm4419, %v3177, -inf
        %4421 = vmax.xlane.f32.xlu0 %v4420
        %v4422 = vpop.xlane.xlu0 %4421
        %v4423 = vsel %vm4419, %v3217, -inf
        %4424 = vmax.xlane.f32.xlu0 %v4423
        %v4425 = vpop.xlane.xlu0 %4424
        %v4426 = vsel %vm4419, %v3257, -inf
        %4427 = vmax.xlane.f32.xlu0 %v4426
        %v4428 = vpop.xlane.xlu0 %4427
        %v4429 = vsel %vm4419, %v3297, -inf
        %4430 = vmax.xlane.f32.xlu0 %v4429
        %v4431 = vpop.xlane.xlu0 %4430
        %v4432 = vsel %vm4419, %v3337, -inf
        %4433 = vmax.xlane.f32.xlu0 %v4432
        %v4434 = vpop.xlane.xlu0 %4433
        %v4435 = vsel %vm4419, %v3377, -inf
        %4436 = vmax.xlane.f32.xlu0 %v4435
        %v4437 = vpop.xlane.xlu0 %4436
        %v4438 = vsel %vm4419, %v3417, -inf
        %4439 = vmax.xlane.f32.xlu0 %v4438
        %v4440 = vpop.xlane.xlu0 %4439
        %v4441 = vsel %vm4419, %v3457, -inf
        %4442 = vmax.xlane.f32.xlu0 %v4441
        %v4443 = vpop.xlane.xlu0 %4442
        %v4444 = vsel %vm4419, %v3497, -inf
        %4445 = vmax.xlane.f32.xlu0 %v4444
        %v4446 = vpop.xlane.xlu0 %4445
        %v4447 = vsel %vm4419, %v3537, -inf
        %4448 = vmax.xlane.f32.xlu0 %v4447
        %v4449 = vpop.xlane.xlu0 %4448
        %v4450 = vsel %vm4419, %v3577, -inf
        %4451 = vmax.xlane.f32.xlu0 %v4450
        %v4452 = vpop.xlane.xlu0 %4451
        %v4453 = vsel %vm4419, %v3617, -inf
        %4454 = vmax.xlane.f32.xlu0 %v4453
        %v4455 = vpop.xlane.xlu0 %4454
        %v4456 = vsel %vm4419, %v3657, -inf
        %4457 = vmax.xlane.f32.xlu0 %v4456
        %v4458 = vpop.xlane.xlu0 %4457
        %v4459 = vsel %vm4419, %v3697, -inf
        %4460 = vmax.xlane.f32.xlu0 %v4459
        %v4461 = vpop.xlane.xlu0 %4460
        %v4462 = vsel %vm4419, %v3737, -inf
        %4463 = vmax.xlane.f32.xlu0 %v4462
        %v4464 = vpop.xlane.xlu0 %4463
        %v4465 = vsel %vm4419, %v3777, -inf
        %4466 = vmax.xlane.f32.xlu0 %v4465
        %v4467 = vpop.xlane.xlu0 %4466
        %v4468 = vsel %vm4419, %v3817, -inf
        %4469 = vmax.xlane.f32.xlu0 %v4468
        %v4470 = vpop.xlane.xlu0 %4469
        %v4471 = vsel %vm4419, %v3857, -inf
        %4472 = vmax.xlane.f32.xlu0 %v4471
        %v4473 = vpop.xlane.xlu0 %4472
        %v4474 = vsel %vm4419, %v3897, -inf
        %4475 = vmax.xlane.f32.xlu0 %v4474
        %v4476 = vpop.xlane.xlu0 %4475
        %v4477 = vsel %vm4419, %v3937, -inf
        %4478 = vmax.xlane.f32.xlu0 %v4477
        %v4479 = vpop.xlane.xlu0 %4478
        %v4480 = vsel %vm4419, %v3977, -inf
        %4481 = vmax.xlane.f32.xlu0 %v4480
        %v4482 = vpop.xlane.xlu0 %4481
        %v4483 = vsel %vm4419, %v4017, -inf
        %4484 = vmax.xlane.f32.xlu0 %v4483
        %v4485 = vpop.xlane.xlu0 %4484
        %v4486 = vsel %vm4419, %v4057, -inf
        %4487 = vmax.xlane.f32.xlu0 %v4486
        %v4488 = vpop.xlane.xlu0 %4487
        %v4489 = vsel %vm4419, %v4097, -inf
        %4490 = vmax.xlane.f32.xlu0 %v4489
        %v4491 = vpop.xlane.xlu0 %4490
        %v4492 = vsel %vm4419, %v4137, -inf
        %4493 = vmax.xlane.f32.xlu0 %v4492
        %v4494 = vpop.xlane.xlu0 %4493
        %v4495 = vsel %vm4419, %v4177, -inf
        %4496 = vmax.xlane.f32.xlu0 %v4495
        %v4497 = vpop.xlane.xlu0 %4496
        %v4498 = vsel %vm4419, %v4217, -inf
        %4499 = vmax.xlane.f32.xlu0 %v4498
        %v4500 = vpop.xlane.xlu0 %4499
        %v4501 = vsel %vm4419, %v4257, -inf
        %4502 = vmax.xlane.f32.xlu0 %v4501
        %v4503 = vpop.xlane.xlu0 %4502
        %v4504 = vsel %vm4419, %v4297, -inf
        %4505 = vmax.xlane.f32.xlu0 %v4504
        %v4506 = vpop.xlane.xlu0 %4505
        %v4507 = vsel %vm4419, %v4337, -inf
        %4508 = vmax.xlane.f32.xlu0 %v4507
        %v4509 = vpop.xlane.xlu0 %4508
        %v4510 = vsel %vm4419, %v4377, -inf
        %4511 = vmax.xlane.f32.xlu0 %v4510
        %v4512 = vpop.xlane.xlu0 %4511
        %v4513 = vsel %vm4419, %v4417, -inf
        %4514 = vmax.xlane.f32.xlu0 %v4513
        %v4515 = vpop.xlane.xlu0 %4514
        %v4516 = vsub.f32 %v3177, %v4422
        %v4517 = vsub.f32 %v3217, %v4425
        %v4518 = vsub.f32 %v3257, %v4428
        %v4519 = vsub.f32 %v3297, %v4431
        %v4520 = vsub.f32 %v3337, %v4434
        %v4521 = vsub.f32 %v3377, %v4437
        %v4522 = vsub.f32 %v3417, %v4440
        %v4523 = vsub.f32 %v3457, %v4443
        %v4524 = vsub.f32 %v3497, %v4446
        %v4525 = vsub.f32 %v3537, %v4449
        %v4526 = vsub.f32 %v3577, %v4452
        %v4527 = vsub.f32 %v3617, %v4455
        %v4528 = vsub.f32 %v3657, %v4458
        %v4529 = vsub.f32 %v3697, %v4461
        %v4530 = vsub.f32 %v3737, %v4464
        %v4531 = vsub.f32 %v3777, %v4467
        %v4532 = vsub.f32 %v3817, %v4470
        %v4533 = vsub.f32 %v3857, %v4473
        %v4534 = vsub.f32 %v3897, %v4476
        %v4535 = vsub.f32 %v3937, %v4479
        %v4536 = vsub.f32 %v3977, %v4482
        %v4537 = vsub.f32 %v4017, %v4485
        %v4538 = vsub.f32 %v4057, %v4488
        %v4539 = vsub.f32 %v4097, %v4491
        %v4540 = vsub.f32 %v4137, %v4494
        %v4541 = vsub.f32 %v4177, %v4497
        %v4542 = vsub.f32 %v4217, %v4500
        %v4543 = vsub.f32 %v4257, %v4503
        %v4544 = vsub.f32 %v4297, %v4506
        %v4545 = vsub.f32 %v4337, %v4509
        %v4546 = vsub.f32 %v4377, %v4512
        %v4547 = vsub.f32 %v4417, %v4515
        %v4548 = vmul.f32 %v4516, 1.442695
        %v4549 = vpow.pop %v4548
        %v4550 = vmul.f32 %v4517, 1.442695
        %v4551 = vpow.pop %v4550
        %v4552 = vmul.f32 %v4518, 1.442695
        %v4553 = vpow.pop %v4552
        %v4554 = vmul.f32 %v4519, 1.442695
        %v4555 = vpow.pop %v4554
        %v4556 = vmul.f32 %v4520, 1.442695
        %v4557 = vpow.pop %v4556
        %v4558 = vmul.f32 %v4521, 1.442695
        %v4559 = vpow.pop %v4558
        %v4560 = vmul.f32 %v4522, 1.442695
        %v4561 = vpow.pop %v4560
        %v4562 = vmul.f32 %v4523, 1.442695
        %v4563 = vpow.pop %v4562
        %v4564 = vmul.f32 %v4524, 1.442695
        %v4565 = vpow.pop %v4564
        %v4566 = vmul.f32 %v4525, 1.442695
        %v4567 = vpow.pop %v4566
        %v4568 = vmul.f32 %v4526, 1.442695
        %v4569 = vpow.pop %v4568
        %v4570 = vmul.f32 %v4527, 1.442695
        %v4571 = vpow.pop %v4570
        %v4572 = vmul.f32 %v4528, 1.442695
        %v4573 = vpow.pop %v4572
        %v4574 = vmul.f32 %v4529, 1.442695
        %v4575 = vpow.pop %v4574
        %v4576 = vmul.f32 %v4530, 1.442695
        %v4577 = vpow.pop %v4576
        %v4578 = vmul.f32 %v4531, 1.442695
        %v4579 = vpow.pop %v4578
        %v4580 = vmul.f32 %v4532, 1.442695
        %v4581 = vpow.pop %v4580
        %v4582 = vmul.f32 %v4533, 1.442695
        %v4583 = vpow.pop %v4582
        %v4584 = vmul.f32 %v4534, 1.442695
        %v4585 = vpow.pop %v4584
        %v4586 = vmul.f32 %v4535, 1.442695
        %v4587 = vpow.pop %v4586
        %v4588 = vmul.f32 %v4536, 1.442695
        %v4589 = vpow.pop %v4588
        %v4590 = vmul.f32 %v4537, 1.442695
        %v4591 = vpow.pop %v4590
        %v4592 = vmul.f32 %v4538, 1.442695
        %v4593 = vpow.pop %v4592
        %v4594 = vmul.f32 %v4539, 1.442695
        %v4595 = vpow.pop %v4594
        %v4596 = vmul.f32 %v4540, 1.442695
        %v4597 = vpow.pop %v4596
        %v4598 = vmul.f32 %v4541, 1.442695
        %v4599 = vpow.pop %v4598
        %v4600 = vmul.f32 %v4542, 1.442695
        %v4601 = vpow.pop %v4600
        %v4602 = vmul.f32 %v4543, 1.442695
        %v4603 = vpow.pop %v4602
        %v4604 = vmul.f32 %v4544, 1.442695
        %v4605 = vpow.pop %v4604
        %v4606 = vmul.f32 %v4545, 1.442695
        %v4607 = vpow.pop %v4606
        %v4608 = vmul.f32 %v4546, 1.442695
        %v4609 = vpow.pop %v4608
        %v4610 = vmul.f32 %v4547, 1.442695
        %v4611 = vpow.pop %v4610
        %v4612 = vsel %vm4419, %v4549, 0.0
        %4613 = vadd.xlane.f32.xlu0 %v4612
        %v4614 = vpop.xlane.xlu0 %4613
        %v4615 = vsel %vm4419, %v4551, 0.0
        %4616 = vadd.xlane.f32.xlu0 %v4615
        %v4617 = vpop.xlane.xlu0 %4616
        %v4618 = vsel %vm4419, %v4553, 0.0
        %4619 = vadd.xlane.f32.xlu0 %v4618
        %v4620 = vpop.xlane.xlu0 %4619
        %v4621 = vsel %vm4419, %v4555, 0.0
        %4622 = vadd.xlane.f32.xlu0 %v4621
        %v4623 = vpop.xlane.xlu0 %4622
        %v4624 = vsel %vm4419, %v4557, 0.0
        %4625 = vadd.xlane.f32.xlu0 %v4624
        %v4626 = vpop.xlane.xlu0 %4625
        %v4627 = vsel %vm4419, %v4559, 0.0
        %4628 = vadd.xlane.f32.xlu0 %v4627
        %v4629 = vpop.xlane.xlu0 %4628
        %v4630 = vsel %vm4419, %v4561, 0.0
        %4631 = vadd.xlane.f32.xlu0 %v4630
        %v4632 = vpop.xlane.xlu0 %4631
        %v4633 = vsel %vm4419, %v4563, 0.0
        %4634 = vadd.xlane.f32.xlu0 %v4633
        %v4635 = vpop.xlane.xlu0 %4634
        %v4636 = vsel %vm4419, %v4565, 0.0
        %4637 = vadd.xlane.f32.xlu0 %v4636
        %v4638 = vpop.xlane.xlu0 %4637
        %v4639 = vsel %vm4419, %v4567, 0.0
        %4640 = vadd.xlane.f32.xlu0 %v4639
        %v4641 = vpop.xlane.xlu0 %4640
        %v4642 = vsel %vm4419, %v4569, 0.0
        %4643 = vadd.xlane.f32.xlu0 %v4642
        %v4644 = vpop.xlane.xlu0 %4643
        %v4645 = vsel %vm4419, %v4571, 0.0
        %4646 = vadd.xlane.f32.xlu0 %v4645
        %v4647 = vpop.xlane.xlu0 %4646
        %v4648 = vsel %vm4419, %v4573, 0.0
        %4649 = vadd.xlane.f32.xlu0 %v4648
        %v4650 = vpop.xlane.xlu0 %4649
        %v4651 = vsel %vm4419, %v4575, 0.0
        %4652 = vadd.xlane.f32.xlu0 %v4651
        %v4653 = vpop.xlane.xlu0 %4652
        %v4654 = vsel %vm4419, %v4577, 0.0
        %4655 = vadd.xlane.f32.xlu0 %v4654
        %v4656 = vpop.xlane.xlu0 %4655
        %v4657 = vsel %vm4419, %v4579, 0.0
        %4658 = vadd.xlane.f32.xlu0 %v4657
        %v4659 = vpop.xlane.xlu0 %4658
        %v4660 = vsel %vm4419, %v4581, 0.0
        %4661 = vadd.xlane.f32.xlu0 %v4660
        %v4662 = vpop.xlane.xlu0 %4661
        %v4663 = vsel %vm4419, %v4583, 0.0
        %4664 = vadd.xlane.f32.xlu0 %v4663
        %v4665 = vpop.xlane.xlu0 %4664
        %v4666 = vsel %vm4419, %v4585, 0.0
        %4667 = vadd.xlane.f32.xlu0 %v4666
        %v4668 = vpop.xlane.xlu0 %4667
        %v4669 = vsel %vm4419, %v4587, 0.0
        %4670 = vadd.xlane.f32.xlu0 %v4669
        %v4671 = vpop.xlane.xlu0 %4670
        %v4672 = vsel %vm4419, %v4589, 0.0
        %4673 = vadd.xlane.f32.xlu0 %v4672
        %v4674 = vpop.xlane.xlu0 %4673
        %v4675 = vsel %vm4419, %v4591, 0.0
        %4676 = vadd.xlane.f32.xlu0 %v4675
        %v4677 = vpop.xlane.xlu0 %4676
        %v4678 = vsel %vm4419, %v4593, 0.0
        %4679 = vadd.xlane.f32.xlu0 %v4678
        %v4680 = vpop.xlane.xlu0 %4679
        %v4681 = vsel %vm4419, %v4595, 0.0
        %4682 = vadd.xlane.f32.xlu0 %v4681
        %v4683 = vpop.xlane.xlu0 %4682
        %v4684 = vsel %vm4419, %v4597, 0.0
        %4685 = vadd.xlane.f32.xlu0 %v4684
        %v4686 = vpop.xlane.xlu0 %4685
        %v4687 = vsel %vm4419, %v4599, 0.0
        %4688 = vadd.xlane.f32.xlu0 %v4687
        %v4689 = vpop.xlane.xlu0 %4688
        %v4690 = vsel %vm4419, %v4601, 0.0
        %4691 = vadd.xlane.f32.xlu0 %v4690
        %v4692 = vpop.xlane.xlu0 %4691
        %v4693 = vsel %vm4419, %v4603, 0.0
        %4694 = vadd.xlane.f32.xlu0 %v4693
        %v4695 = vpop.xlane.xlu0 %4694
        %v4696 = vsel %vm4419, %v4605, 0.0
        %4697 = vadd.xlane.f32.xlu0 %v4696
        %v4698 = vpop.xlane.xlu0 %4697
        %v4699 = vsel %vm4419, %v4607, 0.0
        %4700 = vadd.xlane.f32.xlu0 %v4699
        %v4701 = vpop.xlane.xlu0 %4700
        %v4702 = vsel %vm4419, %v4609, 0.0
        %4703 = vadd.xlane.f32.xlu0 %v4702
        %v4704 = vpop.xlane.xlu0 %4703
        %v4705 = vsel %vm4419, %v4611, 0.0
        %4706 = vadd.xlane.f32.xlu0 %v4705
        %v4707 = vpop.xlane.xlu0 %4706
        %v4708 = vrcp.pop %v4614
        %v4709 = vmul.f32 %v4614, %v4708
        %v4710 = vsub.f32 1.0, %v4709
        %v4711 = vmul.f32 %v4708, %v4710
        %v4712 = vadd.f32 %v4708, %v4711
        %vm4713 = vweird.f32 %v4614
        %vm4714 = vweird.f32 %v4708
        %vm4715 = vmor %vm4713, %vm4714
        %v4716 = vsel %vm4715, %v4708, %v4712
        %v4717 = vand.u32 2147483647, %v4614
        %vm4718 = vcmp.eq.f32.partialorder %v4717, 8.507059e+37
        %v4719 = vand.u32 %v4614, 2147483648
        %v4720 = vor.u32 1.1754944e-38, %v4719
        %v4721 = vsel %vm4718, %v4720, %v4716
        %v4722 = vmul.f32 %v4549, %v4721
        %v4723 = vrcp.pop %v4617
        %v4724 = vmul.f32 %v4617, %v4723
        %v4725 = vsub.f32 1.0, %v4724
        %v4726 = vmul.f32 %v4723, %v4725
        %v4727 = vadd.f32 %v4723, %v4726
        %vm4728 = vweird.f32 %v4617
        %vm4729 = vweird.f32 %v4723
        %vm4730 = vmor %vm4728, %vm4729
        %v4731 = vsel %vm4730, %v4723, %v4727
        %v4732 = vand.u32 2147483647, %v4617
        %vm4733 = vcmp.eq.f32.partialorder %v4732, 8.507059e+37
        %v4734 = vand.u32 %v4617, 2147483648
        %v4735 = vor.u32 1.1754944e-38, %v4734
        %v4736 = vsel %vm4733, %v4735, %v4731
        %v4737 = vmul.f32 %v4551, %v4736
        %v4738 = vrcp.pop %v4620
        %v4739 = vmul.f32 %v4620, %v4738
        %v4740 = vsub.f32 1.0, %v4739
        %v4741 = vmul.f32 %v4738, %v4740
        %v4742 = vadd.f32 %v4738, %v4741
        %vm4743 = vweird.f32 %v4620
        %vm4744 = vweird.f32 %v4738
        %vm4745 = vmor %vm4743, %vm4744
        %v4746 = vsel %vm4745, %v4738, %v4742
        %v4747 = vand.u32 2147483647, %v4620
        %vm4748 = vcmp.eq.f32.partialorder %v4747, 8.507059e+37
        %v4749 = vand.u32 %v4620, 2147483648
        %v4750 = vor.u32 1.1754944e-38, %v4749
        %v4751 = vsel %vm4748, %v4750, %v4746
        %v4752 = vmul.f32 %v4553, %v4751
        %v4753 = vrcp.pop %v4623
        %v4754 = vmul.f32 %v4623, %v4753
        %v4755 = vsub.f32 1.0, %v4754
        %v4756 = vmul.f32 %v4753, %v4755
        %v4757 = vadd.f32 %v4753, %v4756
        %vm4758 = vweird.f32 %v4623
        %vm4759 = vweird.f32 %v4753
        %vm4760 = vmor %vm4758, %vm4759
        %v4761 = vsel %vm4760, %v4753, %v4757
        %v4762 = vand.u32 2147483647, %v4623
        %vm4763 = vcmp.eq.f32.partialorder %v4762, 8.507059e+37
        %v4764 = vand.u32 %v4623, 2147483648
        %v4765 = vor.u32 1.1754944e-38, %v4764
        %v4766 = vsel %vm4763, %v4765, %v4761
        %v4767 = vmul.f32 %v4555, %v4766
        %v4768 = vrcp.pop %v4626
        %v4769 = vmul.f32 %v4626, %v4768
        %v4770 = vsub.f32 1.0, %v4769
        %v4771 = vmul.f32 %v4768, %v4770
        %v4772 = vadd.f32 %v4768, %v4771
        %vm4773 = vweird.f32 %v4626
        %vm4774 = vweird.f32 %v4768
        %vm4775 = vmor %vm4773, %vm4774
        %v4776 = vsel %vm4775, %v4768, %v4772
        %v4777 = vand.u32 2147483647, %v4626
        %vm4778 = vcmp.eq.f32.partialorder %v4777, 8.507059e+37
        %v4779 = vand.u32 %v4626, 2147483648
        %v4780 = vor.u32 1.1754944e-38, %v4779
        %v4781 = vsel %vm4778, %v4780, %v4776
        %v4782 = vmul.f32 %v4557, %v4781
        %v4783 = vrcp.pop %v4629
        %v4784 = vmul.f32 %v4629, %v4783
        %v4785 = vsub.f32 1.0, %v4784
        %v4786 = vmul.f32 %v4783, %v4785
        %v4787 = vadd.f32 %v4783, %v4786
        %vm4788 = vweird.f32 %v4629
        %vm4789 = vweird.f32 %v4783
        %vm4790 = vmor %vm4788, %vm4789
        %v4791 = vsel %vm4790, %v4783, %v4787
        %v4792 = vand.u32 2147483647, %v4629
        %vm4793 = vcmp.eq.f32.partialorder %v4792, 8.507059e+37
        %v4794 = vand.u32 %v4629, 2147483648
        %v4795 = vor.u32 1.1754944e-38, %v4794
        %v4796 = vsel %vm4793, %v4795, %v4791
        %v4797 = vmul.f32 %v4559, %v4796
        %v4798 = vrcp.pop %v4632
        %v4799 = vmul.f32 %v4632, %v4798
        %v4800 = vsub.f32 1.0, %v4799
        %v4801 = vmul.f32 %v4798, %v4800
        %v4802 = vadd.f32 %v4798, %v4801
        %vm4803 = vweird.f32 %v4632
        %vm4804 = vweird.f32 %v4798
        %vm4805 = vmor %vm4803, %vm4804
        %v4806 = vsel %vm4805, %v4798, %v4802
        %v4807 = vand.u32 2147483647, %v4632
        %vm4808 = vcmp.eq.f32.partialorder %v4807, 8.507059e+37
        %v4809 = vand.u32 %v4632, 2147483648
        %v4810 = vor.u32 1.1754944e-38, %v4809
        %v4811 = vsel %vm4808, %v4810, %v4806
        %v4812 = vmul.f32 %v4561, %v4811
        %v4813 = vrcp.pop %v4635
        %v4814 = vmul.f32 %v4635, %v4813
        %v4815 = vsub.f32 1.0, %v4814
        %v4816 = vmul.f32 %v4813, %v4815
        %v4817 = vadd.f32 %v4813, %v4816
        %vm4818 = vweird.f32 %v4635
        %vm4819 = vweird.f32 %v4813
        %vm4820 = vmor %vm4818, %vm4819
        %v4821 = vsel %vm4820, %v4813, %v4817
        %v4822 = vand.u32 2147483647, %v4635
        %vm4823 = vcmp.eq.f32.partialorder %v4822, 8.507059e+37
        %v4824 = vand.u32 %v4635, 2147483648
        %v4825 = vor.u32 1.1754944e-38, %v4824
        %v4826 = vsel %vm4823, %v4825, %v4821
        %v4827 = vmul.f32 %v4563, %v4826
        %v4828 = vrcp.pop %v4638
        %v4829 = vmul.f32 %v4638, %v4828
        %v4830 = vsub.f32 1.0, %v4829
        %v4831 = vmul.f32 %v4828, %v4830
        %v4832 = vadd.f32 %v4828, %v4831
        %vm4833 = vweird.f32 %v4638
        %vm4834 = vweird.f32 %v4828
        %vm4835 = vmor %vm4833, %vm4834
        %v4836 = vsel %vm4835, %v4828, %v4832
        %v4837 = vand.u32 2147483647, %v4638
        %vm4838 = vcmp.eq.f32.partialorder %v4837, 8.507059e+37
        %v4839 = vand.u32 %v4638, 2147483648
        %v4840 = vor.u32 1.1754944e-38, %v4839
        %v4841 = vsel %vm4838, %v4840, %v4836
        %v4842 = vmul.f32 %v4565, %v4841
        %v4843 = vrcp.pop %v4641
        %v4844 = vmul.f32 %v4641, %v4843
        %v4845 = vsub.f32 1.0, %v4844
        %v4846 = vmul.f32 %v4843, %v4845
        %v4847 = vadd.f32 %v4843, %v4846
        %vm4848 = vweird.f32 %v4641
        %vm4849 = vweird.f32 %v4843
        %vm4850 = vmor %vm4848, %vm4849
        %v4851 = vsel %vm4850, %v4843, %v4847
        %v4852 = vand.u32 2147483647, %v4641
        %vm4853 = vcmp.eq.f32.partialorder %v4852, 8.507059e+37
        %v4854 = vand.u32 %v4641, 2147483648
        %v4855 = vor.u32 1.1754944e-38, %v4854
        %v4856 = vsel %vm4853, %v4855, %v4851
        %v4857 = vmul.f32 %v4567, %v4856
        %v4858 = vrcp.pop %v4644
        %v4859 = vmul.f32 %v4644, %v4858
        %v4860 = vsub.f32 1.0, %v4859
        %v4861 = vmul.f32 %v4858, %v4860
        %v4862 = vadd.f32 %v4858, %v4861
        %vm4863 = vweird.f32 %v4644
        %vm4864 = vweird.f32 %v4858
        %vm4865 = vmor %vm4863, %vm4864
        %v4866 = vsel %vm4865, %v4858, %v4862
        %v4867 = vand.u32 2147483647, %v4644
        %vm4868 = vcmp.eq.f32.partialorder %v4867, 8.507059e+37
        %v4869 = vand.u32 %v4644, 2147483648
        %v4870 = vor.u32 1.1754944e-38, %v4869
        %v4871 = vsel %vm4868, %v4870, %v4866
        %v4872 = vmul.f32 %v4569, %v4871
        %v4873 = vrcp.pop %v4647
        %v4874 = vmul.f32 %v4647, %v4873
        %v4875 = vsub.f32 1.0, %v4874
        %v4876 = vmul.f32 %v4873, %v4875
        %v4877 = vadd.f32 %v4873, %v4876
        %vm4878 = vweird.f32 %v4647
        %vm4879 = vweird.f32 %v4873
        %vm4880 = vmor %vm4878, %vm4879
        %v4881 = vsel %vm4880, %v4873, %v4877
        %v4882 = vand.u32 2147483647, %v4647
        %vm4883 = vcmp.eq.f32.partialorder %v4882, 8.507059e+37
        %v4884 = vand.u32 %v4647, 2147483648
        %v4885 = vor.u32 1.1754944e-38, %v4884
        %v4886 = vsel %vm4883, %v4885, %v4881
        %v4887 = vmul.f32 %v4571, %v4886
        %v4888 = vrcp.pop %v4650
        %v4889 = vmul.f32 %v4650, %v4888
        %v4890 = vsub.f32 1.0, %v4889
        %v4891 = vmul.f32 %v4888, %v4890
        %v4892 = vadd.f32 %v4888, %v4891
        %vm4893 = vweird.f32 %v4650
        %vm4894 = vweird.f32 %v4888
        %vm4895 = vmor %vm4893, %vm4894
        %v4896 = vsel %vm4895, %v4888, %v4892
        %v4897 = vand.u32 2147483647, %v4650
        %vm4898 = vcmp.eq.f32.partialorder %v4897, 8.507059e+37
        %v4899 = vand.u32 %v4650, 2147483648
        %v4900 = vor.u32 1.1754944e-38, %v4899
        %v4901 = vsel %vm4898, %v4900, %v4896
        %v4902 = vmul.f32 %v4573, %v4901
        %v4903 = vrcp.pop %v4653
        %v4904 = vmul.f32 %v4653, %v4903
        %v4905 = vsub.f32 1.0, %v4904
        %v4906 = vmul.f32 %v4903, %v4905
        %v4907 = vadd.f32 %v4903, %v4906
        %vm4908 = vweird.f32 %v4653
        %vm4909 = vweird.f32 %v4903
        %vm4910 = vmor %vm4908, %vm4909
        %v4911 = vsel %vm4910, %v4903, %v4907
        %v4912 = vand.u32 2147483647, %v4653
        %vm4913 = vcmp.eq.f32.partialorder %v4912, 8.507059e+37
        %v4914 = vand.u32 %v4653, 2147483648
        %v4915 = vor.u32 1.1754944e-38, %v4914
        %v4916 = vsel %vm4913, %v4915, %v4911
        %v4917 = vmul.f32 %v4575, %v4916
        %v4918 = vrcp.pop %v4656
        %v4919 = vmul.f32 %v4656, %v4918
        %v4920 = vsub.f32 1.0, %v4919
        %v4921 = vmul.f32 %v4918, %v4920
        %v4922 = vadd.f32 %v4918, %v4921
        %vm4923 = vweird.f32 %v4656
        %vm4924 = vweird.f32 %v4918
        %vm4925 = vmor %vm4923, %vm4924
        %v4926 = vsel %vm4925, %v4918, %v4922
        %v4927 = vand.u32 2147483647, %v4656
        %vm4928 = vcmp.eq.f32.partialorder %v4927, 8.507059e+37
        %v4929 = vand.u32 %v4656, 2147483648
        %v4930 = vor.u32 1.1754944e-38, %v4929
        %v4931 = vsel %vm4928, %v4930, %v4926
        %v4932 = vmul.f32 %v4577, %v4931
        %v4933 = vrcp.pop %v4659
        %v4934 = vmul.f32 %v4659, %v4933
        %v4935 = vsub.f32 1.0, %v4934
        %v4936 = vmul.f32 %v4933, %v4935
        %v4937 = vadd.f32 %v4933, %v4936
        %vm4938 = vweird.f32 %v4659
        %vm4939 = vweird.f32 %v4933
        %vm4940 = vmor %vm4938, %vm4939
        %v4941 = vsel %vm4940, %v4933, %v4937
        %v4942 = vand.u32 2147483647, %v4659
        %vm4943 = vcmp.eq.f32.partialorder %v4942, 8.507059e+37
        %v4944 = vand.u32 %v4659, 2147483648
        %v4945 = vor.u32 1.1754944e-38, %v4944
        %v4946 = vsel %vm4943, %v4945, %v4941
        %v4947 = vmul.f32 %v4579, %v4946
        %v4948 = vrcp.pop %v4662
        %v4949 = vmul.f32 %v4662, %v4948
        %v4950 = vsub.f32 1.0, %v4949
        %v4951 = vmul.f32 %v4948, %v4950
        %v4952 = vadd.f32 %v4948, %v4951
        %vm4953 = vweird.f32 %v4662
        %vm4954 = vweird.f32 %v4948
        %vm4955 = vmor %vm4953, %vm4954
        %v4956 = vsel %vm4955, %v4948, %v4952
        %v4957 = vand.u32 2147483647, %v4662
        %vm4958 = vcmp.eq.f32.partialorder %v4957, 8.507059e+37
        %v4959 = vand.u32 %v4662, 2147483648
        %v4960 = vor.u32 1.1754944e-38, %v4959
        %v4961 = vsel %vm4958, %v4960, %v4956
        %v4962 = vmul.f32 %v4581, %v4961
        %v4963 = vrcp.pop %v4665
        %v4964 = vmul.f32 %v4665, %v4963
        %v4965 = vsub.f32 1.0, %v4964
        %v4966 = vmul.f32 %v4963, %v4965
        %v4967 = vadd.f32 %v4963, %v4966
        %vm4968 = vweird.f32 %v4665
        %vm4969 = vweird.f32 %v4963
        %vm4970 = vmor %vm4968, %vm4969
        %v4971 = vsel %vm4970, %v4963, %v4967
        %v4972 = vand.u32 2147483647, %v4665
        %vm4973 = vcmp.eq.f32.partialorder %v4972, 8.507059e+37
        %v4974 = vand.u32 %v4665, 2147483648
        %v4975 = vor.u32 1.1754944e-38, %v4974
        %v4976 = vsel %vm4973, %v4975, %v4971
        %v4977 = vmul.f32 %v4583, %v4976
        %v4978 = vrcp.pop %v4668
        %v4979 = vmul.f32 %v4668, %v4978
        %v4980 = vsub.f32 1.0, %v4979
        %v4981 = vmul.f32 %v4978, %v4980
        %v4982 = vadd.f32 %v4978, %v4981
        %vm4983 = vweird.f32 %v4668
        %vm4984 = vweird.f32 %v4978
        %vm4985 = vmor %vm4983, %vm4984
        %v4986 = vsel %vm4985, %v4978, %v4982
        %v4987 = vand.u32 2147483647, %v4668
        %vm4988 = vcmp.eq.f32.partialorder %v4987, 8.507059e+37
        %v4989 = vand.u32 %v4668, 2147483648
        %v4990 = vor.u32 1.1754944e-38, %v4989
        %v4991 = vsel %vm4988, %v4990, %v4986
        %v4992 = vmul.f32 %v4585, %v4991
        %v4993 = vrcp.pop %v4671
        %v4994 = vmul.f32 %v4671, %v4993
        %v4995 = vsub.f32 1.0, %v4994
        %v4996 = vmul.f32 %v4993, %v4995
        %v4997 = vadd.f32 %v4993, %v4996
        %vm4998 = vweird.f32 %v4671
        %vm4999 = vweird.f32 %v4993
        %vm5000 = vmor %vm4998, %vm4999
        %v5001 = vsel %vm5000, %v4993, %v4997
        %v5002 = vand.u32 2147483647, %v4671
        %vm5003 = vcmp.eq.f32.partialorder %v5002, 8.507059e+37
        %v5004 = vand.u32 %v4671, 2147483648
        %v5005 = vor.u32 1.1754944e-38, %v5004
        %v5006 = vsel %vm5003, %v5005, %v5001
        %v5007 = vmul.f32 %v4587, %v5006
        %v5008 = vrcp.pop %v4674
        %v5009 = vmul.f32 %v4674, %v5008
        %v5010 = vsub.f32 1.0, %v5009
        %v5011 = vmul.f32 %v5008, %v5010
        %v5012 = vadd.f32 %v5008, %v5011
        %vm5013 = vweird.f32 %v4674
        %vm5014 = vweird.f32 %v5008
        %vm5015 = vmor %vm5013, %vm5014
        %v5016 = vsel %vm5015, %v5008, %v5012
        %v5017 = vand.u32 2147483647, %v4674
        %vm5018 = vcmp.eq.f32.partialorder %v5017, 8.507059e+37
        %v5019 = vand.u32 %v4674, 2147483648
        %v5020 = vor.u32 1.1754944e-38, %v5019
        %v5021 = vsel %vm5018, %v5020, %v5016
        %v5022 = vmul.f32 %v4589, %v5021
        %v5023 = vrcp.pop %v4677
        %v5024 = vmul.f32 %v4677, %v5023
        %v5025 = vsub.f32 1.0, %v5024
        %v5026 = vmul.f32 %v5023, %v5025
        %v5027 = vadd.f32 %v5023, %v5026
        %vm5028 = vweird.f32 %v4677
        %vm5029 = vweird.f32 %v5023
        %vm5030 = vmor %vm5028, %vm5029
        %v5031 = vsel %vm5030, %v5023, %v5027
        %v5032 = vand.u32 2147483647, %v4677
        %vm5033 = vcmp.eq.f32.partialorder %v5032, 8.507059e+37
        %v5034 = vand.u32 %v4677, 2147483648
        %v5035 = vor.u32 1.1754944e-38, %v5034
        %v5036 = vsel %vm5033, %v5035, %v5031
        %v5037 = vmul.f32 %v4591, %v5036
        %v5038 = vrcp.pop %v4680
        %v5039 = vmul.f32 %v4680, %v5038
        %v5040 = vsub.f32 1.0, %v5039
        %v5041 = vmul.f32 %v5038, %v5040
        %v5042 = vadd.f32 %v5038, %v5041
        %vm5043 = vweird.f32 %v4680
        %vm5044 = vweird.f32 %v5038
        %vm5045 = vmor %vm5043, %vm5044
        %v5046 = vsel %vm5045, %v5038, %v5042
        %v5047 = vand.u32 2147483647, %v4680
        %vm5048 = vcmp.eq.f32.partialorder %v5047, 8.507059e+37
        %v5049 = vand.u32 %v4680, 2147483648
        %v5050 = vor.u32 1.1754944e-38, %v5049
        %v5051 = vsel %vm5048, %v5050, %v5046
        %v5052 = vmul.f32 %v4593, %v5051
        %v5053 = vrcp.pop %v4683
        %v5054 = vmul.f32 %v4683, %v5053
        %v5055 = vsub.f32 1.0, %v5054
        %v5056 = vmul.f32 %v5053, %v5055
        %v5057 = vadd.f32 %v5053, %v5056
        %vm5058 = vweird.f32 %v4683
        %vm5059 = vweird.f32 %v5053
        %vm5060 = vmor %vm5058, %vm5059
        %v5061 = vsel %vm5060, %v5053, %v5057
        %v5062 = vand.u32 2147483647, %v4683
        %vm5063 = vcmp.eq.f32.partialorder %v5062, 8.507059e+37
        %v5064 = vand.u32 %v4683, 2147483648
        %v5065 = vor.u32 1.1754944e-38, %v5064
        %v5066 = vsel %vm5063, %v5065, %v5061
        %v5067 = vmul.f32 %v4595, %v5066
        %v5068 = vrcp.pop %v4686
        %v5069 = vmul.f32 %v4686, %v5068
        %v5070 = vsub.f32 1.0, %v5069
        %v5071 = vmul.f32 %v5068, %v5070
        %v5072 = vadd.f32 %v5068, %v5071
        %vm5073 = vweird.f32 %v4686
        %vm5074 = vweird.f32 %v5068
        %vm5075 = vmor %vm5073, %vm5074
        %v5076 = vsel %vm5075, %v5068, %v5072
        %v5077 = vand.u32 2147483647, %v4686
        %vm5078 = vcmp.eq.f32.partialorder %v5077, 8.507059e+37
        %v5079 = vand.u32 %v4686, 2147483648
        %v5080 = vor.u32 1.1754944e-38, %v5079
        %v5081 = vsel %vm5078, %v5080, %v5076
        %v5082 = vmul.f32 %v4597, %v5081
        %v5083 = vrcp.pop %v4689
        %v5084 = vmul.f32 %v4689, %v5083
        %v5085 = vsub.f32 1.0, %v5084
        %v5086 = vmul.f32 %v5083, %v5085
        %v5087 = vadd.f32 %v5083, %v5086
        %vm5088 = vweird.f32 %v4689
        %vm5089 = vweird.f32 %v5083
        %vm5090 = vmor %vm5088, %vm5089
        %v5091 = vsel %vm5090, %v5083, %v5087
        %v5092 = vand.u32 2147483647, %v4689
        %vm5093 = vcmp.eq.f32.partialorder %v5092, 8.507059e+37
        %v5094 = vand.u32 %v4689, 2147483648
        %v5095 = vor.u32 1.1754944e-38, %v5094
        %v5096 = vsel %vm5093, %v5095, %v5091
        %v5097 = vmul.f32 %v4599, %v5096
        %v5098 = vrcp.pop %v4692
        %v5099 = vmul.f32 %v4692, %v5098
        %v5100 = vsub.f32 1.0, %v5099
        %v5101 = vmul.f32 %v5098, %v5100
        %v5102 = vadd.f32 %v5098, %v5101
        %vm5103 = vweird.f32 %v4692
        %vm5104 = vweird.f32 %v5098
        %vm5105 = vmor %vm5103, %vm5104
        %v5106 = vsel %vm5105, %v5098, %v5102
        %v5107 = vand.u32 2147483647, %v4692
        %vm5108 = vcmp.eq.f32.partialorder %v5107, 8.507059e+37
        %v5109 = vand.u32 %v4692, 2147483648
        %v5110 = vor.u32 1.1754944e-38, %v5109
        %v5111 = vsel %vm5108, %v5110, %v5106
        %v5112 = vmul.f32 %v4601, %v5111
        %v5113 = vrcp.pop %v4695
        %v5114 = vmul.f32 %v4695, %v5113
        %v5115 = vsub.f32 1.0, %v5114
        %v5116 = vmul.f32 %v5113, %v5115
        %v5117 = vadd.f32 %v5113, %v5116
        %vm5118 = vweird.f32 %v4695
        %vm5119 = vweird.f32 %v5113
        %vm5120 = vmor %vm5118, %vm5119
        %v5121 = vsel %vm5120, %v5113, %v5117
        %v5122 = vand.u32 2147483647, %v4695
        %vm5123 = vcmp.eq.f32.partialorder %v5122, 8.507059e+37
        %v5124 = vand.u32 %v4695, 2147483648
        %v5125 = vor.u32 1.1754944e-38, %v5124
        %v5126 = vsel %vm5123, %v5125, %v5121
        %v5127 = vmul.f32 %v4603, %v5126
        %v5128 = vrcp.pop %v4698
        %v5129 = vmul.f32 %v4698, %v5128
        %v5130 = vsub.f32 1.0, %v5129
        %v5131 = vmul.f32 %v5128, %v5130
        %v5132 = vadd.f32 %v5128, %v5131
        %vm5133 = vweird.f32 %v4698
        %vm5134 = vweird.f32 %v5128
        %vm5135 = vmor %vm5133, %vm5134
        %v5136 = vsel %vm5135, %v5128, %v5132
        %v5137 = vand.u32 2147483647, %v4698
        %vm5138 = vcmp.eq.f32.partialorder %v5137, 8.507059e+37
        %v5139 = vand.u32 %v4698, 2147483648
        %v5140 = vor.u32 1.1754944e-38, %v5139
        %v5141 = vsel %vm5138, %v5140, %v5136
        %v5142 = vmul.f32 %v4605, %v5141
        %v5143 = vrcp.pop %v4701
        %v5144 = vmul.f32 %v4701, %v5143
        %v5145 = vsub.f32 1.0, %v5144
        %v5146 = vmul.f32 %v5143, %v5145
        %v5147 = vadd.f32 %v5143, %v5146
        %vm5148 = vweird.f32 %v4701
        %vm5149 = vweird.f32 %v5143
        %vm5150 = vmor %vm5148, %vm5149
        %v5151 = vsel %vm5150, %v5143, %v5147
        %v5152 = vand.u32 2147483647, %v4701
        %vm5153 = vcmp.eq.f32.partialorder %v5152, 8.507059e+37
        %v5154 = vand.u32 %v4701, 2147483648
        %v5155 = vor.u32 1.1754944e-38, %v5154
        %v5156 = vsel %vm5153, %v5155, %v5151
        %v5157 = vmul.f32 %v4607, %v5156
        %v5158 = vrcp.pop %v4704
        %v5159 = vmul.f32 %v4704, %v5158
        %v5160 = vsub.f32 1.0, %v5159
        %v5161 = vmul.f32 %v5158, %v5160
        %v5162 = vadd.f32 %v5158, %v5161
        %vm5163 = vweird.f32 %v4704
        %vm5164 = vweird.f32 %v5158
        %vm5165 = vmor %vm5163, %vm5164
        %v5166 = vsel %vm5165, %v5158, %v5162
        %v5167 = vand.u32 2147483647, %v4704
        %vm5168 = vcmp.eq.f32.partialorder %v5167, 8.507059e+37
        %v5169 = vand.u32 %v4704, 2147483648
        %v5170 = vor.u32 1.1754944e-38, %v5169
        %v5171 = vsel %vm5168, %v5170, %v5166
        %v5172 = vmul.f32 %v4609, %v5171
        %v5173 = vrcp.pop %v4707
        %v5174 = vmul.f32 %v4707, %v5173
        %v5175 = vsub.f32 1.0, %v5174
        %v5176 = vmul.f32 %v5173, %v5175
        %v5177 = vadd.f32 %v5173, %v5176
        %vm5178 = vweird.f32 %v4707
        %vm5179 = vweird.f32 %v5173
        %vm5180 = vmor %vm5178, %vm5179
        %v5181 = vsel %vm5180, %v5173, %v5177
        %v5182 = vand.u32 2147483647, %v4707
        %vm5183 = vcmp.eq.f32.partialorder %v5182, 8.507059e+37
        %v5184 = vand.u32 %v4707, 2147483648
        %v5185 = vor.u32 1.1754944e-38, %v5184
        %v5186 = vsel %vm5183, %v5185, %v5181
        %v5187 = vmul.f32 %v4611, %v5186
        %v5189 = vsel %vm4419, %v4722, 0
        %5191 = vmatpush.msra.mxu0 0.0
        %5192 = vmatpush.msra.mxu0 0.0
        %5193 = vmatpush.msra.mxu0 0.0
        %5194 = vmatpush.msra.mxu0 0.0
        %5195 = vmatpush.msra.mxu0 0.0
        %5196 = vmatpush.msra.mxu0 0.0
        %5197 = vmatpush.msra.mxu0 0.0
        %5198 = vmatpush.msra.mxu0 0.0
        %5199 = vmatpush.msra.mxu0 0.0
        %5200 = vmatpush.msra.mxu0 0.0
        %5201 = vmatpush.msra.mxu0 0.0
        %5202 = vmatpush.msra.mxu0 0.0
        %5203 = vmatpush.msra.mxu0 0.0
        %5204 = vmatpush.msra.mxu0 0.0
        %5205 = vmatpush.msra.mxu0 %v2259
        %5206 = vmatpush.msra.mxu0 %v2256
        %5207 = vmatmul.f32.gmra.mxu0 %v5189
        %v5208 = vpop.f32.mrf.mxu0
        %v5209 = vadd.f32 0.0, %v5208
        %5210 = vdwg.mxu0
        %5211 = vmatpush.msra.mxu0 0.0
        %5212 = vmatpush.msra.mxu0 0.0
        %5213 = vmatpush.msra.mxu0 0.0
        %5214 = vmatpush.msra.mxu0 0.0
        %5215 = vmatpush.msra.mxu0 0.0
        %5216 = vmatpush.msra.mxu0 0.0
        %5217 = vmatpush.msra.mxu0 0.0
        %5218 = vmatpush.msra.mxu0 0.0
        %5219 = vmatpush.msra.mxu0 0.0
        %5220 = vmatpush.msra.mxu0 0.0
        %5221 = vmatpush.msra.mxu0 0.0
        %5222 = vmatpush.msra.mxu0 0.0
        %5223 = vmatpush.msra.mxu0 0.0
        %5224 = vmatpush.msra.mxu0 0.0
        %5225 = vmatpush.msra.mxu0 %v2677
        %5226 = vmatpush.msra.mxu0 %v2674
        %5227 = vmatmul.f32.gmra.mxu0 %v5189
        %v5228 = vpop.f32.mrf.mxu0
        %v5229 = vadd.f32 0.0, %v5228
        %5230 = vdwg.mxu0
        %v5232 = vsel %vm4419, %v4737, 0
        %5234 = vmatpush.msra.mxu0 0.0
        %5235 = vmatpush.msra.mxu0 0.0
        %5236 = vmatpush.msra.mxu0 0.0
        %5237 = vmatpush.msra.mxu0 0.0
        %5238 = vmatpush.msra.mxu0 0.0
        %5239 = vmatpush.msra.mxu0 0.0
        %5240 = vmatpush.msra.mxu0 0.0
        %5241 = vmatpush.msra.mxu0 0.0
        %5242 = vmatpush.msra.mxu0 0.0
        %5243 = vmatpush.msra.mxu0 0.0
        %5244 = vmatpush.msra.mxu0 0.0
        %5245 = vmatpush.msra.mxu0 0.0
        %5246 = vmatpush.msra.mxu0 0.0
        %5247 = vmatpush.msra.mxu0 0.0
        %5248 = vmatpush.msra.mxu0 %v2265
        %5249 = vmatpush.msra.mxu0 %v2262
        %5250 = vmatmul.f32.gmra.mxu0 %v5232
        %v5251 = vpop.f32.mrf.mxu0
        %v5252 = vadd.f32 0.0, %v5251
        %5253 = vdwg.mxu0
        %5254 = vmatpush.msra.mxu0 0.0
        %5255 = vmatpush.msra.mxu0 0.0
        %5256 = vmatpush.msra.mxu0 0.0
        %5257 = vmatpush.msra.mxu0 0.0
        %5258 = vmatpush.msra.mxu0 0.0
        %5259 = vmatpush.msra.mxu0 0.0
        %5260 = vmatpush.msra.mxu0 0.0
        %5261 = vmatpush.msra.mxu0 0.0
        %5262 = vmatpush.msra.mxu0 0.0
        %5263 = vmatpush.msra.mxu0 0.0
        %5264 = vmatpush.msra.mxu0 0.0
        %5265 = vmatpush.msra.mxu0 0.0
        %5266 = vmatpush.msra.mxu0 0.0
        %5267 = vmatpush.msra.mxu0 0.0
        %5268 = vmatpush.msra.mxu0 %v2683
        %5269 = vmatpush.msra.mxu0 %v2680
        %5270 = vmatmul.f32.gmra.mxu0 %v5232
        %v5271 = vpop.f32.mrf.mxu0
        %v5272 = vadd.f32 0.0, %v5271
        %5273 = vdwg.mxu0
        %v5275 = vsel %vm4419, %v4752, 0
        %5277 = vmatpush.msra.mxu0 0.0
        %5278 = vmatpush.msra.mxu0 0.0
        %5279 = vmatpush.msra.mxu0 0.0
        %5280 = vmatpush.msra.mxu0 0.0
        %5281 = vmatpush.msra.mxu0 0.0
        %5282 = vmatpush.msra.mxu0 0.0
        %5283 = vmatpush.msra.mxu0 0.0
        %5284 = vmatpush.msra.mxu0 0.0
        %5285 = vmatpush.msra.mxu0 0.0
        %5286 = vmatpush.msra.mxu0 0.0
        %5287 = vmatpush.msra.mxu0 0.0
        %5288 = vmatpush.msra.mxu0 0.0
        %5289 = vmatpush.msra.mxu0 0.0
        %5290 = vmatpush.msra.mxu0 0.0
        %5291 = vmatpush.msra.mxu0 %v2271
        %5292 = vmatpush.msra.mxu0 %v2268
        %5293 = vmatmul.f32.gmra.mxu0 %v5275
        %v5294 = vpop.f32.mrf.mxu0
        %v5295 = vadd.f32 0.0, %v5294
        %5296 = vdwg.mxu0
        %5297 = vmatpush.msra.mxu0 0.0
        %5298 = vmatpush.msra.mxu0 0.0
        %5299 = vmatpush.msra.mxu0 0.0
        %5300 = vmatpush.msra.mxu0 0.0
        %5301 = vmatpush.msra.mxu0 0.0
        %5302 = vmatpush.msra.mxu0 0.0
        %5303 = vmatpush.msra.mxu0 0.0
        %5304 = vmatpush.msra.mxu0 0.0
        %5305 = vmatpush.msra.mxu0 0.0
        %5306 = vmatpush.msra.mxu0 0.0
        %5307 = vmatpush.msra.mxu0 0.0
        %5308 = vmatpush.msra.mxu0 0.0
        %5309 = vmatpush.msra.mxu0 0.0
        %5310 = vmatpush.msra.mxu0 0.0
        %5311 = vmatpush.msra.mxu0 %v2689
        %5312 = vmatpush.msra.mxu0 %v2686
        %5313 = vmatmul.f32.gmra.mxu0 %v5275
        %v5314 = vpop.f32.mrf.mxu0
        %v5315 = vadd.f32 0.0, %v5314
        %5316 = vdwg.mxu0
        %v5318 = vsel %vm4419, %v4767, 0
        %5320 = vmatpush.msra.mxu0 0.0
        %5321 = vmatpush.msra.mxu0 0.0
        %5322 = vmatpush.msra.mxu0 0.0
        %5323 = vmatpush.msra.mxu0 0.0
        %5324 = vmatpush.msra.mxu0 0.0
        %5325 = vmatpush.msra.mxu0 0.0
        %5326 = vmatpush.msra.mxu0 0.0
        %5327 = vmatpush.msra.mxu0 0.0
        %5328 = vmatpush.msra.mxu0 0.0
        %5329 = vmatpush.msra.mxu0 0.0
        %5330 = vmatpush.msra.mxu0 0.0
        %5331 = vmatpush.msra.mxu0 0.0
        %5332 = vmatpush.msra.mxu0 0.0
        %5333 = vmatpush.msra.mxu0 0.0
        %5334 = vmatpush.msra.mxu0 %v2277
        %5335 = vmatpush.msra.mxu0 %v2274
        %5336 = vmatmul.f32.gmra.mxu0 %v5318
        %v5337 = vpop.f32.mrf.mxu0
        %v5338 = vadd.f32 0.0, %v5337
        %5339 = vdwg.mxu0
        %5340 = vmatpush.msra.mxu0 0.0
        %5341 = vmatpush.msra.mxu0 0.0
        %5342 = vmatpush.msra.mxu0 0.0
        %5343 = vmatpush.msra.mxu0 0.0
        %5344 = vmatpush.msra.mxu0 0.0
        %5345 = vmatpush.msra.mxu0 0.0
        %5346 = vmatpush.msra.mxu0 0.0
        %5347 = vmatpush.msra.mxu0 0.0
        %5348 = vmatpush.msra.mxu0 0.0
        %5349 = vmatpush.msra.mxu0 0.0
        %5350 = vmatpush.msra.mxu0 0.0
        %5351 = vmatpush.msra.mxu0 0.0
        %5352 = vmatpush.msra.mxu0 0.0
        %5353 = vmatpush.msra.mxu0 0.0
        %5354 = vmatpush.msra.mxu0 %v2695
        %5355 = vmatpush.msra.mxu0 %v2692
        %5356 = vmatmul.f32.gmra.mxu0 %v5318
        %v5357 = vpop.f32.mrf.mxu0
        %v5358 = vadd.f32 0.0, %v5357
        %5359 = vdwg.mxu0
        %v5361 = vsel %vm4419, %v4782, 0
        %5363 = vmatpush.msra.mxu0 0.0
        %5364 = vmatpush.msra.mxu0 0.0
        %5365 = vmatpush.msra.mxu0 0.0
        %5366 = vmatpush.msra.mxu0 0.0
        %5367 = vmatpush.msra.mxu0 0.0
        %5368 = vmatpush.msra.mxu0 0.0
        %5369 = vmatpush.msra.mxu0 0.0
        %5370 = vmatpush.msra.mxu0 0.0
        %5371 = vmatpush.msra.mxu0 0.0
        %5372 = vmatpush.msra.mxu0 0.0
        %5373 = vmatpush.msra.mxu0 0.0
        %5374 = vmatpush.msra.mxu0 0.0
        %5375 = vmatpush.msra.mxu0 0.0
        %5376 = vmatpush.msra.mxu0 0.0
        %5377 = vmatpush.msra.mxu0 %v2283
        %5378 = vmatpush.msra.mxu0 %v2280
        %5379 = vmatmul.f32.gmra.mxu0 %v5361
        %v5380 = vpop.f32.mrf.mxu0
        %v5381 = vadd.f32 0.0, %v5380
        %5382 = vdwg.mxu0
        %5383 = vmatpush.msra.mxu0 0.0
        %5384 = vmatpush.msra.mxu0 0.0
        %5385 = vmatpush.msra.mxu0 0.0
        %5386 = vmatpush.msra.mxu0 0.0
        %5387 = vmatpush.msra.mxu0 0.0
        %5388 = vmatpush.msra.mxu0 0.0
        %5389 = vmatpush.msra.mxu0 0.0
        %5390 = vmatpush.msra.mxu0 0.0
        %5391 = vmatpush.msra.mxu0 0.0
        %5392 = vmatpush.msra.mxu0 0.0
        %5393 = vmatpush.msra.mxu0 0.0
        %5394 = vmatpush.msra.mxu0 0.0
        %5395 = vmatpush.msra.mxu0 0.0
        %5396 = vmatpush.msra.mxu0 0.0
        %5397 = vmatpush.msra.mxu0 %v2701
        %5398 = vmatpush.msra.mxu0 %v2698
        %5399 = vmatmul.f32.gmra.mxu0 %v5361
        %v5400 = vpop.f32.mrf.mxu0
        %v5401 = vadd.f32 0.0, %v5400
        %5402 = vdwg.mxu0
        %v5404 = vsel %vm4419, %v4797, 0
        %5406 = vmatpush.msra.mxu0 0.0
        %5407 = vmatpush.msra.mxu0 0.0
        %5408 = vmatpush.msra.mxu0 0.0
        %5409 = vmatpush.msra.mxu0 0.0
        %5410 = vmatpush.msra.mxu0 0.0
        %5411 = vmatpush.msra.mxu0 0.0
        %5412 = vmatpush.msra.mxu0 0.0
        %5413 = vmatpush.msra.mxu0 0.0
        %5414 = vmatpush.msra.mxu0 0.0
        %5415 = vmatpush.msra.mxu0 0.0
        %5416 = vmatpush.msra.mxu0 0.0
        %5417 = vmatpush.msra.mxu0 0.0
        %5418 = vmatpush.msra.mxu0 0.0
        %5419 = vmatpush.msra.mxu0 0.0
        %5420 = vmatpush.msra.mxu0 %v2289
        %5421 = vmatpush.msra.mxu0 %v2286
        %5422 = vmatmul.f32.gmra.mxu0 %v5404
        %v5423 = vpop.f32.mrf.mxu0
        %v5424 = vadd.f32 0.0, %v5423
        %5425 = vdwg.mxu0
        %5426 = vmatpush.msra.mxu0 0.0
        %5427 = vmatpush.msra.mxu0 0.0
        %5428 = vmatpush.msra.mxu0 0.0
        %5429 = vmatpush.msra.mxu0 0.0
        %5430 = vmatpush.msra.mxu0 0.0
        %5431 = vmatpush.msra.mxu0 0.0
        %5432 = vmatpush.msra.mxu0 0.0
        %5433 = vmatpush.msra.mxu0 0.0
        %5434 = vmatpush.msra.mxu0 0.0
        %5435 = vmatpush.msra.mxu0 0.0
        %5436 = vmatpush.msra.mxu0 0.0
        %5437 = vmatpush.msra.mxu0 0.0
        %5438 = vmatpush.msra.mxu0 0.0
        %5439 = vmatpush.msra.mxu0 0.0
        %5440 = vmatpush.msra.mxu0 %v2707
        %5441 = vmatpush.msra.mxu0 %v2704
        %5442 = vmatmul.f32.gmra.mxu0 %v5404
        %v5443 = vpop.f32.mrf.mxu0
        %v5444 = vadd.f32 0.0, %v5443
        %5445 = vdwg.mxu0
        %v5447 = vsel %vm4419, %v4812, 0
        %5449 = vmatpush.msra.mxu0 0.0
        %5450 = vmatpush.msra.mxu0 0.0
        %5451 = vmatpush.msra.mxu0 0.0
        %5452 = vmatpush.msra.mxu0 0.0
        %5453 = vmatpush.msra.mxu0 0.0
        %5454 = vmatpush.msra.mxu0 0.0
        %5455 = vmatpush.msra.mxu0 0.0
        %5456 = vmatpush.msra.mxu0 0.0
        %5457 = vmatpush.msra.mxu0 0.0
        %5458 = vmatpush.msra.mxu0 0.0
        %5459 = vmatpush.msra.mxu0 0.0
        %5460 = vmatpush.msra.mxu0 0.0
        %5461 = vmatpush.msra.mxu0 0.0
        %5462 = vmatpush.msra.mxu0 0.0
        %5463 = vmatpush.msra.mxu0 %v2295
        %5464 = vmatpush.msra.mxu0 %v2292
        %5465 = vmatmul.f32.gmra.mxu0 %v5447
        %v5466 = vpop.f32.mrf.mxu0
        %v5467 = vadd.f32 0.0, %v5466
        %5468 = vdwg.mxu0
        %5469 = vmatpush.msra.mxu0 0.0
        %5470 = vmatpush.msra.mxu0 0.0
        %5471 = vmatpush.msra.mxu0 0.0
        %5472 = vmatpush.msra.mxu0 0.0
        %5473 = vmatpush.msra.mxu0 0.0
        %5474 = vmatpush.msra.mxu0 0.0
        %5475 = vmatpush.msra.mxu0 0.0
        %5476 = vmatpush.msra.mxu0 0.0
        %5477 = vmatpush.msra.mxu0 0.0
        %5478 = vmatpush.msra.mxu0 0.0
        %5479 = vmatpush.msra.mxu0 0.0
        %5480 = vmatpush.msra.mxu0 0.0
        %5481 = vmatpush.msra.mxu0 0.0
        %5482 = vmatpush.msra.mxu0 0.0
        %5483 = vmatpush.msra.mxu0 %v2713
        %5484 = vmatpush.msra.mxu0 %v2710
        %5485 = vmatmul.f32.gmra.mxu0 %v5447
        %v5486 = vpop.f32.mrf.mxu0
        %v5487 = vadd.f32 0.0, %v5486
        %5488 = vdwg.mxu0
        %v5490 = vsel %vm4419, %v4827, 0
        %5492 = vmatpush.msra.mxu0 0.0
        %5493 = vmatpush.msra.mxu0 0.0
        %5494 = vmatpush.msra.mxu0 0.0
        %5495 = vmatpush.msra.mxu0 0.0
        %5496 = vmatpush.msra.mxu0 0.0
        %5497 = vmatpush.msra.mxu0 0.0
        %5498 = vmatpush.msra.mxu0 0.0
        %5499 = vmatpush.msra.mxu0 0.0
        %5500 = vmatpush.msra.mxu0 0.0
        %5501 = vmatpush.msra.mxu0 0.0
        %5502 = vmatpush.msra.mxu0 0.0
        %5503 = vmatpush.msra.mxu0 0.0
        %5504 = vmatpush.msra.mxu0 0.0
        %5505 = vmatpush.msra.mxu0 0.0
        %5506 = vmatpush.msra.mxu0 %v2301
        %5507 = vmatpush.msra.mxu0 %v2298
        %5508 = vmatmul.f32.gmra.mxu0 %v5490
        %v5509 = vpop.f32.mrf.mxu0
        %v5510 = vadd.f32 0.0, %v5509
        %5511 = vdwg.mxu0
        %5512 = vmatpush.msra.mxu0 0.0
        %5513 = vmatpush.msra.mxu0 0.0
        %5514 = vmatpush.msra.mxu0 0.0
        %5515 = vmatpush.msra.mxu0 0.0
        %5516 = vmatpush.msra.mxu0 0.0
        %5517 = vmatpush.msra.mxu0 0.0
        %5518 = vmatpush.msra.mxu0 0.0
        %5519 = vmatpush.msra.mxu0 0.0
        %5520 = vmatpush.msra.mxu0 0.0
        %5521 = vmatpush.msra.mxu0 0.0
        %5522 = vmatpush.msra.mxu0 0.0
        %5523 = vmatpush.msra.mxu0 0.0
        %5524 = vmatpush.msra.mxu0 0.0
        %5525 = vmatpush.msra.mxu0 0.0
        %5526 = vmatpush.msra.mxu0 %v2719
        %5527 = vmatpush.msra.mxu0 %v2716
        %5528 = vmatmul.f32.gmra.mxu0 %v5490
        %v5529 = vpop.f32.mrf.mxu0
        %v5530 = vadd.f32 0.0, %v5529
        %5531 = vdwg.mxu0
        %v5533 = vsel %vm4419, %v4842, 0
        %5535 = vmatpush.msra.mxu0 0.0
        %5536 = vmatpush.msra.mxu0 0.0
        %5537 = vmatpush.msra.mxu0 0.0
        %5538 = vmatpush.msra.mxu0 0.0
        %5539 = vmatpush.msra.mxu0 0.0
        %5540 = vmatpush.msra.mxu0 0.0
        %5541 = vmatpush.msra.mxu0 0.0
        %5542 = vmatpush.msra.mxu0 0.0
        %5543 = vmatpush.msra.mxu0 0.0
        %5544 = vmatpush.msra.mxu0 0.0
        %5545 = vmatpush.msra.mxu0 0.0
        %5546 = vmatpush.msra.mxu0 0.0
        %5547 = vmatpush.msra.mxu0 0.0
        %5548 = vmatpush.msra.mxu0 0.0
        %5549 = vmatpush.msra.mxu0 %v2307
        %5550 = vmatpush.msra.mxu0 %v2304
        %5551 = vmatmul.f32.gmra.mxu0 %v5533
        %v5552 = vpop.f32.mrf.mxu0
        %v5553 = vadd.f32 0.0, %v5552
        %5554 = vdwg.mxu0
        %5555 = vmatpush.msra.mxu0 0.0
        %5556 = vmatpush.msra.mxu0 0.0
        %5557 = vmatpush.msra.mxu0 0.0
        %5558 = vmatpush.msra.mxu0 0.0
        %5559 = vmatpush.msra.mxu0 0.0
        %5560 = vmatpush.msra.mxu0 0.0
        %5561 = vmatpush.msra.mxu0 0.0
        %5562 = vmatpush.msra.mxu0 0.0
        %5563 = vmatpush.msra.mxu0 0.0
        %5564 = vmatpush.msra.mxu0 0.0
        %5565 = vmatpush.msra.mxu0 0.0
        %5566 = vmatpush.msra.mxu0 0.0
        %5567 = vmatpush.msra.mxu0 0.0
        %5568 = vmatpush.msra.mxu0 0.0
        %5569 = vmatpush.msra.mxu0 %v2725
        %5570 = vmatpush.msra.mxu0 %v2722
        %5571 = vmatmul.f32.gmra.mxu0 %v5533
        %v5572 = vpop.f32.mrf.mxu0
        %v5573 = vadd.f32 0.0, %v5572
        %5574 = vdwg.mxu0
        %v5576 = vsel %vm4419, %v4857, 0
        %5578 = vmatpush.msra.mxu0 0.0
        %5579 = vmatpush.msra.mxu0 0.0
        %5580 = vmatpush.msra.mxu0 0.0
        %5581 = vmatpush.msra.mxu0 0.0
        %5582 = vmatpush.msra.mxu0 0.0
        %5583 = vmatpush.msra.mxu0 0.0
        %5584 = vmatpush.msra.mxu0 0.0
        %5585 = vmatpush.msra.mxu0 0.0
        %5586 = vmatpush.msra.mxu0 0.0
        %5587 = vmatpush.msra.mxu0 0.0
        %5588 = vmatpush.msra.mxu0 0.0
        %5589 = vmatpush.msra.mxu0 0.0
        %5590 = vmatpush.msra.mxu0 0.0
        %5591 = vmatpush.msra.mxu0 0.0
        %5592 = vmatpush.msra.mxu0 %v2313
        %5593 = vmatpush.msra.mxu0 %v2310
        %5594 = vmatmul.f32.gmra.mxu0 %v5576
        %v5595 = vpop.f32.mrf.mxu0
        %v5596 = vadd.f32 0.0, %v5595
        %5597 = vdwg.mxu0
        %5598 = vmatpush.msra.mxu0 0.0
        %5599 = vmatpush.msra.mxu0 0.0
        %5600 = vmatpush.msra.mxu0 0.0
        %5601 = vmatpush.msra.mxu0 0.0
        %5602 = vmatpush.msra.mxu0 0.0
        %5603 = vmatpush.msra.mxu0 0.0
        %5604 = vmatpush.msra.mxu0 0.0
        %5605 = vmatpush.msra.mxu0 0.0
        %5606 = vmatpush.msra.mxu0 0.0
        %5607 = vmatpush.msra.mxu0 0.0
        %5608 = vmatpush.msra.mxu0 0.0
        %5609 = vmatpush.msra.mxu0 0.0
        %5610 = vmatpush.msra.mxu0 0.0
        %5611 = vmatpush.msra.mxu0 0.0
        %5612 = vmatpush.msra.mxu0 %v2731
        %5613 = vmatpush.msra.mxu0 %v2728
        %5614 = vmatmul.f32.gmra.mxu0 %v5576
        %v5615 = vpop.f32.mrf.mxu0
        %v5616 = vadd.f32 0.0, %v5615
        %5617 = vdwg.mxu0
        %v5619 = vsel %vm4419, %v4872, 0
        %5621 = vmatpush.msra.mxu0 0.0
        %5622 = vmatpush.msra.mxu0 0.0
        %5623 = vmatpush.msra.mxu0 0.0
        %5624 = vmatpush.msra.mxu0 0.0
        %5625 = vmatpush.msra.mxu0 0.0
        %5626 = vmatpush.msra.mxu0 0.0
        %5627 = vmatpush.msra.mxu0 0.0
        %5628 = vmatpush.msra.mxu0 0.0
        %5629 = vmatpush.msra.mxu0 0.0
        %5630 = vmatpush.msra.mxu0 0.0
        %5631 = vmatpush.msra.mxu0 0.0
        %5632 = vmatpush.msra.mxu0 0.0
        %5633 = vmatpush.msra.mxu0 0.0
        %5634 = vmatpush.msra.mxu0 0.0
        %5635 = vmatpush.msra.mxu0 %v2319
        %5636 = vmatpush.msra.mxu0 %v2316
        %5637 = vmatmul.f32.gmra.mxu0 %v5619
        %v5638 = vpop.f32.mrf.mxu0
        %v5639 = vadd.f32 0.0, %v5638
        %5640 = vdwg.mxu0
        %5641 = vmatpush.msra.mxu0 0.0
        %5642 = vmatpush.msra.mxu0 0.0
        %5643 = vmatpush.msra.mxu0 0.0
        %5644 = vmatpush.msra.mxu0 0.0
        %5645 = vmatpush.msra.mxu0 0.0
        %5646 = vmatpush.msra.mxu0 0.0
        %5647 = vmatpush.msra.mxu0 0.0
        %5648 = vmatpush.msra.mxu0 0.0
        %5649 = vmatpush.msra.mxu0 0.0
        %5650 = vmatpush.msra.mxu0 0.0
        %5651 = vmatpush.msra.mxu0 0.0
        %5652 = vmatpush.msra.mxu0 0.0
        %5653 = vmatpush.msra.mxu0 0.0
        %5654 = vmatpush.msra.mxu0 0.0
        %5655 = vmatpush.msra.mxu0 %v2737
        %5656 = vmatpush.msra.mxu0 %v2734
        %5657 = vmatmul.f32.gmra.mxu0 %v5619
        %v5658 = vpop.f32.mrf.mxu0
        %v5659 = vadd.f32 0.0, %v5658
        %5660 = vdwg.mxu0
        %v5662 = vsel %vm4419, %v4887, 0
        %5664 = vmatpush.msra.mxu0 0.0
        %5665 = vmatpush.msra.mxu0 0.0
        %5666 = vmatpush.msra.mxu0 0.0
        %5667 = vmatpush.msra.mxu0 0.0
        %5668 = vmatpush.msra.mxu0 0.0
        %5669 = vmatpush.msra.mxu0 0.0
        %5670 = vmatpush.msra.mxu0 0.0
        %5671 = vmatpush.msra.mxu0 0.0
        %5672 = vmatpush.msra.mxu0 0.0
        %5673 = vmatpush.msra.mxu0 0.0
        %5674 = vmatpush.msra.mxu0 0.0
        %5675 = vmatpush.msra.mxu0 0.0
        %5676 = vmatpush.msra.mxu0 0.0
        %5677 = vmatpush.msra.mxu0 0.0
        %5678 = vmatpush.msra.mxu0 %v2325
        %5679 = vmatpush.msra.mxu0 %v2322
        %5680 = vmatmul.f32.gmra.mxu0 %v5662
        %v5681 = vpop.f32.mrf.mxu0
        %v5682 = vadd.f32 0.0, %v5681
        %5683 = vdwg.mxu0
        %5684 = vmatpush.msra.mxu0 0.0
        %5685 = vmatpush.msra.mxu0 0.0
        %5686 = vmatpush.msra.mxu0 0.0
        %5687 = vmatpush.msra.mxu0 0.0
        %5688 = vmatpush.msra.mxu0 0.0
        %5689 = vmatpush.msra.mxu0 0.0
        %5690 = vmatpush.msra.mxu0 0.0
        %5691 = vmatpush.msra.mxu0 0.0
        %5692 = vmatpush.msra.mxu0 0.0
        %5693 = vmatpush.msra.mxu0 0.0
        %5694 = vmatpush.msra.mxu0 0.0
        %5695 = vmatpush.msra.mxu0 0.0
        %5696 = vmatpush.msra.mxu0 0.0
        %5697 = vmatpush.msra.mxu0 0.0
        %5698 = vmatpush.msra.mxu0 %v2743
        %5699 = vmatpush.msra.mxu0 %v2740
        %5700 = vmatmul.f32.gmra.mxu0 %v5662
        %v5701 = vpop.f32.mrf.mxu0
        %v5702 = vadd.f32 0.0, %v5701
        %5703 = vdwg.mxu0
        %v5705 = vsel %vm4419, %v4902, 0
        %5707 = vmatpush.msra.mxu0 0.0
        %5708 = vmatpush.msra.mxu0 0.0
        %5709 = vmatpush.msra.mxu0 0.0
        %5710 = vmatpush.msra.mxu0 0.0
        %5711 = vmatpush.msra.mxu0 0.0
        %5712 = vmatpush.msra.mxu0 0.0
        %5713 = vmatpush.msra.mxu0 0.0
        %5714 = vmatpush.msra.mxu0 0.0
        %5715 = vmatpush.msra.mxu0 0.0
        %5716 = vmatpush.msra.mxu0 0.0
        %5717 = vmatpush.msra.mxu0 0.0
        %5718 = vmatpush.msra.mxu0 0.0
        %5719 = vmatpush.msra.mxu0 0.0
        %5720 = vmatpush.msra.mxu0 0.0
        %5721 = vmatpush.msra.mxu0 %v2331
        %5722 = vmatpush.msra.mxu0 %v2328
        %5723 = vmatmul.f32.gmra.mxu0 %v5705
        %v5724 = vpop.f32.mrf.mxu0
        %v5725 = vadd.f32 0.0, %v5724
        %5726 = vdwg.mxu0
        %5727 = vmatpush.msra.mxu0 0.0
        %5728 = vmatpush.msra.mxu0 0.0
        %5729 = vmatpush.msra.mxu0 0.0
        %5730 = vmatpush.msra.mxu0 0.0
        %5731 = vmatpush.msra.mxu0 0.0
        %5732 = vmatpush.msra.mxu0 0.0
        %5733 = vmatpush.msra.mxu0 0.0
        %5734 = vmatpush.msra.mxu0 0.0
        %5735 = vmatpush.msra.mxu0 0.0
        %5736 = vmatpush.msra.mxu0 0.0
        %5737 = vmatpush.msra.mxu0 0.0
        %5738 = vmatpush.msra.mxu0 0.0
        %5739 = vmatpush.msra.mxu0 0.0
        %5740 = vmatpush.msra.mxu0 0.0
        %5741 = vmatpush.msra.mxu0 %v2749
        %5742 = vmatpush.msra.mxu0 %v2746
        %5743 = vmatmul.f32.gmra.mxu0 %v5705
        %v5744 = vpop.f32.mrf.mxu0
        %v5745 = vadd.f32 0.0, %v5744
        %5746 = vdwg.mxu0
        %v5748 = vsel %vm4419, %v4917, 0
        %5750 = vmatpush.msra.mxu0 0.0
        %5751 = vmatpush.msra.mxu0 0.0
        %5752 = vmatpush.msra.mxu0 0.0
        %5753 = vmatpush.msra.mxu0 0.0
        %5754 = vmatpush.msra.mxu0 0.0
        %5755 = vmatpush.msra.mxu0 0.0
        %5756 = vmatpush.msra.mxu0 0.0
        %5757 = vmatpush.msra.mxu0 0.0
        %5758 = vmatpush.msra.mxu0 0.0
        %5759 = vmatpush.msra.mxu0 0.0
        %5760 = vmatpush.msra.mxu0 0.0
        %5761 = vmatpush.msra.mxu0 0.0
        %5762 = vmatpush.msra.mxu0 0.0
        %5763 = vmatpush.msra.mxu0 0.0
        %5764 = vmatpush.msra.mxu0 %v2337
        %5765 = vmatpush.msra.mxu0 %v2334
        %5766 = vmatmul.f32.gmra.mxu0 %v5748
        %v5767 = vpop.f32.mrf.mxu0
        %v5768 = vadd.f32 0.0, %v5767
        %5769 = vdwg.mxu0
        %5770 = vmatpush.msra.mxu0 0.0
        %5771 = vmatpush.msra.mxu0 0.0
        %5772 = vmatpush.msra.mxu0 0.0
        %5773 = vmatpush.msra.mxu0 0.0
        %5774 = vmatpush.msra.mxu0 0.0
        %5775 = vmatpush.msra.mxu0 0.0
        %5776 = vmatpush.msra.mxu0 0.0
        %5777 = vmatpush.msra.mxu0 0.0
        %5778 = vmatpush.msra.mxu0 0.0
        %5779 = vmatpush.msra.mxu0 0.0
        %5780 = vmatpush.msra.mxu0 0.0
        %5781 = vmatpush.msra.mxu0 0.0
        %5782 = vmatpush.msra.mxu0 0.0
        %5783 = vmatpush.msra.mxu0 0.0
        %5784 = vmatpush.msra.mxu0 %v2755
        %5785 = vmatpush.msra.mxu0 %v2752
        %5786 = vmatmul.f32.gmra.mxu0 %v5748
        %v5787 = vpop.f32.mrf.mxu0
        %v5788 = vadd.f32 0.0, %v5787
        %5789 = vdwg.mxu0
        %v5791 = vsel %vm4419, %v4932, 0
        %5793 = vmatpush.msra.mxu0 0.0
        %5794 = vmatpush.msra.mxu0 0.0
        %5795 = vmatpush.msra.mxu0 0.0
        %5796 = vmatpush.msra.mxu0 0.0
        %5797 = vmatpush.msra.mxu0 0.0
        %5798 = vmatpush.msra.mxu0 0.0
        %5799 = vmatpush.msra.mxu0 0.0
        %5800 = vmatpush.msra.mxu0 0.0
        %5801 = vmatpush.msra.mxu0 0.0
        %5802 = vmatpush.msra.mxu0 0.0
        %5803 = vmatpush.msra.mxu0 0.0
        %5804 = vmatpush.msra.mxu0 0.0
        %5805 = vmatpush.msra.mxu0 0.0
        %5806 = vmatpush.msra.mxu0 0.0
        %5807 = vmatpush.msra.mxu0 %v2343
        %5808 = vmatpush.msra.mxu0 %v2340
        %5809 = vmatmul.f32.gmra.mxu0 %v5791
        %v5810 = vpop.f32.mrf.mxu0
        %v5811 = vadd.f32 0.0, %v5810
        %5812 = vdwg.mxu0
        %5813 = vmatpush.msra.mxu0 0.0
        %5814 = vmatpush.msra.mxu0 0.0
        %5815 = vmatpush.msra.mxu0 0.0
        %5816 = vmatpush.msra.mxu0 0.0
        %5817 = vmatpush.msra.mxu0 0.0
        %5818 = vmatpush.msra.mxu0 0.0
        %5819 = vmatpush.msra.mxu0 0.0
        %5820 = vmatpush.msra.mxu0 0.0
        %5821 = vmatpush.msra.mxu0 0.0
        %5822 = vmatpush.msra.mxu0 0.0
        %5823 = vmatpush.msra.mxu0 0.0
        %5824 = vmatpush.msra.mxu0 0.0
        %5825 = vmatpush.msra.mxu0 0.0
        %5826 = vmatpush.msra.mxu0 0.0
        %5827 = vmatpush.msra.mxu0 %v2761
        %5828 = vmatpush.msra.mxu0 %v2758
        %5829 = vmatmul.f32.gmra.mxu0 %v5791
        %v5830 = vpop.f32.mrf.mxu0
        %v5831 = vadd.f32 0.0, %v5830
        %5832 = vdwg.mxu0
        %v5834 = vsel %vm4419, %v4947, 0
        %5836 = vmatpush.msra.mxu0 0.0
        %5837 = vmatpush.msra.mxu0 0.0
        %5838 = vmatpush.msra.mxu0 0.0
        %5839 = vmatpush.msra.mxu0 0.0
        %5840 = vmatpush.msra.mxu0 0.0
        %5841 = vmatpush.msra.mxu0 0.0
        %5842 = vmatpush.msra.mxu0 0.0
        %5843 = vmatpush.msra.mxu0 0.0
        %5844 = vmatpush.msra.mxu0 0.0
        %5845 = vmatpush.msra.mxu0 0.0
        %5846 = vmatpush.msra.mxu0 0.0
        %5847 = vmatpush.msra.mxu0 0.0
        %5848 = vmatpush.msra.mxu0 0.0
        %5849 = vmatpush.msra.mxu0 0.0
        %5850 = vmatpush.msra.mxu0 %v2349
        %5851 = vmatpush.msra.mxu0 %v2346
        %5852 = vmatmul.f32.gmra.mxu0 %v5834
        %v5853 = vpop.f32.mrf.mxu0
        %v5854 = vadd.f32 0.0, %v5853
        %5855 = vdwg.mxu0
        %5856 = vmatpush.msra.mxu0 0.0
        %5857 = vmatpush.msra.mxu0 0.0
        %5858 = vmatpush.msra.mxu0 0.0
        %5859 = vmatpush.msra.mxu0 0.0
        %5860 = vmatpush.msra.mxu0 0.0
        %5861 = vmatpush.msra.mxu0 0.0
        %5862 = vmatpush.msra.mxu0 0.0
        %5863 = vmatpush.msra.mxu0 0.0
        %5864 = vmatpush.msra.mxu0 0.0
        %5865 = vmatpush.msra.mxu0 0.0
        %5866 = vmatpush.msra.mxu0 0.0
        %5867 = vmatpush.msra.mxu0 0.0
        %5868 = vmatpush.msra.mxu0 0.0
        %5869 = vmatpush.msra.mxu0 0.0
        %5870 = vmatpush.msra.mxu0 %v2767
        %5871 = vmatpush.msra.mxu0 %v2764
        %5872 = vmatmul.f32.gmra.mxu0 %v5834
        %v5873 = vpop.f32.mrf.mxu0
        %v5874 = vadd.f32 0.0, %v5873
        %5875 = vdwg.mxu0
        %v5877 = vsel %vm4419, %v4962, 0
        %5879 = vmatpush.msra.mxu0 0.0
        %5880 = vmatpush.msra.mxu0 0.0
        %5881 = vmatpush.msra.mxu0 0.0
        %5882 = vmatpush.msra.mxu0 0.0
        %5883 = vmatpush.msra.mxu0 0.0
        %5884 = vmatpush.msra.mxu0 0.0
        %5885 = vmatpush.msra.mxu0 0.0
        %5886 = vmatpush.msra.mxu0 0.0
        %5887 = vmatpush.msra.mxu0 0.0
        %5888 = vmatpush.msra.mxu0 0.0
        %5889 = vmatpush.msra.mxu0 0.0
        %5890 = vmatpush.msra.mxu0 0.0
        %5891 = vmatpush.msra.mxu0 0.0
        %5892 = vmatpush.msra.mxu0 0.0
        %5893 = vmatpush.msra.mxu0 %v2355
        %5894 = vmatpush.msra.mxu0 %v2352
        %5895 = vmatmul.f32.gmra.mxu0 %v5877
        %v5896 = vpop.f32.mrf.mxu0
        %v5897 = vadd.f32 0.0, %v5896
        %5898 = vdwg.mxu0
        %5899 = vmatpush.msra.mxu0 0.0
        %5900 = vmatpush.msra.mxu0 0.0
        %5901 = vmatpush.msra.mxu0 0.0
        %5902 = vmatpush.msra.mxu0 0.0
        %5903 = vmatpush.msra.mxu0 0.0
        %5904 = vmatpush.msra.mxu0 0.0
        %5905 = vmatpush.msra.mxu0 0.0
        %5906 = vmatpush.msra.mxu0 0.0
        %5907 = vmatpush.msra.mxu0 0.0
        %5908 = vmatpush.msra.mxu0 0.0
        %5909 = vmatpush.msra.mxu0 0.0
        %5910 = vmatpush.msra.mxu0 0.0
        %5911 = vmatpush.msra.mxu0 0.0
        %5912 = vmatpush.msra.mxu0 0.0
        %5913 = vmatpush.msra.mxu0 %v2773
        %5914 = vmatpush.msra.mxu0 %v2770
        %5915 = vmatmul.f32.gmra.mxu0 %v5877
        %v5916 = vpop.f32.mrf.mxu0
        %v5917 = vadd.f32 0.0, %v5916
        %5918 = vdwg.mxu0
        %v5920 = vsel %vm4419, %v4977, 0
        %5922 = vmatpush.msra.mxu0 0.0
        %5923 = vmatpush.msra.mxu0 0.0
        %5924 = vmatpush.msra.mxu0 0.0
        %5925 = vmatpush.msra.mxu0 0.0
        %5926 = vmatpush.msra.mxu0 0.0
        %5927 = vmatpush.msra.mxu0 0.0
        %5928 = vmatpush.msra.mxu0 0.0
        %5929 = vmatpush.msra.mxu0 0.0
        %5930 = vmatpush.msra.mxu0 0.0
        %5931 = vmatpush.msra.mxu0 0.0
        %5932 = vmatpush.msra.mxu0 0.0
        %5933 = vmatpush.msra.mxu0 0.0
        %5934 = vmatpush.msra.mxu0 0.0
        %5935 = vmatpush.msra.mxu0 0.0
        %5936 = vmatpush.msra.mxu0 %v2361
        %5937 = vmatpush.msra.mxu0 %v2358
        %5938 = vmatmul.f32.gmra.mxu0 %v5920
        %v5939 = vpop.f32.mrf.mxu0
        %v5940 = vadd.f32 0.0, %v5939
        %5941 = vdwg.mxu0
        %5942 = vmatpush.msra.mxu0 0.0
        %5943 = vmatpush.msra.mxu0 0.0
        %5944 = vmatpush.msra.mxu0 0.0
        %5945 = vmatpush.msra.mxu0 0.0
        %5946 = vmatpush.msra.mxu0 0.0
        %5947 = vmatpush.msra.mxu0 0.0
        %5948 = vmatpush.msra.mxu0 0.0
        %5949 = vmatpush.msra.mxu0 0.0
        %5950 = vmatpush.msra.mxu0 0.0
        %5951 = vmatpush.msra.mxu0 0.0
        %5952 = vmatpush.msra.mxu0 0.0
        %5953 = vmatpush.msra.mxu0 0.0
        %5954 = vmatpush.msra.mxu0 0.0
        %5955 = vmatpush.msra.mxu0 0.0
        %5956 = vmatpush.msra.mxu0 %v2779
        %5957 = vmatpush.msra.mxu0 %v2776
        %5958 = vmatmul.f32.gmra.mxu0 %v5920
        %v5959 = vpop.f32.mrf.mxu0
        %v5960 = vadd.f32 0.0, %v5959
        %5961 = vdwg.mxu0
        %v5963 = vsel %vm4419, %v4992, 0
        %5965 = vmatpush.msra.mxu0 0.0
        %5966 = vmatpush.msra.mxu0 0.0
        %5967 = vmatpush.msra.mxu0 0.0
        %5968 = vmatpush.msra.mxu0 0.0
        %5969 = vmatpush.msra.mxu0 0.0
        %5970 = vmatpush.msra.mxu0 0.0
        %5971 = vmatpush.msra.mxu0 0.0
        %5972 = vmatpush.msra.mxu0 0.0
        %5973 = vmatpush.msra.mxu0 0.0
        %5974 = vmatpush.msra.mxu0 0.0
        %5975 = vmatpush.msra.mxu0 0.0
        %5976 = vmatpush.msra.mxu0 0.0
        %5977 = vmatpush.msra.mxu0 0.0
        %5978 = vmatpush.msra.mxu0 0.0
        %5979 = vmatpush.msra.mxu0 %v2367
        %5980 = vmatpush.msra.mxu0 %v2364
        %5981 = vmatmul.f32.gmra.mxu0 %v5963
        %v5982 = vpop.f32.mrf.mxu0
        %v5983 = vadd.f32 0.0, %v5982
        %5984 = vdwg.mxu0
        %5985 = vmatpush.msra.mxu0 0.0
        %5986 = vmatpush.msra.mxu0 0.0
        %5987 = vmatpush.msra.mxu0 0.0
        %5988 = vmatpush.msra.mxu0 0.0
        %5989 = vmatpush.msra.mxu0 0.0
        %5990 = vmatpush.msra.mxu0 0.0
        %5991 = vmatpush.msra.mxu0 0.0
        %5992 = vmatpush.msra.mxu0 0.0
        %5993 = vmatpush.msra.mxu0 0.0
        %5994 = vmatpush.msra.mxu0 0.0
        %5995 = vmatpush.msra.mxu0 0.0
        %5996 = vmatpush.msra.mxu0 0.0
        %5997 = vmatpush.msra.mxu0 0.0
        %5998 = vmatpush.msra.mxu0 0.0
        %5999 = vmatpush.msra.mxu0 %v2785
        %6000 = vmatpush.msra.mxu0 %v2782
        %6001 = vmatmul.f32.gmra.mxu0 %v5963
        %v6002 = vpop.f32.mrf.mxu0
        %v6003 = vadd.f32 0.0, %v6002
        %6004 = vdwg.mxu0
        %v6006 = vsel %vm4419, %v5007, 0
        %6008 = vmatpush.msra.mxu0 0.0
        %6009 = vmatpush.msra.mxu0 0.0
        %6010 = vmatpush.msra.mxu0 0.0
        %6011 = vmatpush.msra.mxu0 0.0
        %6012 = vmatpush.msra.mxu0 0.0
        %6013 = vmatpush.msra.mxu0 0.0
        %6014 = vmatpush.msra.mxu0 0.0
        %6015 = vmatpush.msra.mxu0 0.0
        %6016 = vmatpush.msra.mxu0 0.0
        %6017 = vmatpush.msra.mxu0 0.0
        %6018 = vmatpush.msra.mxu0 0.0
        %6019 = vmatpush.msra.mxu0 0.0
        %6020 = vmatpush.msra.mxu0 0.0
        %6021 = vmatpush.msra.mxu0 0.0
        %6022 = vmatpush.msra.mxu0 %v2373
        %6023 = vmatpush.msra.mxu0 %v2370
        %6024 = vmatmul.f32.gmra.mxu0 %v6006
        %v6025 = vpop.f32.mrf.mxu0
        %v6026 = vadd.f32 0.0, %v6025
        %6027 = vdwg.mxu0
        %6028 = vmatpush.msra.mxu0 0.0
        %6029 = vmatpush.msra.mxu0 0.0
        %6030 = vmatpush.msra.mxu0 0.0
        %6031 = vmatpush.msra.mxu0 0.0
        %6032 = vmatpush.msra.mxu0 0.0
        %6033 = vmatpush.msra.mxu0 0.0
        %6034 = vmatpush.msra.mxu0 0.0
        %6035 = vmatpush.msra.mxu0 0.0
        %6036 = vmatpush.msra.mxu0 0.0
        %6037 = vmatpush.msra.mxu0 0.0
        %6038 = vmatpush.msra.mxu0 0.0
        %6039 = vmatpush.msra.mxu0 0.0
        %6040 = vmatpush.msra.mxu0 0.0
        %6041 = vmatpush.msra.mxu0 0.0
        %6042 = vmatpush.msra.mxu0 %v2791
        %6043 = vmatpush.msra.mxu0 %v2788
        %6044 = vmatmul.f32.gmra.mxu0 %v6006
        %v6045 = vpop.f32.mrf.mxu0
        %v6046 = vadd.f32 0.0, %v6045
        %6047 = vdwg.mxu0
        %v6049 = vsel %vm4419, %v5022, 0
        %6051 = vmatpush.msra.mxu0 0.0
        %6052 = vmatpush.msra.mxu0 0.0
        %6053 = vmatpush.msra.mxu0 0.0
        %6054 = vmatpush.msra.mxu0 0.0
        %6055 = vmatpush.msra.mxu0 0.0
        %6056 = vmatpush.msra.mxu0 0.0
        %6057 = vmatpush.msra.mxu0 0.0
        %6058 = vmatpush.msra.mxu0 0.0
        %6059 = vmatpush.msra.mxu0 0.0
        %6060 = vmatpush.msra.mxu0 0.0
        %6061 = vmatpush.msra.mxu0 0.0
        %6062 = vmatpush.msra.mxu0 0.0
        %6063 = vmatpush.msra.mxu0 0.0
        %6064 = vmatpush.msra.mxu0 0.0
        %6065 = vmatpush.msra.mxu0 %v2379
        %6066 = vmatpush.msra.mxu0 %v2376
        %6067 = vmatmul.f32.gmra.mxu0 %v6049
        %v6068 = vpop.f32.mrf.mxu0
        %v6069 = vadd.f32 0.0, %v6068
        %6070 = vdwg.mxu0
        %6071 = vmatpush.msra.mxu0 0.0
        %6072 = vmatpush.msra.mxu0 0.0
        %6073 = vmatpush.msra.mxu0 0.0
        %6074 = vmatpush.msra.mxu0 0.0
        %6075 = vmatpush.msra.mxu0 0.0
        %6076 = vmatpush.msra.mxu0 0.0
        %6077 = vmatpush.msra.mxu0 0.0
        %6078 = vmatpush.msra.mxu0 0.0
        %6079 = vmatpush.msra.mxu0 0.0
        %6080 = vmatpush.msra.mxu0 0.0
        %6081 = vmatpush.msra.mxu0 0.0
        %6082 = vmatpush.msra.mxu0 0.0
        %6083 = vmatpush.msra.mxu0 0.0
        %6084 = vmatpush.msra.mxu0 0.0
        %6085 = vmatpush.msra.mxu0 %v2797
        %6086 = vmatpush.msra.mxu0 %v2794
        %6087 = vmatmul.f32.gmra.mxu0 %v6049
        %v6088 = vpop.f32.mrf.mxu0
        %v6089 = vadd.f32 0.0, %v6088
        %6090 = vdwg.mxu0
        %v6092 = vsel %vm4419, %v5037, 0
        %6094 = vmatpush.msra.mxu0 0.0
        %6095 = vmatpush.msra.mxu0 0.0
        %6096 = vmatpush.msra.mxu0 0.0
        %6097 = vmatpush.msra.mxu0 0.0
        %6098 = vmatpush.msra.mxu0 0.0
        %6099 = vmatpush.msra.mxu0 0.0
        %6100 = vmatpush.msra.mxu0 0.0
        %6101 = vmatpush.msra.mxu0 0.0
        %6102 = vmatpush.msra.mxu0 0.0
        %6103 = vmatpush.msra.mxu0 0.0
        %6104 = vmatpush.msra.mxu0 0.0
        %6105 = vmatpush.msra.mxu0 0.0
        %6106 = vmatpush.msra.mxu0 0.0
        %6107 = vmatpush.msra.mxu0 0.0
        %6108 = vmatpush.msra.mxu0 %v2385
        %6109 = vmatpush.msra.mxu0 %v2382
        %6110 = vmatmul.f32.gmra.mxu0 %v6092
        %v6111 = vpop.f32.mrf.mxu0
        %v6112 = vadd.f32 0.0, %v6111
        %6113 = vdwg.mxu0
        %6114 = vmatpush.msra.mxu0 0.0
        %6115 = vmatpush.msra.mxu0 0.0
        %6116 = vmatpush.msra.mxu0 0.0
        %6117 = vmatpush.msra.mxu0 0.0
        %6118 = vmatpush.msra.mxu0 0.0
        %6119 = vmatpush.msra.mxu0 0.0
        %6120 = vmatpush.msra.mxu0 0.0
        %6121 = vmatpush.msra.mxu0 0.0
        %6122 = vmatpush.msra.mxu0 0.0
        %6123 = vmatpush.msra.mxu0 0.0
        %6124 = vmatpush.msra.mxu0 0.0
        %6125 = vmatpush.msra.mxu0 0.0
        %6126 = vmatpush.msra.mxu0 0.0
        %6127 = vmatpush.msra.mxu0 0.0
        %6128 = vmatpush.msra.mxu0 %v2803
        %6129 = vmatpush.msra.mxu0 %v2800
        %6130 = vmatmul.f32.gmra.mxu0 %v6092
        %v6131 = vpop.f32.mrf.mxu0
        %v6132 = vadd.f32 0.0, %v6131
        %6133 = vdwg.mxu0
        %v6135 = vsel %vm4419, %v5052, 0
        %6137 = vmatpush.msra.mxu0 0.0
        %6138 = vmatpush.msra.mxu0 0.0
        %6139 = vmatpush.msra.mxu0 0.0
        %6140 = vmatpush.msra.mxu0 0.0
        %6141 = vmatpush.msra.mxu0 0.0
        %6142 = vmatpush.msra.mxu0 0.0
        %6143 = vmatpush.msra.mxu0 0.0
        %6144 = vmatpush.msra.mxu0 0.0
        %6145 = vmatpush.msra.mxu0 0.0
        %6146 = vmatpush.msra.mxu0 0.0
        %6147 = vmatpush.msra.mxu0 0.0
        %6148 = vmatpush.msra.mxu0 0.0
        %6149 = vmatpush.msra.mxu0 0.0
        %6150 = vmatpush.msra.mxu0 0.0
        %6151 = vmatpush.msra.mxu0 %v2391
        %6152 = vmatpush.msra.mxu0 %v2388
        %6153 = vmatmul.f32.gmra.mxu0 %v6135
        %v6154 = vpop.f32.mrf.mxu0
        %v6155 = vadd.f32 0.0, %v6154
        %6156 = vdwg.mxu0
        %6157 = vmatpush.msra.mxu0 0.0
        %6158 = vmatpush.msra.mxu0 0.0
        %6159 = vmatpush.msra.mxu0 0.0
        %6160 = vmatpush.msra.mxu0 0.0
        %6161 = vmatpush.msra.mxu0 0.0
        %6162 = vmatpush.msra.mxu0 0.0
        %6163 = vmatpush.msra.mxu0 0.0
        %6164 = vmatpush.msra.mxu0 0.0
        %6165 = vmatpush.msra.mxu0 0.0
        %6166 = vmatpush.msra.mxu0 0.0
        %6167 = vmatpush.msra.mxu0 0.0
        %6168 = vmatpush.msra.mxu0 0.0
        %6169 = vmatpush.msra.mxu0 0.0
        %6170 = vmatpush.msra.mxu0 0.0
        %6171 = vmatpush.msra.mxu0 %v2809
        %6172 = vmatpush.msra.mxu0 %v2806
        %6173 = vmatmul.f32.gmra.mxu0 %v6135
        %v6174 = vpop.f32.mrf.mxu0
        %v6175 = vadd.f32 0.0, %v6174
        %6176 = vdwg.mxu0
        %v6178 = vsel %vm4419, %v5067, 0
        %6180 = vmatpush.msra.mxu0 0.0
        %6181 = vmatpush.msra.mxu0 0.0
        %6182 = vmatpush.msra.mxu0 0.0
        %6183 = vmatpush.msra.mxu0 0.0
        %6184 = vmatpush.msra.mxu0 0.0
        %6185 = vmatpush.msra.mxu0 0.0
        %6186 = vmatpush.msra.mxu0 0.0
        %6187 = vmatpush.msra.mxu0 0.0
        %6188 = vmatpush.msra.mxu0 0.0
        %6189 = vmatpush.msra.mxu0 0.0
        %6190 = vmatpush.msra.mxu0 0.0
        %6191 = vmatpush.msra.mxu0 0.0
        %6192 = vmatpush.msra.mxu0 0.0
        %6193 = vmatpush.msra.mxu0 0.0
        %6194 = vmatpush.msra.mxu0 %v2397
        %6195 = vmatpush.msra.mxu0 %v2394
        %6196 = vmatmul.f32.gmra.mxu0 %v6178
        %v6197 = vpop.f32.mrf.mxu0
        %v6198 = vadd.f32 0.0, %v6197
        %6199 = vdwg.mxu0
        %6200 = vmatpush.msra.mxu0 0.0
        %6201 = vmatpush.msra.mxu0 0.0
        %6202 = vmatpush.msra.mxu0 0.0
        %6203 = vmatpush.msra.mxu0 0.0
        %6204 = vmatpush.msra.mxu0 0.0
        %6205 = vmatpush.msra.mxu0 0.0
        %6206 = vmatpush.msra.mxu0 0.0
        %6207 = vmatpush.msra.mxu0 0.0
        %6208 = vmatpush.msra.mxu0 0.0
        %6209 = vmatpush.msra.mxu0 0.0
        %6210 = vmatpush.msra.mxu0 0.0
        %6211 = vmatpush.msra.mxu0 0.0
        %6212 = vmatpush.msra.mxu0 0.0
        %6213 = vmatpush.msra.mxu0 0.0
        %6214 = vmatpush.msra.mxu0 %v2815
        %6215 = vmatpush.msra.mxu0 %v2812
        %6216 = vmatmul.f32.gmra.mxu0 %v6178
        %v6217 = vpop.f32.mrf.mxu0
        %v6218 = vadd.f32 0.0, %v6217
        %6219 = vdwg.mxu0
        %v6221 = vsel %vm4419, %v5082, 0
        %6223 = vmatpush.msra.mxu0 0.0
        %6224 = vmatpush.msra.mxu0 0.0
        %6225 = vmatpush.msra.mxu0 0.0
        %6226 = vmatpush.msra.mxu0 0.0
        %6227 = vmatpush.msra.mxu0 0.0
        %6228 = vmatpush.msra.mxu0 0.0
        %6229 = vmatpush.msra.mxu0 0.0
        %6230 = vmatpush.msra.mxu0 0.0
        %6231 = vmatpush.msra.mxu0 0.0
        %6232 = vmatpush.msra.mxu0 0.0
        %6233 = vmatpush.msra.mxu0 0.0
        %6234 = vmatpush.msra.mxu0 0.0
        %6235 = vmatpush.msra.mxu0 0.0
        %6236 = vmatpush.msra.mxu0 0.0
        %6237 = vmatpush.msra.mxu0 %v2403
        %6238 = vmatpush.msra.mxu0 %v2400
        %6239 = vmatmul.f32.gmra.mxu0 %v6221
        %v6240 = vpop.f32.mrf.mxu0
        %v6241 = vadd.f32 0.0, %v6240
        %6242 = vdwg.mxu0
        %6243 = vmatpush.msra.mxu0 0.0
        %6244 = vmatpush.msra.mxu0 0.0
        %6245 = vmatpush.msra.mxu0 0.0
        %6246 = vmatpush.msra.mxu0 0.0
        %6247 = vmatpush.msra.mxu0 0.0
        %6248 = vmatpush.msra.mxu0 0.0
        %6249 = vmatpush.msra.mxu0 0.0
        %6250 = vmatpush.msra.mxu0 0.0
        %6251 = vmatpush.msra.mxu0 0.0
        %6252 = vmatpush.msra.mxu0 0.0
        %6253 = vmatpush.msra.mxu0 0.0
        %6254 = vmatpush.msra.mxu0 0.0
        %6255 = vmatpush.msra.mxu0 0.0
        %6256 = vmatpush.msra.mxu0 0.0
        %6257 = vmatpush.msra.mxu0 %v2821
        %6258 = vmatpush.msra.mxu0 %v2818
        %6259 = vmatmul.f32.gmra.mxu0 %v6221
        %v6260 = vpop.f32.mrf.mxu0
        %v6261 = vadd.f32 0.0, %v6260
        %6262 = vdwg.mxu0
        %v6264 = vsel %vm4419, %v5097, 0
        %6266 = vmatpush.msra.mxu0 0.0
        %6267 = vmatpush.msra.mxu0 0.0
        %6268 = vmatpush.msra.mxu0 0.0
        %6269 = vmatpush.msra.mxu0 0.0
        %6270 = vmatpush.msra.mxu0 0.0
        %6271 = vmatpush.msra.mxu0 0.0
        %6272 = vmatpush.msra.mxu0 0.0
        %6273 = vmatpush.msra.mxu0 0.0
        %6274 = vmatpush.msra.mxu0 0.0
        %6275 = vmatpush.msra.mxu0 0.0
        %6276 = vmatpush.msra.mxu0 0.0
        %6277 = vmatpush.msra.mxu0 0.0
        %6278 = vmatpush.msra.mxu0 0.0
        %6279 = vmatpush.msra.mxu0 0.0
        %6280 = vmatpush.msra.mxu0 %v2409
        %6281 = vmatpush.msra.mxu0 %v2406
        %6282 = vmatmul.f32.gmra.mxu0 %v6264
        %v6283 = vpop.f32.mrf.mxu0
        %v6284 = vadd.f32 0.0, %v6283
        %6285 = vdwg.mxu0
        %6286 = vmatpush.msra.mxu0 0.0
        %6287 = vmatpush.msra.mxu0 0.0
        %6288 = vmatpush.msra.mxu0 0.0
        %6289 = vmatpush.msra.mxu0 0.0
        %6290 = vmatpush.msra.mxu0 0.0
        %6291 = vmatpush.msra.mxu0 0.0
        %6292 = vmatpush.msra.mxu0 0.0
        %6293 = vmatpush.msra.mxu0 0.0
        %6294 = vmatpush.msra.mxu0 0.0
        %6295 = vmatpush.msra.mxu0 0.0
        %6296 = vmatpush.msra.mxu0 0.0
        %6297 = vmatpush.msra.mxu0 0.0
        %6298 = vmatpush.msra.mxu0 0.0
        %6299 = vmatpush.msra.mxu0 0.0
        %6300 = vmatpush.msra.mxu0 %v2827
        %6301 = vmatpush.msra.mxu0 %v2824
        %6302 = vmatmul.f32.gmra.mxu0 %v6264
        %v6303 = vpop.f32.mrf.mxu0
        %v6304 = vadd.f32 0.0, %v6303
        %6305 = vdwg.mxu0
        %v6307 = vsel %vm4419, %v5112, 0
        %6309 = vmatpush.msra.mxu0 0.0
        %6310 = vmatpush.msra.mxu0 0.0
        %6311 = vmatpush.msra.mxu0 0.0
        %6312 = vmatpush.msra.mxu0 0.0
        %6313 = vmatpush.msra.mxu0 0.0
        %6314 = vmatpush.msra.mxu0 0.0
        %6315 = vmatpush.msra.mxu0 0.0
        %6316 = vmatpush.msra.mxu0 0.0
        %6317 = vmatpush.msra.mxu0 0.0
        %6318 = vmatpush.msra.mxu0 0.0
        %6319 = vmatpush.msra.mxu0 0.0
        %6320 = vmatpush.msra.mxu0 0.0
        %6321 = vmatpush.msra.mxu0 0.0
        %6322 = vmatpush.msra.mxu0 0.0
        %6323 = vmatpush.msra.mxu0 %v2415
        %6324 = vmatpush.msra.mxu0 %v2412
        %6325 = vmatmul.f32.gmra.mxu0 %v6307
        %v6326 = vpop.f32.mrf.mxu0
        %v6327 = vadd.f32 0.0, %v6326
        %6328 = vdwg.mxu0
        %6329 = vmatpush.msra.mxu0 0.0
        %6330 = vmatpush.msra.mxu0 0.0
        %6331 = vmatpush.msra.mxu0 0.0
        %6332 = vmatpush.msra.mxu0 0.0
        %6333 = vmatpush.msra.mxu0 0.0
        %6334 = vmatpush.msra.mxu0 0.0
        %6335 = vmatpush.msra.mxu0 0.0
        %6336 = vmatpush.msra.mxu0 0.0
        %6337 = vmatpush.msra.mxu0 0.0
        %6338 = vmatpush.msra.mxu0 0.0
        %6339 = vmatpush.msra.mxu0 0.0
        %6340 = vmatpush.msra.mxu0 0.0
        %6341 = vmatpush.msra.mxu0 0.0
        %6342 = vmatpush.msra.mxu0 0.0
        %6343 = vmatpush.msra.mxu0 %v2833
        %6344 = vmatpush.msra.mxu0 %v2830
        %6345 = vmatmul.f32.gmra.mxu0 %v6307
        %v6346 = vpop.f32.mrf.mxu0
        %v6347 = vadd.f32 0.0, %v6346
        %6348 = vdwg.mxu0
        %v6350 = vsel %vm4419, %v5127, 0
        %6352 = vmatpush.msra.mxu0 0.0
        %6353 = vmatpush.msra.mxu0 0.0
        %6354 = vmatpush.msra.mxu0 0.0
        %6355 = vmatpush.msra.mxu0 0.0
        %6356 = vmatpush.msra.mxu0 0.0
        %6357 = vmatpush.msra.mxu0 0.0
        %6358 = vmatpush.msra.mxu0 0.0
        %6359 = vmatpush.msra.mxu0 0.0
        %6360 = vmatpush.msra.mxu0 0.0
        %6361 = vmatpush.msra.mxu0 0.0
        %6362 = vmatpush.msra.mxu0 0.0
        %6363 = vmatpush.msra.mxu0 0.0
        %6364 = vmatpush.msra.mxu0 0.0
        %6365 = vmatpush.msra.mxu0 0.0
        %6366 = vmatpush.msra.mxu0 %v2421
        %6367 = vmatpush.msra.mxu0 %v2418
        %6368 = vmatmul.f32.gmra.mxu0 %v6350
        %v6369 = vpop.f32.mrf.mxu0
        %v6370 = vadd.f32 0.0, %v6369
        %6371 = vdwg.mxu0
        %6372 = vmatpush.msra.mxu0 0.0
        %6373 = vmatpush.msra.mxu0 0.0
        %6374 = vmatpush.msra.mxu0 0.0
        %6375 = vmatpush.msra.mxu0 0.0
        %6376 = vmatpush.msra.mxu0 0.0
        %6377 = vmatpush.msra.mxu0 0.0
        %6378 = vmatpush.msra.mxu0 0.0
        %6379 = vmatpush.msra.mxu0 0.0
        %6380 = vmatpush.msra.mxu0 0.0
        %6381 = vmatpush.msra.mxu0 0.0
        %6382 = vmatpush.msra.mxu0 0.0
        %6383 = vmatpush.msra.mxu0 0.0
        %6384 = vmatpush.msra.mxu0 0.0
        %6385 = vmatpush.msra.mxu0 0.0
        %6386 = vmatpush.msra.mxu0 %v2839
        %6387 = vmatpush.msra.mxu0 %v2836
        %6388 = vmatmul.f32.gmra.mxu0 %v6350
        %v6389 = vpop.f32.mrf.mxu0
        %v6390 = vadd.f32 0.0, %v6389
        %6391 = vdwg.mxu0
        %v6393 = vsel %vm4419, %v5142, 0
        %6395 = vmatpush.msra.mxu0 0.0
        %6396 = vmatpush.msra.mxu0 0.0
        %6397 = vmatpush.msra.mxu0 0.0
        %6398 = vmatpush.msra.mxu0 0.0
        %6399 = vmatpush.msra.mxu0 0.0
        %6400 = vmatpush.msra.mxu0 0.0
        %6401 = vmatpush.msra.mxu0 0.0
        %6402 = vmatpush.msra.mxu0 0.0
        %6403 = vmatpush.msra.mxu0 0.0
        %6404 = vmatpush.msra.mxu0 0.0
        %6405 = vmatpush.msra.mxu0 0.0
        %6406 = vmatpush.msra.mxu0 0.0
        %6407 = vmatpush.msra.mxu0 0.0
        %6408 = vmatpush.msra.mxu0 0.0
        %6409 = vmatpush.msra.mxu0 %v2427
        %6410 = vmatpush.msra.mxu0 %v2424
        %6411 = vmatmul.f32.gmra.mxu0 %v6393
        %v6412 = vpop.f32.mrf.mxu0
        %v6413 = vadd.f32 0.0, %v6412
        %6414 = vdwg.mxu0
        %6415 = vmatpush.msra.mxu0 0.0
        %6416 = vmatpush.msra.mxu0 0.0
        %6417 = vmatpush.msra.mxu0 0.0
        %6418 = vmatpush.msra.mxu0 0.0
        %6419 = vmatpush.msra.mxu0 0.0
        %6420 = vmatpush.msra.mxu0 0.0
        %6421 = vmatpush.msra.mxu0 0.0
        %6422 = vmatpush.msra.mxu0 0.0
        %6423 = vmatpush.msra.mxu0 0.0
        %6424 = vmatpush.msra.mxu0 0.0
        %6425 = vmatpush.msra.mxu0 0.0
        %6426 = vmatpush.msra.mxu0 0.0
        %6427 = vmatpush.msra.mxu0 0.0
        %6428 = vmatpush.msra.mxu0 0.0
        %6429 = vmatpush.msra.mxu0 %v2845
        %6430 = vmatpush.msra.mxu0 %v2842
        %6431 = vmatmul.f32.gmra.mxu0 %v6393
        %v6432 = vpop.f32.mrf.mxu0
        %v6433 = vadd.f32 0.0, %v6432
        %6434 = vdwg.mxu0
        %v6436 = vsel %vm4419, %v5157, 0
        %6438 = vmatpush.msra.mxu0 0.0
        %6439 = vmatpush.msra.mxu0 0.0
        %6440 = vmatpush.msra.mxu0 0.0
        %6441 = vmatpush.msra.mxu0 0.0
        %6442 = vmatpush.msra.mxu0 0.0
        %6443 = vmatpush.msra.mxu0 0.0
        %6444 = vmatpush.msra.mxu0 0.0
        %6445 = vmatpush.msra.mxu0 0.0
        %6446 = vmatpush.msra.mxu0 0.0
        %6447 = vmatpush.msra.mxu0 0.0
        %6448 = vmatpush.msra.mxu0 0.0
        %6449 = vmatpush.msra.mxu0 0.0
        %6450 = vmatpush.msra.mxu0 0.0
        %6451 = vmatpush.msra.mxu0 0.0
        %6452 = vmatpush.msra.mxu0 %v2433
        %6453 = vmatpush.msra.mxu0 %v2430
        %6454 = vmatmul.f32.gmra.mxu0 %v6436
        %v6455 = vpop.f32.mrf.mxu0
        %v6456 = vadd.f32 0.0, %v6455
        %6457 = vdwg.mxu0
        %6458 = vmatpush.msra.mxu0 0.0
        %6459 = vmatpush.msra.mxu0 0.0
        %6460 = vmatpush.msra.mxu0 0.0
        %6461 = vmatpush.msra.mxu0 0.0
        %6462 = vmatpush.msra.mxu0 0.0
        %6463 = vmatpush.msra.mxu0 0.0
        %6464 = vmatpush.msra.mxu0 0.0
        %6465 = vmatpush.msra.mxu0 0.0
        %6466 = vmatpush.msra.mxu0 0.0
        %6467 = vmatpush.msra.mxu0 0.0
        %6468 = vmatpush.msra.mxu0 0.0
        %6469 = vmatpush.msra.mxu0 0.0
        %6470 = vmatpush.msra.mxu0 0.0
        %6471 = vmatpush.msra.mxu0 0.0
        %6472 = vmatpush.msra.mxu0 %v2851
        %6473 = vmatpush.msra.mxu0 %v2848
        %6474 = vmatmul.f32.gmra.mxu0 %v6436
        %v6475 = vpop.f32.mrf.mxu0
        %v6476 = vadd.f32 0.0, %v6475
        %6477 = vdwg.mxu0
        %v6479 = vsel %vm4419, %v5172, 0
        %6481 = vmatpush.msra.mxu0 0.0
        %6482 = vmatpush.msra.mxu0 0.0
        %6483 = vmatpush.msra.mxu0 0.0
        %6484 = vmatpush.msra.mxu0 0.0
        %6485 = vmatpush.msra.mxu0 0.0
        %6486 = vmatpush.msra.mxu0 0.0
        %6487 = vmatpush.msra.mxu0 0.0
        %6488 = vmatpush.msra.mxu0 0.0
        %6489 = vmatpush.msra.mxu0 0.0
        %6490 = vmatpush.msra.mxu0 0.0
        %6491 = vmatpush.msra.mxu0 0.0
        %6492 = vmatpush.msra.mxu0 0.0
        %6493 = vmatpush.msra.mxu0 0.0
        %6494 = vmatpush.msra.mxu0 0.0
        %6495 = vmatpush.msra.mxu0 %v2439
        %6496 = vmatpush.msra.mxu0 %v2436
        %6497 = vmatmul.f32.gmra.mxu0 %v6479
        %v6498 = vpop.f32.mrf.mxu0
        %v6499 = vadd.f32 0.0, %v6498
        %6500 = vdwg.mxu0
        %6501 = vmatpush.msra.mxu0 0.0
        %6502 = vmatpush.msra.mxu0 0.0
        %6503 = vmatpush.msra.mxu0 0.0
        %6504 = vmatpush.msra.mxu0 0.0
        %6505 = vmatpush.msra.mxu0 0.0
        %6506 = vmatpush.msra.mxu0 0.0
        %6507 = vmatpush.msra.mxu0 0.0
        %6508 = vmatpush.msra.mxu0 0.0
        %6509 = vmatpush.msra.mxu0 0.0
        %6510 = vmatpush.msra.mxu0 0.0
        %6511 = vmatpush.msra.mxu0 0.0
        %6512 = vmatpush.msra.mxu0 0.0
        %6513 = vmatpush.msra.mxu0 0.0
        %6514 = vmatpush.msra.mxu0 0.0
        %6515 = vmatpush.msra.mxu0 %v2857
        %6516 = vmatpush.msra.mxu0 %v2854
        %6517 = vmatmul.f32.gmra.mxu0 %v6479
        %v6518 = vpop.f32.mrf.mxu0
        %v6519 = vadd.f32 0.0, %v6518
        %6520 = vdwg.mxu0
        %v6522 = vsel %vm4419, %v5187, 0
        %6524 = vmatpush.msra.mxu0 0.0
        %6525 = vmatpush.msra.mxu0 0.0
        %6526 = vmatpush.msra.mxu0 0.0
        %6527 = vmatpush.msra.mxu0 0.0
        %6528 = vmatpush.msra.mxu0 0.0
        %6529 = vmatpush.msra.mxu0 0.0
        %6530 = vmatpush.msra.mxu0 0.0
        %6531 = vmatpush.msra.mxu0 0.0
        %6532 = vmatpush.msra.mxu0 0.0
        %6533 = vmatpush.msra.mxu0 0.0
        %6534 = vmatpush.msra.mxu0 0.0
        %6535 = vmatpush.msra.mxu0 0.0
        %6536 = vmatpush.msra.mxu0 0.0
        %6537 = vmatpush.msra.mxu0 0.0
        %6538 = vmatpush.msra.mxu0 %v2445
        %6539 = vmatpush.msra.mxu0 %v2442
        %6540 = vmatmul.f32.gmra.mxu0 %v6522
        %v6541 = vpop.f32.mrf.mxu0
        %v6542 = vadd.f32 0.0, %v6541
        %6543 = vdwg.mxu0
        %6544 = vmatpush.msra.mxu0 0.0
        %6545 = vmatpush.msra.mxu0 0.0
        %6546 = vmatpush.msra.mxu0 0.0
        %6547 = vmatpush.msra.mxu0 0.0
        %6548 = vmatpush.msra.mxu0 0.0
        %6549 = vmatpush.msra.mxu0 0.0
        %6550 = vmatpush.msra.mxu0 0.0
        %6551 = vmatpush.msra.mxu0 0.0
        %6552 = vmatpush.msra.mxu0 0.0
        %6553 = vmatpush.msra.mxu0 0.0
        %6554 = vmatpush.msra.mxu0 0.0
        %6555 = vmatpush.msra.mxu0 0.0
        %6556 = vmatpush.msra.mxu0 0.0
        %6557 = vmatpush.msra.mxu0 0.0
        %6558 = vmatpush.msra.mxu0 %v2863
        %6559 = vmatpush.msra.mxu0 %v2860
        %6560 = vmatmul.f32.gmra.mxu0 %v6522
        %v6561 = vpop.f32.mrf.mxu0
        %v6562 = vadd.f32 0.0, %v6561
        %6563 = vdwg.mxu0
        %v6564 = vmul.f32 %v5209, %v2865
        %v6565 = vmul.f32 %v5229, %v2866
        %v6566 = vmul.f32 %v5252, %v2865
        %v6567 = vmul.f32 %v5272, %v2866
        %v6568 = vmul.f32 %v5295, %v2865
        %v6569 = vmul.f32 %v5315, %v2866
        %v6570 = vmul.f32 %v5338, %v2865
        %v6571 = vmul.f32 %v5358, %v2866
        %v6572 = vmul.f32 %v5381, %v2865
        %v6573 = vmul.f32 %v5401, %v2866
        %v6574 = vmul.f32 %v5424, %v2865
        %v6575 = vmul.f32 %v5444, %v2866
        %v6576 = vmul.f32 %v5467, %v2865
        %v6577 = vmul.f32 %v5487, %v2866
        %v6578 = vmul.f32 %v5510, %v2865
        %v6579 = vmul.f32 %v5530, %v2866
        %v6580 = vmul.f32 %v5553, %v2865
        %v6581 = vmul.f32 %v5573, %v2866
        %v6582 = vmul.f32 %v5596, %v2865
        %v6583 = vmul.f32 %v5616, %v2866
        %v6584 = vmul.f32 %v5639, %v2865
        %v6585 = vmul.f32 %v5659, %v2866
        %v6586 = vmul.f32 %v5682, %v2865
        %v6587 = vmul.f32 %v5702, %v2866
        %v6588 = vmul.f32 %v5725, %v2865
        %v6589 = vmul.f32 %v5745, %v2866
        %v6590 = vmul.f32 %v5768, %v2865
        %v6591 = vmul.f32 %v5788, %v2866
        %v6592 = vmul.f32 %v5811, %v2865
        %v6593 = vmul.f32 %v5831, %v2866
        %v6594 = vmul.f32 %v5854, %v2865
        %v6595 = vmul.f32 %v5874, %v2866
        %v6596 = vmul.f32 %v5897, %v2865
        %v6597 = vmul.f32 %v5917, %v2866
        %v6598 = vmul.f32 %v5940, %v2865
        %v6599 = vmul.f32 %v5960, %v2866
        %v6600 = vmul.f32 %v5983, %v2865
        %v6601 = vmul.f32 %v6003, %v2866
        %v6602 = vmul.f32 %v6026, %v2865
        %v6603 = vmul.f32 %v6046, %v2866
        %v6604 = vmul.f32 %v6069, %v2865
        %v6605 = vmul.f32 %v6089, %v2866
        %v6606 = vmul.f32 %v6112, %v2865
        %v6607 = vmul.f32 %v6132, %v2866
        %v6608 = vmul.f32 %v6155, %v2865
        %v6609 = vmul.f32 %v6175, %v2866
        %v6610 = vmul.f32 %v6198, %v2865
        %v6611 = vmul.f32 %v6218, %v2866
        %v6612 = vmul.f32 %v6241, %v2865
        %v6613 = vmul.f32 %v6261, %v2866
        %v6614 = vmul.f32 %v6284, %v2865
        %v6615 = vmul.f32 %v6304, %v2866
        %v6616 = vmul.f32 %v6327, %v2865
        %v6617 = vmul.f32 %v6347, %v2866
        %v6618 = vmul.f32 %v6370, %v2865
        %v6619 = vmul.f32 %v6390, %v2866
        %v6620 = vmul.f32 %v6413, %v2865
        %v6621 = vmul.f32 %v6433, %v2866
        %v6622 = vmul.f32 %v6456, %v2865
        %v6623 = vmul.f32 %v6476, %v2866
        %v6624 = vmul.f32 %v6499, %v2865
        %v6625 = vmul.f32 %v6519, %v2866
        %v6626 = vmul.f32 %v6542, %v2865
        %v6627 = vmul.f32 %v6562, %v2866
        %v6628 = vrot.slane %v6564, 4
        %v6629 = vadd.f32 %v6564, %v6628
        %v6630 = vrot.slane %v6629, 2
        %v6631 = vadd.f32 %v6629, %v6630
        %v6632 = vrot.slane %v6631, 1
        %v6633 = vadd.f32 %v6631, %v6632
        %v6634 = vrot.slane %v6565, 4
        %v6635 = vadd.f32 %v6565, %v6634
        %v6636 = vrot.slane %v6635, 2
        %v6637 = vadd.f32 %v6635, %v6636
        %v6638 = vrot.slane %v6637, 1
        %v6639 = vadd.f32 %v6637, %v6638
        %v6640 = vrot.slane %v6566, 4
        %v6641 = vadd.f32 %v6566, %v6640
        %v6642 = vrot.slane %v6641, 2
        %v6643 = vadd.f32 %v6641, %v6642
        %v6644 = vrot.slane %v6643, 1
        %v6645 = vadd.f32 %v6643, %v6644
        %v6646 = vrot.slane %v6567, 4
        %v6647 = vadd.f32 %v6567, %v6646
        %v6648 = vrot.slane %v6647, 2
        %v6649 = vadd.f32 %v6647, %v6648
        %v6650 = vrot.slane %v6649, 1
        %v6651 = vadd.f32 %v6649, %v6650
        %v6652 = vrot.slane %v6568, 4
        %v6653 = vadd.f32 %v6568, %v6652
        %v6654 = vrot.slane %v6653, 2
        %v6655 = vadd.f32 %v6653, %v6654
        %v6656 = vrot.slane %v6655, 1
        %v6657 = vadd.f32 %v6655, %v6656
        %v6658 = vrot.slane %v6569, 4
        %v6659 = vadd.f32 %v6569, %v6658
        %v6660 = vrot.slane %v6659, 2
        %v6661 = vadd.f32 %v6659, %v6660
        %v6662 = vrot.slane %v6661, 1
        %v6663 = vadd.f32 %v6661, %v6662
        %v6664 = vrot.slane %v6570, 4
        %v6665 = vadd.f32 %v6570, %v6664
        %v6666 = vrot.slane %v6665, 2
        %v6667 = vadd.f32 %v6665, %v6666
        %v6668 = vrot.slane %v6667, 1
        %v6669 = vadd.f32 %v6667, %v6668
        %v6670 = vrot.slane %v6571, 4
        %v6671 = vadd.f32 %v6571, %v6670
        %v6672 = vrot.slane %v6671, 2
        %v6673 = vadd.f32 %v6671, %v6672
        %v6674 = vrot.slane %v6673, 1
        %v6675 = vadd.f32 %v6673, %v6674
        %v6676 = vrot.slane %v6572, 4
        %v6677 = vadd.f32 %v6572, %v6676
        %v6678 = vrot.slane %v6677, 2
        %v6679 = vadd.f32 %v6677, %v6678
        %v6680 = vrot.slane %v6679, 1
        %v6681 = vadd.f32 %v6679, %v6680
        %v6682 = vrot.slane %v6573, 4
        %v6683 = vadd.f32 %v6573, %v6682
        %v6684 = vrot.slane %v6683, 2
        %v6685 = vadd.f32 %v6683, %v6684
        %v6686 = vrot.slane %v6685, 1
        %v6687 = vadd.f32 %v6685, %v6686
        %v6688 = vrot.slane %v6574, 4
        %v6689 = vadd.f32 %v6574, %v6688
        %v6690 = vrot.slane %v6689, 2
        %v6691 = vadd.f32 %v6689, %v6690
        %v6692 = vrot.slane %v6691, 1
        %v6693 = vadd.f32 %v6691, %v6692
        %v6694 = vrot.slane %v6575, 4
        %v6695 = vadd.f32 %v6575, %v6694
        %v6696 = vrot.slane %v6695, 2
        %v6697 = vadd.f32 %v6695, %v6696
        %v6698 = vrot.slane %v6697, 1
        %v6699 = vadd.f32 %v6697, %v6698
        %v6700 = vrot.slane %v6576, 4
        %v6701 = vadd.f32 %v6576, %v6700
        %v6702 = vrot.slane %v6701, 2
        %v6703 = vadd.f32 %v6701, %v6702
        %v6704 = vrot.slane %v6703, 1
        %v6705 = vadd.f32 %v6703, %v6704
        %v6706 = vrot.slane %v6577, 4
        %v6707 = vadd.f32 %v6577, %v6706
        %v6708 = vrot.slane %v6707, 2
        %v6709 = vadd.f32 %v6707, %v6708
        %v6710 = vrot.slane %v6709, 1
        %v6711 = vadd.f32 %v6709, %v6710
        %v6712 = vrot.slane %v6578, 4
        %v6713 = vadd.f32 %v6578, %v6712
        %v6714 = vrot.slane %v6713, 2
        %v6715 = vadd.f32 %v6713, %v6714
        %v6716 = vrot.slane %v6715, 1
        %v6717 = vadd.f32 %v6715, %v6716
        %v6718 = vrot.slane %v6579, 4
        %v6719 = vadd.f32 %v6579, %v6718
        %v6720 = vrot.slane %v6719, 2
        %v6721 = vadd.f32 %v6719, %v6720
        %v6722 = vrot.slane %v6721, 1
        %v6723 = vadd.f32 %v6721, %v6722
        %v6724 = vrot.slane %v6580, 4
        %v6725 = vadd.f32 %v6580, %v6724
        %v6726 = vrot.slane %v6725, 2
        %v6727 = vadd.f32 %v6725, %v6726
        %v6728 = vrot.slane %v6727, 1
        %v6729 = vadd.f32 %v6727, %v6728
        %v6730 = vrot.slane %v6581, 4
        %v6731 = vadd.f32 %v6581, %v6730
        %v6732 = vrot.slane %v6731, 2
        %v6733 = vadd.f32 %v6731, %v6732
        %v6734 = vrot.slane %v6733, 1
        %v6735 = vadd.f32 %v6733, %v6734
        %v6736 = vrot.slane %v6582, 4
        %v6737 = vadd.f32 %v6582, %v6736
        %v6738 = vrot.slane %v6737, 2
        %v6739 = vadd.f32 %v6737, %v6738
        %v6740 = vrot.slane %v6739, 1
        %v6741 = vadd.f32 %v6739, %v6740
        %v6742 = vrot.slane %v6583, 4
        %v6743 = vadd.f32 %v6583, %v6742
        %v6744 = vrot.slane %v6743, 2
        %v6745 = vadd.f32 %v6743, %v6744
        %v6746 = vrot.slane %v6745, 1
        %v6747 = vadd.f32 %v6745, %v6746
        %v6748 = vrot.slane %v6584, 4
        %v6749 = vadd.f32 %v6584, %v6748
        %v6750 = vrot.slane %v6749, 2
        %v6751 = vadd.f32 %v6749, %v6750
        %v6752 = vrot.slane %v6751, 1
        %v6753 = vadd.f32 %v6751, %v6752
        %v6754 = vrot.slane %v6585, 4
        %v6755 = vadd.f32 %v6585, %v6754
        %v6756 = vrot.slane %v6755, 2
        %v6757 = vadd.f32 %v6755, %v6756
        %v6758 = vrot.slane %v6757, 1
        %v6759 = vadd.f32 %v6757, %v6758
        %v6760 = vrot.slane %v6586, 4
        %v6761 = vadd.f32 %v6586, %v6760
        %v6762 = vrot.slane %v6761, 2
        %v6763 = vadd.f32 %v6761, %v6762
        %v6764 = vrot.slane %v6763, 1
        %v6765 = vadd.f32 %v6763, %v6764
        %v6766 = vrot.slane %v6587, 4
        %v6767 = vadd.f32 %v6587, %v6766
        %v6768 = vrot.slane %v6767, 2
        %v6769 = vadd.f32 %v6767, %v6768
        %v6770 = vrot.slane %v6769, 1
        %v6771 = vadd.f32 %v6769, %v6770
        %v6772 = vrot.slane %v6588, 4
        %v6773 = vadd.f32 %v6588, %v6772
        %v6774 = vrot.slane %v6773, 2
        %v6775 = vadd.f32 %v6773, %v6774
        %v6776 = vrot.slane %v6775, 1
        %v6777 = vadd.f32 %v6775, %v6776
        %v6778 = vrot.slane %v6589, 4
        %v6779 = vadd.f32 %v6589, %v6778
        %v6780 = vrot.slane %v6779, 2
        %v6781 = vadd.f32 %v6779, %v6780
        %v6782 = vrot.slane %v6781, 1
        %v6783 = vadd.f32 %v6781, %v6782
        %v6784 = vrot.slane %v6590, 4
        %v6785 = vadd.f32 %v6590, %v6784
        %v6786 = vrot.slane %v6785, 2
        %v6787 = vadd.f32 %v6785, %v6786
        %v6788 = vrot.slane %v6787, 1
        %v6789 = vadd.f32 %v6787, %v6788
        %v6790 = vrot.slane %v6591, 4
        %v6791 = vadd.f32 %v6591, %v6790
        %v6792 = vrot.slane %v6791, 2
        %v6793 = vadd.f32 %v6791, %v6792
        %v6794 = vrot.slane %v6793, 1
        %v6795 = vadd.f32 %v6793, %v6794
        %v6796 = vrot.slane %v6592, 4
        %v6797 = vadd.f32 %v6592, %v6796
        %v6798 = vrot.slane %v6797, 2
        %v6799 = vadd.f32 %v6797, %v6798
        %v6800 = vrot.slane %v6799, 1
        %v6801 = vadd.f32 %v6799, %v6800
        %v6802 = vrot.slane %v6593, 4
        %v6803 = vadd.f32 %v6593, %v6802
        %v6804 = vrot.slane %v6803, 2
        %v6805 = vadd.f32 %v6803, %v6804
        %v6806 = vrot.slane %v6805, 1
        %v6807 = vadd.f32 %v6805, %v6806
        %v6808 = vrot.slane %v6594, 4
        %v6809 = vadd.f32 %v6594, %v6808
        %v6810 = vrot.slane %v6809, 2
        %v6811 = vadd.f32 %v6809, %v6810
        %v6812 = vrot.slane %v6811, 1
        %v6813 = vadd.f32 %v6811, %v6812
        %v6814 = vrot.slane %v6595, 4
        %v6815 = vadd.f32 %v6595, %v6814
        %v6816 = vrot.slane %v6815, 2
        %v6817 = vadd.f32 %v6815, %v6816
        %v6818 = vrot.slane %v6817, 1
        %v6819 = vadd.f32 %v6817, %v6818
        %v6820 = vrot.slane %v6596, 4
        %v6821 = vadd.f32 %v6596, %v6820
        %v6822 = vrot.slane %v6821, 2
        %v6823 = vadd.f32 %v6821, %v6822
        %v6824 = vrot.slane %v6823, 1
        %v6825 = vadd.f32 %v6823, %v6824
        %v6826 = vrot.slane %v6597, 4
        %v6827 = vadd.f32 %v6597, %v6826
        %v6828 = vrot.slane %v6827, 2
        %v6829 = vadd.f32 %v6827, %v6828
        %v6830 = vrot.slane %v6829, 1
        %v6831 = vadd.f32 %v6829, %v6830
        %v6832 = vrot.slane %v6598, 4
        %v6833 = vadd.f32 %v6598, %v6832
        %v6834 = vrot.slane %v6833, 2
        %v6835 = vadd.f32 %v6833, %v6834
        %v6836 = vrot.slane %v6835, 1
        %v6837 = vadd.f32 %v6835, %v6836
        %v6838 = vrot.slane %v6599, 4
        %v6839 = vadd.f32 %v6599, %v6838
        %v6840 = vrot.slane %v6839, 2
        %v6841 = vadd.f32 %v6839, %v6840
        %v6842 = vrot.slane %v6841, 1
        %v6843 = vadd.f32 %v6841, %v6842
        %v6844 = vrot.slane %v6600, 4
        %v6845 = vadd.f32 %v6600, %v6844
        %v6846 = vrot.slane %v6845, 2
        %v6847 = vadd.f32 %v6845, %v6846
        %v6848 = vrot.slane %v6847, 1
        %v6849 = vadd.f32 %v6847, %v6848
        %v6850 = vrot.slane %v6601, 4
        %v6851 = vadd.f32 %v6601, %v6850
        %v6852 = vrot.slane %v6851, 2
        %v6853 = vadd.f32 %v6851, %v6852
        %v6854 = vrot.slane %v6853, 1
        %v6855 = vadd.f32 %v6853, %v6854
        %v6856 = vrot.slane %v6602, 4
        %v6857 = vadd.f32 %v6602, %v6856
        %v6858 = vrot.slane %v6857, 2
        %v6859 = vadd.f32 %v6857, %v6858
        %v6860 = vrot.slane %v6859, 1
        %v6861 = vadd.f32 %v6859, %v6860
        %v6862 = vrot.slane %v6603, 4
        %v6863 = vadd.f32 %v6603, %v6862
        %v6864 = vrot.slane %v6863, 2
        %v6865 = vadd.f32 %v6863, %v6864
        %v6866 = vrot.slane %v6865, 1
        %v6867 = vadd.f32 %v6865, %v6866
        %v6868 = vrot.slane %v6604, 4
        %v6869 = vadd.f32 %v6604, %v6868
        %v6870 = vrot.slane %v6869, 2
        %v6871 = vadd.f32 %v6869, %v6870
        %v6872 = vrot.slane %v6871, 1
        %v6873 = vadd.f32 %v6871, %v6872
        %v6874 = vrot.slane %v6605, 4
        %v6875 = vadd.f32 %v6605, %v6874
        %v6876 = vrot.slane %v6875, 2
        %v6877 = vadd.f32 %v6875, %v6876
        %v6878 = vrot.slane %v6877, 1
        %v6879 = vadd.f32 %v6877, %v6878
        %v6880 = vrot.slane %v6606, 4
        %v6881 = vadd.f32 %v6606, %v6880
        %v6882 = vrot.slane %v6881, 2
        %v6883 = vadd.f32 %v6881, %v6882
        %v6884 = vrot.slane %v6883, 1
        %v6885 = vadd.f32 %v6883, %v6884
        %v6886 = vrot.slane %v6607, 4
        %v6887 = vadd.f32 %v6607, %v6886
        %v6888 = vrot.slane %v6887, 2
        %v6889 = vadd.f32 %v6887, %v6888
        %v6890 = vrot.slane %v6889, 1
        %v6891 = vadd.f32 %v6889, %v6890
        %v6892 = vrot.slane %v6608, 4
        %v6893 = vadd.f32 %v6608, %v6892
        %v6894 = vrot.slane %v6893, 2
        %v6895 = vadd.f32 %v6893, %v6894
        %v6896 = vrot.slane %v6895, 1
        %v6897 = vadd.f32 %v6895, %v6896
        %v6898 = vrot.slane %v6609, 4
        %v6899 = vadd.f32 %v6609, %v6898
        %v6900 = vrot.slane %v6899, 2
        %v6901 = vadd.f32 %v6899, %v6900
        %v6902 = vrot.slane %v6901, 1
        %v6903 = vadd.f32 %v6901, %v6902
        %v6904 = vrot.slane %v6610, 4
        %v6905 = vadd.f32 %v6610, %v6904
        %v6906 = vrot.slane %v6905, 2
        %v6907 = vadd.f32 %v6905, %v6906
        %v6908 = vrot.slane %v6907, 1
        %v6909 = vadd.f32 %v6907, %v6908
        %v6910 = vrot.slane %v6611, 4
        %v6911 = vadd.f32 %v6611, %v6910
        %v6912 = vrot.slane %v6911, 2
        %v6913 = vadd.f32 %v6911, %v6912
        %v6914 = vrot.slane %v6913, 1
        %v6915 = vadd.f32 %v6913, %v6914
        %v6916 = vrot.slane %v6612, 4
        %v6917 = vadd.f32 %v6612, %v6916
        %v6918 = vrot.slane %v6917, 2
        %v6919 = vadd.f32 %v6917, %v6918
        %v6920 = vrot.slane %v6919, 1
        %v6921 = vadd.f32 %v6919, %v6920
        %v6922 = vrot.slane %v6613, 4
        %v6923 = vadd.f32 %v6613, %v6922
        %v6924 = vrot.slane %v6923, 2
        %v6925 = vadd.f32 %v6923, %v6924
        %v6926 = vrot.slane %v6925, 1
        %v6927 = vadd.f32 %v6925, %v6926
        %v6928 = vrot.slane %v6614, 4
        %v6929 = vadd.f32 %v6614, %v6928
        %v6930 = vrot.slane %v6929, 2
        %v6931 = vadd.f32 %v6929, %v6930
        %v6932 = vrot.slane %v6931, 1
        %v6933 = vadd.f32 %v6931, %v6932
        %v6934 = vrot.slane %v6615, 4
        %v6935 = vadd.f32 %v6615, %v6934
        %v6936 = vrot.slane %v6935, 2
        %v6937 = vadd.f32 %v6935, %v6936
        %v6938 = vrot.slane %v6937, 1
        %v6939 = vadd.f32 %v6937, %v6938
        %v6940 = vrot.slane %v6616, 4
        %v6941 = vadd.f32 %v6616, %v6940
        %v6942 = vrot.slane %v6941, 2
        %v6943 = vadd.f32 %v6941, %v6942
        %v6944 = vrot.slane %v6943, 1
        %v6945 = vadd.f32 %v6943, %v6944
        %v6946 = vrot.slane %v6617, 4
        %v6947 = vadd.f32 %v6617, %v6946
        %v6948 = vrot.slane %v6947, 2
        %v6949 = vadd.f32 %v6947, %v6948
        %v6950 = vrot.slane %v6949, 1
        %v6951 = vadd.f32 %v6949, %v6950
        %v6952 = vrot.slane %v6618, 4
        %v6953 = vadd.f32 %v6618, %v6952
        %v6954 = vrot.slane %v6953, 2
        %v6955 = vadd.f32 %v6953, %v6954
        %v6956 = vrot.slane %v6955, 1
        %v6957 = vadd.f32 %v6955, %v6956
        %v6958 = vrot.slane %v6619, 4
        %v6959 = vadd.f32 %v6619, %v6958
        %v6960 = vrot.slane %v6959, 2
        %v6961 = vadd.f32 %v6959, %v6960
        %v6962 = vrot.slane %v6961, 1
        %v6963 = vadd.f32 %v6961, %v6962
        %v6964 = vrot.slane %v6620, 4
        %v6965 = vadd.f32 %v6620, %v6964
        %v6966 = vrot.slane %v6965, 2
        %v6967 = vadd.f32 %v6965, %v6966
        %v6968 = vrot.slane %v6967, 1
        %v6969 = vadd.f32 %v6967, %v6968
        %v6970 = vrot.slane %v6621, 4
        %v6971 = vadd.f32 %v6621, %v6970
        %v6972 = vrot.slane %v6971, 2
        %v6973 = vadd.f32 %v6971, %v6972
        %v6974 = vrot.slane %v6973, 1
        %v6975 = vadd.f32 %v6973, %v6974
        %v6976 = vrot.slane %v6622, 4
        %v6977 = vadd.f32 %v6622, %v6976
        %v6978 = vrot.slane %v6977, 2
        %v6979 = vadd.f32 %v6977, %v6978
        %v6980 = vrot.slane %v6979, 1
        %v6981 = vadd.f32 %v6979, %v6980
        %v6982 = vrot.slane %v6623, 4
        %v6983 = vadd.f32 %v6623, %v6982
        %v6984 = vrot.slane %v6983, 2
        %v6985 = vadd.f32 %v6983, %v6984
        %v6986 = vrot.slane %v6985, 1
        %v6987 = vadd.f32 %v6985, %v6986
        %v6988 = vrot.slane %v6624, 4
        %v6989 = vadd.f32 %v6624, %v6988
        %v6990 = vrot.slane %v6989, 2
        %v6991 = vadd.f32 %v6989, %v6990
        %v6992 = vrot.slane %v6991, 1
        %v6993 = vadd.f32 %v6991, %v6992
        %v6994 = vrot.slane %v6625, 4
        %v6995 = vadd.f32 %v6625, %v6994
        %v6996 = vrot.slane %v6995, 2
        %v6997 = vadd.f32 %v6995, %v6996
        %v6998 = vrot.slane %v6997, 1
        %v6999 = vadd.f32 %v6997, %v6998
        %v7000 = vrot.slane %v6626, 4
        %v7001 = vadd.f32 %v6626, %v7000
        %v7002 = vrot.slane %v7001, 2
        %v7003 = vadd.f32 %v7001, %v7002
        %v7004 = vrot.slane %v7003, 1
        %v7005 = vadd.f32 %v7003, %v7004
        %v7006 = vrot.slane %v6627, 4
        %v7007 = vadd.f32 %v6627, %v7006
        %v7008 = vrot.slane %v7007, 2
        %v7009 = vadd.f32 %v7007, %v7008
        %v7010 = vrot.slane %v7009, 1
        %v7011 = vadd.f32 %v7009, %v7010
        %v7012 = vld [vmem:[#allocation13] sm:$0xff]
        %v7013 = vld [vmem:[#allocation13 + $0x8] sm:$0xff]
        %v7014 = vld [vmem:[#allocation13 + $0x10] sm:$0xff]
        %v7015 = vld [vmem:[#allocation13 + $0x18] sm:$0xff]
        %v7016 = vld [vmem:[#allocation13 + $0x20] sm:$0xff]
        %v7017 = vld [vmem:[#allocation13 + $0x28] sm:$0xff]
        %v7018 = vld [vmem:[#allocation13 + $0x30] sm:$0xff]
        %v7019 = vld [vmem:[#allocation13 + $0x38] sm:$0xff]
        %v7020 = vld [vmem:[#allocation13 + $0x40] sm:$0xff]
        %v7021 = vld [vmem:[#allocation13 + $0x48] sm:$0xff]
        %v7022 = vld [vmem:[#allocation13 + $0x50] sm:$0xff]
        %v7023 = vld [vmem:[#allocation13 + $0x58] sm:$0xff]
        %v7024 = vld [vmem:[#allocation13 + $0x60] sm:$0xff]
        %v7025 = vld [vmem:[#allocation13 + $0x68] sm:$0xff]
        %v7026 = vld [vmem:[#allocation13 + $0x70] sm:$0xff]
        %v7027 = vld [vmem:[#allocation13 + $0x78] sm:$0xff]
        %v7028 = vld [vmem:[#allocation13 + $0x80] sm:$0xff]
        %v7029 = vld [vmem:[#allocation13 + $0x88] sm:$0xff]
        %v7030 = vld [vmem:[#allocation13 + $0x90] sm:$0xff]
        %v7031 = vld [vmem:[#allocation13 + $0x98] sm:$0xff]
        %v7032 = vld [vmem:[#allocation13 + $0xa0] sm:$0xff]
        %v7033 = vld [vmem:[#allocation13 + $0xa8] sm:$0xff]
        %v7034 = vld [vmem:[#allocation13 + $0xb0] sm:$0xff]
        %v7035 = vld [vmem:[#allocation13 + $0xb8] sm:$0xff]
        %v7036 = vld [vmem:[#allocation13 + $0xc0] sm:$0xff]
        %v7037 = vld [vmem:[#allocation13 + $0xc8] sm:$0xff]
        %v7038 = vld [vmem:[#allocation13 + $0xd0] sm:$0xff]
        %v7039 = vld [vmem:[#allocation13 + $0xd8] sm:$0xff]
        %v7040 = vld [vmem:[#allocation13 + $0xe0] sm:$0xff]
        %v7041 = vld [vmem:[#allocation13 + $0xe8] sm:$0xff]
        %v7042 = vld [vmem:[#allocation13 + $0xf0] sm:$0xff]
        %v7043 = vld [vmem:[#allocation13 + $0xf8] sm:$0xff]
        %v7044 = vld [vmem:[#allocation13 + $0x100] sm:$0xff]
        %v7045 = vld [vmem:[#allocation13 + $0x108] sm:$0xff]
        %v7046 = vld [vmem:[#allocation13 + $0x110] sm:$0xff]
        %v7047 = vld [vmem:[#allocation13 + $0x118] sm:$0xff]
        %v7048 = vld [vmem:[#allocation13 + $0x120] sm:$0xff]
        %v7049 = vld [vmem:[#allocation13 + $0x128] sm:$0xff]
        %v7050 = vld [vmem:[#allocation13 + $0x130] sm:$0xff]
        %v7051 = vld [vmem:[#allocation13 + $0x138] sm:$0xff]
        %v7052 = vld [vmem:[#allocation13 + $0x140] sm:$0xff]
        %v7053 = vld [vmem:[#allocation13 + $0x148] sm:$0xff]
        %v7054 = vld [vmem:[#allocation13 + $0x150] sm:$0xff]
        %v7055 = vld [vmem:[#allocation13 + $0x158] sm:$0xff]
        %v7056 = vld [vmem:[#allocation13 + $0x160] sm:$0xff]
        %v7057 = vld [vmem:[#allocation13 + $0x168] sm:$0xff]
        %v7058 = vld [vmem:[#allocation13 + $0x170] sm:$0xff]
        %v7059 = vld [vmem:[#allocation13 + $0x178] sm:$0xff]
        %v7060 = vld [vmem:[#allocation13 + $0x180] sm:$0xff]
        %v7061 = vld [vmem:[#allocation13 + $0x188] sm:$0xff]
        %v7062 = vld [vmem:[#allocation13 + $0x190] sm:$0xff]
        %v7063 = vld [vmem:[#allocation13 + $0x198] sm:$0xff]
        %v7064 = vld [vmem:[#allocation13 + $0x1a0] sm:$0xff]
        %v7065 = vld [vmem:[#allocation13 + $0x1a8] sm:$0xff]
        %v7066 = vld [vmem:[#allocation13 + $0x1b0] sm:$0xff]
        %v7067 = vld [vmem:[#allocation13 + $0x1b8] sm:$0xff]
        %v7068 = vld [vmem:[#allocation13 + $0x1c0] sm:$0xff]
        %v7069 = vld [vmem:[#allocation13 + $0x1c8] sm:$0xff]
        %v7070 = vld [vmem:[#allocation13 + $0x1d0] sm:$0xff]
        %v7071 = vld [vmem:[#allocation13 + $0x1d8] sm:$0xff]
        %v7072 = vld [vmem:[#allocation13 + $0x1e0] sm:$0xff]
        %v7073 = vld [vmem:[#allocation13 + $0x1e8] sm:$0xff]
        %v7074 = vld [vmem:[#allocation13 + $0x1f0] sm:$0xff]
        %v7075 = vld [vmem:[#allocation13 + $0x1f8] sm:$0xff]
        %v7076 = vld [vmem:[%s10] sm:$0x3]
        %v7078 = vperm.slane %v7076, 0
        %v7079 = vperm.slane %v7076, 1
        %v7146 = vsel %vm2881, %v6645, %v6633
        %v7147 = vsel %vm2884, %v6657, %v7146
        %v7148 = vsel %vm2887, %v6669, %v7147
        %v7149 = vsel %vm2890, %v6681, %v7148
        %v7150 = vsel %vm2893, %v6693, %v7149
        %v7151 = vsel %vm2896, %v6705, %v7150
        %vm7152 = vcmask 1047559
        %v7153 = vsel %vm7152, %v6717, %v7151
        %v7154 = vsel %vm2881, %v6651, %v6639
        %v7155 = vsel %vm2884, %v6663, %v7154
        %v7156 = vsel %vm2887, %v6675, %v7155
        %v7157 = vsel %vm2890, %v6687, %v7156
        %v7158 = vsel %vm2893, %v6699, %v7157
        %v7159 = vsel %vm2896, %v6711, %v7158
        %v7160 = vsel %vm7152, %v6723, %v7159
        %v7161 = vsel %vm2881, %v6741, %v6729
        %v7162 = vsel %vm2884, %v6753, %v7161
        %v7163 = vsel %vm2887, %v6765, %v7162
        %v7164 = vsel %vm2890, %v6777, %v7163
        %v7165 = vsel %vm2893, %v6789, %v7164
        %v7166 = vsel %vm2896, %v6801, %v7165
        %v7167 = vsel %vm7152, %v6813, %v7166
        %v7168 = vsel %vm2881, %v6747, %v6735
        %v7169 = vsel %vm2884, %v6759, %v7168
        %v7170 = vsel %vm2887, %v6771, %v7169
        %v7171 = vsel %vm2890, %v6783, %v7170
        %v7172 = vsel %vm2893, %v6795, %v7171
        %v7173 = vsel %vm2896, %v6807, %v7172
        %v7174 = vsel %vm7152, %v6819, %v7173
        %v7175 = vsel %vm2881, %v6837, %v6825
        %v7176 = vsel %vm2884, %v6849, %v7175
        %v7177 = vsel %vm2887, %v6861, %v7176
        %v7178 = vsel %vm2890, %v6873, %v7177
        %v7179 = vsel %vm2893, %v6885, %v7178
        %v7180 = vsel %vm2896, %v6897, %v7179
        %v7181 = vsel %vm7152, %v6909, %v7180
        %v7182 = vsel %vm2881, %v6843, %v6831
        %v7183 = vsel %vm2884, %v6855, %v7182
        %v7184 = vsel %vm2887, %v6867, %v7183
        %v7185 = vsel %vm2890, %v6879, %v7184
        %v7186 = vsel %vm2893, %v6891, %v7185
        %v7187 = vsel %vm2896, %v6903, %v7186
        %v7188 = vsel %vm7152, %v6915, %v7187
        %v7189 = vsel %vm2881, %v6933, %v6921
        %v7190 = vsel %vm2884, %v6945, %v7189
        %v7191 = vsel %vm2887, %v6957, %v7190
        %v7192 = vsel %vm2890, %v6969, %v7191
        %v7193 = vsel %vm2893, %v6981, %v7192
        %v7194 = vsel %vm2896, %v6993, %v7193
        %v7195 = vsel %vm7152, %v7005, %v7194
        %v7196 = vsel %vm2881, %v6939, %v6927
        %v7197 = vsel %vm2884, %v6951, %v7196
        %v7198 = vsel %vm2887, %v6963, %v7197
        %v7199 = vsel %vm2890, %v6975, %v7198
        %v7200 = vsel %vm2893, %v6987, %v7199
        %v7201 = vsel %vm2896, %v6999, %v7200
        %v7202 = vsel %vm7152, %v7011, %v7201
        %7211 = vmatpush.msra.mxu0 %v7042
        %7212 = vmatpush.msra.mxu0 %v7040
        %7213 = vmatpush.msra.mxu0 %v7038
        %7214 = vmatpush.msra.mxu0 %v7036
        %7215 = vmatpush.msra.mxu0 %v7034
        %7216 = vmatpush.msra.mxu0 %v7032
        %7217 = vmatpush.msra.mxu0 %v7030
        %7218 = vmatpush.msra.mxu0 %v7028
        %7219 = vmatpush.msra.mxu0 %v7026
        %7220 = vmatpush.msra.mxu0 %v7024
        %7221 = vmatpush.msra.mxu0 %v7022
        %7222 = vmatpush.msra.mxu0 %v7020
        %7223 = vmatpush.msra.mxu0 %v7018
        %7224 = vmatpush.msra.mxu0 %v7016
        %7225 = vmatpush.msra.mxu0 %v7014
        %7226 = vmatpush.msra.mxu0 %v7012
        %7227 = vmatmul.f32.gmra.mxu0 %v7153
        %v7228 = vpop.f32.mrf.mxu0
        %v7229 = vadd.f32 %v7078, %v7228
        %7230 = vmatmul.f32.gmra.mxu0 %v7167
        %v7231 = vpop.f32.mrf.mxu0
        %v7232 = vadd.f32 %v7078, %v7231
        %7233 = vmatmul.f32.gmra.mxu0 %v7181
        %v7234 = vpop.f32.mrf.mxu0
        %v7235 = vadd.f32 %v7078, %v7234
        %7236 = vmatmul.f32.gmra.mxu0 %v7195
        %v7237 = vpop.f32.mrf.mxu0
        %v7238 = vadd.f32 %v7078, %v7237
        %7239 = vdwg.mxu0
        %7240 = vmatpush.msra.mxu0 %v7074
        %7241 = vmatpush.msra.mxu0 %v7072
        %7242 = vmatpush.msra.mxu0 %v7070
        %7243 = vmatpush.msra.mxu0 %v7068
        %7244 = vmatpush.msra.mxu0 %v7066
        %7245 = vmatpush.msra.mxu0 %v7064
        %7246 = vmatpush.msra.mxu0 %v7062
        %7247 = vmatpush.msra.mxu0 %v7060
        %7248 = vmatpush.msra.mxu0 %v7058
        %7249 = vmatpush.msra.mxu0 %v7056
        %7250 = vmatpush.msra.mxu0 %v7054
        %7251 = vmatpush.msra.mxu0 %v7052
        %7252 = vmatpush.msra.mxu0 %v7050
        %7253 = vmatpush.msra.mxu0 %v7048
        %7254 = vmatpush.msra.mxu0 %v7046
        %7255 = vmatpush.msra.mxu0 %v7044
        %7256 = vmatmul.f32.gmra.mxu0 %v7160
        %v7257 = vpop.f32.mrf.mxu0
        %v7258 = vadd.f32 %v7229, %v7257
        %7259 = vmatmul.f32.gmra.mxu0 %v7174
        %v7260 = vpop.f32.mrf.mxu0
        %v7261 = vadd.f32 %v7232, %v7260
        %7262 = vmatmul.f32.gmra.mxu0 %v7188
        %v7263 = vpop.f32.mrf.mxu0
        %v7264 = vadd.f32 %v7235, %v7263
        %7265 = vmatmul.f32.gmra.mxu0 %v7202
        %v7266 = vpop.f32.mrf.mxu0
        %v7267 = vadd.f32 %v7238, %v7266
        %7268 = vdwg.mxu0
        %7269 = vmatpush.msra.mxu0 %v7043
        %7270 = vmatpush.msra.mxu0 %v7041
        %7271 = vmatpush.msra.mxu0 %v7039
        %7272 = vmatpush.msra.mxu0 %v7037
        %7273 = vmatpush.msra.mxu0 %v7035
        %7274 = vmatpush.msra.mxu0 %v7033
        %7275 = vmatpush.msra.mxu0 %v7031
        %7276 = vmatpush.msra.mxu0 %v7029
        %7277 = vmatpush.msra.mxu0 %v7027
        %7278 = vmatpush.msra.mxu0 %v7025
        %7279 = vmatpush.msra.mxu0 %v7023
        %7280 = vmatpush.msra.mxu0 %v7021
        %7281 = vmatpush.msra.mxu0 %v7019
        %7282 = vmatpush.msra.mxu0 %v7017
        %7283 = vmatpush.msra.mxu0 %v7015
        %7284 = vmatpush.msra.mxu0 %v7013
        %7285 = vmatmul.f32.gmra.mxu0 %v7153
        %v7286 = vpop.f32.mrf.mxu0
        %v7287 = vadd.f32 %v7079, %v7286
        %7288 = vmatmul.f32.gmra.mxu0 %v7167
        %v7289 = vpop.f32.mrf.mxu0
        %v7290 = vadd.f32 %v7079, %v7289
        %7291 = vmatmul.f32.gmra.mxu0 %v7181
        %v7292 = vpop.f32.mrf.mxu0
        %v7293 = vadd.f32 %v7079, %v7292
        %7294 = vmatmul.f32.gmra.mxu0 %v7195
        %v7295 = vpop.f32.mrf.mxu0
        %v7296 = vadd.f32 %v7079, %v7295
        %7297 = vdwg.mxu0
        %7298 = vmatpush.msra.mxu0 %v7075
        %7299 = vmatpush.msra.mxu0 %v7073
        %7300 = vmatpush.msra.mxu0 %v7071
        %7301 = vmatpush.msra.mxu0 %v7069
        %7302 = vmatpush.msra.mxu0 %v7067
        %7303 = vmatpush.msra.mxu0 %v7065
        %7304 = vmatpush.msra.mxu0 %v7063
        %7305 = vmatpush.msra.mxu0 %v7061
        %7306 = vmatpush.msra.mxu0 %v7059
        %7307 = vmatpush.msra.mxu0 %v7057
        %7308 = vmatpush.msra.mxu0 %v7055
        %7309 = vmatpush.msra.mxu0 %v7053
        %7310 = vmatpush.msra.mxu0 %v7051
        %7311 = vmatpush.msra.mxu0 %v7049
        %7312 = vmatpush.msra.mxu0 %v7047
        %7313 = vmatpush.msra.mxu0 %v7045
        %7314 = vmatmul.f32.gmra.mxu0 %v7160
        %v7315 = vpop.f32.mrf.mxu0
        %v7316 = vadd.f32 %v7287, %v7315
        %7317 = vmatmul.f32.gmra.mxu0 %v7174
        %v7318 = vpop.f32.mrf.mxu0
        %v7319 = vadd.f32 %v7290, %v7318
        %7320 = vmatmul.f32.gmra.mxu0 %v7188
        %v7321 = vpop.f32.mrf.mxu0
        %v7322 = vadd.f32 %v7293, %v7321
        %7323 = vmatmul.f32.gmra.mxu0 %v7202
        %v7324 = vpop.f32.mrf.mxu0
        %v7325 = vadd.f32 %v7296, %v7324
        %7326 = vdwg.mxu0
        %7327 = vst [vmem:[%s598] sm:$0xff] %v7258
        %7328 = vst [vmem:[%s598 + $0x8] sm:$0xff] %v7316
        %7329 = vst [vmem:[%s598 + $0x10] sm:$0xff] %v7261
        %7330 = vst [vmem:[%s598 + $0x18] sm:$0xff] %v7319
        %7331 = vst [vmem:[%s598 + $0x20] sm:$0xff] %v7264
        %7332 = vst [vmem:[%s598 + $0x28] sm:$0xff] %v7322
        %7333 = vst [vmem:[%s598 + $0x30] sm:$0xff] %v7267
        %7334 = vst [vmem:[%s598 + $0x38] sm:$0xff] %v7325
        %s7335 = sand.u32 %s310, 1
        %s7336 = scalar_lea.sflag [#allocation4], %s7335
        %s7337 = sand.u32 %s310, 1
        %s7338 = smul.addr %s7337, 64
        %s7339 = scalar_lea.vmem [#allocation16], %s7338
        // Predicated region
        $region101: #{tpu_custom_call.1} parent=67 // pred_check
          %p7340 = pneg %p320
        $region102: #{tpu_custom_call.1} parent=67 // pred_check_branch
          %7342 = sbr.rel (%p7340) target = $region104
        $region103: #{tpu_custom_call.1} parent=67 // pred_region
          %s7343 = smul.u32 4, %s35
          %7345 = vsyncadd %s7336, 0
          %s7346 = smul.addr %s7343, 2
          %s7347 = smul.addr %s7346, 8
          %s7348 = scalar_lea.hbm %s12, %s7347
          %s7349 = sshll.u32 %s7339, 4
          %s7350 = int_to_ptr.vmem [resolvable:$true] %s7349
          %s7351 = sshll.u32 %s7348, 4
          %s7352 = int_to_ptr.hbm [resolvable:$true] %s7351
          %7357 = dma.vmem_to_hbm [thread:$0]  %s7350, 1024, %s7352, %s7336, 256, 256, 16
        $region104: #{tpu_custom_call.1} parent=67 // pred_fallthru
          _
      $region68: #{tpu_custom_call.1} parent=5 // pred_fallthru
        _
      %p7358 = scmp.le.s32.totalorder 2, %s30
      // Predicated region
      $region105: #{tpu_custom_call.1} parent=5 // pred_check
        %p7359 = pneg %p7358
      $region106: #{tpu_custom_call.1} parent=5 // pred_check_branch
        %7361 = sbr.rel (%p7359) target = $region108
      $region107: #{tpu_custom_call.1} parent=5 // pred_region
        %s7362 = ssub.s32 %s30, 2
        // Predicated region
        $region109: #{tpu_custom_call.1} parent=107 // pred_check
          %p7363 = pneg %p326
        $region110: #{tpu_custom_call.1} parent=107 // pred_check_branch
          %7365 = sbr.rel (%p7363) target = $region112
        $region111: #{tpu_custom_call.1} parent=107 // pred_region
          %s7366 = sand.u32 %s311, 1
          %s7367 = scalar_lea.sflag [#allocation4], %s7366
          %s7368 = sand.u32 %s311, 1
          %s7369 = smul.addr %s7368, 64
          %s7370 = scalar_lea.vmem [#allocation16], %s7369
          %7372 = dma.done %s7367, 1024
        $region112: #{tpu_custom_call.1} parent=107 // pred_fallthru
          _
      $region108: #{tpu_custom_call.1} parent=5 // pred_fallthru
        _
    $region6: #{tpu_custom_call.1} parent=1 // loop_footer
      %s34 = sadd.s32 1, %s30
    $region7: #{tpu_custom_call.1} parent=1 // loop_footer_branch
      %29 = sbr.rel target = $region3
    $region8: #{tpu_custom_call.1} parent=1 // loop_exit
      _
    %7373 = vsyncpa [#allocation3], 1
    %s7374 = scalar_lea.sflag [#allocation3], 1
    %7375 = vsyncpa %s7374, 1
    %7376 = vsyncpa [#allocation6], 1
    %s7377 = scalar_lea.sflag [#allocation6], 1
    %7378 = vsyncpa %s7377, 1
    %7379 = vsyncpa [#allocation9], 1
    %7380 = vsyncpa [#allocation12], 1
    %7381 = vsyncpa [#allocation15], 1
    %7382 = vsyncpa [#allocation4], 1
    %s7383 = scalar_lea.sflag [#allocation4], 1
    %7384 = vsyncpa %s7383, 1

</llo_original>
